<compile_context>
chip_gen: v7x
topology: tpu7x:2x2x1
jax: 0.10.0
libtpu: 0.0.40
codegen_flags: <defaults>
</compile_context>

<pallas_src>
import jax
import jax.numpy as jnp
import numpy as np
from jax.experimental import pallas as pl
from jax.experimental.pallas import tpu as pltpu

# ---------------- static model config (nnvit defaults, small batch) ----------
DIM = 128          # nnvit Dim
TOKEN_DIM = 32     # nnvit token_dim  -> C
NUM_HEAD = 8       # nnvit num_head   -> H
DEEP = 2           # nnvit deep
NUM_TOKENS = DIM // TOKEN_DIM          # 4
N = NUM_TOKENS + 1                     # 5 tokens (learnable token + splits)
C = TOKEN_DIM                          # 32
H = NUM_HEAD                           # 8
HD = C // H                            # 4
SCALE = HD ** (-0.5)                   # 0.5

NP = ((N + 7) // 8) * 8                # token axis padded to a full sublane tile
PAD_TOKENS = NP - N                    # 3 dummy tokens (masked as keys)
HN = H * NP                            # 64: flattened (head, key) axis
NEG_INF = -1e30

B = 16                                 # test batch


# ---------------- Pallas kernel ----------------
def _nnvit_kernel(x_ref, tok_ref, wqkv_ref, bqkv_ref, posf_ref, wproj_ref,
                  bproj_ref, gate_ref, mss_ref, out_ref, y_scr):
    # x_ref:     (bb, NUM_TOKENS, C) f32   tok_ref:  (1, 1, C) f32
    # wqkv_ref:  (DEEP, 3, C, C) bf16      bqkv_ref: (DEEP, 3, 1, C) f32
    # posf_ref:  (DEEP, NP, HN) f32  (head,key) flattened bias, padded keys=-1e30
    # wproj_ref: (DEEP, C, C) bf16         bproj_ref:(DEEP, 1, C) f32
    # gate_ref:  (H, 1, C) bf16 head gate  mss_ref:  (HN, HN) f32 head-block ones
    # out_ref:   (bb, C) f32               y_scr:    (bb, NP, C) f32 scratch
    bb = x_ref.shape[0]

    # ---- assemble y0 = [learnable token ; x splits ; zero pad] via stores ----
    y_scr[:, 0:1, :] = jnp.broadcast_to(tok_ref[...], (bb, 1, C)).astype(jnp.float32)
    y_scr[:, 1:1 + NUM_TOKENS, :] = x_ref[...].astype(jnp.float32)
    if PAD_TOKENS:
        y_scr[:, 1 + NUM_TOKENS:, :] = jnp.zeros((bb, PAD_TOKENS, C), jnp.float32)
    y2 = y_scr[...].reshape(bb * NP, C)            # (bb*NP, C) f32 residual stream

    gate4 = gate_ref[...][None]                    # (1, H, 1, C) bf16 head gate
    mss = mss_ref[...]                             # (HN, HN) f32 head-block ones

    def kv_expand(y2b, wqkv_l, bqkv_l):
        """k/v for all NP tokens, head-replicated via fused broadcast gate."""
        k2 = jnp.dot(y2b, wqkv_l[1], preferred_element_type=jnp.float32) + bqkv_l[1]
        v2 = jnp.dot(y2b, wqkv_l[2], preferred_element_type=jnp.float32) + bqkv_l[2]
        k3 = k2.reshape(bb, NP, C).astype(jnp.bfloat16)
        v3 = v2.reshape(bb, NP, C).astype(jnp.bfloat16)
        k_exp = (k3[:, None, :, :] * gate4).reshape(bb, HN, C)   # (bb, HN, C) bf16
        v_exp = (v3[:, None, :, :] * gate4).reshape(bb, HN, C)
        return k_exp, v_exp

    def softmax_rows(s2):
        """Per-head softmax over keys (f32 statistics); rows = (batch, query)."""
        m = jnp.max(s2, axis=-1, keepdims=True)
        e = jnp.exp(s2 - m)                        # padded keys (-1e30) -> exactly 0
        denom = jnp.dot(e, mss, preferred_element_type=jnp.float32)
        denom = jnp.maximum(denom, 1e-30)
        return e * pl.reciprocal(denom, approx=True)

    # ---- layers 0 .. DEEP-2: full attention over all NP query rows ----------
    for l in range(DEEP - 1):                      # static unroll
        wqkv_l = wqkv_ref[l]                       # (3, C, C) bf16
        bqkv_l = bqkv_ref[l]                       # (3, 1, C) f32
        y2b = y2.astype(jnp.bfloat16)

        q2 = jnp.dot(y2b, wqkv_l[0], preferred_element_type=jnp.float32) + bqkv_l[0]
        q3 = q2.reshape(bb, NP, C).astype(jnp.bfloat16)
        k_exp, v_exp = kv_expand(y2b, wqkv_l, bqkv_l)

        s = jnp.einsum('bnc,bjc->bnj', q3, k_exp,
                       preferred_element_type=jnp.float32) * SCALE
        s = s + posf_ref[l]                        # (bb, NP, HN) + (NP, HN)

        p2 = softmax_rows(s.reshape(bb * NP, HN))
        p3 = p2.reshape(bb, NP, HN).astype(jnp.bfloat16)

        o3 = jnp.einsum('bnj,bjc->bnc', p3, v_exp,
                        preferred_element_type=jnp.float32)       # (bb, NP, C)
        proj = jnp.dot(o3.reshape(bb * NP, C).astype(jnp.bfloat16), wproj_ref[l],
                       preferred_element_type=jnp.float32) + bproj_ref[l]
        y2 = y2 + proj                             # residual (f32)

    # ---- last layer: class-token query only (only token 0 is emitted) -------
    l = DEEP - 1
    wqkv_l = wqkv_ref[l]
    bqkv_l = bqkv_ref[l]
    y2b = y2.astype(jnp.bfloat16)
    y_cls = y2.reshape(bb, NP, C)[:, 0:1, :].reshape(bb, C)        # (bb, C) f32

    q_cls = jnp.dot(y_cls.astype(jnp.bfloat16), wqkv_l[0],
                    preferred_element_type=jnp.float32) + bqkv_l[0]
    q3 = q_cls.reshape(bb, 1, C).astype(jnp.bfloat16)
    k_exp, v_exp = kv_expand(y2b, wqkv_l, bqkv_l)

    s = jnp.einsum('bnc,bjc->bnj', q3, k_exp,
                   preferred_element_type=jnp.float32) * SCALE     # (bb, 1, HN)
    s = s.reshape(bb, HN) + posf_ref[l][0:1, :]                    # query row 0 bias

    p = softmax_rows(s)
    p3 = p.reshape(bb, 1, HN).astype(jnp.bfloat16)
    o = jnp.einsum('bnj,bjc->bnc', p3, v_exp,
                   preferred_element_type=jnp.float32).reshape(bb, C)
    proj = jnp.dot(o.astype(jnp.bfloat16), wproj_ref[l],
                   preferred_element_type=jnp.float32) + bproj_ref[l]

    out_ref[...] = (y_cls + proj).astype(out_ref.dtype)


# ---------------- wrapper ----------------
def _num_tensorcores_per_device():
    """v7x exposes 2 TensorCores per device (a 'parallel' grid axis shards
    across them); v5e / v6e are single-TC where extra blocks are pure overhead."""
    try:
        dev = jax.devices()[0]
        if dev.platform != "tpu":
            return 1
        kind = dev.device_kind.lower()
        return 2 if ("v7" in kind or "tpu7" in kind) else 1
    except Exception:
        return 1


@jax.jit
def nnvit_forward(x, tok, wqkv_b, bqkv_k, posf, wproj_b, bproj_k, gate, mss):
    """x: (B, DIM). Returns (B, C)."""
    Bx = x.shape[0]
    x3 = x.reshape(Bx, NUM_TOKENS, TOKEN_DIM)        # free row-major view

    num_tc = _num_tensorcores_per_device()
    # per-block batch cap: v7x has only 64 MiB VMEM per TC -> keep 256;
    # single-TC 128-MiB parts (v5e / v6e) take larger blocks (fewer grid steps).
    bb_cap = 256 if num_tc >= 2 else 512

    nblocks = max(1, -(-Bx // bb_cap))
    if num_tc >= 2 and Bx >= num_tc * 64:
        nblocks = max(nblocks, num_tc)               # one block per v7x TensorCore
    bb = -(-Bx // nblocks)
    bb = ((bb + 7) // 8) * 8                         # sublane-aligned block
    Bp = nblocks * bb
    if Bp != Bx:                                     # zero-pad batch tail
        pad = jnp.zeros((Bp - Bx, NUM_TOKENS, TOKEN_DIM), x3.dtype)
        x3 = jnp.concatenate([x3, pad], axis=0)

    compiler_kwargs = {}
    if num_tc == 1 and bb > 128:
        # big blocks on 128-MiB VMEM parts: raise the scoped-VMEM default
        compiler_kwargs["vmem_limit_bytes"] = 96 * 1024 * 1024

    out = pl.pallas_call(
        _nnvit_kernel,
        out_shape=jax.ShapeDtypeStruct((Bp, C), jnp.float32),
        grid_spec=pltpu.PrefetchScalarGridSpec(
            num_scalar_prefetch=0,
            grid=(nblocks,),
            in_specs=[
                pl.BlockSpec((bb, NUM_TOKENS, C), lambda i: (i, 0, 0)),    # x
                pl.BlockSpec((1, 1, C), lambda i: (0, 0, 0)),              # tok
                pl.BlockSpec((DEEP, 3, C, C), lambda i: (0, 0, 0, 0)),     # wqkv (bf16)
                pl.BlockSpec((DEEP, 3, 1, C), lambda i: (0, 0, 0, 0)),     # bqkv (f32)
                pl.BlockSpec((DEEP, NP, HN), lambda i: (0, 0, 0)),         # posf (f32)
                pl.BlockSpec((DEEP, C, C), lambda i: (0, 0, 0)),           # wproj (bf16)
                pl.BlockSpec((DEEP, 1, C), lambda i: (0, 0, 0)),           # bproj (f32)
                pl.BlockSpec((H, 1, C), lambda i: (0, 0, 0)),              # head gate
                pl.BlockSpec((HN, HN), lambda i: (0, 0)),                  # head-block ones
            ],
            out_specs=pl.BlockSpec((bb, C), lambda i: (i, 0)),
            scratch_shapes=[pltpu.VMEM((bb, NP, C), jnp.float32)],         # y0 assembly
        ),
        compiler_params=pltpu.CompilerParams(
            dimension_semantics=("parallel",), **compiler_kwargs),
    )(x3, tok, wqkv_b, bqkv_k, posf, wproj_b, bproj_k, gate, mss)
    return out[:Bx]


# ---------------- parameter init (PyTorch layout) & kernel repacking ---------
def init_params(key):
    """Parameters in the PyTorch nn.Module layout (Linear weight = (out, in))."""
    ks = jax.random.split(key, 6)
    tok = jax.random.normal(ks[0], (1, 1, TOKEN_DIM), jnp.float32)
    wqkv = jax.random.normal(ks[1], (DEEP, 3 * C, C), jnp.float32) * 0.1
    bqkv = jax.random.normal(ks[2], (DEEP, 3 * C), jnp.float32) * 0.1
    pos = jax.random.normal(ks[3], (DEEP, H, N, N), jnp.float32)
    wproj = jax.random.normal(ks[4], (DEEP, C, C), jnp.float32) * 0.1
    bproj = jax.random.normal(ks[5], (DEEP, C), jnp.float32) * 0.1
    return tok, wqkv, bqkv, pos, wproj, bproj


def prepare_kernel_params(tok, wqkv, bqkv, pos, wproj, bproj):
    """Repack PyTorch-layout params into the kernel layouts (done once)."""
    # MXU weight operands in bf16 (f32 accumulation in-kernel); biases stay f32.
    wqkv_b = jnp.swapaxes(wqkv.reshape(DEEP, 3, C, C), -1, -2).astype(jnp.bfloat16)
    bqkv_k = bqkv.reshape(DEEP, 3, 1, C).astype(jnp.float32)
    wproj_b = jnp.swapaxes(wproj, -1, -2).astype(jnp.bfloat16)
    bproj_k = bproj.reshape(DEEP, 1, C).astype(jnp.float32)

    # flattened (query, head*key) positional bias; padded key slots -> -1e30
    posf = jnp.zeros((DEEP, NP, H, NP), jnp.float32)
    posf = posf.at[:, :N, :, :N].set(jnp.transpose(pos, (0, 2, 1, 3)))
    posf = posf.at[:, :, :, N:].set(NEG_INF)
    posf = posf.reshape(DEEP, NP, HN)

    # head gate: gate[h, 0, c] = 1 iff channel c belongs to head h (exact in bf16)
    c = np.arange(C)
    h = np.arange(H)
    gate = jnp.asarray((c[None, :] // HD) == h[:, None], jnp.bfloat16).reshape(H, 1, C)
    # head-block ones for the per-head softmax denominator (f32 path)
    j = np.arange(HN)
    mss = jnp.asarray(j[:, None] // NP == j[None, :] // NP, jnp.float32)
    return tok, wqkv_b, bqkv_k, posf, wproj_b, bproj_k, gate, mss


# ---------------- plain-JAX reference (mirrors the PyTorch module) -----------
def nnvit_reference(x, tok, wqkv, bqkv, pos, wproj, bproj):
    Bx = x.shape[0]
    y = jnp.concatenate(
        [jnp.broadcast_to(tok, (Bx, 1, TOKEN_DIM)),
         x.reshape(Bx, NUM_TOKENS, TOKEN_DIM)], axis=1)
    for l in range(DEEP):
        qkv = y @ wqkv[l].T + bqkv[l]                        # (B, N, 3C)
        qkv = qkv.reshape(Bx, N, 3, H, HD).transpose(2, 0, 3, 1, 4)
        q, k, v = qkv[0], qkv[1], qkv[2]                     # (B, H, N, HD)
        attn = (q @ jnp.swapaxes(k, -2, -1)) * SCALE + pos[l][None]
        attn = jax.nn.softmax(attn, axis=-1)
        o = (attn @ v).transpose(0, 2, 1, 3).reshape(Bx, N, C)
        y = y + (o @ wproj[l].T + bproj[l])
    return y[:, 0, :]


if __name__ == "__main__":
    key = jax.random.PRNGKey(0)
    kx, kp = jax.random.split(key)
    x = jax.random.normal(kx, (B, DIM), jnp.float32)
    raw_params = init_params(kp)
    kernel_params = prepare_kernel_params(*raw_params)

    out = jax.block_until_ready(nnvit_forward(x, *kernel_params))
    ref = jax.block_until_ready(nnvit_reference(x, *raw_params))

    # tolerance covers bf16 MXU operands + pl.reciprocal(approx=True)
    np.testing.assert_allclose(np.asarray(out), np.asarray(ref),
                               rtol=2.5e-2, atol=2.5e-2)
    assert out.shape == (B, C)
    print("KERNEL_OK")
</pallas_src>

<mosaic_0001>
module attributes {stable_mosaic.version = 11 : i64} {
  func.func @_nnvit_kernel(%arg0: i32, %arg1: memref<16x4x32xf32, #tpu.memory_space<vmem>>, %arg2: memref<1x1x32xf32, #tpu.memory_space<vmem>>, %arg3: memref<2x3x32x32xbf16, #tpu.memory_space<vmem>>, %arg4: memref<2x3x1x32xf32, #tpu.memory_space<vmem>>, %arg5: memref<2x8x64xf32, #tpu.memory_space<vmem>>, %arg6: memref<2x32x32xbf16, #tpu.memory_space<vmem>>, %arg7: memref<2x1x32xf32, #tpu.memory_space<vmem>>, %arg8: memref<8x1x32xbf16, #tpu.memory_space<vmem>>, %arg9: memref<64x64xf32, #tpu.memory_space<vmem>>, %arg10: memref<16x32xf32, #tpu.memory_space<vmem>>, %arg11: memref<16x8x32xf32, #tpu.memory_space<vmem>>) attributes {dimension_semantics = [#tpu.dimension_semantics<parallel>], iteration_bounds = array<i64: 1>, scalar_prefetch = 0 : i64, scratch_operands = 1 : i64, tpu.core_type = #tpu.core_type<tc>, window_params = [{transform_indices = @transform_0, window_bounds = array<i64: 16, 4, 32>}, {pipeline_mode = #tpu.pipeline_mode<synchronous>, transform_indices = @transform_1, window_bounds = array<i64: 1, 1, 32>}, {pipeline_mode = #tpu.pipeline_mode<synchronous>, transform_indices = @transform_2, window_bounds = array<i64: 2, 3, 32, 32>}, {pipeline_mode = #tpu.pipeline_mode<synchronous>, transform_indices = @transform_3, window_bounds = array<i64: 2, 3, 1, 32>}, {pipeline_mode = #tpu.pipeline_mode<synchronous>, transform_indices = @transform_4, window_bounds = array<i64: 2, 8, 64>}, {pipeline_mode = #tpu.pipeline_mode<synchronous>, transform_indices = @transform_5, window_bounds = array<i64: 2, 32, 32>}, {pipeline_mode = #tpu.pipeline_mode<synchronous>, transform_indices = @transform_6, window_bounds = array<i64: 2, 1, 32>}, {pipeline_mode = #tpu.pipeline_mode<synchronous>, transform_indices = @transform_7, window_bounds = array<i64: 8, 1, 32>}, {pipeline_mode = #tpu.pipeline_mode<synchronous>, transform_indices = @transform_8, window_bounds = array<i64: 64, 64>}, {transform_indices = @transform_9, window_bounds = array<i64: 16, 32>}]} {
    %c0 = arith.constant 0 : index
    %c0_0 = arith.constant 0 : index
    %c0_1 = arith.constant 0 : index
    %0 = vector.load %arg2[%c0, %c0_0, %c0_1] : memref<1x1x32xf32, #tpu.memory_space<vmem>>, vector<1x1x32xf32>
    %1 = vector.shape_cast %0 : vector<1x1x32xf32> to vector<1x1x32xf32>
    %2 = vector.broadcast %1 : vector<1x1x32xf32> to vector<16x1x32xf32>
    %c0_2 = arith.constant 0 : index
    %c0_3 = arith.constant 0 : index
    %c0_4 = arith.constant 0 : index
    %3 = vector.load %arg11[%c0_2, %c0_3, %c0_4] : memref<16x8x32xf32, #tpu.memory_space<vmem>>, vector<16x1x32xf32>
    tpu.vector_store %arg11[%c0_2, %c0_3, %c0_4], %2 {strides = array<i32>} : memref<16x8x32xf32, #tpu.memory_space<vmem>>, vector<16x1x32xf32>,
    %c0_5 = arith.constant 0 : index
    %c0_6 = arith.constant 0 : index
    %c0_7 = arith.constant 0 : index
    %4 = vector.load %arg1[%c0_5, %c0_6, %c0_7] : memref<16x4x32xf32, #tpu.memory_space<vmem>>, vector<16x4x32xf32>
    %c0_8 = arith.constant 0 : index
    %c1 = arith.constant 1 : index
    %c0_9 = arith.constant 0 : index
    %5 = vector.load %arg11[%c0_8, %c1, %c0_9] : memref<16x8x32xf32, #tpu.memory_space<vmem>>, vector<16x4x32xf32>
    tpu.vector_store %arg11[%c0_8, %c1, %c0_9], %4 {strides = array<i32>} : memref<16x8x32xf32, #tpu.memory_space<vmem>>, vector<16x4x32xf32>,
    %cst = arith.constant 0.000000e+00 : f32
    %6 = vector.broadcast %cst : f32 to vector<16x3x32xf32>
    %c0_10 = arith.constant 0 : index
    %c5 = arith.constant 5 : index
    %c0_11 = arith.constant 0 : index
    %7 = vector.load %arg11[%c0_10, %c5, %c0_11] : memref<16x8x32xf32, #tpu.memory_space<vmem>>, vector<16x3x32xf32>
    tpu.vector_store %arg11[%c0_10, %c5, %c0_11], %6 {strides = array<i32>} : memref<16x8x32xf32, #tpu.memory_space<vmem>>, vector<16x3x32xf32>,
    %c0_12 = arith.constant 0 : index
    %c0_13 = arith.constant 0 : index
    %c0_14 = arith.constant 0 : index
    %8 = vector.load %arg11[%c0_12, %c0_13, %c0_14] : memref<16x8x32xf32, #tpu.memory_space<vmem>>, vector<16x8x32xf32>
    %9 = vector.shape_cast %8 : vector<16x8x32xf32> to vector<128x32xf32>
    %c0_15 = arith.constant 0 : index
    %c0_16 = arith.constant 0 : index
    %c0_17 = arith.constant 0 : index
    %10 = vector.load %arg8[%c0_15, %c0_16, %c0_17] : memref<8x1x32xbf16, #tpu.memory_space<vmem>>, vector<8x1x32xbf16>
    %11 = vector.shape_cast %10 : vector<8x1x32xbf16> to vector<1x8x1x32xbf16>
    %c0_18 = arith.constant 0 : index
    %c0_19 = arith.constant 0 : index
    %12 = vector.load %arg9[%c0_18, %c0_19] : memref<64x64xf32, #tpu.memory_space<vmem>>, vector<64x64xf32>
    %c0_20 = arith.constant 0 : index
    %c0_21 = arith.constant 0 : index
    %c0_22 = arith.constant 0 : index
    %c0_23 = arith.constant 0 : index
    %13 = vector.load %arg3[%c0_20, %c0_21, %c0_22, %c0_23] : memref<2x3x32x32xbf16, #tpu.memory_space<vmem>>, vector<1x3x32x32xbf16>
    %14 = vector.shape_cast %13 : vector<1x3x32x32xbf16> to vector<3x32x32xbf16>
    %c0_24 = arith.constant 0 : index
    %c0_25 = arith.constant 0 : index
    %c0_26 = arith.constant 0 : index
    %c0_27 = arith.constant 0 : index
    %15 = vector.load %arg4[%c0_24, %c0_25, %c0_26, %c0_27] : memref<2x3x1x32xf32, #tpu.memory_space<vmem>>, vector<1x3x1x32xf32>
    %16 = vector.shape_cast %15 : vector<1x3x1x32xf32> to vector<3x1x32xf32>
    %17 = arith.truncf %9 : vector<128x32xf32> to vector<128x32xbf16>
    %18 = vector.extract_strided_slice %14 {offsets = [0, 0, 0], sizes = [1, 32, 32], strides = [1, 1, 1]} : vector<3x32x32xbf16> to vector<1x32x32xbf16>
    %19 = vector.shape_cast %18 : vector<1x32x32xbf16> to vector<32x32xbf16>
    %cst_28 = arith.constant dense<0.000000e+00> : vector<128x32xf32>
    %20 = tpu.matmul %17, %19, %cst_28 {dimension_numbers = #tpu.dot_dimension_numbers<[1], [0], [0], [1], [0, 0, 1, 1], [], []>} : vector<128x32xbf16>, vector<32x32xbf16>, vector<128x32xf32> -> vector<128x32xf32>
    %21 = vector.extract_strided_slice %16 {offsets = [0, 0, 0], sizes = [1, 1, 32], strides = [1, 1, 1]} : vector<3x1x32xf32> to vector<1x1x32xf32>
    %22 = vector.shape_cast %21 : vector<1x1x32xf32> to vector<1x32xf32>
    %23 = vector.broadcast %22 : vector<1x32xf32> to vector<128x32xf32>
    %24 = arith.addf %20, %23 : vector<128x32xf32>
    %25 = vector.shape_cast %24 : vector<128x32xf32> to vector<16x8x32xf32>
    %26 = arith.truncf %25 : vector<16x8x32xf32> to vector<16x8x32xbf16>
    %27 = vector.extract_strided_slice %14 {offsets = [1, 0, 0], sizes = [1, 32, 32], strides = [1, 1, 1]} : vector<3x32x32xbf16> to vector<1x32x32xbf16>
    %28 = vector.shape_cast %27 : vector<1x32x32xbf16> to vector<32x32xbf16>
    %cst_29 = arith.constant dense<0.000000e+00> : vector<128x32xf32>
    %29 = tpu.matmul %17, %28, %cst_29 {dimension_numbers = #tpu.dot_dimension_numbers<[1], [0], [0], [1], [0, 0, 1, 1], [], []>} : vector<128x32xbf16>, vector<32x32xbf16>, vector<128x32xf32> -> vector<128x32xf32>
    %30 = vector.extract_strided_slice %16 {offsets = [1, 0, 0], sizes = [1, 1, 32], strides = [1, 1, 1]} : vector<3x1x32xf32> to vector<1x1x32xf32>
    %31 = vector.shape_cast %30 : vector<1x1x32xf32> to vector<1x32xf32>
    %32 = vector.broadcast %31 : vector<1x32xf32> to vector<128x32xf32>
    %33 = arith.addf %29, %32 : vector<128x32xf32>
    %34 = vector.extract_strided_slice %14 {offsets = [2, 0, 0], sizes = [1, 32, 32], strides = [1, 1, 1]} : vector<3x32x32xbf16> to vector<1x32x32xbf16>
    %35 = vector.shape_cast %34 : vector<1x32x32xbf16> to vector<32x32xbf16>
    %cst_30 = arith.constant dense<0.000000e+00> : vector<128x32xf32>
    %36 = tpu.matmul %17, %35, %cst_30 {dimension_numbers = #tpu.dot_dimension_numbers<[1], [0], [0], [1], [0, 0, 1, 1], [], []>} : vector<128x32xbf16>, vector<32x32xbf16>, vector<128x32xf32> -> vector<128x32xf32>
    %37 = vector.extract_strided_slice %16 {offsets = [2, 0, 0], sizes = [1, 1, 32], strides = [1, 1, 1]} : vector<3x1x32xf32> to vector<1x1x32xf32>
    %38 = vector.shape_cast %37 : vector<1x1x32xf32> to vector<1x32xf32>
    %39 = vector.broadcast %38 : vector<1x32xf32> to vector<128x32xf32>
    %40 = arith.addf %36, %39 : vector<128x32xf32>
    %41 = vector.shape_cast %33 : vector<128x32xf32> to vector<16x8x32xf32>
    %42 = arith.truncf %41 : vector<16x8x32xf32> to vector<16x8x32xbf16>
    %43 = vector.shape_cast %40 : vector<128x32xf32> to vector<16x8x32xf32>
    %44 = arith.truncf %43 : vector<16x8x32xf32> to vector<16x8x32xbf16>
    %45 = vector.shape_cast %42 : vector<16x8x32xbf16> to vector<16x1x8x32xbf16>
    %46 = vector.broadcast %45 : vector<16x1x8x32xbf16> to vector<16x8x8x32xbf16>
    %47 = vector.broadcast %11 : vector<1x8x1x32xbf16> to vector<16x8x8x32xbf16>
    %48 = arith.mulf %46, %47 : vector<16x8x8x32xbf16>
    %49 = vector.shape_cast %48 : vector<16x8x8x32xbf16> to vector<16x64x32xbf16>
    %50 = vector.shape_cast %44 : vector<16x8x32xbf16> to vector<16x1x8x32xbf16>
    %51 = vector.broadcast %50 : vector<16x1x8x32xbf16> to vector<16x8x8x32xbf16>
    %52 = vector.broadcast %11 : vector<1x8x1x32xbf16> to vector<16x8x8x32xbf16>
    %53 = arith.mulf %51, %52 : vector<16x8x8x32xbf16>
    %54 = vector.shape_cast %53 : vector<16x8x8x32xbf16> to vector<16x64x32xbf16>
    "tpu.trace_start"() <{level = 10 : i32, message = "bnc,bjc->bnj"}> : () -> ()
    %cst_31 = arith.constant dense<0.000000e+00> : vector<16x8x64xf32>
    %55 = tpu.matmul %26, %49, %cst_31 {dimension_numbers = #tpu.dot_dimension_numbers<[2], [2], [1], [1], [0, 0, 0, 1, 1, 1], [0], [0]>} : vector<16x8x32xbf16>, vector<16x64x32xbf16>, vector<16x8x64xf32> -> vector<16x8x64xf32>
    "tpu.trace_stop"() : () -> ()
    %cst_32 = arith.constant 5.000000e-01 : f32
    %56 = vector.broadcast %cst_32 : f32 to vector<16x8x64xf32>
    %57 = arith.mulf %55, %56 : vector<16x8x64xf32>
    %c0_33 = arith.constant 0 : index
    %c0_34 = arith.constant 0 : index
    %c0_35 = arith.constant 0 : index
    %58 = vector.load %arg5[%c0_33, %c0_34, %c0_35] : memref<2x8x64xf32, #tpu.memory_space<vmem>>, vector<1x8x64xf32>
    %59 = vector.shape_cast %58 : vector<1x8x64xf32> to vector<8x64xf32>
    %60 = vector.shape_cast %59 : vector<8x64xf32> to vector<1x8x64xf32>
    %61 = vector.broadcast %60 : vector<1x8x64xf32> to vector<16x8x64xf32>
    %62 = arith.addf %57, %61 : vector<16x8x64xf32>
    %63 = vector.shape_cast %62 : vector<16x8x64xf32> to vector<128x64xf32>
    %cst_36 = arith.constant dense<0xFF800000> : vector<128xf32>
    %64 = vector.multi_reduction <maximumf>, %63, %cst_36 [1] : vector<128x64xf32> to vector<128xf32>
    %65 = vector.shape_cast %64 : vector<128xf32> to vector<128x1xf32>
    %66 = vector.broadcast %65 : vector<128x1xf32> to vector<128x64xf32>
    %67 = arith.subf %63, %66 : vector<128x64xf32>
    %68 = math.exp %67 : vector<128x64xf32>
    %cst_37 = arith.constant dense<0.000000e+00> : vector<128x64xf32>
    %69 = tpu.matmul %68, %12, %cst_37 {dimension_numbers = #tpu.dot_dimension_numbers<[1], [0], [0], [1], [0, 0, 1, 1], [], []>} : vector<128x64xf32>, vector<64x64xf32>, vector<128x64xf32> -> vector<128x64xf32>
    %cst_38 = arith.constant 1.000000e-30 : f32
    %70 = vector.broadcast %cst_38 : f32 to vector<128x64xf32>
    %71 = arith.maximumf %69, %70 : vector<128x64xf32>
    %72 = tpu.reciprocal %71 {approx = true} : vector<128x64xf32> -> vector<128x64xf32>
    %73 = arith.mulf %68, %72 : vector<128x64xf32>
    %74 = vector.shape_cast %73 : vector<128x64xf32> to vector<16x8x64xf32>
    %75 = arith.truncf %74 : vector<16x8x64xf32> to vector<16x8x64xbf16>
    "tpu.trace_start"() <{level = 10 : i32, message = "bnj,bjc->bnc"}> : () -> ()
    %cst_39 = arith.constant dense<0.000000e+00> : vector<16x8x32xf32>
    %76 = tpu.matmul %75, %54, %cst_39 {dimension_numbers = #tpu.dot_dimension_numbers<[2], [1], [1], [2], [0, 0, 0, 1, 1, 2], [0], [0]>} : vector<16x8x64xbf16>, vector<16x64x32xbf16>, vector<16x8x32xf32> -> vector<16x8x32xf32>
    "tpu.trace_stop"() : () -> ()
    %77 = vector.shape_cast %76 : vector<16x8x32xf32> to vector<128x32xf32>
    %78 = arith.truncf %77 : vector<128x32xf32> to vector<128x32xbf16>
    %c0_40 = arith.constant 0 : index
    %c0_41 = arith.constant 0 : index
    %c0_42 = arith.constant 0 : index
    %79 = vector.load %arg6[%c0_40, %c0_41, %c0_42] : memref<2x32x32xbf16, #tpu.memory_space<vmem>>, vector<1x32x32xbf16>
    %80 = vector.shape_cast %79 : vector<1x32x32xbf16> to vector<32x32xbf16>
    %cst_43 = arith.constant dense<0.000000e+00> : vector<128x32xf32>
    %81 = tpu.matmul %78, %80, %cst_43 {dimension_numbers = #tpu.dot_dimension_numbers<[1], [0], [0], [1], [0, 0, 1, 1], [], []>} : vector<128x32xbf16>, vector<32x32xbf16>, vector<128x32xf32> -> vector<128x32xf32>
    %c0_44 = arith.constant 0 : index
    %c0_45 = arith.constant 0 : index
    %c0_46 = arith.constant 0 : index
    %82 = vector.load %arg7[%c0_44, %c0_45, %c0_46] : memref<2x1x32xf32, #tpu.memory_space<vmem>>, vector<1x1x32xf32>
    %83 = vector.shape_cast %82 : vector<1x1x32xf32> to vector<1x32xf32>
    %84 = vector.broadcast %83 : vector<1x32xf32> to vector<128x32xf32>
    %85 = arith.addf %81, %84 : vector<128x32xf32>
    %86 = arith.addf %9, %85 : vector<128x32xf32>
    %c1_47 = arith.constant 1 : index
    %c0_48 = arith.constant 0 : index
    %c0_49 = arith.constant 0 : index
    %c0_50 = arith.constant 0 : index
    %87 = vector.load %arg3[%c1_47, %c0_48, %c0_49, %c0_50] : memref<2x3x32x32xbf16, #tpu.memory_space<vmem>>, vector<1x3x32x32xbf16>
    %88 = vector.shape_cast %87 : vector<1x3x32x32xbf16> to vector<3x32x32xbf16>
    %c1_51 = arith.constant 1 : index
    %c0_52 = arith.constant 0 : index
    %c0_53 = arith.constant 0 : index
    %c0_54 = arith.constant 0 : index
    %89 = vector.load %arg4[%c1_51, %c0_52, %c0_53, %c0_54] : memref<2x3x1x32xf32, #tpu.memory_space<vmem>>, vector<1x3x1x32xf32>
    %90 = vector.shape_cast %89 : vector<1x3x1x32xf32> to vector<3x1x32xf32>
    %91 = arith.truncf %86 : vector<128x32xf32> to vector<128x32xbf16>
    %92 = vector.shape_cast %86 : vector<128x32xf32> to vector<16x8x32xf32>
    %93 = vector.extract_strided_slice %92 {offsets = [0, 0, 0], sizes = [16, 1, 32], strides = [1, 1, 1]} : vector<16x8x32xf32> to vector<16x1x32xf32>
    %94 = vector.shape_cast %93 : vector<16x1x32xf32> to vector<16x32xf32>
    %95 = arith.truncf %94 : vector<16x32xf32> to vector<16x32xbf16>
    %96 = vector.extract_strided_slice %88 {offsets = [0, 0, 0], sizes = [1, 32, 32], strides = [1, 1, 1]} : vector<3x32x32xbf16> to vector<1x32x32xbf16>
    %97 = vector.shape_cast %96 : vector<1x32x32xbf16> to vector<32x32xbf16>
    %cst_55 = arith.constant dense<0.000000e+00> : vector<16x32xf32>
    %98 = tpu.matmul %95, %97, %cst_55 {dimension_numbers = #tpu.dot_dimension_numbers<[1], [0], [0], [1], [0, 0, 1, 1], [], []>} : vector<16x32xbf16>, vector<32x32xbf16>, vector<16x32xf32> -> vector<16x32xf32>
    %99 = vector.extract_strided_slice %90 {offsets = [0, 0, 0], sizes = [1, 1, 32], strides = [1, 1, 1]} : vector<3x1x32xf32> to vector<1x1x32xf32>
    %100 = vector.shape_cast %99 : vector<1x1x32xf32> to vector<1x32xf32>
    %101 = vector.broadcast %100 : vector<1x32xf32> to vector<16x32xf32>
    %102 = arith.addf %98, %101 : vector<16x32xf32>
    %103 = vector.shape_cast %102 : vector<16x32xf32> to vector<16x1x32xf32>
    %104 = arith.truncf %103 : vector<16x1x32xf32> to vector<16x1x32xbf16>
    %105 = vector.extract_strided_slice %88 {offsets = [1, 0, 0], sizes = [1, 32, 32], strides = [1, 1, 1]} : vector<3x32x32xbf16> to vector<1x32x32xbf16>
    %106 = vector.shape_cast %105 : vector<1x32x32xbf16> to vector<32x32xbf16>
    %cst_56 = arith.constant dense<0.000000e+00> : vector<128x32xf32>
    %107 = tpu.matmul %91, %106, %cst_56 {dimension_numbers = #tpu.dot_dimension_numbers<[1], [0], [0], [1], [0, 0, 1, 1], [], []>} : vector<128x32xbf16>, vector<32x32xbf16>, vector<128x32xf32> -> vector<128x32xf32>
    %108 = vector.extract_strided_slice %90 {offsets = [1, 0, 0], sizes = [1, 1, 32], strides = [1, 1, 1]} : vector<3x1x32xf32> to vector<1x1x32xf32>
    %109 = vector.shape_cast %108 : vector<1x1x32xf32> to vector<1x32xf32>
    %110 = vector.broadcast %109 : vector<1x32xf32> to vector<128x32xf32>
    %111 = arith.addf %107, %110 : vector<128x32xf32>
    %112 = vector.extract_strided_slice %88 {offsets = [2, 0, 0], sizes = [1, 32, 32], strides = [1, 1, 1]} : vector<3x32x32xbf16> to vector<1x32x32xbf16>
    %113 = vector.shape_cast %112 : vector<1x32x32xbf16> to vector<32x32xbf16>
    %cst_57 = arith.constant dense<0.000000e+00> : vector<128x32xf32>
    %114 = tpu.matmul %91, %113, %cst_57 {dimension_numbers = #tpu.dot_dimension_numbers<[1], [0], [0], [1], [0, 0, 1, 1], [], []>} : vector<128x32xbf16>, vector<32x32xbf16>, vector<128x32xf32> -> vector<128x32xf32>
    %115 = vector.extract_strided_slice %90 {offsets = [2, 0, 0], sizes = [1, 1, 32], strides = [1, 1, 1]} : vector<3x1x32xf32> to vector<1x1x32xf32>
    %116 = vector.shape_cast %115 : vector<1x1x32xf32> to vector<1x32xf32>
    %117 = vector.broadcast %116 : vector<1x32xf32> to vector<128x32xf32>
    %118 = arith.addf %114, %117 : vector<128x32xf32>
    %119 = vector.shape_cast %111 : vector<128x32xf32> to vector<16x8x32xf32>
    %120 = arith.truncf %119 : vector<16x8x32xf32> to vector<16x8x32xbf16>
    %121 = vector.shape_cast %118 : vector<128x32xf32> to vector<16x8x32xf32>
    %122 = arith.truncf %121 : vector<16x8x32xf32> to vector<16x8x32xbf16>
    %123 = vector.shape_cast %120 : vector<16x8x32xbf16> to vector<16x1x8x32xbf16>
    %124 = vector.broadcast %123 : vector<16x1x8x32xbf16> to vector<16x8x8x32xbf16>
    %125 = vector.broadcast %11 : vector<1x8x1x32xbf16> to vector<16x8x8x32xbf16>
    %126 = arith.mulf %124, %125 : vector<16x8x8x32xbf16>
    %127 = vector.shape_cast %126 : vector<16x8x8x32xbf16> to vector<16x64x32xbf16>
    %128 = vector.shape_cast %122 : vector<16x8x32xbf16> to vector<16x1x8x32xbf16>
    %129 = vector.broadcast %128 : vector<16x1x8x32xbf16> to vector<16x8x8x32xbf16>
    %130 = vector.broadcast %11 : vector<1x8x1x32xbf16> to vector<16x8x8x32xbf16>
    %131 = arith.mulf %129, %130 : vector<16x8x8x32xbf16>
    %132 = vector.shape_cast %131 : vector<16x8x8x32xbf16> to vector<16x64x32xbf16>
    "tpu.trace_start"() <{level = 10 : i32, message = "bnc,bjc->bnj"}> : () -> ()
    %cst_58 = arith.constant dense<0.000000e+00> : vector<16x1x64xf32>
    %133 = tpu.matmul %104, %127, %cst_58 {dimension_numbers = #tpu.dot_dimension_numbers<[2], [2], [1], [1], [0, 0, 0, 1, 1, 1], [0], [0]>} : vector<16x1x32xbf16>, vector<16x64x32xbf16>, vector<16x1x64xf32> -> vector<16x1x64xf32>
    "tpu.trace_stop"() : () -> ()
    %cst_59 = arith.constant 5.000000e-01 : f32
    %134 = vector.broadcast %cst_59 : f32 to vector<16x1x64xf32>
    %135 = arith.mulf %133, %134 : vector<16x1x64xf32>
    %136 = vector.shape_cast %135 : vector<16x1x64xf32> to vector<16x64xf32>
    %c1_60 = arith.constant 1 : index
    %c0_61 = arith.constant 0 : index
    %c0_62 = arith.constant 0 : index
    %137 = vector.load %arg5[%c1_60, %c0_61, %c0_62] : memref<2x8x64xf32, #tpu.memory_space<vmem>>, vector<1x8x64xf32>
    %138 = vector.shape_cast %137 : vector<1x8x64xf32> to vector<8x64xf32>
    %139 = vector.extract_strided_slice %138 {offsets = [0, 0], sizes = [1, 64], strides = [1, 1]} : vector<8x64xf32> to vector<1x64xf32>
    %140 = vector.broadcast %139 : vector<1x64xf32> to vector<16x64xf32>
    %141 = arith.addf %136, %140 : vector<16x64xf32>
    %cst_63 = arith.constant dense<0xFF800000> : vector<16xf32>
    %142 = vector.multi_reduction <maximumf>, %141, %cst_63 [1] : vector<16x64xf32> to vector<16xf32>
    %143 = vector.shape_cast %142 : vector<16xf32> to vector<16x1xf32>
    %144 = vector.broadcast %143 : vector<16x1xf32> to vector<16x64xf32>
    %145 = arith.subf %141, %144 : vector<16x64xf32>
    %146 = math.exp %145 : vector<16x64xf32>
    %cst_64 = arith.constant dense<0.000000e+00> : vector<16x64xf32>
    %147 = tpu.matmul %146, %12, %cst_64 {dimension_numbers = #tpu.dot_dimension_numbers<[1], [0], [0], [1], [0, 0, 1, 1], [], []>} : vector<16x64xf32>, vector<64x64xf32>, vector<16x64xf32> -> vector<16x64xf32>
    %cst_65 = arith.constant 1.000000e-30 : f32
    %148 = vector.broadcast %cst_65 : f32 to vector<16x64xf32>
    %149 = arith.maximumf %147, %148 : vector<16x64xf32>
    %150 = tpu.reciprocal %149 {approx = true} : vector<16x64xf32> -> vector<16x64xf32>
    %151 = arith.mulf %146, %150 : vector<16x64xf32>
    %152 = vector.shape_cast %151 : vector<16x64xf32> to vector<16x1x64xf32>
    %153 = arith.truncf %152 : vector<16x1x64xf32> to vector<16x1x64xbf16>
    "tpu.trace_start"() <{level = 10 : i32, message = "bnj,bjc->bnc"}> : () -> ()
    %cst_66 = arith.constant dense<0.000000e+00> : vector<16x1x32xf32>
    %154 = tpu.matmul %153, %132, %cst_66 {dimension_numbers = #tpu.dot_dimension_numbers<[2], [1], [1], [2], [0, 0, 0, 1, 1, 2], [0], [0]>} : vector<16x1x64xbf16>, vector<16x64x32xbf16>, vector<16x1x32xf32> -> vector<16x1x32xf32>
    "tpu.trace_stop"() : () -> ()
    %155 = vector.shape_cast %154 : vector<16x1x32xf32> to vector<16x32xf32>
    %156 = arith.truncf %155 : vector<16x32xf32> to vector<16x32xbf16>
    %c1_67 = arith.constant 1 : index
    %c0_68 = arith.constant 0 : index
    %c0_69 = arith.constant 0 : index
    %157 = vector.load %arg6[%c1_67, %c0_68, %c0_69] : memref<2x32x32xbf16, #tpu.memory_space<vmem>>, vector<1x32x32xbf16>
    %158 = vector.shape_cast %157 : vector<1x32x32xbf16> to vector<32x32xbf16>
    %cst_70 = arith.constant dense<0.000000e+00> : vector<16x32xf32>
    %159 = tpu.matmul %156, %158, %cst_70 {dimension_numbers = #tpu.dot_dimension_numbers<[1], [0], [0], [1], [0, 0, 1, 1], [], []>} : vector<16x32xbf16>, vector<32x32xbf16>, vector<16x32xf32> -> vector<16x32xf32>
    %c1_71 = arith.constant 1 : index
    %c0_72 = arith.constant 0 : index
    %c0_73 = arith.constant 0 : index
    %160 = vector.load %arg7[%c1_71, %c0_72, %c0_73] : memref<2x1x32xf32, #tpu.memory_space<vmem>>, vector<1x1x32xf32>
    %161 = vector.shape_cast %160 : vector<1x1x32xf32> to vector<1x32xf32>
    %162 = vector.broadcast %161 : vector<1x32xf32> to vector<16x32xf32>
    %163 = arith.addf %159, %162 : vector<16x32xf32>
    %164 = arith.addf %94, %163 : vector<16x32xf32>
    %c0_74 = arith.constant 0 : index
    %c0_75 = arith.constant 0 : index
    %165 = vector.load %arg10[%c0_74, %c0_75] : memref<16x32xf32, #tpu.memory_space<vmem>>, vector<16x32xf32>
    tpu.vector_store %arg10[%c0_74, %c0_75], %164 {strides = array<i32>} : memref<16x32xf32, #tpu.memory_space<vmem>>, vector<16x32xf32>,
    return
  }
  func.func @transform_0(%arg0: i32) -> (i32, i32, i32) {
    %c0_i32 = arith.constant 0 : i32
    %c0_i32_0 = arith.constant 0 : i32
    %c0_i32_1 = arith.constant 0 : i32
    return %arg0, %c0_i32, %c0_i32_0 : i32, i32, i32
  }
  func.func @transform_1(%arg0: i32) -> (i32, i32, i32) {
    %c0_i32 = arith.constant 0 : i32
    %c0_i32_0 = arith.constant 0 : i32
    %c0_i32_1 = arith.constant 0 : i32
    %c0_i32_2 = arith.constant 0 : i32
    return %c0_i32, %c0_i32_0, %c0_i32_1 : i32, i32, i32
  }
  func.func @transform_2(%arg0: i32) -> (i32, i32, i32, i32) {
    %c0_i32 = arith.constant 0 : i32
    %c0_i32_0 = arith.constant 0 : i32
    %c0_i32_1 = arith.constant 0 : i32
    %c0_i32_2 = arith.constant 0 : i32
    %c0_i32_3 = arith.constant 0 : i32
    return %c0_i32, %c0_i32_0, %c0_i32_1, %c0_i32_2 : i32, i32, i32, i32
  }
  func.func @transform_3(%arg0: i32) -> (i32, i32, i32, i32) {
    %c0_i32 = arith.constant 0 : i32
    %c0_i32_0 = arith.constant 0 : i32
    %c0_i32_1 = arith.constant 0 : i32
    %c0_i32_2 = arith.constant 0 : i32
    %c0_i32_3 = arith.constant 0 : i32
    return %c0_i32, %c0_i32_0, %c0_i32_1, %c0_i32_2 : i32, i32, i32, i32
  }
  func.func @transform_4(%arg0: i32) -> (i32, i32, i32) {
    %c0_i32 = arith.constant 0 : i32
    %c0_i32_0 = arith.constant 0 : i32
    %c0_i32_1 = arith.constant 0 : i32
    %c0_i32_2 = arith.constant 0 : i32
    return %c0_i32, %c0_i32_0, %c0_i32_1 : i32, i32, i32
  }
  func.func @transform_5(%arg0: i32) -> (i32, i32, i32) {
    %c0_i32 = arith.constant 0 : i32
    %c0_i32_0 = arith.constant 0 : i32
    %c0_i32_1 = arith.constant 0 : i32
    %c0_i32_2 = arith.constant 0 : i32
    return %c0_i32, %c0_i32_0, %c0_i32_1 : i32, i32, i32
  }
  func.func @transform_6(%arg0: i32) -> (i32, i32, i32) {
    %c0_i32 = arith.constant 0 : i32
    %c0_i32_0 = arith.constant 0 : i32
    %c0_i32_1 = arith.constant 0 : i32
    %c0_i32_2 = arith.constant 0 : i32
    return %c0_i32, %c0_i32_0, %c0_i32_1 : i32, i32, i32
  }
  func.func @transform_7(%arg0: i32) -> (i32, i32, i32) {
    %c0_i32 = arith.constant 0 : i32
    %c0_i32_0 = arith.constant 0 : i32
    %c0_i32_1 = arith.constant 0 : i32
    %c0_i32_2 = arith.constant 0 : i32
    return %c0_i32, %c0_i32_0, %c0_i32_1 : i32, i32, i32
  }
  func.func @transform_8(%arg0: i32) -> (i32, i32) {
    %c0_i32 = arith.constant 0 : i32
    %c0_i32_0 = arith.constant 0 : i32
    %c0_i32_1 = arith.constant 0 : i32
    return %c0_i32, %c0_i32_0 : i32, i32
  }
  func.func @transform_9(%arg0: i32) -> (i32, i32) {
    %c0_i32 = arith.constant 0 : i32
    %c0_i32_0 = arith.constant 0 : i32
    return %arg0, %c0_i32 : i32, i32
  }
}

</mosaic_0001>

<llo_original>
// kernel: nnvit_forward.1
$region0: #{nnvit_forward.1}
  #allocation0 [shape = 'u32[]', space=smem, size = 0x4, offset = 0x4, fixed_abs, tag = 'smem constant byte address 0x4 - core index']
  #allocation1 [shape = 'u32[144,128]{1,0:T(1,128)}', space=vmem, size = 0x12000, scoped, tag = 'internal scratch']
  #allocation2 [shape = 'f32[16,8,32]{2,1,0:T(8,128)}', space=vmem, size = 0x10000, scoped, tag = 'scratch operand']
  %s0 = inlined_call_operand.vmem [shape: f32[16,4,32], index: 0, kind: input, shape index: {}]
  %s1 = inlined_call_operand.vmem [shape: f32[1,1,32], index: 1, kind: input, shape index: {}]
  %s2 = inlined_call_operand.vmem [shape: bf16[2,3,32,32], index: 2, kind: input, shape index: {}]
  %s3 = inlined_call_operand.vmem [shape: f32[2,3,1,32], index: 3, kind: input, shape index: {}]
  %s4 = inlined_call_operand.hbm [shape: f32[2,8,64], index: 4, kind: input, shape index: {}]
  %s5 = inlined_call_operand.hbm [shape: bf16[2,32,32], index: 5, kind: input, shape index: {}]
  %s6 = inlined_call_operand.vmem [shape: f32[2,1,32], index: 6, kind: input, shape index: {}]
  %s7 = inlined_call_operand.vmem [shape: bf16[8,1,32], index: 7, kind: input, shape index: {}]
  %s8 = inlined_call_operand.hbm [shape: f32[64,64], index: 8, kind: input, shape index: {}]
  %s9 = inlined_call_operand.hbm [shape: f32[16,32], index: 9, kind: output, shape index: {}]
  %s10 = sld [smem:[#allocation0]]
  $region58: #{nnvit_forward.1} parent=0
    _
  %s12 = ssub.s32 1, %s10
  %s13 = scalar_select 0, %s12, %s10
  $region1: #{nnvit_forward.1} parent=0
    #allocation3 [shape = 'u8[8192]{0}', space=vmem, size = 0x2000, scoped, tag = 'input window, operand 4, single buffered']
    #allocation4 [shape = 's32[1]{0}', space=sflag, size = 0x4, scoped, tag = 'scoped memory for nnvit_forward.1']
    #allocation5 [shape = 's32[1]{0}', space=sflag, size = 0x4, scoped, tag = 'scoped memory for nnvit_forward.1']
    #allocation6 [shape = 'u8[16384]{0}', space=vmem, size = 0x4000, scoped, tag = 'input window, operand 5, single buffered']
    #allocation7 [shape = 's32[1]{0}', space=sflag, size = 0x4, scoped, tag = 'scoped memory for nnvit_forward.1']
    #allocation8 [shape = 'u8[32768]{0}', space=vmem, size = 0x8000, scoped, tag = 'input window, operand 8, single buffered']
    #allocation9 [shape = 'u8[8192]{0}', space=vmem, size = 0x2000, scoped, tag = 'output window, operand 0, single buffered']
    %14 = vsyncpa [#allocation4], 0
    %15 = vsyncpa [#allocation7], 0
    %16 = vsyncpa [#allocation5], 0
    // Predicated region
    $region2: #{nnvit_forward.1} parent=1 // pred_check
      _
    $region3: #{nnvit_forward.1} parent=1 // pred_check_branch
      %18 = sbr.rel (0) target = $region5
    $region4: #{nnvit_forward.1} parent=1 // pred_region
      _
    $region5: #{nnvit_forward.1} parent=1 // pred_fallthru
      _
    // Predicated region
    $region6: #{nnvit_forward.1} parent=1 // pred_check
      _
    $region7: #{nnvit_forward.1} parent=1 // pred_check_branch
      %20 = sbr.rel (0) target = $region9
    $region8: #{nnvit_forward.1} parent=1 // pred_region
      _
    $region9: #{nnvit_forward.1} parent=1 // pred_fallthru
      _
    // Predicated region
    $region10: #{nnvit_forward.1} parent=1 // pred_check
      _
    $region11: #{nnvit_forward.1} parent=1 // pred_check_branch
      %22 = sbr.rel (0) target = $region13
    $region12: #{nnvit_forward.1} parent=1 // pred_region
      _
    $region13: #{nnvit_forward.1} parent=1 // pred_fallthru
      _
    // Predicated region
    $region14: #{nnvit_forward.1} parent=1 // pred_check
      _
    $region15: #{nnvit_forward.1} parent=1 // pred_check_branch
      %24 = sbr.rel (0) target = $region17
    $region16: #{nnvit_forward.1} parent=1 // pred_region
      _
    $region17: #{nnvit_forward.1} parent=1 // pred_fallthru
      _
    // Predicated region
    $region18: #{nnvit_forward.1} parent=1 // pred_check
      _
    $region19: #{nnvit_forward.1} parent=1 // pred_check_branch
      %26 = sbr.rel (0) target = $region21
    $region20: #{nnvit_forward.1} parent=1 // pred_region
      %s28 = ssub.s32 256, 256
      %29 = vsyncadd [#allocation4], %s28
      %s30 = sshll.u32 [#allocation3], 4
      %s31 = int_to_ptr.vmem [resolvable:$true] %s30
      %36 = dma.hbm_to_vmem [thread:$0]  %s4, 256, %s31, [#allocation4], 128, 128, 8
    $region21: #{nnvit_forward.1} parent=1 // pred_fallthru
      _
    // Predicated region
    $region22: #{nnvit_forward.1} parent=1 // pred_check
      _
    $region23: #{nnvit_forward.1} parent=1 // pred_check_branch
      %38 = sbr.rel (0) target = $region25
    $region24: #{nnvit_forward.1} parent=1 // pred_region
      %s40 = ssub.s32 512, 512
      %41 = vsyncadd [#allocation7], %s40
      %s42 = sshll.u32 [#allocation6], 4
      %s43 = int_to_ptr.vmem [resolvable:$true] %s42
      %48 = dma.hbm_to_vmem [thread:$0]  %s5, 512, %s43, [#allocation7], 64, 64, 4
    $region25: #{nnvit_forward.1} parent=1 // pred_fallthru
      _
    // Predicated region
    $region26: #{nnvit_forward.1} parent=1 // pred_check
      _
    $region27: #{nnvit_forward.1} parent=1 // pred_check_branch
      %50 = sbr.rel (0) target = $region29
    $region28: #{nnvit_forward.1} parent=1 // pred_region
      _
    $region29: #{nnvit_forward.1} parent=1 // pred_fallthru
      _
    // Predicated region
    $region30: #{nnvit_forward.1} parent=1 // pred_check
      _
    $region31: #{nnvit_forward.1} parent=1 // pred_check_branch
      %52 = sbr.rel (0) target = $region33
    $region32: #{nnvit_forward.1} parent=1 // pred_region
      _
    $region33: #{nnvit_forward.1} parent=1 // pred_fallthru
      _
    // Predicated region
    $region34: #{nnvit_forward.1} parent=1 // pred_check
      _
    $region35: #{nnvit_forward.1} parent=1 // pred_check_branch
      %54 = sbr.rel (0) target = $region37
    $region36: #{nnvit_forward.1} parent=1 // pred_region
      %s56 = ssub.s32 1024, 1024
      %57 = vsyncadd [#allocation7], %s56
      %s58 = sshll.u32 [#allocation8], 4
      %s59 = int_to_ptr.vmem [resolvable:$true] %s58
      %64 = dma.hbm_to_vmem [thread:$0]  %s8, 1024, %s59, [#allocation7], 128, 128, 8
    $region37: #{nnvit_forward.1} parent=1 // pred_fallthru
      _
    // Predicated region
    $region38: #{nnvit_forward.1} parent=1 // pred_check
      _
    $region39: #{nnvit_forward.1} parent=1 // pred_check_branch
      %66 = sbr.rel (0) target = $region41
    $region40: #{nnvit_forward.1} parent=1 // pred_region
      %67 = dma.done [#allocation4], 256
    $region41: #{nnvit_forward.1} parent=1 // pred_fallthru
      _
    // Predicated region
    $region42: #{nnvit_forward.1} parent=1 // pred_check
      _
    $region43: #{nnvit_forward.1} parent=1 // pred_check_branch
      %69 = sbr.rel (0) target = $region45
    $region44: #{nnvit_forward.1} parent=1 // pred_region
      %70 = dma.done [#allocation7], 512
    $region45: #{nnvit_forward.1} parent=1 // pred_fallthru
      _
    // Predicated region
    $region46: #{nnvit_forward.1} parent=1 // pred_check
      _
    $region47: #{nnvit_forward.1} parent=1 // pred_check_branch
      %72 = sbr.rel (0) target = $region49
    $region48: #{nnvit_forward.1} parent=1 // pred_region
      %73 = dma.done [#allocation7], 1024
    $region49: #{nnvit_forward.1} parent=1 // pred_fallthru
      _
    %v75 = vld [vmem:[%s1] sm:$0x1]
    %vm76 = vcmask 253952
    %77 = vst.msk [vmem:[#allocation2] sm:$0x1] %vm76, %v75
    %78 = vst.msk [vmem:[#allocation2 + $0x8] sm:$0x1] %vm76, %v75
    %79 = vst.msk [vmem:[#allocation2 + $0x10] sm:$0x1] %vm76, %v75
    %80 = vst.msk [vmem:[#allocation2 + $0x18] sm:$0x1] %vm76, %v75
    %81 = vst.msk [vmem:[#allocation2 + $0x20] sm:$0x1] %vm76, %v75
    %82 = vst.msk [vmem:[#allocation2 + $0x28] sm:$0x1] %vm76, %v75
    %83 = vst.msk [vmem:[#allocation2 + $0x30] sm:$0x1] %vm76, %v75
    %84 = vst.msk [vmem:[#allocation2 + $0x38] sm:$0x1] %vm76, %v75
    %85 = vst.msk [vmem:[#allocation2 + $0x40] sm:$0x1] %vm76, %v75
    %86 = vst.msk [vmem:[#allocation2 + $0x48] sm:$0x1] %vm76, %v75
    %87 = vst.msk [vmem:[#allocation2 + $0x50] sm:$0x1] %vm76, %v75
    %88 = vst.msk [vmem:[#allocation2 + $0x58] sm:$0x1] %vm76, %v75
    %89 = vst.msk [vmem:[#allocation2 + $0x60] sm:$0x1] %vm76, %v75
    %90 = vst.msk [vmem:[#allocation2 + $0x68] sm:$0x1] %vm76, %v75
    %91 = vst.msk [vmem:[#allocation2 + $0x70] sm:$0x1] %vm76, %v75
    %92 = vst.msk [vmem:[#allocation2 + $0x78] sm:$0x1] %vm76, %v75
    %v93 = vld [vmem:[%s0] sm:$0xf]
    %v94 = vld [vmem:[%s0 + $0x4] sm:$0xf]
    %v95 = vld [vmem:[%s0 + $0x8] sm:$0xf]
    %v96 = vld [vmem:[%s0 + $0xc] sm:$0xf]
    %v97 = vld [vmem:[%s0 + $0x10] sm:$0xf]
    %v98 = vld [vmem:[%s0 + $0x14] sm:$0xf]
    %v99 = vld [vmem:[%s0 + $0x18] sm:$0xf]
    %v100 = vld [vmem:[%s0 + $0x1c] sm:$0xf]
    %v101 = vld [vmem:[%s0 + $0x20] sm:$0xf]
    %v102 = vld [vmem:[%s0 + $0x24] sm:$0xf]
    %v103 = vld [vmem:[%s0 + $0x28] sm:$0xf]
    %v104 = vld [vmem:[%s0 + $0x2c] sm:$0xf]
    %v105 = vld [vmem:[%s0 + $0x30] sm:$0xf]
    %v106 = vld [vmem:[%s0 + $0x34] sm:$0xf]
    %v107 = vld [vmem:[%s0 + $0x38] sm:$0xf]
    %v108 = vld [vmem:[%s0 + $0x3c] sm:$0xf]
    %vm109 = vcmask 257024
    %110 = vst.msk [vmem:[#allocation2 + $0x1] sm:$0xf] %vm109, %v93
    %111 = vst.msk [vmem:[#allocation2 + $0x9] sm:$0xf] %vm109, %v94
    %112 = vst.msk [vmem:[#allocation2 + $0x11] sm:$0xf] %vm109, %v95
    %113 = vst.msk [vmem:[#allocation2 + $0x19] sm:$0xf] %vm109, %v96
    %114 = vst.msk [vmem:[#allocation2 + $0x21] sm:$0xf] %vm109, %v97
    %115 = vst.msk [vmem:[#allocation2 + $0x29] sm:$0xf] %vm109, %v98
    %116 = vst.msk [vmem:[#allocation2 + $0x31] sm:$0xf] %vm109, %v99
    %117 = vst.msk [vmem:[#allocation2 + $0x39] sm:$0xf] %vm109, %v100
    %118 = vst.msk [vmem:[#allocation2 + $0x41] sm:$0xf] %vm109, %v101
    %119 = vst.msk [vmem:[#allocation2 + $0x49] sm:$0xf] %vm109, %v102
    %120 = vst.msk [vmem:[#allocation2 + $0x51] sm:$0xf] %vm109, %v103
    %121 = vst.msk [vmem:[#allocation2 + $0x59] sm:$0xf] %vm109, %v104
    %122 = vst.msk [vmem:[#allocation2 + $0x61] sm:$0xf] %vm109, %v105
    %123 = vst.msk [vmem:[#allocation2 + $0x69] sm:$0xf] %vm109, %v106
    %124 = vst.msk [vmem:[#allocation2 + $0x71] sm:$0xf] %vm109, %v107
    %125 = vst.msk [vmem:[#allocation2 + $0x79] sm:$0xf] %vm109, %v108
    %vm126 = vcmask 256000
    %127 = vst.msk [vmem:[#allocation2 + $0x5] sm:$0x7] %vm126, 0.0
    %128 = vst.msk [vmem:[#allocation2 + $0xd] sm:$0x7] %vm126, 0.0
    %129 = vst.msk [vmem:[#allocation2 + $0x15] sm:$0x7] %vm126, 0.0
    %130 = vst.msk [vmem:[#allocation2 + $0x1d] sm:$0x7] %vm126, 0.0
    %131 = vst.msk [vmem:[#allocation2 + $0x25] sm:$0x7] %vm126, 0.0
    %132 = vst.msk [vmem:[#allocation2 + $0x2d] sm:$0x7] %vm126, 0.0
    %133 = vst.msk [vmem:[#allocation2 + $0x35] sm:$0x7] %vm126, 0.0
    %134 = vst.msk [vmem:[#allocation2 + $0x3d] sm:$0x7] %vm126, 0.0
    %135 = vst.msk [vmem:[#allocation2 + $0x45] sm:$0x7] %vm126, 0.0
    %136 = vst.msk [vmem:[#allocation2 + $0x4d] sm:$0x7] %vm126, 0.0
    %137 = vst.msk [vmem:[#allocation2 + $0x55] sm:$0x7] %vm126, 0.0
    %138 = vst.msk [vmem:[#allocation2 + $0x5d] sm:$0x7] %vm126, 0.0
    %139 = vst.msk [vmem:[#allocation2 + $0x65] sm:$0x7] %vm126, 0.0
    %140 = vst.msk [vmem:[#allocation2 + $0x6d] sm:$0x7] %vm126, 0.0
    %141 = vst.msk [vmem:[#allocation2 + $0x75] sm:$0x7] %vm126, 0.0
    %142 = vst.msk [vmem:[#allocation2 + $0x7d] sm:$0x7] %vm126, 0.0
    %v143 = vld [vmem:[#allocation2] sm:$0xff]
    %v144 = vld [vmem:[#allocation2 + $0x8] sm:$0xff]
    %v145 = vld [vmem:[#allocation2 + $0x10] sm:$0xff]
    %v146 = vld [vmem:[#allocation2 + $0x18] sm:$0xff]
    %v147 = vld [vmem:[#allocation2 + $0x20] sm:$0xff]
    %v148 = vld [vmem:[#allocation2 + $0x28] sm:$0xff]
    %v149 = vld [vmem:[#allocation2 + $0x30] sm:$0xff]
    %v150 = vld [vmem:[#allocation2 + $0x38] sm:$0xff]
    %v151 = vld [vmem:[#allocation2 + $0x40] sm:$0xff]
    %v152 = vld [vmem:[#allocation2 + $0x48] sm:$0xff]
    %v153 = vld [vmem:[#allocation2 + $0x50] sm:$0xff]
    %v154 = vld [vmem:[#allocation2 + $0x58] sm:$0xff]
    %v155 = vld [vmem:[#allocation2 + $0x60] sm:$0xff]
    %v156 = vld [vmem:[#allocation2 + $0x68] sm:$0xff]
    %v157 = vld [vmem:[#allocation2 + $0x70] sm:$0xff]
    %v158 = vld [vmem:[#allocation2 + $0x78] sm:$0xff]
    %v159 = vld [vmem:[%s7] sm:$0x1]
    %v160 = vld [vmem:[%s7 + $0x1] sm:$0x1]
    %v161 = vld [vmem:[%s7 + $0x2] sm:$0x1]
    %v162 = vld [vmem:[%s7 + $0x3] sm:$0x1]
    %v163 = vld [vmem:[%s7 + $0x4] sm:$0x1]
    %v164 = vld [vmem:[%s7 + $0x5] sm:$0x1]
    %v165 = vld [vmem:[%s7 + $0x6] sm:$0x1]
    %v166 = vld [vmem:[%s7 + $0x7] sm:$0x1]
    %v167 = vld [vmem:[#allocation8] sm:$0xff]
    %v168 = vld [vmem:[#allocation8 + $0x8] sm:$0xff]
    %v169 = vld [vmem:[#allocation8 + $0x10] sm:$0xff]
    %v170 = vld [vmem:[#allocation8 + $0x18] sm:$0xff]
    %v171 = vld [vmem:[#allocation8 + $0x20] sm:$0xff]
    %v172 = vld [vmem:[#allocation8 + $0x28] sm:$0xff]
    %v173 = vld [vmem:[#allocation8 + $0x30] sm:$0xff]
    %v174 = vld [vmem:[#allocation8 + $0x38] sm:$0xff]
    %v175 = vld [vmem:[%s2] sm:$0xf]
    %v176 = vld [vmem:[%s2 + $0x4] sm:$0xf]
    %v177 = vld [vmem:[%s2 + $0x8] sm:$0xf]
    %v178 = vld [vmem:[%s2 + $0xc] sm:$0xf]
    %v179 = vld [vmem:[%s2 + $0x10] sm:$0xf]
    %v180 = vld [vmem:[%s2 + $0x14] sm:$0xf]
    %v181 = vld [vmem:[%s2 + $0x18] sm:$0xf]
    %v182 = vld [vmem:[%s2 + $0x1c] sm:$0xf]
    %v183 = vld [vmem:[%s2 + $0x20] sm:$0xf]
    %v184 = vld [vmem:[%s2 + $0x24] sm:$0xf]
    %v185 = vld [vmem:[%s2 + $0x28] sm:$0xf]
    %v186 = vld [vmem:[%s2 + $0x2c] sm:$0xf]
    %v187 = vld [vmem:[%s3] sm:$0x1]
    %v188 = vld [vmem:[%s3 + $0x1] sm:$0x1]
    %v189 = vld [vmem:[%s3 + $0x2] sm:$0x1]
    %v190 = vpack.c.bf16 %v144, %v143
    %v191 = vpack.c.bf16 %v146, %v145
    %v192 = vpack.c.bf16 %v148, %v147
    %v193 = vpack.c.bf16 %v150, %v149
    %v194 = vpack.c.bf16 %v152, %v151
    %v195 = vpack.c.bf16 %v154, %v153
    %v196 = vpack.c.bf16 %v156, %v155
    %v197 = vpack.c.bf16 %v158, %v157
    %v199 = vlaneseq
    %v200 = vshrl.u32 %v199, 7
    %v201 = vsub.s32 0, %v200
    %v202 = vrot.slane %v187, %v201
    %v208 = vunpack.c.l.b16 %v175
    %v209 = vunpack.c.l.b16 %v176
    %v210 = vunpack.c.l.b16 %v177
    %v211 = vunpack.c.l.b16 %v178
    %v212 = vpack.c.b16 %v209, %v208
    %v213 = vpack.c.b16 %v211, %v210
    %vm216 = vcmask 261120
    %v218 = vsel %vm216, %v190, 0
    %v221 = vsel %vm216, %v191, 0
    %v224 = vsel %vm216, %v192, 0
    %v227 = vsel %vm216, %v193, 0
    %v230 = vsel %vm216, %v194, 0
    %v233 = vsel %vm216, %v195, 0
    %v236 = vsel %vm216, %v196, 0
    %v239 = vsel %vm216, %v197, 0
    %241 = vmatprep.subr.bf16.mxu0 0
    %242 = vmatpush1.bf16.msra.mxu0 %v212
    %243 = vmatprep.subr.bf16.mxu0 0
    %244 = vmatpush1.bf16.msra.mxu0 %v213
    %245 = vmatprep.subr.bf16.mxu0 0
    %246 = vmatpush1.bf16.msra.mxu0 0
    %247 = vmatprep.subr.bf16.mxu0 0
    %248 = vmatpush1.bf16.msra.mxu0 0
    %249 = vmatprep.subr.bf16.mxu0 0
    %250 = vmatpush1.bf16.msra.mxu0 0
    %251 = vmatprep.subr.bf16.mxu0 0
    %252 = vmatpush1.bf16.msra.mxu0 0
    %253 = vmatprep.subr.bf16.mxu0 0
    %254 = vmatpush1.bf16.msra.mxu0 0
    %255 = vmatprep.subr.bf16.mxu0 0
    %256 = vmatpush1.bf16.msra.mxu0 0
    %257 = vmatprep.subr.bf16.mxu0 0
    %258 = vmatpush1.bf16.msra.mxu0 0
    %259 = vmatprep.subr.bf16.mxu0 0
    %260 = vmatpush1.bf16.msra.mxu0 0
    %261 = vmatprep.subr.bf16.mxu0 0
    %262 = vmatpush1.bf16.msra.mxu0 0
    %263 = vmatprep.subr.bf16.mxu0 0
    %264 = vmatpush1.bf16.msra.mxu0 0
    %265 = vmatprep.subr.bf16.mxu0 0
    %266 = vmatpush1.bf16.msra.mxu0 0
    %267 = vmatprep.subr.bf16.mxu0 0
    %268 = vmatpush1.bf16.msra.mxu0 0
    %269 = vmatprep.subr.bf16.mxu0 0
    %270 = vmatpush1.bf16.msra.mxu0 0
    %271 = vmatprep.subr.bf16.mxu0 0
    %272 = vmatpush1.bf16.msra.mxu0 0
    %273 = vmatprep.mubr.bf16.mxu0 0
    %274 = vmatmul.mubr.bf16.gmra.mrb[0].mxu0 %v218
    %v275 = vpop.f32.mrb[0].mxu0
    %v276 = vadd.f32 %v202, %v275
    %v277 = vpop.f32.mrb[0].mxu0
    %v278 = vpop.f32.mrb[0].mxu0
    %v279 = vadd.f32 %v202, %v278
    %v280 = vpop.f32.mrb[0].mxu0
    %281 = vmatprep.mubr.bf16.mxu0 0
    %282 = vmatmul.mubr.bf16.gmra.mrb[0].mxu0 %v221
    %v283 = vpop.f32.mrb[0].mxu0
    %v284 = vadd.f32 %v202, %v283
    %v285 = vpop.f32.mrb[0].mxu0
    %v286 = vpop.f32.mrb[0].mxu0
    %v287 = vadd.f32 %v202, %v286
    %v288 = vpop.f32.mrb[0].mxu0
    %289 = vmatprep.mubr.bf16.mxu0 0
    %290 = vmatmul.mubr.bf16.gmra.mrb[0].mxu0 %v224
    %v291 = vpop.f32.mrb[0].mxu0
    %v292 = vadd.f32 %v202, %v291
    %v293 = vpop.f32.mrb[0].mxu0
    %v294 = vpop.f32.mrb[0].mxu0
    %v295 = vadd.f32 %v202, %v294
    %v296 = vpop.f32.mrb[0].mxu0
    %297 = vmatprep.mubr.bf16.mxu0 0
    %298 = vmatmul.mubr.bf16.gmra.mrb[0].mxu0 %v227
    %v299 = vpop.f32.mrb[0].mxu0
    %v300 = vadd.f32 %v202, %v299
    %v301 = vpop.f32.mrb[0].mxu0
    %v302 = vpop.f32.mrb[0].mxu0
    %v303 = vadd.f32 %v202, %v302
    %v304 = vpop.f32.mrb[0].mxu0
    %305 = vmatprep.mubr.bf16.mxu0 0
    %306 = vmatmul.mubr.bf16.gmra.mrb[0].mxu0 %v230
    %v307 = vpop.f32.mrb[0].mxu0
    %v308 = vadd.f32 %v202, %v307
    %v309 = vpop.f32.mrb[0].mxu0
    %v310 = vpop.f32.mrb[0].mxu0
    %v311 = vadd.f32 %v202, %v310
    %v312 = vpop.f32.mrb[0].mxu0
    %313 = vmatprep.mubr.bf16.mxu0 0
    %314 = vmatmul.mubr.bf16.gmra.mrb[0].mxu0 %v233
    %v315 = vpop.f32.mrb[0].mxu0
    %v316 = vadd.f32 %v202, %v315
    %v317 = vpop.f32.mrb[0].mxu0
    %v318 = vpop.f32.mrb[0].mxu0
    %v319 = vadd.f32 %v202, %v318
    %v320 = vpop.f32.mrb[0].mxu0
    %321 = vmatprep.mubr.bf16.mxu0 0
    %322 = vmatmul.mubr.bf16.gmra.mrb[0].mxu0 %v236
    %v323 = vpop.f32.mrb[0].mxu0
    %v324 = vadd.f32 %v202, %v323
    %v325 = vpop.f32.mrb[0].mxu0
    %v326 = vpop.f32.mrb[0].mxu0
    %v327 = vadd.f32 %v202, %v326
    %v328 = vpop.f32.mrb[0].mxu0
    %329 = vmatprep.mubr.bf16.mxu0 0
    %330 = vmatmul.mubr.bf16.gmra.mrb[0].mxu0 %v239
    %v331 = vpop.f32.mrb[0].mxu0
    %v332 = vadd.f32 %v202, %v331
    %v333 = vpop.f32.mrb[0].mxu0
    %v334 = vpop.f32.mrb[0].mxu0
    %v335 = vadd.f32 %v202, %v334
    %v336 = vpop.f32.mrb[0].mxu0
    %337 = vdwg.mxu0
    %v338 = vpack.c.bf16 %v276, %v276
    %v339 = vpack.c.bf16 %v279, %v279
    %v340 = vpack.c.bf16 %v284, %v284
    %v341 = vpack.c.bf16 %v287, %v287
    %v342 = vpack.c.bf16 %v292, %v292
    %v343 = vpack.c.bf16 %v295, %v295
    %v344 = vpack.c.bf16 %v300, %v300
    %v345 = vpack.c.bf16 %v303, %v303
    %v346 = vpack.c.bf16 %v308, %v308
    %v347 = vpack.c.bf16 %v311, %v311
    %v348 = vpack.c.bf16 %v316, %v316
    %v349 = vpack.c.bf16 %v319, %v319
    %v350 = vpack.c.bf16 %v324, %v324
    %v351 = vpack.c.bf16 %v327, %v327
    %v352 = vpack.c.bf16 %v332, %v332
    %v353 = vpack.c.bf16 %v335, %v335
    %v355 = vlaneseq
    %v356 = vshrl.u32 %v355, 7
    %v357 = vsub.s32 0, %v356
    %v358 = vrot.slane %v188, %v357
    %v364 = vunpack.c.l.b16 %v179
    %v365 = vunpack.c.l.b16 %v180
    %v366 = vunpack.c.l.b16 %v181
    %v367 = vunpack.c.l.b16 %v182
    %v368 = vpack.c.b16 %v365, %v364
    %v369 = vpack.c.b16 %v367, %v366
    %372 = vmatprep.subr.bf16.mxu0 0
    %373 = vmatpush1.bf16.msra.mxu0 %v368
    %374 = vmatprep.subr.bf16.mxu0 0
    %375 = vmatpush1.bf16.msra.mxu0 %v369
    %376 = vmatprep.subr.bf16.mxu0 0
    %377 = vmatpush1.bf16.msra.mxu0 0
    %378 = vmatprep.subr.bf16.mxu0 0
    %379 = vmatpush1.bf16.msra.mxu0 0
    %380 = vmatprep.subr.bf16.mxu0 0
    %381 = vmatpush1.bf16.msra.mxu0 0
    %382 = vmatprep.subr.bf16.mxu0 0
    %383 = vmatpush1.bf16.msra.mxu0 0
    %384 = vmatprep.subr.bf16.mxu0 0
    %385 = vmatpush1.bf16.msra.mxu0 0
    %386 = vmatprep.subr.bf16.mxu0 0
    %387 = vmatpush1.bf16.msra.mxu0 0
    %388 = vmatprep.subr.bf16.mxu0 0
    %389 = vmatpush1.bf16.msra.mxu0 0
    %390 = vmatprep.subr.bf16.mxu0 0
    %391 = vmatpush1.bf16.msra.mxu0 0
    %392 = vmatprep.subr.bf16.mxu0 0
    %393 = vmatpush1.bf16.msra.mxu0 0
    %394 = vmatprep.subr.bf16.mxu0 0
    %395 = vmatpush1.bf16.msra.mxu0 0
    %396 = vmatprep.subr.bf16.mxu0 0
    %397 = vmatpush1.bf16.msra.mxu0 0
    %398 = vmatprep.subr.bf16.mxu0 0
    %399 = vmatpush1.bf16.msra.mxu0 0
    %400 = vmatprep.subr.bf16.mxu0 0
    %401 = vmatpush1.bf16.msra.mxu0 0
    %402 = vmatprep.subr.bf16.mxu0 0
    %403 = vmatpush1.bf16.msra.mxu0 0
    %404 = vmatprep.mubr.bf16.mxu0 0
    %405 = vmatmul.mubr.bf16.gmra.mrb[0].mxu0 %v218
    %v406 = vpop.f32.mrb[0].mxu0
    %v407 = vadd.f32 %v358, %v406
    %v408 = vpop.f32.mrb[0].mxu0
    %v409 = vpop.f32.mrb[0].mxu0
    %v410 = vadd.f32 %v358, %v409
    %v411 = vpop.f32.mrb[0].mxu0
    %412 = vmatprep.mubr.bf16.mxu0 0
    %413 = vmatmul.mubr.bf16.gmra.mrb[0].mxu0 %v221
    %v414 = vpop.f32.mrb[0].mxu0
    %v415 = vadd.f32 %v358, %v414
    %v416 = vpop.f32.mrb[0].mxu0
    %v417 = vpop.f32.mrb[0].mxu0
    %v418 = vadd.f32 %v358, %v417
    %v419 = vpop.f32.mrb[0].mxu0
    %420 = vmatprep.mubr.bf16.mxu0 0
    %421 = vmatmul.mubr.bf16.gmra.mrb[0].mxu0 %v224
    %v422 = vpop.f32.mrb[0].mxu0
    %v423 = vadd.f32 %v358, %v422
    %v424 = vpop.f32.mrb[0].mxu0
    %v425 = vpop.f32.mrb[0].mxu0
    %v426 = vadd.f32 %v358, %v425
    %v427 = vpop.f32.mrb[0].mxu0
    %428 = vmatprep.mubr.bf16.mxu0 0
    %429 = vmatmul.mubr.bf16.gmra.mrb[0].mxu0 %v227
    %v430 = vpop.f32.mrb[0].mxu0
    %v431 = vadd.f32 %v358, %v430
    %v432 = vpop.f32.mrb[0].mxu0
    %v433 = vpop.f32.mrb[0].mxu0
    %v434 = vadd.f32 %v358, %v433
    %v435 = vpop.f32.mrb[0].mxu0
    %436 = vmatprep.mubr.bf16.mxu0 0
    %437 = vmatmul.mubr.bf16.gmra.mrb[0].mxu0 %v230
    %v438 = vpop.f32.mrb[0].mxu0
    %v439 = vadd.f32 %v358, %v438
    %v440 = vpop.f32.mrb[0].mxu0
    %v441 = vpop.f32.mrb[0].mxu0
    %v442 = vadd.f32 %v358, %v441
    %v443 = vpop.f32.mrb[0].mxu0
    %444 = vmatprep.mubr.bf16.mxu0 0
    %445 = vmatmul.mubr.bf16.gmra.mrb[0].mxu0 %v233
    %v446 = vpop.f32.mrb[0].mxu0
    %v447 = vadd.f32 %v358, %v446
    %v448 = vpop.f32.mrb[0].mxu0
    %v449 = vpop.f32.mrb[0].mxu0
    %v450 = vadd.f32 %v358, %v449
    %v451 = vpop.f32.mrb[0].mxu0
    %452 = vmatprep.mubr.bf16.mxu0 0
    %453 = vmatmul.mubr.bf16.gmra.mrb[0].mxu0 %v236
    %v454 = vpop.f32.mrb[0].mxu0
    %v455 = vadd.f32 %v358, %v454
    %v456 = vpop.f32.mrb[0].mxu0
    %v457 = vpop.f32.mrb[0].mxu0
    %v458 = vadd.f32 %v358, %v457
    %v459 = vpop.f32.mrb[0].mxu0
    %460 = vmatprep.mubr.bf16.mxu0 0
    %461 = vmatmul.mubr.bf16.gmra.mrb[0].mxu0 %v239
    %v462 = vpop.f32.mrb[0].mxu0
    %v463 = vadd.f32 %v358, %v462
    %v464 = vpop.f32.mrb[0].mxu0
    %v465 = vpop.f32.mrb[0].mxu0
    %v466 = vadd.f32 %v358, %v465
    %v467 = vpop.f32.mrb[0].mxu0
    %468 = vdwg.mxu0
    %v470 = vlaneseq
    %v471 = vshrl.u32 %v470, 7
    %v472 = vsub.s32 0, %v471
    %v473 = vrot.slane %v189, %v472
    %v479 = vunpack.c.l.b16 %v183
    %v480 = vunpack.c.l.b16 %v184
    %v481 = vunpack.c.l.b16 %v185
    %v482 = vunpack.c.l.b16 %v186
    %v483 = vpack.c.b16 %v480, %v479
    %v484 = vpack.c.b16 %v482, %v481
    %487 = vmatprep.subr.bf16.mxu0 0
    %488 = vmatpush1.bf16.msra.mxu0 %v483
    %489 = vmatprep.subr.bf16.mxu0 0
    %490 = vmatpush1.bf16.msra.mxu0 %v484
    %491 = vmatprep.subr.bf16.mxu0 0
    %492 = vmatpush1.bf16.msra.mxu0 0
    %493 = vmatprep.subr.bf16.mxu0 0
    %494 = vmatpush1.bf16.msra.mxu0 0
    %495 = vmatprep.subr.bf16.mxu0 0
    %496 = vmatpush1.bf16.msra.mxu0 0
    %497 = vmatprep.subr.bf16.mxu0 0
    %498 = vmatpush1.bf16.msra.mxu0 0
    %499 = vmatprep.subr.bf16.mxu0 0
    %500 = vmatpush1.bf16.msra.mxu0 0
    %501 = vmatprep.subr.bf16.mxu0 0
    %502 = vmatpush1.bf16.msra.mxu0 0
    %503 = vmatprep.subr.bf16.mxu0 0
    %504 = vmatpush1.bf16.msra.mxu0 0
    %505 = vmatprep.subr.bf16.mxu0 0
    %506 = vmatpush1.bf16.msra.mxu0 0
    %507 = vmatprep.subr.bf16.mxu0 0
    %508 = vmatpush1.bf16.msra.mxu0 0
    %509 = vmatprep.subr.bf16.mxu0 0
    %510 = vmatpush1.bf16.msra.mxu0 0
    %511 = vmatprep.subr.bf16.mxu0 0
    %512 = vmatpush1.bf16.msra.mxu0 0
    %513 = vmatprep.subr.bf16.mxu0 0
    %514 = vmatpush1.bf16.msra.mxu0 0
    %515 = vmatprep.subr.bf16.mxu0 0
    %516 = vmatpush1.bf16.msra.mxu0 0
    %517 = vmatprep.subr.bf16.mxu0 0
    %518 = vmatpush1.bf16.msra.mxu0 0
    %519 = vmatprep.mubr.bf16.mxu0 0
    %520 = vmatmul.mubr.bf16.gmra.mrb[0].mxu0 %v218
    %v521 = vpop.f32.mrb[0].mxu0
    %v522 = vadd.f32 %v473, %v521
    %v523 = vpop.f32.mrb[0].mxu0
    %v524 = vpop.f32.mrb[0].mxu0
    %v525 = vadd.f32 %v473, %v524
    %v526 = vpop.f32.mrb[0].mxu0
    %527 = vmatprep.mubr.bf16.mxu0 0
    %528 = vmatmul.mubr.bf16.gmra.mrb[0].mxu0 %v221
    %v529 = vpop.f32.mrb[0].mxu0
    %v530 = vadd.f32 %v473, %v529
    %v531 = vpop.f32.mrb[0].mxu0
    %v532 = vpop.f32.mrb[0].mxu0
    %v533 = vadd.f32 %v473, %v532
    %v534 = vpop.f32.mrb[0].mxu0
    %535 = vmatprep.mubr.bf16.mxu0 0
    %536 = vmatmul.mubr.bf16.gmra.mrb[0].mxu0 %v224
    %v537 = vpop.f32.mrb[0].mxu0
    %v538 = vadd.f32 %v473, %v537
    %v539 = vpop.f32.mrb[0].mxu0
    %v540 = vpop.f32.mrb[0].mxu0
    %v541 = vadd.f32 %v473, %v540
    %v542 = vpop.f32.mrb[0].mxu0
    %543 = vmatprep.mubr.bf16.mxu0 0
    %544 = vmatmul.mubr.bf16.gmra.mrb[0].mxu0 %v227
    %v545 = vpop.f32.mrb[0].mxu0
    %v546 = vadd.f32 %v473, %v545
    %v547 = vpop.f32.mrb[0].mxu0
    %v548 = vpop.f32.mrb[0].mxu0
    %v549 = vadd.f32 %v473, %v548
    %v550 = vpop.f32.mrb[0].mxu0
    %551 = vmatprep.mubr.bf16.mxu0 0
    %552 = vmatmul.mubr.bf16.gmra.mrb[0].mxu0 %v230
    %v553 = vpop.f32.mrb[0].mxu0
    %v554 = vadd.f32 %v473, %v553
    %v555 = vpop.f32.mrb[0].mxu0
    %v556 = vpop.f32.mrb[0].mxu0
    %v557 = vadd.f32 %v473, %v556
    %v558 = vpop.f32.mrb[0].mxu0
    %559 = vmatprep.mubr.bf16.mxu0 0
    %560 = vmatmul.mubr.bf16.gmra.mrb[0].mxu0 %v233
    %v561 = vpop.f32.mrb[0].mxu0
    %v562 = vadd.f32 %v473, %v561
    %v563 = vpop.f32.mrb[0].mxu0
    %v564 = vpop.f32.mrb[0].mxu0
    %v565 = vadd.f32 %v473, %v564
    %v566 = vpop.f32.mrb[0].mxu0
    %567 = vmatprep.mubr.bf16.mxu0 0
    %568 = vmatmul.mubr.bf16.gmra.mrb[0].mxu0 %v236
    %v569 = vpop.f32.mrb[0].mxu0
    %v570 = vadd.f32 %v473, %v569
    %v571 = vpop.f32.mrb[0].mxu0
    %v572 = vpop.f32.mrb[0].mxu0
    %v573 = vadd.f32 %v473, %v572
    %v574 = vpop.f32.mrb[0].mxu0
    %575 = vmatprep.mubr.bf16.mxu0 0
    %576 = vmatmul.mubr.bf16.gmra.mrb[0].mxu0 %v239
    %v577 = vpop.f32.mrb[0].mxu0
    %v578 = vadd.f32 %v473, %v577
    %v579 = vpop.f32.mrb[0].mxu0
    %v580 = vpop.f32.mrb[0].mxu0
    %v581 = vadd.f32 %v473, %v580
    %v582 = vpop.f32.mrb[0].mxu0
    %583 = vdwg.mxu0
    %v584 = vpack.c.bf16 %v407, %v407
    %v585 = vpack.c.bf16 %v410, %v410
    %v586 = vpack.c.bf16 %v415, %v415
    %v587 = vpack.c.bf16 %v418, %v418
    %v588 = vpack.c.bf16 %v423, %v423
    %v589 = vpack.c.bf16 %v426, %v426
    %v590 = vpack.c.bf16 %v431, %v431
    %v591 = vpack.c.bf16 %v434, %v434
    %v592 = vpack.c.bf16 %v439, %v439
    %v593 = vpack.c.bf16 %v442, %v442
    %v594 = vpack.c.bf16 %v447, %v447
    %v595 = vpack.c.bf16 %v450, %v450
    %v596 = vpack.c.bf16 %v455, %v455
    %v597 = vpack.c.bf16 %v458, %v458
    %v598 = vpack.c.bf16 %v463, %v463
    %v599 = vpack.c.bf16 %v466, %v466
    %v600 = vpack.c.bf16 %v522, %v522
    %v601 = vpack.c.bf16 %v525, %v525
    %v602 = vpack.c.bf16 %v530, %v530
    %v603 = vpack.c.bf16 %v533, %v533
    %v604 = vpack.c.bf16 %v538, %v538
    %v605 = vpack.c.bf16 %v541, %v541
    %v606 = vpack.c.bf16 %v546, %v546
    %v607 = vpack.c.bf16 %v549, %v549
    %v608 = vpack.c.bf16 %v554, %v554
    %v609 = vpack.c.bf16 %v557, %v557
    %v610 = vpack.c.bf16 %v562, %v562
    %v611 = vpack.c.bf16 %v565, %v565
    %v612 = vpack.c.bf16 %v570, %v570
    %v613 = vpack.c.bf16 %v573, %v573
    %v614 = vpack.c.bf16 %v578, %v578
    %v615 = vpack.c.bf16 %v581, %v581
    %v617 = vpack.i.b16 %v159, %v159
    %v619 = vlaneseq
    %v620 = vshrl.u32 %v619, 7
    %v621 = vsub.s32 0, %v620
    %v622 = vrot.slane %v617, %v621
    %v624 = vpack.i.b16 %v160, %v160
    %v626 = vlaneseq
    %v627 = vshrl.u32 %v626, 7
    %v628 = vsub.s32 0, %v627
    %v629 = vrot.slane %v624, %v628
    %v631 = vpack.i.b16 %v161, %v161
    %v633 = vlaneseq
    %v634 = vshrl.u32 %v633, 7
    %v635 = vsub.s32 0, %v634
    %v636 = vrot.slane %v631, %v635
    %v638 = vpack.i.b16 %v162, %v162
    %v640 = vlaneseq
    %v641 = vshrl.u32 %v640, 7
    %v642 = vsub.s32 0, %v641
    %v643 = vrot.slane %v638, %v642
    %v645 = vpack.i.b16 %v163, %v163
    %v647 = vlaneseq
    %v648 = vshrl.u32 %v647, 7
    %v649 = vsub.s32 0, %v648
    %v650 = vrot.slane %v645, %v649
    %v652 = vpack.i.b16 %v164, %v164
    %v654 = vlaneseq
    %v655 = vshrl.u32 %v654, 7
    %v656 = vsub.s32 0, %v655
    %v657 = vrot.slane %v652, %v656
    %v659 = vpack.i.b16 %v165, %v165
    %v661 = vlaneseq
    %v662 = vshrl.u32 %v661, 7
    %v663 = vsub.s32 0, %v662
    %v664 = vrot.slane %v659, %v663
    %v666 = vpack.i.b16 %v166, %v166
    %v668 = vlaneseq
    %v669 = vshrl.u32 %v668, 7
    %v670 = vsub.s32 0, %v669
    %v671 = vrot.slane %v666, %v670
    %v672 = vmul.bf16 %v584, %v622
    %v673 = vmul.bf16 %v584, %v629
    %v674 = vmul.bf16 %v584, %v636
    %v675 = vmul.bf16 %v584, %v643
    %v676 = vmul.bf16 %v584, %v650
    %v677 = vmul.bf16 %v584, %v657
    %v678 = vmul.bf16 %v584, %v664
    %v679 = vmul.bf16 %v584, %v671
    %v680 = vmul.bf16 %v585, %v622
    %v681 = vmul.bf16 %v585, %v629
    %v682 = vmul.bf16 %v585, %v636
    %v683 = vmul.bf16 %v585, %v643
    %v684 = vmul.bf16 %v585, %v650
    %v685 = vmul.bf16 %v585, %v657
    %v686 = vmul.bf16 %v585, %v664
    %v687 = vmul.bf16 %v585, %v671
    %v688 = vmul.bf16 %v586, %v622
    %v689 = vmul.bf16 %v586, %v629
    %v690 = vmul.bf16 %v586, %v636
    %v691 = vmul.bf16 %v586, %v643
    %v692 = vmul.bf16 %v586, %v650
    %v693 = vmul.bf16 %v586, %v657
    %v694 = vmul.bf16 %v586, %v664
    %v695 = vmul.bf16 %v586, %v671
    %v696 = vmul.bf16 %v587, %v622
    %v697 = vmul.bf16 %v587, %v629
    %v698 = vmul.bf16 %v587, %v636
    %v699 = vmul.bf16 %v587, %v643
    %v700 = vmul.bf16 %v587, %v650
    %v701 = vmul.bf16 %v587, %v657
    %v702 = vmul.bf16 %v587, %v664
    %v703 = vmul.bf16 %v587, %v671
    %v704 = vmul.bf16 %v588, %v622
    %v705 = vmul.bf16 %v588, %v629
    %v706 = vmul.bf16 %v588, %v636
    %v707 = vmul.bf16 %v588, %v643
    %v708 = vmul.bf16 %v588, %v650
    %v709 = vmul.bf16 %v588, %v657
    %v710 = vmul.bf16 %v588, %v664
    %v711 = vmul.bf16 %v588, %v671
    %v712 = vmul.bf16 %v589, %v622
    %v713 = vmul.bf16 %v589, %v629
    %v714 = vmul.bf16 %v589, %v636
    %v715 = vmul.bf16 %v589, %v643
    %v716 = vmul.bf16 %v589, %v650
    %v717 = vmul.bf16 %v589, %v657
    %v718 = vmul.bf16 %v589, %v664
    %v719 = vmul.bf16 %v589, %v671
    %v720 = vmul.bf16 %v590, %v622
    %v721 = vmul.bf16 %v590, %v629
    %v722 = vmul.bf16 %v590, %v636
    %v723 = vmul.bf16 %v590, %v643
    %v724 = vmul.bf16 %v590, %v650
    %v725 = vmul.bf16 %v590, %v657
    %v726 = vmul.bf16 %v590, %v664
    %v727 = vmul.bf16 %v590, %v671
    %v728 = vmul.bf16 %v591, %v622
    %v729 = vmul.bf16 %v591, %v629
    %v730 = vmul.bf16 %v591, %v636
    %v731 = vmul.bf16 %v591, %v643
    %v732 = vmul.bf16 %v591, %v650
    %v733 = vmul.bf16 %v591, %v657
    %v734 = vmul.bf16 %v591, %v664
    %v735 = vmul.bf16 %v591, %v671
    %v736 = vmul.bf16 %v592, %v622
    %v737 = vmul.bf16 %v592, %v629
    %v738 = vmul.bf16 %v592, %v636
    %v739 = vmul.bf16 %v592, %v643
    %v740 = vmul.bf16 %v592, %v650
    %v741 = vmul.bf16 %v592, %v657
    %v742 = vmul.bf16 %v592, %v664
    %v743 = vmul.bf16 %v592, %v671
    %v744 = vmul.bf16 %v593, %v622
    %v745 = vmul.bf16 %v593, %v629
    %v746 = vmul.bf16 %v593, %v636
    %v747 = vmul.bf16 %v593, %v643
    %v748 = vmul.bf16 %v593, %v650
    %v749 = vmul.bf16 %v593, %v657
    %v750 = vmul.bf16 %v593, %v664
    %v751 = vmul.bf16 %v593, %v671
    %v752 = vmul.bf16 %v594, %v622
    %v753 = vmul.bf16 %v594, %v629
    %v754 = vmul.bf16 %v594, %v636
    %v755 = vmul.bf16 %v594, %v643
    %v756 = vmul.bf16 %v594, %v650
    %v757 = vmul.bf16 %v594, %v657
    %v758 = vmul.bf16 %v594, %v664
    %v759 = vmul.bf16 %v594, %v671
    %v760 = vmul.bf16 %v595, %v622
    %v761 = vmul.bf16 %v595, %v629
    %v762 = vmul.bf16 %v595, %v636
    %v763 = vmul.bf16 %v595, %v643
    %v764 = vmul.bf16 %v595, %v650
    %v765 = vmul.bf16 %v595, %v657
    %v766 = vmul.bf16 %v595, %v664
    %v767 = vmul.bf16 %v595, %v671
    %v768 = vmul.bf16 %v596, %v622
    %v769 = vmul.bf16 %v596, %v629
    %v770 = vmul.bf16 %v596, %v636
    %v771 = vmul.bf16 %v596, %v643
    %v772 = vmul.bf16 %v596, %v650
    %v773 = vmul.bf16 %v596, %v657
    %v774 = vmul.bf16 %v596, %v664
    %v775 = vmul.bf16 %v596, %v671
    %v776 = vmul.bf16 %v597, %v622
    %v777 = vmul.bf16 %v597, %v629
    %v778 = vmul.bf16 %v597, %v636
    %v779 = vmul.bf16 %v597, %v643
    %v780 = vmul.bf16 %v597, %v650
    %v781 = vmul.bf16 %v597, %v657
    %v782 = vmul.bf16 %v597, %v664
    %v783 = vmul.bf16 %v597, %v671
    %v784 = vmul.bf16 %v598, %v622
    %v785 = vmul.bf16 %v598, %v629
    %v786 = vmul.bf16 %v598, %v636
    %v787 = vmul.bf16 %v598, %v643
    %v788 = vmul.bf16 %v598, %v650
    %v789 = vmul.bf16 %v598, %v657
    %v790 = vmul.bf16 %v598, %v664
    %v791 = vmul.bf16 %v598, %v671
    %v792 = vmul.bf16 %v599, %v622
    %v793 = vmul.bf16 %v599, %v629
    %v794 = vmul.bf16 %v599, %v636
    %v795 = vmul.bf16 %v599, %v643
    %v796 = vmul.bf16 %v599, %v650
    %v797 = vmul.bf16 %v599, %v657
    %v798 = vmul.bf16 %v599, %v664
    %v799 = vmul.bf16 %v599, %v671
    %v800 = vmul.bf16 %v600, %v622
    %v801 = vmul.bf16 %v600, %v629
    %v802 = vmul.bf16 %v600, %v636
    %v803 = vmul.bf16 %v600, %v643
    %v804 = vmul.bf16 %v600, %v650
    %v805 = vmul.bf16 %v600, %v657
    %v806 = vmul.bf16 %v600, %v664
    %v807 = vmul.bf16 %v600, %v671
    %v808 = vmul.bf16 %v601, %v622
    %v809 = vmul.bf16 %v601, %v629
    %v810 = vmul.bf16 %v601, %v636
    %v811 = vmul.bf16 %v601, %v643
    %v812 = vmul.bf16 %v601, %v650
    %v813 = vmul.bf16 %v601, %v657
    %v814 = vmul.bf16 %v601, %v664
    %v815 = vmul.bf16 %v601, %v671
    %v816 = vmul.bf16 %v602, %v622
    %v817 = vmul.bf16 %v602, %v629
    %v818 = vmul.bf16 %v602, %v636
    %v819 = vmul.bf16 %v602, %v643
    %v820 = vmul.bf16 %v602, %v650
    %v821 = vmul.bf16 %v602, %v657
    %v822 = vmul.bf16 %v602, %v664
    %v823 = vmul.bf16 %v602, %v671
    %v824 = vmul.bf16 %v603, %v622
    %v825 = vmul.bf16 %v603, %v629
    %v826 = vmul.bf16 %v603, %v636
    %v827 = vmul.bf16 %v603, %v643
    %v828 = vmul.bf16 %v603, %v650
    %v829 = vmul.bf16 %v603, %v657
    %v830 = vmul.bf16 %v603, %v664
    %v831 = vmul.bf16 %v603, %v671
    %v832 = vmul.bf16 %v604, %v622
    %v833 = vmul.bf16 %v604, %v629
    %v834 = vmul.bf16 %v604, %v636
    %v835 = vmul.bf16 %v604, %v643
    %v836 = vmul.bf16 %v604, %v650
    %v837 = vmul.bf16 %v604, %v657
    %v838 = vmul.bf16 %v604, %v664
    %v839 = vmul.bf16 %v604, %v671
    %v840 = vmul.bf16 %v605, %v622
    %v841 = vmul.bf16 %v605, %v629
    %v842 = vmul.bf16 %v605, %v636
    %v843 = vmul.bf16 %v605, %v643
    %v844 = vmul.bf16 %v605, %v650
    %v845 = vmul.bf16 %v605, %v657
    %v846 = vmul.bf16 %v605, %v664
    %v847 = vmul.bf16 %v605, %v671
    %v848 = vmul.bf16 %v606, %v622
    %v849 = vmul.bf16 %v606, %v629
    %v850 = vmul.bf16 %v606, %v636
    %v851 = vmul.bf16 %v606, %v643
    %v852 = vmul.bf16 %v606, %v650
    %v853 = vmul.bf16 %v606, %v657
    %v854 = vmul.bf16 %v606, %v664
    %v855 = vmul.bf16 %v606, %v671
    %v856 = vmul.bf16 %v607, %v622
    %v857 = vmul.bf16 %v607, %v629
    %v858 = vmul.bf16 %v607, %v636
    %v859 = vmul.bf16 %v607, %v643
    %v860 = vmul.bf16 %v607, %v650
    %v861 = vmul.bf16 %v607, %v657
    %v862 = vmul.bf16 %v607, %v664
    %v863 = vmul.bf16 %v607, %v671
    %v864 = vmul.bf16 %v608, %v622
    %v865 = vmul.bf16 %v608, %v629
    %v866 = vmul.bf16 %v608, %v636
    %v867 = vmul.bf16 %v608, %v643
    %v868 = vmul.bf16 %v608, %v650
    %v869 = vmul.bf16 %v608, %v657
    %v870 = vmul.bf16 %v608, %v664
    %v871 = vmul.bf16 %v608, %v671
    %v872 = vmul.bf16 %v609, %v622
    %v873 = vmul.bf16 %v609, %v629
    %v874 = vmul.bf16 %v609, %v636
    %v875 = vmul.bf16 %v609, %v643
    %v876 = vmul.bf16 %v609, %v650
    %v877 = vmul.bf16 %v609, %v657
    %v878 = vmul.bf16 %v609, %v664
    %v879 = vmul.bf16 %v609, %v671
    %v880 = vmul.bf16 %v610, %v622
    %v881 = vmul.bf16 %v610, %v629
    %v882 = vmul.bf16 %v610, %v636
    %v883 = vmul.bf16 %v610, %v643
    %v884 = vmul.bf16 %v610, %v650
    %v885 = vmul.bf16 %v610, %v657
    %v886 = vmul.bf16 %v610, %v664
    %v887 = vmul.bf16 %v610, %v671
    %v888 = vmul.bf16 %v611, %v622
    %v889 = vmul.bf16 %v611, %v629
    %v890 = vmul.bf16 %v611, %v636
    %v891 = vmul.bf16 %v611, %v643
    %v892 = vmul.bf16 %v611, %v650
    %v893 = vmul.bf16 %v611, %v657
    %v894 = vmul.bf16 %v611, %v664
    %v895 = vmul.bf16 %v611, %v671
    %v896 = vmul.bf16 %v612, %v622
    %v897 = vmul.bf16 %v612, %v629
    %v898 = vmul.bf16 %v612, %v636
    %v899 = vmul.bf16 %v612, %v643
    %v900 = vmul.bf16 %v612, %v650
    %v901 = vmul.bf16 %v612, %v657
    %v902 = vmul.bf16 %v612, %v664
    %v903 = vmul.bf16 %v612, %v671
    %v904 = vmul.bf16 %v613, %v622
    %v905 = vmul.bf16 %v613, %v629
    %v906 = vmul.bf16 %v613, %v636
    %v907 = vmul.bf16 %v613, %v643
    %v908 = vmul.bf16 %v613, %v650
    %v909 = vmul.bf16 %v613, %v657
    %v910 = vmul.bf16 %v613, %v664
    %v911 = vmul.bf16 %v613, %v671
    %v912 = vmul.bf16 %v614, %v622
    %v913 = vmul.bf16 %v614, %v629
    %v914 = vmul.bf16 %v614, %v636
    %v915 = vmul.bf16 %v614, %v643
    %v916 = vmul.bf16 %v614, %v650
    %v917 = vmul.bf16 %v614, %v657
    %v918 = vmul.bf16 %v614, %v664
    %v919 = vmul.bf16 %v614, %v671
    %v920 = vmul.bf16 %v615, %v622
    %v921 = vmul.bf16 %v615, %v629
    %v922 = vmul.bf16 %v615, %v636
    %v923 = vmul.bf16 %v615, %v643
    %v924 = vmul.bf16 %v615, %v650
    %v925 = vmul.bf16 %v615, %v657
    %v926 = vmul.bf16 %v615, %v664
    %v927 = vmul.bf16 %v615, %v671
    %v936 = vunpack.c.l.b16 %v672
    %v937 = vunpack.c.l.b16 %v673
    %v938 = vunpack.c.l.b16 %v674
    %v939 = vunpack.c.l.b16 %v675
    %v940 = vunpack.c.l.b16 %v676
    %v941 = vunpack.c.l.b16 %v677
    %v942 = vunpack.c.l.b16 %v678
    %v943 = vunpack.c.l.b16 %v679
    %v944 = vpack.c.b16 %v937, %v936
    %v945 = vpack.c.b16 %v939, %v938
    %v946 = vpack.c.b16 %v941, %v940
    %v947 = vpack.c.b16 %v943, %v942
    %v949 = vsel %vm216, %v338, 0
    %v952 = vsel %vm216, %v944, 0
    %v955 = vsel %vm216, %v945, 0
    %v958 = vsel %vm216, %v946, 0
    %v961 = vsel %vm216, %v947, 0
    %963 = vmatprep.subr.bf16.mxu0 0
    %964 = vmatpush1.bf16.xpose.msra.mxu0 %v952
    %965 = vmatprep.subr.bf16.mxu0 0
    %966 = vmatpush1.bf16.xpose.msra.mxu0 %v955
    %967 = vmatprep.subr.bf16.mxu0 0
    %968 = vmatpush1.bf16.xpose.msra.mxu0 %v958
    %969 = vmatprep.subr.bf16.mxu0 0
    %970 = vmatpush1.bf16.xpose.msra.mxu0 %v961
    %971 = vmatprep.subr.bf16.mxu0 0
    %972 = vmatpush1.bf16.xpose.msra.mxu0 0
    %973 = vmatprep.subr.bf16.mxu0 0
    %974 = vmatpush1.bf16.xpose.msra.mxu0 0
    %975 = vmatprep.subr.bf16.mxu0 0
    %976 = vmatpush1.bf16.xpose.msra.mxu0 0
    %977 = vmatprep.subr.bf16.mxu0 0
    %978 = vmatpush1.bf16.xpose.msra.mxu0 0
    %979 = vmatprep.subr.bf16.mxu0 0
    %980 = vmatpush1.bf16.xpose.msra.mxu0 0
    %981 = vmatprep.subr.bf16.mxu0 0
    %982 = vmatpush1.bf16.xpose.msra.mxu0 0
    %983 = vmatprep.subr.bf16.mxu0 0
    %984 = vmatpush1.bf16.xpose.msra.mxu0 0
    %985 = vmatprep.subr.bf16.mxu0 0
    %986 = vmatpush1.bf16.xpose.msra.mxu0 0
    %987 = vmatprep.subr.bf16.mxu0 0
    %988 = vmatpush1.bf16.xpose.msra.mxu0 0
    %989 = vmatprep.subr.bf16.mxu0 0
    %990 = vmatpush1.bf16.xpose.msra.mxu0 0
    %991 = vmatprep.subr.bf16.mxu0 0
    %992 = vmatpush1.bf16.xpose.msra.mxu0 0
    %993 = vmatprep.subr.bf16.mxu0 0
    %994 = vmatpush1.bf16.xpose.msra.mxu0 0
    %995 = vmatprep.mubr.bf16.mxu0 0
    %996 = vmatmul.mubr.bf16.gmra.mrb[0].mxu0 %v949
    %v997 = vpop.f32.mrb[0].mxu0
    %v998 = vadd.f32 0.0, %v997
    %v999 = vpop.f32.mrb[0].mxu0
    %v1000 = vpop.f32.mrb[0].mxu0
    %v1001 = vpop.f32.mrb[0].mxu0
    %1002 = vdwg.mxu0
    %v1011 = vunpack.c.l.b16 %v680
    %v1012 = vunpack.c.l.b16 %v681
    %v1013 = vunpack.c.l.b16 %v682
    %v1014 = vunpack.c.l.b16 %v683
    %v1015 = vunpack.c.l.b16 %v684
    %v1016 = vunpack.c.l.b16 %v685
    %v1017 = vunpack.c.l.b16 %v686
    %v1018 = vunpack.c.l.b16 %v687
    %v1019 = vpack.c.b16 %v1012, %v1011
    %v1020 = vpack.c.b16 %v1014, %v1013
    %v1021 = vpack.c.b16 %v1016, %v1015
    %v1022 = vpack.c.b16 %v1018, %v1017
    %v1024 = vsel %vm216, %v339, 0
    %v1027 = vsel %vm216, %v1019, 0
    %v1030 = vsel %vm216, %v1020, 0
    %v1033 = vsel %vm216, %v1021, 0
    %v1036 = vsel %vm216, %v1022, 0
    %1038 = vmatprep.subr.bf16.mxu0 0
    %1039 = vmatpush1.bf16.xpose.msra.mxu0 %v1027
    %1040 = vmatprep.subr.bf16.mxu0 0
    %1041 = vmatpush1.bf16.xpose.msra.mxu0 %v1030
    %1042 = vmatprep.subr.bf16.mxu0 0
    %1043 = vmatpush1.bf16.xpose.msra.mxu0 %v1033
    %1044 = vmatprep.subr.bf16.mxu0 0
    %1045 = vmatpush1.bf16.xpose.msra.mxu0 %v1036
    %1046 = vmatprep.subr.bf16.mxu0 0
    %1047 = vmatpush1.bf16.xpose.msra.mxu0 0
    %1048 = vmatprep.subr.bf16.mxu0 0
    %1049 = vmatpush1.bf16.xpose.msra.mxu0 0
    %1050 = vmatprep.subr.bf16.mxu0 0
    %1051 = vmatpush1.bf16.xpose.msra.mxu0 0
    %1052 = vmatprep.subr.bf16.mxu0 0
    %1053 = vmatpush1.bf16.xpose.msra.mxu0 0
    %1054 = vmatprep.subr.bf16.mxu0 0
    %1055 = vmatpush1.bf16.xpose.msra.mxu0 0
    %1056 = vmatprep.subr.bf16.mxu0 0
    %1057 = vmatpush1.bf16.xpose.msra.mxu0 0
    %1058 = vmatprep.subr.bf16.mxu0 0
    %1059 = vmatpush1.bf16.xpose.msra.mxu0 0
    %1060 = vmatprep.subr.bf16.mxu0 0
    %1061 = vmatpush1.bf16.xpose.msra.mxu0 0
    %1062 = vmatprep.subr.bf16.mxu0 0
    %1063 = vmatpush1.bf16.xpose.msra.mxu0 0
    %1064 = vmatprep.subr.bf16.mxu0 0
    %1065 = vmatpush1.bf16.xpose.msra.mxu0 0
    %1066 = vmatprep.subr.bf16.mxu0 0
    %1067 = vmatpush1.bf16.xpose.msra.mxu0 0
    %1068 = vmatprep.subr.bf16.mxu0 0
    %1069 = vmatpush1.bf16.xpose.msra.mxu0 0
    %1070 = vmatprep.mubr.bf16.mxu0 0
    %1071 = vmatmul.mubr.bf16.gmra.mrb[0].mxu0 %v1024
    %v1072 = vpop.f32.mrb[0].mxu0
    %v1073 = vadd.f32 0.0, %v1072
    %v1074 = vpop.f32.mrb[0].mxu0
    %v1075 = vpop.f32.mrb[0].mxu0
    %v1076 = vpop.f32.mrb[0].mxu0
    %1077 = vdwg.mxu0
    %v1086 = vunpack.c.l.b16 %v688
    %v1087 = vunpack.c.l.b16 %v689
    %v1088 = vunpack.c.l.b16 %v690
    %v1089 = vunpack.c.l.b16 %v691
    %v1090 = vunpack.c.l.b16 %v692
    %v1091 = vunpack.c.l.b16 %v693
    %v1092 = vunpack.c.l.b16 %v694
    %v1093 = vunpack.c.l.b16 %v695
    %v1094 = vpack.c.b16 %v1087, %v1086
    %v1095 = vpack.c.b16 %v1089, %v1088
    %v1096 = vpack.c.b16 %v1091, %v1090
    %v1097 = vpack.c.b16 %v1093, %v1092
    %v1099 = vsel %vm216, %v340, 0
    %v1102 = vsel %vm216, %v1094, 0
    %v1105 = vsel %vm216, %v1095, 0
    %v1108 = vsel %vm216, %v1096, 0
    %v1111 = vsel %vm216, %v1097, 0
    %1113 = vmatprep.subr.bf16.mxu0 0
    %1114 = vmatpush1.bf16.xpose.msra.mxu0 %v1102
    %1115 = vmatprep.subr.bf16.mxu0 0
    %1116 = vmatpush1.bf16.xpose.msra.mxu0 %v1105
    %1117 = vmatprep.subr.bf16.mxu0 0
    %1118 = vmatpush1.bf16.xpose.msra.mxu0 %v1108
    %1119 = vmatprep.subr.bf16.mxu0 0
    %1120 = vmatpush1.bf16.xpose.msra.mxu0 %v1111
    %1121 = vmatprep.subr.bf16.mxu0 0
    %1122 = vmatpush1.bf16.xpose.msra.mxu0 0
    %1123 = vmatprep.subr.bf16.mxu0 0
    %1124 = vmatpush1.bf16.xpose.msra.mxu0 0
    %1125 = vmatprep.subr.bf16.mxu0 0
    %1126 = vmatpush1.bf16.xpose.msra.mxu0 0
    %1127 = vmatprep.subr.bf16.mxu0 0
    %1128 = vmatpush1.bf16.xpose.msra.mxu0 0
    %1129 = vmatprep.subr.bf16.mxu0 0
    %1130 = vmatpush1.bf16.xpose.msra.mxu0 0
    %1131 = vmatprep.subr.bf16.mxu0 0
    %1132 = vmatpush1.bf16.xpose.msra.mxu0 0
    %1133 = vmatprep.subr.bf16.mxu0 0
    %1134 = vmatpush1.bf16.xpose.msra.mxu0 0
    %1135 = vmatprep.subr.bf16.mxu0 0
    %1136 = vmatpush1.bf16.xpose.msra.mxu0 0
    %1137 = vmatprep.subr.bf16.mxu0 0
    %1138 = vmatpush1.bf16.xpose.msra.mxu0 0
    %1139 = vmatprep.subr.bf16.mxu0 0
    %1140 = vmatpush1.bf16.xpose.msra.mxu0 0
    %1141 = vmatprep.subr.bf16.mxu0 0
    %1142 = vmatpush1.bf16.xpose.msra.mxu0 0
    %1143 = vmatprep.subr.bf16.mxu0 0
    %1144 = vmatpush1.bf16.xpose.msra.mxu0 0
    %1145 = vmatprep.mubr.bf16.mxu0 0
    %1146 = vmatmul.mubr.bf16.gmra.mrb[0].mxu0 %v1099
    %v1147 = vpop.f32.mrb[0].mxu0
    %v1148 = vadd.f32 0.0, %v1147
    %v1149 = vpop.f32.mrb[0].mxu0
    %v1150 = vpop.f32.mrb[0].mxu0
    %v1151 = vpop.f32.mrb[0].mxu0
    %1152 = vdwg.mxu0
    %v1161 = vunpack.c.l.b16 %v696
    %v1162 = vunpack.c.l.b16 %v697
    %v1163 = vunpack.c.l.b16 %v698
    %v1164 = vunpack.c.l.b16 %v699
    %v1165 = vunpack.c.l.b16 %v700
    %v1166 = vunpack.c.l.b16 %v701
    %v1167 = vunpack.c.l.b16 %v702
    %v1168 = vunpack.c.l.b16 %v703
    %v1169 = vpack.c.b16 %v1162, %v1161
    %v1170 = vpack.c.b16 %v1164, %v1163
    %v1171 = vpack.c.b16 %v1166, %v1165
    %v1172 = vpack.c.b16 %v1168, %v1167
    %v1174 = vsel %vm216, %v341, 0
    %v1177 = vsel %vm216, %v1169, 0
    %v1180 = vsel %vm216, %v1170, 0
    %v1183 = vsel %vm216, %v1171, 0
    %v1186 = vsel %vm216, %v1172, 0
    %1188 = vmatprep.subr.bf16.mxu0 0
    %1189 = vmatpush1.bf16.xpose.msra.mxu0 %v1177
    %1190 = vmatprep.subr.bf16.mxu0 0
    %1191 = vmatpush1.bf16.xpose.msra.mxu0 %v1180
    %1192 = vmatprep.subr.bf16.mxu0 0
    %1193 = vmatpush1.bf16.xpose.msra.mxu0 %v1183
    %1194 = vmatprep.subr.bf16.mxu0 0
    %1195 = vmatpush1.bf16.xpose.msra.mxu0 %v1186
    %1196 = vmatprep.subr.bf16.mxu0 0
    %1197 = vmatpush1.bf16.xpose.msra.mxu0 0
    %1198 = vmatprep.subr.bf16.mxu0 0
    %1199 = vmatpush1.bf16.xpose.msra.mxu0 0
    %1200 = vmatprep.subr.bf16.mxu0 0
    %1201 = vmatpush1.bf16.xpose.msra.mxu0 0
    %1202 = vmatprep.subr.bf16.mxu0 0
    %1203 = vmatpush1.bf16.xpose.msra.mxu0 0
    %1204 = vmatprep.subr.bf16.mxu0 0
    %1205 = vmatpush1.bf16.xpose.msra.mxu0 0
    %1206 = vmatprep.subr.bf16.mxu0 0
    %1207 = vmatpush1.bf16.xpose.msra.mxu0 0
    %1208 = vmatprep.subr.bf16.mxu0 0
    %1209 = vmatpush1.bf16.xpose.msra.mxu0 0
    %1210 = vmatprep.subr.bf16.mxu0 0
    %1211 = vmatpush1.bf16.xpose.msra.mxu0 0
    %1212 = vmatprep.subr.bf16.mxu0 0
    %1213 = vmatpush1.bf16.xpose.msra.mxu0 0
    %1214 = vmatprep.subr.bf16.mxu0 0
    %1215 = vmatpush1.bf16.xpose.msra.mxu0 0
    %1216 = vmatprep.subr.bf16.mxu0 0
    %1217 = vmatpush1.bf16.xpose.msra.mxu0 0
    %1218 = vmatprep.subr.bf16.mxu0 0
    %1219 = vmatpush1.bf16.xpose.msra.mxu0 0
    %1220 = vmatprep.mubr.bf16.mxu0 0
    %1221 = vmatmul.mubr.bf16.gmra.mrb[0].mxu0 %v1174
    %v1222 = vpop.f32.mrb[0].mxu0
    %v1223 = vadd.f32 0.0, %v1222
    %v1224 = vpop.f32.mrb[0].mxu0
    %v1225 = vpop.f32.mrb[0].mxu0
    %v1226 = vpop.f32.mrb[0].mxu0
    %1227 = vdwg.mxu0
    %v1236 = vunpack.c.l.b16 %v704
    %v1237 = vunpack.c.l.b16 %v705
    %v1238 = vunpack.c.l.b16 %v706
    %v1239 = vunpack.c.l.b16 %v707
    %v1240 = vunpack.c.l.b16 %v708
    %v1241 = vunpack.c.l.b16 %v709
    %v1242 = vunpack.c.l.b16 %v710
    %v1243 = vunpack.c.l.b16 %v711
    %v1244 = vpack.c.b16 %v1237, %v1236
    %v1245 = vpack.c.b16 %v1239, %v1238
    %v1246 = vpack.c.b16 %v1241, %v1240
    %v1247 = vpack.c.b16 %v1243, %v1242
    %v1249 = vsel %vm216, %v342, 0
    %v1252 = vsel %vm216, %v1244, 0
    %v1255 = vsel %vm216, %v1245, 0
    %v1258 = vsel %vm216, %v1246, 0
    %v1261 = vsel %vm216, %v1247, 0
    %1263 = vmatprep.subr.bf16.mxu0 0
    %1264 = vmatpush1.bf16.xpose.msra.mxu0 %v1252
    %1265 = vmatprep.subr.bf16.mxu0 0
    %1266 = vmatpush1.bf16.xpose.msra.mxu0 %v1255
    %1267 = vmatprep.subr.bf16.mxu0 0
    %1268 = vmatpush1.bf16.xpose.msra.mxu0 %v1258
    %1269 = vmatprep.subr.bf16.mxu0 0
    %1270 = vmatpush1.bf16.xpose.msra.mxu0 %v1261
    %1271 = vmatprep.subr.bf16.mxu0 0
    %1272 = vmatpush1.bf16.xpose.msra.mxu0 0
    %1273 = vmatprep.subr.bf16.mxu0 0
    %1274 = vmatpush1.bf16.xpose.msra.mxu0 0
    %1275 = vmatprep.subr.bf16.mxu0 0
    %1276 = vmatpush1.bf16.xpose.msra.mxu0 0
    %1277 = vmatprep.subr.bf16.mxu0 0
    %1278 = vmatpush1.bf16.xpose.msra.mxu0 0
    %1279 = vmatprep.subr.bf16.mxu0 0
    %1280 = vmatpush1.bf16.xpose.msra.mxu0 0
    %1281 = vmatprep.subr.bf16.mxu0 0
    %1282 = vmatpush1.bf16.xpose.msra.mxu0 0
    %1283 = vmatprep.subr.bf16.mxu0 0
    %1284 = vmatpush1.bf16.xpose.msra.mxu0 0
    %1285 = vmatprep.subr.bf16.mxu0 0
    %1286 = vmatpush1.bf16.xpose.msra.mxu0 0
    %1287 = vmatprep.subr.bf16.mxu0 0
    %1288 = vmatpush1.bf16.xpose.msra.mxu0 0
    %1289 = vmatprep.subr.bf16.mxu0 0
    %1290 = vmatpush1.bf16.xpose.msra.mxu0 0
    %1291 = vmatprep.subr.bf16.mxu0 0
    %1292 = vmatpush1.bf16.xpose.msra.mxu0 0
    %1293 = vmatprep.subr.bf16.mxu0 0
    %1294 = vmatpush1.bf16.xpose.msra.mxu0 0
    %1295 = vmatprep.mubr.bf16.mxu0 0
    %1296 = vmatmul.mubr.bf16.gmra.mrb[0].mxu0 %v1249
    %v1297 = vpop.f32.mrb[0].mxu0
    %v1298 = vadd.f32 0.0, %v1297
    %v1299 = vpop.f32.mrb[0].mxu0
    %v1300 = vpop.f32.mrb[0].mxu0
    %v1301 = vpop.f32.mrb[0].mxu0
    %1302 = vdwg.mxu0
    %v1311 = vunpack.c.l.b16 %v712
    %v1312 = vunpack.c.l.b16 %v713
    %v1313 = vunpack.c.l.b16 %v714
    %v1314 = vunpack.c.l.b16 %v715
    %v1315 = vunpack.c.l.b16 %v716
    %v1316 = vunpack.c.l.b16 %v717
    %v1317 = vunpack.c.l.b16 %v718
    %v1318 = vunpack.c.l.b16 %v719
    %v1319 = vpack.c.b16 %v1312, %v1311
    %v1320 = vpack.c.b16 %v1314, %v1313
    %v1321 = vpack.c.b16 %v1316, %v1315
    %v1322 = vpack.c.b16 %v1318, %v1317
    %v1324 = vsel %vm216, %v343, 0
    %v1327 = vsel %vm216, %v1319, 0
    %v1330 = vsel %vm216, %v1320, 0
    %v1333 = vsel %vm216, %v1321, 0
    %v1336 = vsel %vm216, %v1322, 0
    %1338 = vmatprep.subr.bf16.mxu0 0
    %1339 = vmatpush1.bf16.xpose.msra.mxu0 %v1327
    %1340 = vmatprep.subr.bf16.mxu0 0
    %1341 = vmatpush1.bf16.xpose.msra.mxu0 %v1330
    %1342 = vmatprep.subr.bf16.mxu0 0
    %1343 = vmatpush1.bf16.xpose.msra.mxu0 %v1333
    %1344 = vmatprep.subr.bf16.mxu0 0
    %1345 = vmatpush1.bf16.xpose.msra.mxu0 %v1336
    %1346 = vmatprep.subr.bf16.mxu0 0
    %1347 = vmatpush1.bf16.xpose.msra.mxu0 0
    %1348 = vmatprep.subr.bf16.mxu0 0
    %1349 = vmatpush1.bf16.xpose.msra.mxu0 0
    %1350 = vmatprep.subr.bf16.mxu0 0
    %1351 = vmatpush1.bf16.xpose.msra.mxu0 0
    %1352 = vmatprep.subr.bf16.mxu0 0
    %1353 = vmatpush1.bf16.xpose.msra.mxu0 0
    %1354 = vmatprep.subr.bf16.mxu0 0
    %1355 = vmatpush1.bf16.xpose.msra.mxu0 0
    %1356 = vmatprep.subr.bf16.mxu0 0
    %1357 = vmatpush1.bf16.xpose.msra.mxu0 0
    %1358 = vmatprep.subr.bf16.mxu0 0
    %1359 = vmatpush1.bf16.xpose.msra.mxu0 0
    %1360 = vmatprep.subr.bf16.mxu0 0
    %1361 = vmatpush1.bf16.xpose.msra.mxu0 0
    %1362 = vmatprep.subr.bf16.mxu0 0
    %1363 = vmatpush1.bf16.xpose.msra.mxu0 0
    %1364 = vmatprep.subr.bf16.mxu0 0
    %1365 = vmatpush1.bf16.xpose.msra.mxu0 0
    %1366 = vmatprep.subr.bf16.mxu0 0
    %1367 = vmatpush1.bf16.xpose.msra.mxu0 0
    %1368 = vmatprep.subr.bf16.mxu0 0
    %1369 = vmatpush1.bf16.xpose.msra.mxu0 0
    %1370 = vmatprep.mubr.bf16.mxu0 0
    %1371 = vmatmul.mubr.bf16.gmra.mrb[0].mxu0 %v1324
    %v1372 = vpop.f32.mrb[0].mxu0
    %v1373 = vadd.f32 0.0, %v1372
    %v1374 = vpop.f32.mrb[0].mxu0
    %v1375 = vpop.f32.mrb[0].mxu0
    %v1376 = vpop.f32.mrb[0].mxu0
    %1377 = vdwg.mxu0
    %v1386 = vunpack.c.l.b16 %v720
    %v1387 = vunpack.c.l.b16 %v721
    %v1388 = vunpack.c.l.b16 %v722
    %v1389 = vunpack.c.l.b16 %v723
    %v1390 = vunpack.c.l.b16 %v724
    %v1391 = vunpack.c.l.b16 %v725
    %v1392 = vunpack.c.l.b16 %v726
    %v1393 = vunpack.c.l.b16 %v727
    %v1394 = vpack.c.b16 %v1387, %v1386
    %v1395 = vpack.c.b16 %v1389, %v1388
    %v1396 = vpack.c.b16 %v1391, %v1390
    %v1397 = vpack.c.b16 %v1393, %v1392
    %v1399 = vsel %vm216, %v344, 0
    %v1402 = vsel %vm216, %v1394, 0
    %v1405 = vsel %vm216, %v1395, 0
    %v1408 = vsel %vm216, %v1396, 0
    %v1411 = vsel %vm216, %v1397, 0
    %1413 = vmatprep.subr.bf16.mxu0 0
    %1414 = vmatpush1.bf16.xpose.msra.mxu0 %v1402
    %1415 = vmatprep.subr.bf16.mxu0 0
    %1416 = vmatpush1.bf16.xpose.msra.mxu0 %v1405
    %1417 = vmatprep.subr.bf16.mxu0 0
    %1418 = vmatpush1.bf16.xpose.msra.mxu0 %v1408
    %1419 = vmatprep.subr.bf16.mxu0 0
    %1420 = vmatpush1.bf16.xpose.msra.mxu0 %v1411
    %1421 = vmatprep.subr.bf16.mxu0 0
    %1422 = vmatpush1.bf16.xpose.msra.mxu0 0
    %1423 = vmatprep.subr.bf16.mxu0 0
    %1424 = vmatpush1.bf16.xpose.msra.mxu0 0
    %1425 = vmatprep.subr.bf16.mxu0 0
    %1426 = vmatpush1.bf16.xpose.msra.mxu0 0
    %1427 = vmatprep.subr.bf16.mxu0 0
    %1428 = vmatpush1.bf16.xpose.msra.mxu0 0
    %1429 = vmatprep.subr.bf16.mxu0 0
    %1430 = vmatpush1.bf16.xpose.msra.mxu0 0
    %1431 = vmatprep.subr.bf16.mxu0 0
    %1432 = vmatpush1.bf16.xpose.msra.mxu0 0
    %1433 = vmatprep.subr.bf16.mxu0 0
    %1434 = vmatpush1.bf16.xpose.msra.mxu0 0
    %1435 = vmatprep.subr.bf16.mxu0 0
    %1436 = vmatpush1.bf16.xpose.msra.mxu0 0
    %1437 = vmatprep.subr.bf16.mxu0 0
    %1438 = vmatpush1.bf16.xpose.msra.mxu0 0
    %1439 = vmatprep.subr.bf16.mxu0 0
    %1440 = vmatpush1.bf16.xpose.msra.mxu0 0
    %1441 = vmatprep.subr.bf16.mxu0 0
    %1442 = vmatpush1.bf16.xpose.msra.mxu0 0
    %1443 = vmatprep.subr.bf16.mxu0 0
    %1444 = vmatpush1.bf16.xpose.msra.mxu0 0
    %1445 = vmatprep.mubr.bf16.mxu0 0
    %1446 = vmatmul.mubr.bf16.gmra.mrb[0].mxu0 %v1399
    %v1447 = vpop.f32.mrb[0].mxu0
    %v1448 = vadd.f32 0.0, %v1447
    %v1449 = vpop.f32.mrb[0].mxu0
    %v1450 = vpop.f32.mrb[0].mxu0
    %v1451 = vpop.f32.mrb[0].mxu0
    %1452 = vdwg.mxu0
    %v1461 = vunpack.c.l.b16 %v728
    %v1462 = vunpack.c.l.b16 %v729
    %v1463 = vunpack.c.l.b16 %v730
    %v1464 = vunpack.c.l.b16 %v731
    %v1465 = vunpack.c.l.b16 %v732
    %v1466 = vunpack.c.l.b16 %v733
    %v1467 = vunpack.c.l.b16 %v734
    %v1468 = vunpack.c.l.b16 %v735
    %v1469 = vpack.c.b16 %v1462, %v1461
    %v1470 = vpack.c.b16 %v1464, %v1463
    %v1471 = vpack.c.b16 %v1466, %v1465
    %v1472 = vpack.c.b16 %v1468, %v1467
    %v1474 = vsel %vm216, %v345, 0
    %v1477 = vsel %vm216, %v1469, 0
    %v1480 = vsel %vm216, %v1470, 0
    %v1483 = vsel %vm216, %v1471, 0
    %v1486 = vsel %vm216, %v1472, 0
    %1488 = vmatprep.subr.bf16.mxu0 0
    %1489 = vmatpush1.bf16.xpose.msra.mxu0 %v1477
    %1490 = vmatprep.subr.bf16.mxu0 0
    %1491 = vmatpush1.bf16.xpose.msra.mxu0 %v1480
    %1492 = vmatprep.subr.bf16.mxu0 0
    %1493 = vmatpush1.bf16.xpose.msra.mxu0 %v1483
    %1494 = vmatprep.subr.bf16.mxu0 0
    %1495 = vmatpush1.bf16.xpose.msra.mxu0 %v1486
    %1496 = vmatprep.subr.bf16.mxu0 0
    %1497 = vmatpush1.bf16.xpose.msra.mxu0 0
    %1498 = vmatprep.subr.bf16.mxu0 0
    %1499 = vmatpush1.bf16.xpose.msra.mxu0 0
    %1500 = vmatprep.subr.bf16.mxu0 0
    %1501 = vmatpush1.bf16.xpose.msra.mxu0 0
    %1502 = vmatprep.subr.bf16.mxu0 0
    %1503 = vmatpush1.bf16.xpose.msra.mxu0 0
    %1504 = vmatprep.subr.bf16.mxu0 0
    %1505 = vmatpush1.bf16.xpose.msra.mxu0 0
    %1506 = vmatprep.subr.bf16.mxu0 0
    %1507 = vmatpush1.bf16.xpose.msra.mxu0 0
    %1508 = vmatprep.subr.bf16.mxu0 0
    %1509 = vmatpush1.bf16.xpose.msra.mxu0 0
    %1510 = vmatprep.subr.bf16.mxu0 0
    %1511 = vmatpush1.bf16.xpose.msra.mxu0 0
    %1512 = vmatprep.subr.bf16.mxu0 0
    %1513 = vmatpush1.bf16.xpose.msra.mxu0 0
    %1514 = vmatprep.subr.bf16.mxu0 0
    %1515 = vmatpush1.bf16.xpose.msra.mxu0 0
    %1516 = vmatprep.subr.bf16.mxu0 0
    %1517 = vmatpush1.bf16.xpose.msra.mxu0 0
    %1518 = vmatprep.subr.bf16.mxu0 0
    %1519 = vmatpush1.bf16.xpose.msra.mxu0 0
    %1520 = vmatprep.mubr.bf16.mxu0 0
    %1521 = vmatmul.mubr.bf16.gmra.mrb[0].mxu0 %v1474
    %v1522 = vpop.f32.mrb[0].mxu0
    %v1523 = vadd.f32 0.0, %v1522
    %v1524 = vpop.f32.mrb[0].mxu0
    %v1525 = vpop.f32.mrb[0].mxu0
    %v1526 = vpop.f32.mrb[0].mxu0
    %1527 = vdwg.mxu0
    %v1536 = vunpack.c.l.b16 %v736
    %v1537 = vunpack.c.l.b16 %v737
    %v1538 = vunpack.c.l.b16 %v738
    %v1539 = vunpack.c.l.b16 %v739
    %v1540 = vunpack.c.l.b16 %v740
    %v1541 = vunpack.c.l.b16 %v741
    %v1542 = vunpack.c.l.b16 %v742
    %v1543 = vunpack.c.l.b16 %v743
    %v1544 = vpack.c.b16 %v1537, %v1536
    %v1545 = vpack.c.b16 %v1539, %v1538
    %v1546 = vpack.c.b16 %v1541, %v1540
    %v1547 = vpack.c.b16 %v1543, %v1542
    %v1549 = vsel %vm216, %v346, 0
    %v1552 = vsel %vm216, %v1544, 0
    %v1555 = vsel %vm216, %v1545, 0
    %v1558 = vsel %vm216, %v1546, 0
    %v1561 = vsel %vm216, %v1547, 0
    %1563 = vmatprep.subr.bf16.mxu0 0
    %1564 = vmatpush1.bf16.xpose.msra.mxu0 %v1552
    %1565 = vmatprep.subr.bf16.mxu0 0
    %1566 = vmatpush1.bf16.xpose.msra.mxu0 %v1555
    %1567 = vmatprep.subr.bf16.mxu0 0
    %1568 = vmatpush1.bf16.xpose.msra.mxu0 %v1558
    %1569 = vmatprep.subr.bf16.mxu0 0
    %1570 = vmatpush1.bf16.xpose.msra.mxu0 %v1561
    %1571 = vmatprep.subr.bf16.mxu0 0
    %1572 = vmatpush1.bf16.xpose.msra.mxu0 0
    %1573 = vmatprep.subr.bf16.mxu0 0
    %1574 = vmatpush1.bf16.xpose.msra.mxu0 0
    %1575 = vmatprep.subr.bf16.mxu0 0
    %1576 = vmatpush1.bf16.xpose.msra.mxu0 0
    %1577 = vmatprep.subr.bf16.mxu0 0
    %1578 = vmatpush1.bf16.xpose.msra.mxu0 0
    %1579 = vmatprep.subr.bf16.mxu0 0
    %1580 = vmatpush1.bf16.xpose.msra.mxu0 0
    %1581 = vmatprep.subr.bf16.mxu0 0
    %1582 = vmatpush1.bf16.xpose.msra.mxu0 0
    %1583 = vmatprep.subr.bf16.mxu0 0
    %1584 = vmatpush1.bf16.xpose.msra.mxu0 0
    %1585 = vmatprep.subr.bf16.mxu0 0
    %1586 = vmatpush1.bf16.xpose.msra.mxu0 0
    %1587 = vmatprep.subr.bf16.mxu0 0
    %1588 = vmatpush1.bf16.xpose.msra.mxu0 0
    %1589 = vmatprep.subr.bf16.mxu0 0
    %1590 = vmatpush1.bf16.xpose.msra.mxu0 0
    %1591 = vmatprep.subr.bf16.mxu0 0
    %1592 = vmatpush1.bf16.xpose.msra.mxu0 0
    %1593 = vmatprep.subr.bf16.mxu0 0
    %1594 = vmatpush1.bf16.xpose.msra.mxu0 0
    %1595 = vmatprep.mubr.bf16.mxu0 0
    %1596 = vmatmul.mubr.bf16.gmra.mrb[0].mxu0 %v1549
    %v1597 = vpop.f32.mrb[0].mxu0
    %v1598 = vadd.f32 0.0, %v1597
    %v1599 = vpop.f32.mrb[0].mxu0
    %v1600 = vpop.f32.mrb[0].mxu0
    %v1601 = vpop.f32.mrb[0].mxu0
    %1602 = vdwg.mxu0
    %v1611 = vunpack.c.l.b16 %v744
    %v1612 = vunpack.c.l.b16 %v745
    %v1613 = vunpack.c.l.b16 %v746
    %v1614 = vunpack.c.l.b16 %v747
    %v1615 = vunpack.c.l.b16 %v748
    %v1616 = vunpack.c.l.b16 %v749
    %v1617 = vunpack.c.l.b16 %v750
    %v1618 = vunpack.c.l.b16 %v751
    %v1619 = vpack.c.b16 %v1612, %v1611
    %v1620 = vpack.c.b16 %v1614, %v1613
    %v1621 = vpack.c.b16 %v1616, %v1615
    %v1622 = vpack.c.b16 %v1618, %v1617
    %v1624 = vsel %vm216, %v347, 0
    %v1627 = vsel %vm216, %v1619, 0
    %v1630 = vsel %vm216, %v1620, 0
    %v1633 = vsel %vm216, %v1621, 0
    %v1636 = vsel %vm216, %v1622, 0
    %1638 = vmatprep.subr.bf16.mxu0 0
    %1639 = vmatpush1.bf16.xpose.msra.mxu0 %v1627
    %1640 = vmatprep.subr.bf16.mxu0 0
    %1641 = vmatpush1.bf16.xpose.msra.mxu0 %v1630
    %1642 = vmatprep.subr.bf16.mxu0 0
    %1643 = vmatpush1.bf16.xpose.msra.mxu0 %v1633
    %1644 = vmatprep.subr.bf16.mxu0 0
    %1645 = vmatpush1.bf16.xpose.msra.mxu0 %v1636
    %1646 = vmatprep.subr.bf16.mxu0 0
    %1647 = vmatpush1.bf16.xpose.msra.mxu0 0
    %1648 = vmatprep.subr.bf16.mxu0 0
    %1649 = vmatpush1.bf16.xpose.msra.mxu0 0
    %1650 = vmatprep.subr.bf16.mxu0 0
    %1651 = vmatpush1.bf16.xpose.msra.mxu0 0
    %1652 = vmatprep.subr.bf16.mxu0 0
    %1653 = vmatpush1.bf16.xpose.msra.mxu0 0
    %1654 = vmatprep.subr.bf16.mxu0 0
    %1655 = vmatpush1.bf16.xpose.msra.mxu0 0
    %1656 = vmatprep.subr.bf16.mxu0 0
    %1657 = vmatpush1.bf16.xpose.msra.mxu0 0
    %1658 = vmatprep.subr.bf16.mxu0 0
    %1659 = vmatpush1.bf16.xpose.msra.mxu0 0
    %1660 = vmatprep.subr.bf16.mxu0 0
    %1661 = vmatpush1.bf16.xpose.msra.mxu0 0
    %1662 = vmatprep.subr.bf16.mxu0 0
    %1663 = vmatpush1.bf16.xpose.msra.mxu0 0
    %1664 = vmatprep.subr.bf16.mxu0 0
    %1665 = vmatpush1.bf16.xpose.msra.mxu0 0
    %1666 = vmatprep.subr.bf16.mxu0 0
    %1667 = vmatpush1.bf16.xpose.msra.mxu0 0
    %1668 = vmatprep.subr.bf16.mxu0 0
    %1669 = vmatpush1.bf16.xpose.msra.mxu0 0
    %1670 = vmatprep.mubr.bf16.mxu0 0
    %1671 = vmatmul.mubr.bf16.gmra.mrb[0].mxu0 %v1624
    %v1672 = vpop.f32.mrb[0].mxu0
    %v1673 = vadd.f32 0.0, %v1672
    %v1674 = vpop.f32.mrb[0].mxu0
    %v1675 = vpop.f32.mrb[0].mxu0
    %v1676 = vpop.f32.mrb[0].mxu0
    %1677 = vdwg.mxu0
    %v1686 = vunpack.c.l.b16 %v752
    %v1687 = vunpack.c.l.b16 %v753
    %v1688 = vunpack.c.l.b16 %v754
    %v1689 = vunpack.c.l.b16 %v755
    %v1690 = vunpack.c.l.b16 %v756
    %v1691 = vunpack.c.l.b16 %v757
    %v1692 = vunpack.c.l.b16 %v758
    %v1693 = vunpack.c.l.b16 %v759
    %v1694 = vpack.c.b16 %v1687, %v1686
    %v1695 = vpack.c.b16 %v1689, %v1688
    %v1696 = vpack.c.b16 %v1691, %v1690
    %v1697 = vpack.c.b16 %v1693, %v1692
    %v1699 = vsel %vm216, %v348, 0
    %v1702 = vsel %vm216, %v1694, 0
    %v1705 = vsel %vm216, %v1695, 0
    %v1708 = vsel %vm216, %v1696, 0
    %v1711 = vsel %vm216, %v1697, 0
    %1713 = vmatprep.subr.bf16.mxu0 0
    %1714 = vmatpush1.bf16.xpose.msra.mxu0 %v1702
    %1715 = vmatprep.subr.bf16.mxu0 0
    %1716 = vmatpush1.bf16.xpose.msra.mxu0 %v1705
    %1717 = vmatprep.subr.bf16.mxu0 0
    %1718 = vmatpush1.bf16.xpose.msra.mxu0 %v1708
    %1719 = vmatprep.subr.bf16.mxu0 0
    %1720 = vmatpush1.bf16.xpose.msra.mxu0 %v1711
    %1721 = vmatprep.subr.bf16.mxu0 0
    %1722 = vmatpush1.bf16.xpose.msra.mxu0 0
    %1723 = vmatprep.subr.bf16.mxu0 0
    %1724 = vmatpush1.bf16.xpose.msra.mxu0 0
    %1725 = vmatprep.subr.bf16.mxu0 0
    %1726 = vmatpush1.bf16.xpose.msra.mxu0 0
    %1727 = vmatprep.subr.bf16.mxu0 0
    %1728 = vmatpush1.bf16.xpose.msra.mxu0 0
    %1729 = vmatprep.subr.bf16.mxu0 0
    %1730 = vmatpush1.bf16.xpose.msra.mxu0 0
    %1731 = vmatprep.subr.bf16.mxu0 0
    %1732 = vmatpush1.bf16.xpose.msra.mxu0 0
    %1733 = vmatprep.subr.bf16.mxu0 0
    %1734 = vmatpush1.bf16.xpose.msra.mxu0 0
    %1735 = vmatprep.subr.bf16.mxu0 0
    %1736 = vmatpush1.bf16.xpose.msra.mxu0 0
    %1737 = vmatprep.subr.bf16.mxu0 0
    %1738 = vmatpush1.bf16.xpose.msra.mxu0 0
    %1739 = vmatprep.subr.bf16.mxu0 0
    %1740 = vmatpush1.bf16.xpose.msra.mxu0 0
    %1741 = vmatprep.subr.bf16.mxu0 0
    %1742 = vmatpush1.bf16.xpose.msra.mxu0 0
    %1743 = vmatprep.subr.bf16.mxu0 0
    %1744 = vmatpush1.bf16.xpose.msra.mxu0 0
    %1745 = vmatprep.mubr.bf16.mxu0 0
    %1746 = vmatmul.mubr.bf16.gmra.mrb[0].mxu0 %v1699
    %v1747 = vpop.f32.mrb[0].mxu0
    %v1748 = vadd.f32 0.0, %v1747
    %v1749 = vpop.f32.mrb[0].mxu0
    %v1750 = vpop.f32.mrb[0].mxu0
    %v1751 = vpop.f32.mrb[0].mxu0
    %1752 = vdwg.mxu0
    %v1761 = vunpack.c.l.b16 %v760
    %v1762 = vunpack.c.l.b16 %v761
    %v1763 = vunpack.c.l.b16 %v762
    %v1764 = vunpack.c.l.b16 %v763
    %v1765 = vunpack.c.l.b16 %v764
    %v1766 = vunpack.c.l.b16 %v765
    %v1767 = vunpack.c.l.b16 %v766
    %v1768 = vunpack.c.l.b16 %v767
    %v1769 = vpack.c.b16 %v1762, %v1761
    %v1770 = vpack.c.b16 %v1764, %v1763
    %v1771 = vpack.c.b16 %v1766, %v1765
    %v1772 = vpack.c.b16 %v1768, %v1767
    %v1774 = vsel %vm216, %v349, 0
    %v1777 = vsel %vm216, %v1769, 0
    %v1780 = vsel %vm216, %v1770, 0
    %v1783 = vsel %vm216, %v1771, 0
    %v1786 = vsel %vm216, %v1772, 0
    %1788 = vmatprep.subr.bf16.mxu0 0
    %1789 = vmatpush1.bf16.xpose.msra.mxu0 %v1777
    %1790 = vmatprep.subr.bf16.mxu0 0
    %1791 = vmatpush1.bf16.xpose.msra.mxu0 %v1780
    %1792 = vmatprep.subr.bf16.mxu0 0
    %1793 = vmatpush1.bf16.xpose.msra.mxu0 %v1783
    %1794 = vmatprep.subr.bf16.mxu0 0
    %1795 = vmatpush1.bf16.xpose.msra.mxu0 %v1786
    %1796 = vmatprep.subr.bf16.mxu0 0
    %1797 = vmatpush1.bf16.xpose.msra.mxu0 0
    %1798 = vmatprep.subr.bf16.mxu0 0
    %1799 = vmatpush1.bf16.xpose.msra.mxu0 0
    %1800 = vmatprep.subr.bf16.mxu0 0
    %1801 = vmatpush1.bf16.xpose.msra.mxu0 0
    %1802 = vmatprep.subr.bf16.mxu0 0
    %1803 = vmatpush1.bf16.xpose.msra.mxu0 0
    %1804 = vmatprep.subr.bf16.mxu0 0
    %1805 = vmatpush1.bf16.xpose.msra.mxu0 0
    %1806 = vmatprep.subr.bf16.mxu0 0
    %1807 = vmatpush1.bf16.xpose.msra.mxu0 0
    %1808 = vmatprep.subr.bf16.mxu0 0
    %1809 = vmatpush1.bf16.xpose.msra.mxu0 0
    %1810 = vmatprep.subr.bf16.mxu0 0
    %1811 = vmatpush1.bf16.xpose.msra.mxu0 0
    %1812 = vmatprep.subr.bf16.mxu0 0
    %1813 = vmatpush1.bf16.xpose.msra.mxu0 0
    %1814 = vmatprep.subr.bf16.mxu0 0
    %1815 = vmatpush1.bf16.xpose.msra.mxu0 0
    %1816 = vmatprep.subr.bf16.mxu0 0
    %1817 = vmatpush1.bf16.xpose.msra.mxu0 0
    %1818 = vmatprep.subr.bf16.mxu0 0
    %1819 = vmatpush1.bf16.xpose.msra.mxu0 0
    %1820 = vmatprep.mubr.bf16.mxu0 0
    %1821 = vmatmul.mubr.bf16.gmra.mrb[0].mxu0 %v1774
    %v1822 = vpop.f32.mrb[0].mxu0
    %v1823 = vadd.f32 0.0, %v1822
    %v1824 = vpop.f32.mrb[0].mxu0
    %v1825 = vpop.f32.mrb[0].mxu0
    %v1826 = vpop.f32.mrb[0].mxu0
    %1827 = vdwg.mxu0
    %v1836 = vunpack.c.l.b16 %v768
    %v1837 = vunpack.c.l.b16 %v769
    %v1838 = vunpack.c.l.b16 %v770
    %v1839 = vunpack.c.l.b16 %v771
    %v1840 = vunpack.c.l.b16 %v772
    %v1841 = vunpack.c.l.b16 %v773
    %v1842 = vunpack.c.l.b16 %v774
    %v1843 = vunpack.c.l.b16 %v775
    %v1844 = vpack.c.b16 %v1837, %v1836
    %v1845 = vpack.c.b16 %v1839, %v1838
    %v1846 = vpack.c.b16 %v1841, %v1840
    %v1847 = vpack.c.b16 %v1843, %v1842
    %v1849 = vsel %vm216, %v350, 0
    %v1852 = vsel %vm216, %v1844, 0
    %v1855 = vsel %vm216, %v1845, 0
    %v1858 = vsel %vm216, %v1846, 0
    %v1861 = vsel %vm216, %v1847, 0
    %1863 = vmatprep.subr.bf16.mxu0 0
    %1864 = vmatpush1.bf16.xpose.msra.mxu0 %v1852
    %1865 = vmatprep.subr.bf16.mxu0 0
    %1866 = vmatpush1.bf16.xpose.msra.mxu0 %v1855
    %1867 = vmatprep.subr.bf16.mxu0 0
    %1868 = vmatpush1.bf16.xpose.msra.mxu0 %v1858
    %1869 = vmatprep.subr.bf16.mxu0 0
    %1870 = vmatpush1.bf16.xpose.msra.mxu0 %v1861
    %1871 = vmatprep.subr.bf16.mxu0 0
    %1872 = vmatpush1.bf16.xpose.msra.mxu0 0
    %1873 = vmatprep.subr.bf16.mxu0 0
    %1874 = vmatpush1.bf16.xpose.msra.mxu0 0
    %1875 = vmatprep.subr.bf16.mxu0 0
    %1876 = vmatpush1.bf16.xpose.msra.mxu0 0
    %1877 = vmatprep.subr.bf16.mxu0 0
    %1878 = vmatpush1.bf16.xpose.msra.mxu0 0
    %1879 = vmatprep.subr.bf16.mxu0 0
    %1880 = vmatpush1.bf16.xpose.msra.mxu0 0
    %1881 = vmatprep.subr.bf16.mxu0 0
    %1882 = vmatpush1.bf16.xpose.msra.mxu0 0
    %1883 = vmatprep.subr.bf16.mxu0 0
    %1884 = vmatpush1.bf16.xpose.msra.mxu0 0
    %1885 = vmatprep.subr.bf16.mxu0 0
    %1886 = vmatpush1.bf16.xpose.msra.mxu0 0
    %1887 = vmatprep.subr.bf16.mxu0 0
    %1888 = vmatpush1.bf16.xpose.msra.mxu0 0
    %1889 = vmatprep.subr.bf16.mxu0 0
    %1890 = vmatpush1.bf16.xpose.msra.mxu0 0
    %1891 = vmatprep.subr.bf16.mxu0 0
    %1892 = vmatpush1.bf16.xpose.msra.mxu0 0
    %1893 = vmatprep.subr.bf16.mxu0 0
    %1894 = vmatpush1.bf16.xpose.msra.mxu0 0
    %1895 = vmatprep.mubr.bf16.mxu0 0
    %1896 = vmatmul.mubr.bf16.gmra.mrb[0].mxu0 %v1849
    %v1897 = vpop.f32.mrb[0].mxu0
    %v1898 = vadd.f32 0.0, %v1897
    %v1899 = vpop.f32.mrb[0].mxu0
    %v1900 = vpop.f32.mrb[0].mxu0
    %v1901 = vpop.f32.mrb[0].mxu0
    %1902 = vdwg.mxu0
    %v1911 = vunpack.c.l.b16 %v776
    %v1912 = vunpack.c.l.b16 %v777
    %v1913 = vunpack.c.l.b16 %v778
    %v1914 = vunpack.c.l.b16 %v779
    %v1915 = vunpack.c.l.b16 %v780
    %v1916 = vunpack.c.l.b16 %v781
    %v1917 = vunpack.c.l.b16 %v782
    %v1918 = vunpack.c.l.b16 %v783
    %v1919 = vpack.c.b16 %v1912, %v1911
    %v1920 = vpack.c.b16 %v1914, %v1913
    %v1921 = vpack.c.b16 %v1916, %v1915
    %v1922 = vpack.c.b16 %v1918, %v1917
    %v1924 = vsel %vm216, %v351, 0
    %v1927 = vsel %vm216, %v1919, 0
    %v1930 = vsel %vm216, %v1920, 0
    %v1933 = vsel %vm216, %v1921, 0
    %v1936 = vsel %vm216, %v1922, 0
    %1938 = vmatprep.subr.bf16.mxu0 0
    %1939 = vmatpush1.bf16.xpose.msra.mxu0 %v1927
    %1940 = vmatprep.subr.bf16.mxu0 0
    %1941 = vmatpush1.bf16.xpose.msra.mxu0 %v1930
    %1942 = vmatprep.subr.bf16.mxu0 0
    %1943 = vmatpush1.bf16.xpose.msra.mxu0 %v1933
    %1944 = vmatprep.subr.bf16.mxu0 0
    %1945 = vmatpush1.bf16.xpose.msra.mxu0 %v1936
    %1946 = vmatprep.subr.bf16.mxu0 0
    %1947 = vmatpush1.bf16.xpose.msra.mxu0 0
    %1948 = vmatprep.subr.bf16.mxu0 0
    %1949 = vmatpush1.bf16.xpose.msra.mxu0 0
    %1950 = vmatprep.subr.bf16.mxu0 0
    %1951 = vmatpush1.bf16.xpose.msra.mxu0 0
    %1952 = vmatprep.subr.bf16.mxu0 0
    %1953 = vmatpush1.bf16.xpose.msra.mxu0 0
    %1954 = vmatprep.subr.bf16.mxu0 0
    %1955 = vmatpush1.bf16.xpose.msra.mxu0 0
    %1956 = vmatprep.subr.bf16.mxu0 0
    %1957 = vmatpush1.bf16.xpose.msra.mxu0 0
    %1958 = vmatprep.subr.bf16.mxu0 0
    %1959 = vmatpush1.bf16.xpose.msra.mxu0 0
    %1960 = vmatprep.subr.bf16.mxu0 0
    %1961 = vmatpush1.bf16.xpose.msra.mxu0 0
    %1962 = vmatprep.subr.bf16.mxu0 0
    %1963 = vmatpush1.bf16.xpose.msra.mxu0 0
    %1964 = vmatprep.subr.bf16.mxu0 0
    %1965 = vmatpush1.bf16.xpose.msra.mxu0 0
    %1966 = vmatprep.subr.bf16.mxu0 0
    %1967 = vmatpush1.bf16.xpose.msra.mxu0 0
    %1968 = vmatprep.subr.bf16.mxu0 0
    %1969 = vmatpush1.bf16.xpose.msra.mxu0 0
    %1970 = vmatprep.mubr.bf16.mxu0 0
    %1971 = vmatmul.mubr.bf16.gmra.mrb[0].mxu0 %v1924
    %v1972 = vpop.f32.mrb[0].mxu0
    %v1973 = vadd.f32 0.0, %v1972
    %v1974 = vpop.f32.mrb[0].mxu0
    %v1975 = vpop.f32.mrb[0].mxu0
    %v1976 = vpop.f32.mrb[0].mxu0
    %1977 = vdwg.mxu0
    %v1986 = vunpack.c.l.b16 %v784
    %v1987 = vunpack.c.l.b16 %v785
    %v1988 = vunpack.c.l.b16 %v786
    %v1989 = vunpack.c.l.b16 %v787
    %v1990 = vunpack.c.l.b16 %v788
    %v1991 = vunpack.c.l.b16 %v789
    %v1992 = vunpack.c.l.b16 %v790
    %v1993 = vunpack.c.l.b16 %v791
    %v1994 = vpack.c.b16 %v1987, %v1986
    %v1995 = vpack.c.b16 %v1989, %v1988
    %v1996 = vpack.c.b16 %v1991, %v1990
    %v1997 = vpack.c.b16 %v1993, %v1992
    %v1999 = vsel %vm216, %v352, 0
    %v2002 = vsel %vm216, %v1994, 0
    %v2005 = vsel %vm216, %v1995, 0
    %v2008 = vsel %vm216, %v1996, 0
    %v2011 = vsel %vm216, %v1997, 0
    %2013 = vmatprep.subr.bf16.mxu0 0
    %2014 = vmatpush1.bf16.xpose.msra.mxu0 %v2002
    %2015 = vmatprep.subr.bf16.mxu0 0
    %2016 = vmatpush1.bf16.xpose.msra.mxu0 %v2005
    %2017 = vmatprep.subr.bf16.mxu0 0
    %2018 = vmatpush1.bf16.xpose.msra.mxu0 %v2008
    %2019 = vmatprep.subr.bf16.mxu0 0
    %2020 = vmatpush1.bf16.xpose.msra.mxu0 %v2011
    %2021 = vmatprep.subr.bf16.mxu0 0
    %2022 = vmatpush1.bf16.xpose.msra.mxu0 0
    %2023 = vmatprep.subr.bf16.mxu0 0
    %2024 = vmatpush1.bf16.xpose.msra.mxu0 0
    %2025 = vmatprep.subr.bf16.mxu0 0
    %2026 = vmatpush1.bf16.xpose.msra.mxu0 0
    %2027 = vmatprep.subr.bf16.mxu0 0
    %2028 = vmatpush1.bf16.xpose.msra.mxu0 0
    %2029 = vmatprep.subr.bf16.mxu0 0
    %2030 = vmatpush1.bf16.xpose.msra.mxu0 0
    %2031 = vmatprep.subr.bf16.mxu0 0
    %2032 = vmatpush1.bf16.xpose.msra.mxu0 0
    %2033 = vmatprep.subr.bf16.mxu0 0
    %2034 = vmatpush1.bf16.xpose.msra.mxu0 0
    %2035 = vmatprep.subr.bf16.mxu0 0
    %2036 = vmatpush1.bf16.xpose.msra.mxu0 0
    %2037 = vmatprep.subr.bf16.mxu0 0
    %2038 = vmatpush1.bf16.xpose.msra.mxu0 0
    %2039 = vmatprep.subr.bf16.mxu0 0
    %2040 = vmatpush1.bf16.xpose.msra.mxu0 0
    %2041 = vmatprep.subr.bf16.mxu0 0
    %2042 = vmatpush1.bf16.xpose.msra.mxu0 0
    %2043 = vmatprep.subr.bf16.mxu0 0
    %2044 = vmatpush1.bf16.xpose.msra.mxu0 0
    %2045 = vmatprep.mubr.bf16.mxu0 0
    %2046 = vmatmul.mubr.bf16.gmra.mrb[0].mxu0 %v1999
    %v2047 = vpop.f32.mrb[0].mxu0
    %v2048 = vadd.f32 0.0, %v2047
    %v2049 = vpop.f32.mrb[0].mxu0
    %v2050 = vpop.f32.mrb[0].mxu0
    %v2051 = vpop.f32.mrb[0].mxu0
    %2052 = vdwg.mxu0
    %v2061 = vunpack.c.l.b16 %v792
    %v2062 = vunpack.c.l.b16 %v793
    %v2063 = vunpack.c.l.b16 %v794
    %v2064 = vunpack.c.l.b16 %v795
    %v2065 = vunpack.c.l.b16 %v796
    %v2066 = vunpack.c.l.b16 %v797
    %v2067 = vunpack.c.l.b16 %v798
    %v2068 = vunpack.c.l.b16 %v799
    %v2069 = vpack.c.b16 %v2062, %v2061
    %v2070 = vpack.c.b16 %v2064, %v2063
    %v2071 = vpack.c.b16 %v2066, %v2065
    %v2072 = vpack.c.b16 %v2068, %v2067
    %v2074 = vsel %vm216, %v353, 0
    %v2077 = vsel %vm216, %v2069, 0
    %v2080 = vsel %vm216, %v2070, 0
    %v2083 = vsel %vm216, %v2071, 0
    %v2086 = vsel %vm216, %v2072, 0
    %2088 = vmatprep.subr.bf16.mxu0 0
    %2089 = vmatpush1.bf16.xpose.msra.mxu0 %v2077
    %2090 = vmatprep.subr.bf16.mxu0 0
    %2091 = vmatpush1.bf16.xpose.msra.mxu0 %v2080
    %2092 = vmatprep.subr.bf16.mxu0 0
    %2093 = vmatpush1.bf16.xpose.msra.mxu0 %v2083
    %2094 = vmatprep.subr.bf16.mxu0 0
    %2095 = vmatpush1.bf16.xpose.msra.mxu0 %v2086
    %2096 = vmatprep.subr.bf16.mxu0 0
    %2097 = vmatpush1.bf16.xpose.msra.mxu0 0
    %2098 = vmatprep.subr.bf16.mxu0 0
    %2099 = vmatpush1.bf16.xpose.msra.mxu0 0
    %2100 = vmatprep.subr.bf16.mxu0 0
    %2101 = vmatpush1.bf16.xpose.msra.mxu0 0
    %2102 = vmatprep.subr.bf16.mxu0 0
    %2103 = vmatpush1.bf16.xpose.msra.mxu0 0
    %2104 = vmatprep.subr.bf16.mxu0 0
    %2105 = vmatpush1.bf16.xpose.msra.mxu0 0
    %2106 = vmatprep.subr.bf16.mxu0 0
    %2107 = vmatpush1.bf16.xpose.msra.mxu0 0
    %2108 = vmatprep.subr.bf16.mxu0 0
    %2109 = vmatpush1.bf16.xpose.msra.mxu0 0
    %2110 = vmatprep.subr.bf16.mxu0 0
    %2111 = vmatpush1.bf16.xpose.msra.mxu0 0
    %2112 = vmatprep.subr.bf16.mxu0 0
    %2113 = vmatpush1.bf16.xpose.msra.mxu0 0
    %2114 = vmatprep.subr.bf16.mxu0 0
    %2115 = vmatpush1.bf16.xpose.msra.mxu0 0
    %2116 = vmatprep.subr.bf16.mxu0 0
    %2117 = vmatpush1.bf16.xpose.msra.mxu0 0
    %2118 = vmatprep.subr.bf16.mxu0 0
    %2119 = vmatpush1.bf16.xpose.msra.mxu0 0
    %2120 = vmatprep.mubr.bf16.mxu0 0
    %2121 = vmatmul.mubr.bf16.gmra.mrb[0].mxu0 %v2074
    %v2122 = vpop.f32.mrb[0].mxu0
    %v2123 = vadd.f32 0.0, %v2122
    %v2124 = vpop.f32.mrb[0].mxu0
    %v2125 = vpop.f32.mrb[0].mxu0
    %v2126 = vpop.f32.mrb[0].mxu0
    %2127 = vdwg.mxu0
    %v2128 = vmul.f32 %v998, 0.5
    %v2129 = vmul.f32 %v1073, 0.5
    %v2130 = vmul.f32 %v1148, 0.5
    %v2131 = vmul.f32 %v1223, 0.5
    %v2132 = vmul.f32 %v1298, 0.5
    %v2133 = vmul.f32 %v1373, 0.5
    %v2134 = vmul.f32 %v1448, 0.5
    %v2135 = vmul.f32 %v1523, 0.5
    %v2136 = vmul.f32 %v1598, 0.5
    %v2137 = vmul.f32 %v1673, 0.5
    %v2138 = vmul.f32 %v1748, 0.5
    %v2139 = vmul.f32 %v1823, 0.5
    %v2140 = vmul.f32 %v1898, 0.5
    %v2141 = vmul.f32 %v1973, 0.5
    %v2142 = vmul.f32 %v2048, 0.5
    %v2143 = vmul.f32 %v2123, 0.5
    %v2144 = vld [vmem:[#allocation3] sm:$0xff]
    %v2145 = vadd.f32 %v2128, %v2144
    %v2146 = vadd.f32 %v2129, %v2144
    %v2147 = vadd.f32 %v2130, %v2144
    %v2148 = vadd.f32 %v2131, %v2144
    %v2149 = vadd.f32 %v2132, %v2144
    %v2150 = vadd.f32 %v2133, %v2144
    %v2151 = vadd.f32 %v2134, %v2144
    %v2152 = vadd.f32 %v2135, %v2144
    %v2153 = vadd.f32 %v2136, %v2144
    %v2154 = vadd.f32 %v2137, %v2144
    %v2155 = vadd.f32 %v2138, %v2144
    %v2156 = vadd.f32 %v2139, %v2144
    %v2157 = vadd.f32 %v2140, %v2144
    %v2158 = vadd.f32 %v2141, %v2144
    %v2159 = vadd.f32 %v2142, %v2144
    %v2160 = vadd.f32 %v2143, %v2144
    %vm2161 = vcmask 523264
    %v2162 = vsel %vm2161, %v2145, -inf
    %2163 = vmax.xlane.f32.xlu0 %v2162
    %v2164 = vpop.xlane.xlu0 %2163
    %v2165 = vsel %vm2161, %v2146, -inf
    %2166 = vmax.xlane.f32.xlu0 %v2165
    %v2167 = vpop.xlane.xlu0 %2166
    %v2168 = vsel %vm2161, %v2147, -inf
    %2169 = vmax.xlane.f32.xlu0 %v2168
    %v2170 = vpop.xlane.xlu0 %2169
    %v2171 = vsel %vm2161, %v2148, -inf
    %2172 = vmax.xlane.f32.xlu0 %v2171
    %v2173 = vpop.xlane.xlu0 %2172
    %v2174 = vsel %vm2161, %v2149, -inf
    %2175 = vmax.xlane.f32.xlu0 %v2174
    %v2176 = vpop.xlane.xlu0 %2175
    %v2177 = vsel %vm2161, %v2150, -inf
    %2178 = vmax.xlane.f32.xlu0 %v2177
    %v2179 = vpop.xlane.xlu0 %2178
    %v2180 = vsel %vm2161, %v2151, -inf
    %2181 = vmax.xlane.f32.xlu0 %v2180
    %v2182 = vpop.xlane.xlu0 %2181
    %v2183 = vsel %vm2161, %v2152, -inf
    %2184 = vmax.xlane.f32.xlu0 %v2183
    %v2185 = vpop.xlane.xlu0 %2184
    %v2186 = vsel %vm2161, %v2153, -inf
    %2187 = vmax.xlane.f32.xlu0 %v2186
    %v2188 = vpop.xlane.xlu0 %2187
    %v2189 = vsel %vm2161, %v2154, -inf
    %2190 = vmax.xlane.f32.xlu0 %v2189
    %v2191 = vpop.xlane.xlu0 %2190
    %v2192 = vsel %vm2161, %v2155, -inf
    %2193 = vmax.xlane.f32.xlu0 %v2192
    %v2194 = vpop.xlane.xlu0 %2193
    %v2195 = vsel %vm2161, %v2156, -inf
    %2196 = vmax.xlane.f32.xlu0 %v2195
    %v2197 = vpop.xlane.xlu0 %2196
    %v2198 = vsel %vm2161, %v2157, -inf
    %2199 = vmax.xlane.f32.xlu0 %v2198
    %v2200 = vpop.xlane.xlu0 %2199
    %v2201 = vsel %vm2161, %v2158, -inf
    %2202 = vmax.xlane.f32.xlu0 %v2201
    %v2203 = vpop.xlane.xlu0 %2202
    %v2204 = vsel %vm2161, %v2159, -inf
    %2205 = vmax.xlane.f32.xlu0 %v2204
    %v2206 = vpop.xlane.xlu0 %2205
    %v2207 = vsel %vm2161, %v2160, -inf
    %2208 = vmax.xlane.f32.xlu0 %v2207
    %v2209 = vpop.xlane.xlu0 %2208
    %v2210 = vsub.f32 %v2145, %v2164
    %v2211 = vsub.f32 %v2146, %v2167
    %v2212 = vsub.f32 %v2147, %v2170
    %v2213 = vsub.f32 %v2148, %v2173
    %v2214 = vsub.f32 %v2149, %v2176
    %v2215 = vsub.f32 %v2150, %v2179
    %v2216 = vsub.f32 %v2151, %v2182
    %v2217 = vsub.f32 %v2152, %v2185
    %v2218 = vsub.f32 %v2153, %v2188
    %v2219 = vsub.f32 %v2154, %v2191
    %v2220 = vsub.f32 %v2155, %v2194
    %v2221 = vsub.f32 %v2156, %v2197
    %v2222 = vsub.f32 %v2157, %v2200
    %v2223 = vsub.f32 %v2158, %v2203
    %v2224 = vsub.f32 %v2159, %v2206
    %v2225 = vsub.f32 %v2160, %v2209
    %v2226 = vmul.f32 %v2210, 1.442695
    %v2227 = vpow.pop %v2226
    %v2228 = vmul.f32 %v2211, 1.442695
    %v2229 = vpow.pop %v2228
    %v2230 = vmul.f32 %v2212, 1.442695
    %v2231 = vpow.pop %v2230
    %v2232 = vmul.f32 %v2213, 1.442695
    %v2233 = vpow.pop %v2232
    %v2234 = vmul.f32 %v2214, 1.442695
    %v2235 = vpow.pop %v2234
    %v2236 = vmul.f32 %v2215, 1.442695
    %v2237 = vpow.pop %v2236
    %v2238 = vmul.f32 %v2216, 1.442695
    %v2239 = vpow.pop %v2238
    %v2240 = vmul.f32 %v2217, 1.442695
    %v2241 = vpow.pop %v2240
    %v2242 = vmul.f32 %v2218, 1.442695
    %v2243 = vpow.pop %v2242
    %v2244 = vmul.f32 %v2219, 1.442695
    %v2245 = vpow.pop %v2244
    %v2246 = vmul.f32 %v2220, 1.442695
    %v2247 = vpow.pop %v2246
    %v2248 = vmul.f32 %v2221, 1.442695
    %v2249 = vpow.pop %v2248
    %v2250 = vmul.f32 %v2222, 1.442695
    %v2251 = vpow.pop %v2250
    %v2252 = vmul.f32 %v2223, 1.442695
    %v2253 = vpow.pop %v2252
    %v2254 = vmul.f32 %v2224, 1.442695
    %v2255 = vpow.pop %v2254
    %v2256 = vmul.f32 %v2225, 1.442695
    %v2257 = vpow.pop %v2256
    %v2259 = vsel %vm2161, %v2227, 0
    %v2262 = vsel %vm2161, %v2229, 0
    %v2265 = vsel %vm2161, %v2231, 0
    %v2268 = vsel %vm2161, %v2233, 0
    %v2271 = vsel %vm2161, %v2235, 0
    %v2274 = vsel %vm2161, %v2237, 0
    %v2277 = vsel %vm2161, %v2239, 0
    %v2280 = vsel %vm2161, %v2241, 0
    %v2283 = vsel %vm2161, %v2243, 0
    %v2286 = vsel %vm2161, %v2245, 0
    %v2289 = vsel %vm2161, %v2247, 0
    %v2292 = vsel %vm2161, %v2249, 0
    %v2295 = vsel %vm2161, %v2251, 0
    %v2298 = vsel %vm2161, %v2253, 0
    %v2301 = vsel %vm2161, %v2255, 0
    %v2304 = vsel %vm2161, %v2257, 0
    %2306 = vmatprep.subr.mxu0 0.0
    %2307 = vmatpush1.msra.mxu0 %v167
    %2308 = vmatprep.subr.mxu0 0.0
    %2309 = vmatpush1.msra.mxu0 %v168
    %2310 = vmatprep.subr.mxu0 0.0
    %2311 = vmatpush1.msra.mxu0 %v169
    %2312 = vmatprep.subr.mxu0 0.0
    %2313 = vmatpush1.msra.mxu0 %v170
    %2314 = vmatprep.subr.mxu0 0.0
    %2315 = vmatpush1.msra.mxu0 %v171
    %2316 = vmatprep.subr.mxu0 0.0
    %2317 = vmatpush1.msra.mxu0 %v172
    %2318 = vmatprep.subr.mxu0 0.0
    %2319 = vmatpush1.msra.mxu0 %v173
    %2320 = vmatprep.subr.mxu0 0.0
    %2321 = vmatpush1.msra.mxu0 %v174
    %2322 = vmatprep.subr.mxu0 0.0
    %2323 = vmatpush1.msra.mxu0 0.0
    %2324 = vmatprep.subr.mxu0 0.0
    %2325 = vmatpush1.msra.mxu0 0.0
    %2326 = vmatprep.subr.mxu0 0.0
    %2327 = vmatpush1.msra.mxu0 0.0
    %2328 = vmatprep.subr.mxu0 0.0
    %2329 = vmatpush1.msra.mxu0 0.0
    %2330 = vmatprep.subr.mxu0 0.0
    %2331 = vmatpush1.msra.mxu0 0.0
    %2332 = vmatprep.subr.mxu0 0.0
    %2333 = vmatpush1.msra.mxu0 0.0
    %2334 = vmatprep.subr.mxu0 0.0
    %2335 = vmatpush1.msra.mxu0 0.0
    %2336 = vmatprep.subr.mxu0 0.0
    %2337 = vmatpush1.msra.mxu0 0.0
    %2338 = vmatprep.subr.mxu0 0.0
    %2339 = vmatpush1.msra.mxu0 0.0
    %2340 = vmatprep.subr.mxu0 0.0
    %2341 = vmatpush1.msra.mxu0 0.0
    %2342 = vmatprep.subr.mxu0 0.0
    %2343 = vmatpush1.msra.mxu0 0.0
    %2344 = vmatprep.subr.mxu0 0.0
    %2345 = vmatpush1.msra.mxu0 0.0
    %2346 = vmatprep.subr.mxu0 0.0
    %2347 = vmatpush1.msra.mxu0 0.0
    %2348 = vmatprep.subr.mxu0 0.0
    %2349 = vmatpush1.msra.mxu0 0.0
    %2350 = vmatprep.subr.mxu0 0.0
    %2351 = vmatpush1.msra.mxu0 0.0
    %2352 = vmatprep.subr.mxu0 0.0
    %2353 = vmatpush1.msra.mxu0 0.0
    %2354 = vmatprep.subr.mxu0 0.0
    %2355 = vmatpush1.msra.mxu0 0.0
    %2356 = vmatprep.subr.mxu0 0.0
    %2357 = vmatpush1.msra.mxu0 0.0
    %2358 = vmatprep.subr.mxu0 0.0
    %2359 = vmatpush1.msra.mxu0 0.0
    %2360 = vmatprep.subr.mxu0 0.0
    %2361 = vmatpush1.msra.mxu0 0.0
    %2362 = vmatprep.subr.mxu0 0.0
    %2363 = vmatpush1.msra.mxu0 0.0
    %2364 = vmatprep.subr.mxu0 0.0
    %2365 = vmatpush1.msra.mxu0 0.0
    %2366 = vmatprep.subr.mxu0 0.0
    %2367 = vmatpush1.msra.mxu0 0.0
    %2368 = vmatprep.subr.mxu0 0.0
    %2369 = vmatpush1.msra.mxu0 0.0
    %2370 = vmatprep.mubr.f32.mxu0 0.0
    %2371 = vmatmul.mubr.f32.gmra.mrb[0].mxu0 %v2259
    %v2372 = vpop.f32.mrb[0].mxu0
    %v2373 = vadd.f32 0.0, %v2372
    %v2374 = vpop.f32.mrb[0].mxu0
    %2375 = vmatprep.mubr.f32.mxu0 0.0
    %2376 = vmatmul.mubr.f32.gmra.mrb[0].mxu0 %v2262
    %v2377 = vpop.f32.mrb[0].mxu0
    %v2378 = vadd.f32 0.0, %v2377
    %v2379 = vpop.f32.mrb[0].mxu0
    %2380 = vmatprep.mubr.f32.mxu0 0.0
    %2381 = vmatmul.mubr.f32.gmra.mrb[0].mxu0 %v2265
    %v2382 = vpop.f32.mrb[0].mxu0
    %v2383 = vadd.f32 0.0, %v2382
    %v2384 = vpop.f32.mrb[0].mxu0
    %2385 = vmatprep.mubr.f32.mxu0 0.0
    %2386 = vmatmul.mubr.f32.gmra.mrb[0].mxu0 %v2268
    %v2387 = vpop.f32.mrb[0].mxu0
    %v2388 = vadd.f32 0.0, %v2387
    %v2389 = vpop.f32.mrb[0].mxu0
    %2390 = vmatprep.mubr.f32.mxu0 0.0
    %2391 = vmatmul.mubr.f32.gmra.mrb[0].mxu0 %v2271
    %v2392 = vpop.f32.mrb[0].mxu0
    %v2393 = vadd.f32 0.0, %v2392
    %v2394 = vpop.f32.mrb[0].mxu0
    %2395 = vmatprep.mubr.f32.mxu0 0.0
    %2396 = vmatmul.mubr.f32.gmra.mrb[0].mxu0 %v2274
    %v2397 = vpop.f32.mrb[0].mxu0
    %v2398 = vadd.f32 0.0, %v2397
    %v2399 = vpop.f32.mrb[0].mxu0
    %2400 = vmatprep.mubr.f32.mxu0 0.0
    %2401 = vmatmul.mubr.f32.gmra.mrb[0].mxu0 %v2277
    %v2402 = vpop.f32.mrb[0].mxu0
    %v2403 = vadd.f32 0.0, %v2402
    %v2404 = vpop.f32.mrb[0].mxu0
    %2405 = vmatprep.mubr.f32.mxu0 0.0
    %2406 = vmatmul.mubr.f32.gmra.mrb[0].mxu0 %v2280
    %v2407 = vpop.f32.mrb[0].mxu0
    %v2408 = vadd.f32 0.0, %v2407
    %v2409 = vpop.f32.mrb[0].mxu0
    %2410 = vmatprep.mubr.f32.mxu0 0.0
    %2411 = vmatmul.mubr.f32.gmra.mrb[0].mxu0 %v2283
    %v2412 = vpop.f32.mrb[0].mxu0
    %v2413 = vadd.f32 0.0, %v2412
    %v2414 = vpop.f32.mrb[0].mxu0
    %2415 = vmatprep.mubr.f32.mxu0 0.0
    %2416 = vmatmul.mubr.f32.gmra.mrb[0].mxu0 %v2286
    %v2417 = vpop.f32.mrb[0].mxu0
    %v2418 = vadd.f32 0.0, %v2417
    %v2419 = vpop.f32.mrb[0].mxu0
    %2420 = vmatprep.mubr.f32.mxu0 0.0
    %2421 = vmatmul.mubr.f32.gmra.mrb[0].mxu0 %v2289
    %v2422 = vpop.f32.mrb[0].mxu0
    %v2423 = vadd.f32 0.0, %v2422
    %v2424 = vpop.f32.mrb[0].mxu0
    %2425 = vmatprep.mubr.f32.mxu0 0.0
    %2426 = vmatmul.mubr.f32.gmra.mrb[0].mxu0 %v2292
    %v2427 = vpop.f32.mrb[0].mxu0
    %v2428 = vadd.f32 0.0, %v2427
    %v2429 = vpop.f32.mrb[0].mxu0
    %2430 = vmatprep.mubr.f32.mxu0 0.0
    %2431 = vmatmul.mubr.f32.gmra.mrb[0].mxu0 %v2295
    %v2432 = vpop.f32.mrb[0].mxu0
    %v2433 = vadd.f32 0.0, %v2432
    %v2434 = vpop.f32.mrb[0].mxu0
    %2435 = vmatprep.mubr.f32.mxu0 0.0
    %2436 = vmatmul.mubr.f32.gmra.mrb[0].mxu0 %v2298
    %v2437 = vpop.f32.mrb[0].mxu0
    %v2438 = vadd.f32 0.0, %v2437
    %v2439 = vpop.f32.mrb[0].mxu0
    %2440 = vmatprep.mubr.f32.mxu0 0.0
    %2441 = vmatmul.mubr.f32.gmra.mrb[0].mxu0 %v2301
    %v2442 = vpop.f32.mrb[0].mxu0
    %v2443 = vadd.f32 0.0, %v2442
    %v2444 = vpop.f32.mrb[0].mxu0
    %2445 = vmatprep.mubr.f32.mxu0 0.0
    %2446 = vmatmul.mubr.f32.gmra.mrb[0].mxu0 %v2304
    %v2447 = vpop.f32.mrb[0].mxu0
    %v2448 = vadd.f32 0.0, %v2447
    %v2449 = vpop.f32.mrb[0].mxu0
    %2450 = vdwg.mxu0
    %v2451 = vmax.f32 %v2373, 1e-30
    %v2452 = vmax.f32 %v2378, 1e-30
    %v2453 = vmax.f32 %v2383, 1e-30
    %v2454 = vmax.f32 %v2388, 1e-30
    %v2455 = vmax.f32 %v2393, 1e-30
    %v2456 = vmax.f32 %v2398, 1e-30
    %v2457 = vmax.f32 %v2403, 1e-30
    %v2458 = vmax.f32 %v2408, 1e-30
    %v2459 = vmax.f32 %v2413, 1e-30
    %v2460 = vmax.f32 %v2418, 1e-30
    %v2461 = vmax.f32 %v2423, 1e-30
    %v2462 = vmax.f32 %v2428, 1e-30
    %v2463 = vmax.f32 %v2433, 1e-30
    %v2464 = vmax.f32 %v2438, 1e-30
    %v2465 = vmax.f32 %v2443, 1e-30
    %v2466 = vmax.f32 %v2448, 1e-30
    %v2467 = vrcp.pop %v2451
    %v2468 = vrcp.pop %v2452
    %v2469 = vrcp.pop %v2453
    %v2470 = vrcp.pop %v2454
    %v2471 = vrcp.pop %v2455
    %v2472 = vrcp.pop %v2456
    %v2473 = vrcp.pop %v2457
    %v2474 = vrcp.pop %v2458
    %v2475 = vrcp.pop %v2459
    %v2476 = vrcp.pop %v2460
    %v2477 = vrcp.pop %v2461
    %v2478 = vrcp.pop %v2462
    %v2479 = vrcp.pop %v2463
    %v2480 = vrcp.pop %v2464
    %v2481 = vrcp.pop %v2465
    %v2482 = vrcp.pop %v2466
    %v2483 = vmul.f32 %v2227, %v2467
    %v2484 = vmul.f32 %v2229, %v2468
    %v2485 = vmul.f32 %v2231, %v2469
    %v2486 = vmul.f32 %v2233, %v2470
    %v2487 = vmul.f32 %v2235, %v2471
    %v2488 = vmul.f32 %v2237, %v2472
    %v2489 = vmul.f32 %v2239, %v2473
    %v2490 = vmul.f32 %v2241, %v2474
    %v2491 = vmul.f32 %v2243, %v2475
    %v2492 = vmul.f32 %v2245, %v2476
    %v2493 = vmul.f32 %v2247, %v2477
    %v2494 = vmul.f32 %v2249, %v2478
    %v2495 = vmul.f32 %v2251, %v2479
    %v2496 = vmul.f32 %v2253, %v2480
    %v2497 = vmul.f32 %v2255, %v2481
    %v2498 = vmul.f32 %v2257, %v2482
    %v2499 = vpack.c.bf16 %v2483, %v2483
    %v2500 = vpack.c.bf16 %v2484, %v2484
    %v2501 = vpack.c.bf16 %v2485, %v2485
    %v2502 = vpack.c.bf16 %v2486, %v2486
    %v2503 = vpack.c.bf16 %v2487, %v2487
    %v2504 = vpack.c.bf16 %v2488, %v2488
    %v2505 = vpack.c.bf16 %v2489, %v2489
    %v2506 = vpack.c.bf16 %v2490, %v2490
    %v2507 = vpack.c.bf16 %v2491, %v2491
    %v2508 = vpack.c.bf16 %v2492, %v2492
    %v2509 = vpack.c.bf16 %v2493, %v2493
    %v2510 = vpack.c.bf16 %v2494, %v2494
    %v2511 = vpack.c.bf16 %v2495, %v2495
    %v2512 = vpack.c.bf16 %v2496, %v2496
    %v2513 = vpack.c.bf16 %v2497, %v2497
    %v2514 = vpack.c.bf16 %v2498, %v2498
    %v2523 = vunpack.c.l.b16 %v800
    %v2524 = vunpack.c.l.b16 %v801
    %v2525 = vunpack.c.l.b16 %v802
    %v2526 = vunpack.c.l.b16 %v803
    %v2527 = vunpack.c.l.b16 %v804
    %v2528 = vunpack.c.l.b16 %v805
    %v2529 = vunpack.c.l.b16 %v806
    %v2530 = vunpack.c.l.b16 %v807
    %v2531 = vpack.c.b16 %v2524, %v2523
    %v2532 = vpack.c.b16 %v2526, %v2525
    %v2533 = vpack.c.b16 %v2528, %v2527
    %v2534 = vpack.c.b16 %v2530, %v2529
    %v2540 = vsel %vm2161, %v2499, 0
    %2542 = vmatprep.subr.bf16.mxu0 0
    %2543 = vmatpush1.bf16.msra.mxu0 %v2531
    %2544 = vmatprep.subr.bf16.mxu0 0
    %2545 = vmatpush1.bf16.msra.mxu0 %v2532
    %2546 = vmatprep.subr.bf16.mxu0 0
    %2547 = vmatpush1.bf16.msra.mxu0 %v2533
    %2548 = vmatprep.subr.bf16.mxu0 0
    %2549 = vmatpush1.bf16.msra.mxu0 %v2534
    %2550 = vmatprep.subr.bf16.mxu0 0
    %2551 = vmatpush1.bf16.msra.mxu0 0
    %2552 = vmatprep.subr.bf16.mxu0 0
    %2553 = vmatpush1.bf16.msra.mxu0 0
    %2554 = vmatprep.subr.bf16.mxu0 0
    %2555 = vmatpush1.bf16.msra.mxu0 0
    %2556 = vmatprep.subr.bf16.mxu0 0
    %2557 = vmatpush1.bf16.msra.mxu0 0
    %2558 = vmatprep.subr.bf16.mxu0 0
    %2559 = vmatpush1.bf16.msra.mxu0 0
    %2560 = vmatprep.subr.bf16.mxu0 0
    %2561 = vmatpush1.bf16.msra.mxu0 0
    %2562 = vmatprep.subr.bf16.mxu0 0
    %2563 = vmatpush1.bf16.msra.mxu0 0
    %2564 = vmatprep.subr.bf16.mxu0 0
    %2565 = vmatpush1.bf16.msra.mxu0 0
    %2566 = vmatprep.subr.bf16.mxu0 0
    %2567 = vmatpush1.bf16.msra.mxu0 0
    %2568 = vmatprep.subr.bf16.mxu0 0
    %2569 = vmatpush1.bf16.msra.mxu0 0
    %2570 = vmatprep.subr.bf16.mxu0 0
    %2571 = vmatpush1.bf16.msra.mxu0 0
    %2572 = vmatprep.subr.bf16.mxu0 0
    %2573 = vmatpush1.bf16.msra.mxu0 0
    %2574 = vmatprep.mubr.bf16.mxu0 0
    %2575 = vmatmul.mubr.bf16.gmra.mrb[0].mxu0 %v2540
    %v2576 = vpop.f32.mrb[0].mxu0
    %v2577 = vadd.f32 0.0, %v2576
    %v2578 = vpop.f32.mrb[0].mxu0
    %v2579 = vpop.f32.mrb[0].mxu0
    %v2580 = vpop.f32.mrb[0].mxu0
    %2581 = vdwg.mxu0
    %v2590 = vunpack.c.l.b16 %v808
    %v2591 = vunpack.c.l.b16 %v809
    %v2592 = vunpack.c.l.b16 %v810
    %v2593 = vunpack.c.l.b16 %v811
    %v2594 = vunpack.c.l.b16 %v812
    %v2595 = vunpack.c.l.b16 %v813
    %v2596 = vunpack.c.l.b16 %v814
    %v2597 = vunpack.c.l.b16 %v815
    %v2598 = vpack.c.b16 %v2591, %v2590
    %v2599 = vpack.c.b16 %v2593, %v2592
    %v2600 = vpack.c.b16 %v2595, %v2594
    %v2601 = vpack.c.b16 %v2597, %v2596
    %v2607 = vsel %vm2161, %v2500, 0
    %2609 = vmatprep.subr.bf16.mxu0 0
    %2610 = vmatpush1.bf16.msra.mxu0 %v2598
    %2611 = vmatprep.subr.bf16.mxu0 0
    %2612 = vmatpush1.bf16.msra.mxu0 %v2599
    %2613 = vmatprep.subr.bf16.mxu0 0
    %2614 = vmatpush1.bf16.msra.mxu0 %v2600
    %2615 = vmatprep.subr.bf16.mxu0 0
    %2616 = vmatpush1.bf16.msra.mxu0 %v2601
    %2617 = vmatprep.subr.bf16.mxu0 0
    %2618 = vmatpush1.bf16.msra.mxu0 0
    %2619 = vmatprep.subr.bf16.mxu0 0
    %2620 = vmatpush1.bf16.msra.mxu0 0
    %2621 = vmatprep.subr.bf16.mxu0 0
    %2622 = vmatpush1.bf16.msra.mxu0 0
    %2623 = vmatprep.subr.bf16.mxu0 0
    %2624 = vmatpush1.bf16.msra.mxu0 0
    %2625 = vmatprep.subr.bf16.mxu0 0
    %2626 = vmatpush1.bf16.msra.mxu0 0
    %2627 = vmatprep.subr.bf16.mxu0 0
    %2628 = vmatpush1.bf16.msra.mxu0 0
    %2629 = vmatprep.subr.bf16.mxu0 0
    %2630 = vmatpush1.bf16.msra.mxu0 0
    %2631 = vmatprep.subr.bf16.mxu0 0
    %2632 = vmatpush1.bf16.msra.mxu0 0
    %2633 = vmatprep.subr.bf16.mxu0 0
    %2634 = vmatpush1.bf16.msra.mxu0 0
    %2635 = vmatprep.subr.bf16.mxu0 0
    %2636 = vmatpush1.bf16.msra.mxu0 0
    %2637 = vmatprep.subr.bf16.mxu0 0
    %2638 = vmatpush1.bf16.msra.mxu0 0
    %2639 = vmatprep.subr.bf16.mxu0 0
    %2640 = vmatpush1.bf16.msra.mxu0 0
    %2641 = vmatprep.mubr.bf16.mxu0 0
    %2642 = vmatmul.mubr.bf16.gmra.mrb[0].mxu0 %v2607
    %v2643 = vpop.f32.mrb[0].mxu0
    %v2644 = vadd.f32 0.0, %v2643
    %v2645 = vpop.f32.mrb[0].mxu0
    %v2646 = vpop.f32.mrb[0].mxu0
    %v2647 = vpop.f32.mrb[0].mxu0
    %2648 = vdwg.mxu0
    %v2657 = vunpack.c.l.b16 %v816
    %v2658 = vunpack.c.l.b16 %v817
    %v2659 = vunpack.c.l.b16 %v818
    %v2660 = vunpack.c.l.b16 %v819
    %v2661 = vunpack.c.l.b16 %v820
    %v2662 = vunpack.c.l.b16 %v821
    %v2663 = vunpack.c.l.b16 %v822
    %v2664 = vunpack.c.l.b16 %v823
    %v2665 = vpack.c.b16 %v2658, %v2657
    %v2666 = vpack.c.b16 %v2660, %v2659
    %v2667 = vpack.c.b16 %v2662, %v2661
    %v2668 = vpack.c.b16 %v2664, %v2663
    %v2674 = vsel %vm2161, %v2501, 0
    %2676 = vmatprep.subr.bf16.mxu0 0
    %2677 = vmatpush1.bf16.msra.mxu0 %v2665
    %2678 = vmatprep.subr.bf16.mxu0 0
    %2679 = vmatpush1.bf16.msra.mxu0 %v2666
    %2680 = vmatprep.subr.bf16.mxu0 0
    %2681 = vmatpush1.bf16.msra.mxu0 %v2667
    %2682 = vmatprep.subr.bf16.mxu0 0
    %2683 = vmatpush1.bf16.msra.mxu0 %v2668
    %2684 = vmatprep.subr.bf16.mxu0 0
    %2685 = vmatpush1.bf16.msra.mxu0 0
    %2686 = vmatprep.subr.bf16.mxu0 0
    %2687 = vmatpush1.bf16.msra.mxu0 0
    %2688 = vmatprep.subr.bf16.mxu0 0
    %2689 = vmatpush1.bf16.msra.mxu0 0
    %2690 = vmatprep.subr.bf16.mxu0 0
    %2691 = vmatpush1.bf16.msra.mxu0 0
    %2692 = vmatprep.subr.bf16.mxu0 0
    %2693 = vmatpush1.bf16.msra.mxu0 0
    %2694 = vmatprep.subr.bf16.mxu0 0
    %2695 = vmatpush1.bf16.msra.mxu0 0
    %2696 = vmatprep.subr.bf16.mxu0 0
    %2697 = vmatpush1.bf16.msra.mxu0 0
    %2698 = vmatprep.subr.bf16.mxu0 0
    %2699 = vmatpush1.bf16.msra.mxu0 0
    %2700 = vmatprep.subr.bf16.mxu0 0
    %2701 = vmatpush1.bf16.msra.mxu0 0
    %2702 = vmatprep.subr.bf16.mxu0 0
    %2703 = vmatpush1.bf16.msra.mxu0 0
    %2704 = vmatprep.subr.bf16.mxu0 0
    %2705 = vmatpush1.bf16.msra.mxu0 0
    %2706 = vmatprep.subr.bf16.mxu0 0
    %2707 = vmatpush1.bf16.msra.mxu0 0
    %2708 = vmatprep.mubr.bf16.mxu0 0
    %2709 = vmatmul.mubr.bf16.gmra.mrb[0].mxu0 %v2674
    %v2710 = vpop.f32.mrb[0].mxu0
    %v2711 = vadd.f32 0.0, %v2710
    %v2712 = vpop.f32.mrb[0].mxu0
    %v2713 = vpop.f32.mrb[0].mxu0
    %v2714 = vpop.f32.mrb[0].mxu0
    %2715 = vdwg.mxu0
    %v2724 = vunpack.c.l.b16 %v824
    %v2725 = vunpack.c.l.b16 %v825
    %v2726 = vunpack.c.l.b16 %v826
    %v2727 = vunpack.c.l.b16 %v827
    %v2728 = vunpack.c.l.b16 %v828
    %v2729 = vunpack.c.l.b16 %v829
    %v2730 = vunpack.c.l.b16 %v830
    %v2731 = vunpack.c.l.b16 %v831
    %v2732 = vpack.c.b16 %v2725, %v2724
    %v2733 = vpack.c.b16 %v2727, %v2726
    %v2734 = vpack.c.b16 %v2729, %v2728
    %v2735 = vpack.c.b16 %v2731, %v2730
    %v2741 = vsel %vm2161, %v2502, 0
    %2743 = vmatprep.subr.bf16.mxu0 0
    %2744 = vmatpush1.bf16.msra.mxu0 %v2732
    %2745 = vmatprep.subr.bf16.mxu0 0
    %2746 = vmatpush1.bf16.msra.mxu0 %v2733
    %2747 = vmatprep.subr.bf16.mxu0 0
    %2748 = vmatpush1.bf16.msra.mxu0 %v2734
    %2749 = vmatprep.subr.bf16.mxu0 0
    %2750 = vmatpush1.bf16.msra.mxu0 %v2735
    %2751 = vmatprep.subr.bf16.mxu0 0
    %2752 = vmatpush1.bf16.msra.mxu0 0
    %2753 = vmatprep.subr.bf16.mxu0 0
    %2754 = vmatpush1.bf16.msra.mxu0 0
    %2755 = vmatprep.subr.bf16.mxu0 0
    %2756 = vmatpush1.bf16.msra.mxu0 0
    %2757 = vmatprep.subr.bf16.mxu0 0
    %2758 = vmatpush1.bf16.msra.mxu0 0
    %2759 = vmatprep.subr.bf16.mxu0 0
    %2760 = vmatpush1.bf16.msra.mxu0 0
    %2761 = vmatprep.subr.bf16.mxu0 0
    %2762 = vmatpush1.bf16.msra.mxu0 0
    %2763 = vmatprep.subr.bf16.mxu0 0
    %2764 = vmatpush1.bf16.msra.mxu0 0
    %2765 = vmatprep.subr.bf16.mxu0 0
    %2766 = vmatpush1.bf16.msra.mxu0 0
    %2767 = vmatprep.subr.bf16.mxu0 0
    %2768 = vmatpush1.bf16.msra.mxu0 0
    %2769 = vmatprep.subr.bf16.mxu0 0
    %2770 = vmatpush1.bf16.msra.mxu0 0
    %2771 = vmatprep.subr.bf16.mxu0 0
    %2772 = vmatpush1.bf16.msra.mxu0 0
    %2773 = vmatprep.subr.bf16.mxu0 0
    %2774 = vmatpush1.bf16.msra.mxu0 0
    %2775 = vmatprep.mubr.bf16.mxu0 0
    %2776 = vmatmul.mubr.bf16.gmra.mrb[0].mxu0 %v2741
    %v2777 = vpop.f32.mrb[0].mxu0
    %v2778 = vadd.f32 0.0, %v2777
    %v2779 = vpop.f32.mrb[0].mxu0
    %v2780 = vpop.f32.mrb[0].mxu0
    %v2781 = vpop.f32.mrb[0].mxu0
    %2782 = vdwg.mxu0
    %v2791 = vunpack.c.l.b16 %v832
    %v2792 = vunpack.c.l.b16 %v833
    %v2793 = vunpack.c.l.b16 %v834
    %v2794 = vunpack.c.l.b16 %v835
    %v2795 = vunpack.c.l.b16 %v836
    %v2796 = vunpack.c.l.b16 %v837
    %v2797 = vunpack.c.l.b16 %v838
    %v2798 = vunpack.c.l.b16 %v839
    %v2799 = vpack.c.b16 %v2792, %v2791
    %v2800 = vpack.c.b16 %v2794, %v2793
    %v2801 = vpack.c.b16 %v2796, %v2795
    %v2802 = vpack.c.b16 %v2798, %v2797
    %v2808 = vsel %vm2161, %v2503, 0
    %2810 = vmatprep.subr.bf16.mxu0 0
    %2811 = vmatpush1.bf16.msra.mxu0 %v2799
    %2812 = vmatprep.subr.bf16.mxu0 0
    %2813 = vmatpush1.bf16.msra.mxu0 %v2800
    %2814 = vmatprep.subr.bf16.mxu0 0
    %2815 = vmatpush1.bf16.msra.mxu0 %v2801
    %2816 = vmatprep.subr.bf16.mxu0 0
    %2817 = vmatpush1.bf16.msra.mxu0 %v2802
    %2818 = vmatprep.subr.bf16.mxu0 0
    %2819 = vmatpush1.bf16.msra.mxu0 0
    %2820 = vmatprep.subr.bf16.mxu0 0
    %2821 = vmatpush1.bf16.msra.mxu0 0
    %2822 = vmatprep.subr.bf16.mxu0 0
    %2823 = vmatpush1.bf16.msra.mxu0 0
    %2824 = vmatprep.subr.bf16.mxu0 0
    %2825 = vmatpush1.bf16.msra.mxu0 0
    %2826 = vmatprep.subr.bf16.mxu0 0
    %2827 = vmatpush1.bf16.msra.mxu0 0
    %2828 = vmatprep.subr.bf16.mxu0 0
    %2829 = vmatpush1.bf16.msra.mxu0 0
    %2830 = vmatprep.subr.bf16.mxu0 0
    %2831 = vmatpush1.bf16.msra.mxu0 0
    %2832 = vmatprep.subr.bf16.mxu0 0
    %2833 = vmatpush1.bf16.msra.mxu0 0
    %2834 = vmatprep.subr.bf16.mxu0 0
    %2835 = vmatpush1.bf16.msra.mxu0 0
    %2836 = vmatprep.subr.bf16.mxu0 0
    %2837 = vmatpush1.bf16.msra.mxu0 0
    %2838 = vmatprep.subr.bf16.mxu0 0
    %2839 = vmatpush1.bf16.msra.mxu0 0
    %2840 = vmatprep.subr.bf16.mxu0 0
    %2841 = vmatpush1.bf16.msra.mxu0 0
    %2842 = vmatprep.mubr.bf16.mxu0 0
    %2843 = vmatmul.mubr.bf16.gmra.mrb[0].mxu0 %v2808
    %v2844 = vpop.f32.mrb[0].mxu0
    %v2845 = vadd.f32 0.0, %v2844
    %v2846 = vpop.f32.mrb[0].mxu0
    %v2847 = vpop.f32.mrb[0].mxu0
    %v2848 = vpop.f32.mrb[0].mxu0
    %2849 = vdwg.mxu0
    %v2858 = vunpack.c.l.b16 %v840
    %v2859 = vunpack.c.l.b16 %v841
    %v2860 = vunpack.c.l.b16 %v842
    %v2861 = vunpack.c.l.b16 %v843
    %v2862 = vunpack.c.l.b16 %v844
    %v2863 = vunpack.c.l.b16 %v845
    %v2864 = vunpack.c.l.b16 %v846
    %v2865 = vunpack.c.l.b16 %v847
    %v2866 = vpack.c.b16 %v2859, %v2858
    %v2867 = vpack.c.b16 %v2861, %v2860
    %v2868 = vpack.c.b16 %v2863, %v2862
    %v2869 = vpack.c.b16 %v2865, %v2864
    %v2875 = vsel %vm2161, %v2504, 0
    %2877 = vmatprep.subr.bf16.mxu0 0
    %2878 = vmatpush1.bf16.msra.mxu0 %v2866
    %2879 = vmatprep.subr.bf16.mxu0 0
    %2880 = vmatpush1.bf16.msra.mxu0 %v2867
    %2881 = vmatprep.subr.bf16.mxu0 0
    %2882 = vmatpush1.bf16.msra.mxu0 %v2868
    %2883 = vmatprep.subr.bf16.mxu0 0
    %2884 = vmatpush1.bf16.msra.mxu0 %v2869
    %2885 = vmatprep.subr.bf16.mxu0 0
    %2886 = vmatpush1.bf16.msra.mxu0 0
    %2887 = vmatprep.subr.bf16.mxu0 0
    %2888 = vmatpush1.bf16.msra.mxu0 0
    %2889 = vmatprep.subr.bf16.mxu0 0
    %2890 = vmatpush1.bf16.msra.mxu0 0
    %2891 = vmatprep.subr.bf16.mxu0 0
    %2892 = vmatpush1.bf16.msra.mxu0 0
    %2893 = vmatprep.subr.bf16.mxu0 0
    %2894 = vmatpush1.bf16.msra.mxu0 0
    %2895 = vmatprep.subr.bf16.mxu0 0
    %2896 = vmatpush1.bf16.msra.mxu0 0
    %2897 = vmatprep.subr.bf16.mxu0 0
    %2898 = vmatpush1.bf16.msra.mxu0 0
    %2899 = vmatprep.subr.bf16.mxu0 0
    %2900 = vmatpush1.bf16.msra.mxu0 0
    %2901 = vmatprep.subr.bf16.mxu0 0
    %2902 = vmatpush1.bf16.msra.mxu0 0
    %2903 = vmatprep.subr.bf16.mxu0 0
    %2904 = vmatpush1.bf16.msra.mxu0 0
    %2905 = vmatprep.subr.bf16.mxu0 0
    %2906 = vmatpush1.bf16.msra.mxu0 0
    %2907 = vmatprep.subr.bf16.mxu0 0
    %2908 = vmatpush1.bf16.msra.mxu0 0
    %2909 = vmatprep.mubr.bf16.mxu0 0
    %2910 = vmatmul.mubr.bf16.gmra.mrb[0].mxu0 %v2875
    %v2911 = vpop.f32.mrb[0].mxu0
    %v2912 = vadd.f32 0.0, %v2911
    %v2913 = vpop.f32.mrb[0].mxu0
    %v2914 = vpop.f32.mrb[0].mxu0
    %v2915 = vpop.f32.mrb[0].mxu0
    %2916 = vdwg.mxu0
    %v2925 = vunpack.c.l.b16 %v848
    %v2926 = vunpack.c.l.b16 %v849
    %v2927 = vunpack.c.l.b16 %v850
    %v2928 = vunpack.c.l.b16 %v851
    %v2929 = vunpack.c.l.b16 %v852
    %v2930 = vunpack.c.l.b16 %v853
    %v2931 = vunpack.c.l.b16 %v854
    %v2932 = vunpack.c.l.b16 %v855
    %v2933 = vpack.c.b16 %v2926, %v2925
    %v2934 = vpack.c.b16 %v2928, %v2927
    %v2935 = vpack.c.b16 %v2930, %v2929
    %v2936 = vpack.c.b16 %v2932, %v2931
    %v2942 = vsel %vm2161, %v2505, 0
    %2944 = vmatprep.subr.bf16.mxu0 0
    %2945 = vmatpush1.bf16.msra.mxu0 %v2933
    %2946 = vmatprep.subr.bf16.mxu0 0
    %2947 = vmatpush1.bf16.msra.mxu0 %v2934
    %2948 = vmatprep.subr.bf16.mxu0 0
    %2949 = vmatpush1.bf16.msra.mxu0 %v2935
    %2950 = vmatprep.subr.bf16.mxu0 0
    %2951 = vmatpush1.bf16.msra.mxu0 %v2936
    %2952 = vmatprep.subr.bf16.mxu0 0
    %2953 = vmatpush1.bf16.msra.mxu0 0
    %2954 = vmatprep.subr.bf16.mxu0 0
    %2955 = vmatpush1.bf16.msra.mxu0 0
    %2956 = vmatprep.subr.bf16.mxu0 0
    %2957 = vmatpush1.bf16.msra.mxu0 0
    %2958 = vmatprep.subr.bf16.mxu0 0
    %2959 = vmatpush1.bf16.msra.mxu0 0
    %2960 = vmatprep.subr.bf16.mxu0 0
    %2961 = vmatpush1.bf16.msra.mxu0 0
    %2962 = vmatprep.subr.bf16.mxu0 0
    %2963 = vmatpush1.bf16.msra.mxu0 0
    %2964 = vmatprep.subr.bf16.mxu0 0
    %2965 = vmatpush1.bf16.msra.mxu0 0
    %2966 = vmatprep.subr.bf16.mxu0 0
    %2967 = vmatpush1.bf16.msra.mxu0 0
    %2968 = vmatprep.subr.bf16.mxu0 0
    %2969 = vmatpush1.bf16.msra.mxu0 0
    %2970 = vmatprep.subr.bf16.mxu0 0
    %2971 = vmatpush1.bf16.msra.mxu0 0
    %2972 = vmatprep.subr.bf16.mxu0 0
    %2973 = vmatpush1.bf16.msra.mxu0 0
    %2974 = vmatprep.subr.bf16.mxu0 0
    %2975 = vmatpush1.bf16.msra.mxu0 0
    %2976 = vmatprep.mubr.bf16.mxu0 0
    %2977 = vmatmul.mubr.bf16.gmra.mrb[0].mxu0 %v2942
    %v2978 = vpop.f32.mrb[0].mxu0
    %v2979 = vadd.f32 0.0, %v2978
    %v2980 = vpop.f32.mrb[0].mxu0
    %v2981 = vpop.f32.mrb[0].mxu0
    %v2982 = vpop.f32.mrb[0].mxu0
    %2983 = vdwg.mxu0
    %v2992 = vunpack.c.l.b16 %v856
    %v2993 = vunpack.c.l.b16 %v857
    %v2994 = vunpack.c.l.b16 %v858
    %v2995 = vunpack.c.l.b16 %v859
    %v2996 = vunpack.c.l.b16 %v860
    %v2997 = vunpack.c.l.b16 %v861
    %v2998 = vunpack.c.l.b16 %v862
    %v2999 = vunpack.c.l.b16 %v863
    %v3000 = vpack.c.b16 %v2993, %v2992
    %v3001 = vpack.c.b16 %v2995, %v2994
    %v3002 = vpack.c.b16 %v2997, %v2996
    %v3003 = vpack.c.b16 %v2999, %v2998
    %v3009 = vsel %vm2161, %v2506, 0
    %3011 = vmatprep.subr.bf16.mxu0 0
    %3012 = vmatpush1.bf16.msra.mxu0 %v3000
    %3013 = vmatprep.subr.bf16.mxu0 0
    %3014 = vmatpush1.bf16.msra.mxu0 %v3001
    %3015 = vmatprep.subr.bf16.mxu0 0
    %3016 = vmatpush1.bf16.msra.mxu0 %v3002
    %3017 = vmatprep.subr.bf16.mxu0 0
    %3018 = vmatpush1.bf16.msra.mxu0 %v3003
    %3019 = vmatprep.subr.bf16.mxu0 0
    %3020 = vmatpush1.bf16.msra.mxu0 0
    %3021 = vmatprep.subr.bf16.mxu0 0
    %3022 = vmatpush1.bf16.msra.mxu0 0
    %3023 = vmatprep.subr.bf16.mxu0 0
    %3024 = vmatpush1.bf16.msra.mxu0 0
    %3025 = vmatprep.subr.bf16.mxu0 0
    %3026 = vmatpush1.bf16.msra.mxu0 0
    %3027 = vmatprep.subr.bf16.mxu0 0
    %3028 = vmatpush1.bf16.msra.mxu0 0
    %3029 = vmatprep.subr.bf16.mxu0 0
    %3030 = vmatpush1.bf16.msra.mxu0 0
    %3031 = vmatprep.subr.bf16.mxu0 0
    %3032 = vmatpush1.bf16.msra.mxu0 0
    %3033 = vmatprep.subr.bf16.mxu0 0
    %3034 = vmatpush1.bf16.msra.mxu0 0
    %3035 = vmatprep.subr.bf16.mxu0 0
    %3036 = vmatpush1.bf16.msra.mxu0 0
    %3037 = vmatprep.subr.bf16.mxu0 0
    %3038 = vmatpush1.bf16.msra.mxu0 0
    %3039 = vmatprep.subr.bf16.mxu0 0
    %3040 = vmatpush1.bf16.msra.mxu0 0
    %3041 = vmatprep.subr.bf16.mxu0 0
    %3042 = vmatpush1.bf16.msra.mxu0 0
    %3043 = vmatprep.mubr.bf16.mxu0 0
    %3044 = vmatmul.mubr.bf16.gmra.mrb[0].mxu0 %v3009
    %v3045 = vpop.f32.mrb[0].mxu0
    %v3046 = vadd.f32 0.0, %v3045
    %v3047 = vpop.f32.mrb[0].mxu0
    %v3048 = vpop.f32.mrb[0].mxu0
    %v3049 = vpop.f32.mrb[0].mxu0
    %3050 = vdwg.mxu0
    %v3059 = vunpack.c.l.b16 %v864
    %v3060 = vunpack.c.l.b16 %v865
    %v3061 = vunpack.c.l.b16 %v866
    %v3062 = vunpack.c.l.b16 %v867
    %v3063 = vunpack.c.l.b16 %v868
    %v3064 = vunpack.c.l.b16 %v869
    %v3065 = vunpack.c.l.b16 %v870
    %v3066 = vunpack.c.l.b16 %v871
    %v3067 = vpack.c.b16 %v3060, %v3059
    %v3068 = vpack.c.b16 %v3062, %v3061
    %v3069 = vpack.c.b16 %v3064, %v3063
    %v3070 = vpack.c.b16 %v3066, %v3065
    %v3076 = vsel %vm2161, %v2507, 0
    %3078 = vmatprep.subr.bf16.mxu0 0
    %3079 = vmatpush1.bf16.msra.mxu0 %v3067
    %3080 = vmatprep.subr.bf16.mxu0 0
    %3081 = vmatpush1.bf16.msra.mxu0 %v3068
    %3082 = vmatprep.subr.bf16.mxu0 0
    %3083 = vmatpush1.bf16.msra.mxu0 %v3069
    %3084 = vmatprep.subr.bf16.mxu0 0
    %3085 = vmatpush1.bf16.msra.mxu0 %v3070
    %3086 = vmatprep.subr.bf16.mxu0 0
    %3087 = vmatpush1.bf16.msra.mxu0 0
    %3088 = vmatprep.subr.bf16.mxu0 0
    %3089 = vmatpush1.bf16.msra.mxu0 0
    %3090 = vmatprep.subr.bf16.mxu0 0
    %3091 = vmatpush1.bf16.msra.mxu0 0
    %3092 = vmatprep.subr.bf16.mxu0 0
    %3093 = vmatpush1.bf16.msra.mxu0 0
    %3094 = vmatprep.subr.bf16.mxu0 0
    %3095 = vmatpush1.bf16.msra.mxu0 0
    %3096 = vmatprep.subr.bf16.mxu0 0
    %3097 = vmatpush1.bf16.msra.mxu0 0
    %3098 = vmatprep.subr.bf16.mxu0 0
    %3099 = vmatpush1.bf16.msra.mxu0 0
    %3100 = vmatprep.subr.bf16.mxu0 0
    %3101 = vmatpush1.bf16.msra.mxu0 0
    %3102 = vmatprep.subr.bf16.mxu0 0
    %3103 = vmatpush1.bf16.msra.mxu0 0
    %3104 = vmatprep.subr.bf16.mxu0 0
    %3105 = vmatpush1.bf16.msra.mxu0 0
    %3106 = vmatprep.subr.bf16.mxu0 0
    %3107 = vmatpush1.bf16.msra.mxu0 0
    %3108 = vmatprep.subr.bf16.mxu0 0
    %3109 = vmatpush1.bf16.msra.mxu0 0
    %3110 = vmatprep.mubr.bf16.mxu0 0
    %3111 = vmatmul.mubr.bf16.gmra.mrb[0].mxu0 %v3076
    %v3112 = vpop.f32.mrb[0].mxu0
    %v3113 = vadd.f32 0.0, %v3112
    %v3114 = vpop.f32.mrb[0].mxu0
    %v3115 = vpop.f32.mrb[0].mxu0
    %v3116 = vpop.f32.mrb[0].mxu0
    %3117 = vdwg.mxu0
    %v3126 = vunpack.c.l.b16 %v872
    %v3127 = vunpack.c.l.b16 %v873
    %v3128 = vunpack.c.l.b16 %v874
    %v3129 = vunpack.c.l.b16 %v875
    %v3130 = vunpack.c.l.b16 %v876
    %v3131 = vunpack.c.l.b16 %v877
    %v3132 = vunpack.c.l.b16 %v878
    %v3133 = vunpack.c.l.b16 %v879
    %v3134 = vpack.c.b16 %v3127, %v3126
    %v3135 = vpack.c.b16 %v3129, %v3128
    %v3136 = vpack.c.b16 %v3131, %v3130
    %v3137 = vpack.c.b16 %v3133, %v3132
    %v3143 = vsel %vm2161, %v2508, 0
    %3145 = vmatprep.subr.bf16.mxu0 0
    %3146 = vmatpush1.bf16.msra.mxu0 %v3134
    %3147 = vmatprep.subr.bf16.mxu0 0
    %3148 = vmatpush1.bf16.msra.mxu0 %v3135
    %3149 = vmatprep.subr.bf16.mxu0 0
    %3150 = vmatpush1.bf16.msra.mxu0 %v3136
    %3151 = vmatprep.subr.bf16.mxu0 0
    %3152 = vmatpush1.bf16.msra.mxu0 %v3137
    %3153 = vmatprep.subr.bf16.mxu0 0
    %3154 = vmatpush1.bf16.msra.mxu0 0
    %3155 = vmatprep.subr.bf16.mxu0 0
    %3156 = vmatpush1.bf16.msra.mxu0 0
    %3157 = vmatprep.subr.bf16.mxu0 0
    %3158 = vmatpush1.bf16.msra.mxu0 0
    %3159 = vmatprep.subr.bf16.mxu0 0
    %3160 = vmatpush1.bf16.msra.mxu0 0
    %3161 = vmatprep.subr.bf16.mxu0 0
    %3162 = vmatpush1.bf16.msra.mxu0 0
    %3163 = vmatprep.subr.bf16.mxu0 0
    %3164 = vmatpush1.bf16.msra.mxu0 0
    %3165 = vmatprep.subr.bf16.mxu0 0
    %3166 = vmatpush1.bf16.msra.mxu0 0
    %3167 = vmatprep.subr.bf16.mxu0 0
    %3168 = vmatpush1.bf16.msra.mxu0 0
    %3169 = vmatprep.subr.bf16.mxu0 0
    %3170 = vmatpush1.bf16.msra.mxu0 0
    %3171 = vmatprep.subr.bf16.mxu0 0
    %3172 = vmatpush1.bf16.msra.mxu0 0
    %3173 = vmatprep.subr.bf16.mxu0 0
    %3174 = vmatpush1.bf16.msra.mxu0 0
    %3175 = vmatprep.subr.bf16.mxu0 0
    %3176 = vmatpush1.bf16.msra.mxu0 0
    %3177 = vmatprep.mubr.bf16.mxu0 0
    %3178 = vmatmul.mubr.bf16.gmra.mrb[0].mxu0 %v3143
    %v3179 = vpop.f32.mrb[0].mxu0
    %v3180 = vadd.f32 0.0, %v3179
    %v3181 = vpop.f32.mrb[0].mxu0
    %v3182 = vpop.f32.mrb[0].mxu0
    %v3183 = vpop.f32.mrb[0].mxu0
    %3184 = vdwg.mxu0
    %v3193 = vunpack.c.l.b16 %v880
    %v3194 = vunpack.c.l.b16 %v881
    %v3195 = vunpack.c.l.b16 %v882
    %v3196 = vunpack.c.l.b16 %v883
    %v3197 = vunpack.c.l.b16 %v884
    %v3198 = vunpack.c.l.b16 %v885
    %v3199 = vunpack.c.l.b16 %v886
    %v3200 = vunpack.c.l.b16 %v887
    %v3201 = vpack.c.b16 %v3194, %v3193
    %v3202 = vpack.c.b16 %v3196, %v3195
    %v3203 = vpack.c.b16 %v3198, %v3197
    %v3204 = vpack.c.b16 %v3200, %v3199
    %v3210 = vsel %vm2161, %v2509, 0
    %3212 = vmatprep.subr.bf16.mxu0 0
    %3213 = vmatpush1.bf16.msra.mxu0 %v3201
    %3214 = vmatprep.subr.bf16.mxu0 0
    %3215 = vmatpush1.bf16.msra.mxu0 %v3202
    %3216 = vmatprep.subr.bf16.mxu0 0
    %3217 = vmatpush1.bf16.msra.mxu0 %v3203
    %3218 = vmatprep.subr.bf16.mxu0 0
    %3219 = vmatpush1.bf16.msra.mxu0 %v3204
    %3220 = vmatprep.subr.bf16.mxu0 0
    %3221 = vmatpush1.bf16.msra.mxu0 0
    %3222 = vmatprep.subr.bf16.mxu0 0
    %3223 = vmatpush1.bf16.msra.mxu0 0
    %3224 = vmatprep.subr.bf16.mxu0 0
    %3225 = vmatpush1.bf16.msra.mxu0 0
    %3226 = vmatprep.subr.bf16.mxu0 0
    %3227 = vmatpush1.bf16.msra.mxu0 0
    %3228 = vmatprep.subr.bf16.mxu0 0
    %3229 = vmatpush1.bf16.msra.mxu0 0
    %3230 = vmatprep.subr.bf16.mxu0 0
    %3231 = vmatpush1.bf16.msra.mxu0 0
    %3232 = vmatprep.subr.bf16.mxu0 0
    %3233 = vmatpush1.bf16.msra.mxu0 0
    %3234 = vmatprep.subr.bf16.mxu0 0
    %3235 = vmatpush1.bf16.msra.mxu0 0
    %3236 = vmatprep.subr.bf16.mxu0 0
    %3237 = vmatpush1.bf16.msra.mxu0 0
    %3238 = vmatprep.subr.bf16.mxu0 0
    %3239 = vmatpush1.bf16.msra.mxu0 0
    %3240 = vmatprep.subr.bf16.mxu0 0
    %3241 = vmatpush1.bf16.msra.mxu0 0
    %3242 = vmatprep.subr.bf16.mxu0 0
    %3243 = vmatpush1.bf16.msra.mxu0 0
    %3244 = vmatprep.mubr.bf16.mxu0 0
    %3245 = vmatmul.mubr.bf16.gmra.mrb[0].mxu0 %v3210
    %v3246 = vpop.f32.mrb[0].mxu0
    %v3247 = vadd.f32 0.0, %v3246
    %v3248 = vpop.f32.mrb[0].mxu0
    %v3249 = vpop.f32.mrb[0].mxu0
    %v3250 = vpop.f32.mrb[0].mxu0
    %3251 = vdwg.mxu0
    %v3260 = vunpack.c.l.b16 %v888
    %v3261 = vunpack.c.l.b16 %v889
    %v3262 = vunpack.c.l.b16 %v890
    %v3263 = vunpack.c.l.b16 %v891
    %v3264 = vunpack.c.l.b16 %v892
    %v3265 = vunpack.c.l.b16 %v893
    %v3266 = vunpack.c.l.b16 %v894
    %v3267 = vunpack.c.l.b16 %v895
    %v3268 = vpack.c.b16 %v3261, %v3260
    %v3269 = vpack.c.b16 %v3263, %v3262
    %v3270 = vpack.c.b16 %v3265, %v3264
    %v3271 = vpack.c.b16 %v3267, %v3266
    %v3277 = vsel %vm2161, %v2510, 0
    %3279 = vmatprep.subr.bf16.mxu0 0
    %3280 = vmatpush1.bf16.msra.mxu0 %v3268
    %3281 = vmatprep.subr.bf16.mxu0 0
    %3282 = vmatpush1.bf16.msra.mxu0 %v3269
    %3283 = vmatprep.subr.bf16.mxu0 0
    %3284 = vmatpush1.bf16.msra.mxu0 %v3270
    %3285 = vmatprep.subr.bf16.mxu0 0
    %3286 = vmatpush1.bf16.msra.mxu0 %v3271
    %3287 = vmatprep.subr.bf16.mxu0 0
    %3288 = vmatpush1.bf16.msra.mxu0 0
    %3289 = vmatprep.subr.bf16.mxu0 0
    %3290 = vmatpush1.bf16.msra.mxu0 0
    %3291 = vmatprep.subr.bf16.mxu0 0
    %3292 = vmatpush1.bf16.msra.mxu0 0
    %3293 = vmatprep.subr.bf16.mxu0 0
    %3294 = vmatpush1.bf16.msra.mxu0 0
    %3295 = vmatprep.subr.bf16.mxu0 0
    %3296 = vmatpush1.bf16.msra.mxu0 0
    %3297 = vmatprep.subr.bf16.mxu0 0
    %3298 = vmatpush1.bf16.msra.mxu0 0
    %3299 = vmatprep.subr.bf16.mxu0 0
    %3300 = vmatpush1.bf16.msra.mxu0 0
    %3301 = vmatprep.subr.bf16.mxu0 0
    %3302 = vmatpush1.bf16.msra.mxu0 0
    %3303 = vmatprep.subr.bf16.mxu0 0
    %3304 = vmatpush1.bf16.msra.mxu0 0
    %3305 = vmatprep.subr.bf16.mxu0 0
    %3306 = vmatpush1.bf16.msra.mxu0 0
    %3307 = vmatprep.subr.bf16.mxu0 0
    %3308 = vmatpush1.bf16.msra.mxu0 0
    %3309 = vmatprep.subr.bf16.mxu0 0
    %3310 = vmatpush1.bf16.msra.mxu0 0
    %3311 = vmatprep.mubr.bf16.mxu0 0
    %3312 = vmatmul.mubr.bf16.gmra.mrb[0].mxu0 %v3277
    %v3313 = vpop.f32.mrb[0].mxu0
    %v3314 = vadd.f32 0.0, %v3313
    %v3315 = vpop.f32.mrb[0].mxu0
    %v3316 = vpop.f32.mrb[0].mxu0
    %v3317 = vpop.f32.mrb[0].mxu0
    %3318 = vdwg.mxu0
    %v3327 = vunpack.c.l.b16 %v896
    %v3328 = vunpack.c.l.b16 %v897
    %v3329 = vunpack.c.l.b16 %v898
    %v3330 = vunpack.c.l.b16 %v899
    %v3331 = vunpack.c.l.b16 %v900
    %v3332 = vunpack.c.l.b16 %v901
    %v3333 = vunpack.c.l.b16 %v902
    %v3334 = vunpack.c.l.b16 %v903
    %v3335 = vpack.c.b16 %v3328, %v3327
    %v3336 = vpack.c.b16 %v3330, %v3329
    %v3337 = vpack.c.b16 %v3332, %v3331
    %v3338 = vpack.c.b16 %v3334, %v3333
    %v3344 = vsel %vm2161, %v2511, 0
    %3346 = vmatprep.subr.bf16.mxu0 0
    %3347 = vmatpush1.bf16.msra.mxu0 %v3335
    %3348 = vmatprep.subr.bf16.mxu0 0
    %3349 = vmatpush1.bf16.msra.mxu0 %v3336
    %3350 = vmatprep.subr.bf16.mxu0 0
    %3351 = vmatpush1.bf16.msra.mxu0 %v3337
    %3352 = vmatprep.subr.bf16.mxu0 0
    %3353 = vmatpush1.bf16.msra.mxu0 %v3338
    %3354 = vmatprep.subr.bf16.mxu0 0
    %3355 = vmatpush1.bf16.msra.mxu0 0
    %3356 = vmatprep.subr.bf16.mxu0 0
    %3357 = vmatpush1.bf16.msra.mxu0 0
    %3358 = vmatprep.subr.bf16.mxu0 0
    %3359 = vmatpush1.bf16.msra.mxu0 0
    %3360 = vmatprep.subr.bf16.mxu0 0
    %3361 = vmatpush1.bf16.msra.mxu0 0
    %3362 = vmatprep.subr.bf16.mxu0 0
    %3363 = vmatpush1.bf16.msra.mxu0 0
    %3364 = vmatprep.subr.bf16.mxu0 0
    %3365 = vmatpush1.bf16.msra.mxu0 0
    %3366 = vmatprep.subr.bf16.mxu0 0
    %3367 = vmatpush1.bf16.msra.mxu0 0
    %3368 = vmatprep.subr.bf16.mxu0 0
    %3369 = vmatpush1.bf16.msra.mxu0 0
    %3370 = vmatprep.subr.bf16.mxu0 0
    %3371 = vmatpush1.bf16.msra.mxu0 0
    %3372 = vmatprep.subr.bf16.mxu0 0
    %3373 = vmatpush1.bf16.msra.mxu0 0
    %3374 = vmatprep.subr.bf16.mxu0 0
    %3375 = vmatpush1.bf16.msra.mxu0 0
    %3376 = vmatprep.subr.bf16.mxu0 0
    %3377 = vmatpush1.bf16.msra.mxu0 0
    %3378 = vmatprep.mubr.bf16.mxu0 0
    %3379 = vmatmul.mubr.bf16.gmra.mrb[0].mxu0 %v3344
    %v3380 = vpop.f32.mrb[0].mxu0
    %v3381 = vadd.f32 0.0, %v3380
    %v3382 = vpop.f32.mrb[0].mxu0
    %v3383 = vpop.f32.mrb[0].mxu0
    %v3384 = vpop.f32.mrb[0].mxu0
    %3385 = vdwg.mxu0
    %v3394 = vunpack.c.l.b16 %v904
    %v3395 = vunpack.c.l.b16 %v905
    %v3396 = vunpack.c.l.b16 %v906
    %v3397 = vunpack.c.l.b16 %v907
    %v3398 = vunpack.c.l.b16 %v908
    %v3399 = vunpack.c.l.b16 %v909
    %v3400 = vunpack.c.l.b16 %v910
    %v3401 = vunpack.c.l.b16 %v911
    %v3402 = vpack.c.b16 %v3395, %v3394
    %v3403 = vpack.c.b16 %v3397, %v3396
    %v3404 = vpack.c.b16 %v3399, %v3398
    %v3405 = vpack.c.b16 %v3401, %v3400
    %v3411 = vsel %vm2161, %v2512, 0
    %3413 = vmatprep.subr.bf16.mxu0 0
    %3414 = vmatpush1.bf16.msra.mxu0 %v3402
    %3415 = vmatprep.subr.bf16.mxu0 0
    %3416 = vmatpush1.bf16.msra.mxu0 %v3403
    %3417 = vmatprep.subr.bf16.mxu0 0
    %3418 = vmatpush1.bf16.msra.mxu0 %v3404
    %3419 = vmatprep.subr.bf16.mxu0 0
    %3420 = vmatpush1.bf16.msra.mxu0 %v3405
    %3421 = vmatprep.subr.bf16.mxu0 0
    %3422 = vmatpush1.bf16.msra.mxu0 0
    %3423 = vmatprep.subr.bf16.mxu0 0
    %3424 = vmatpush1.bf16.msra.mxu0 0
    %3425 = vmatprep.subr.bf16.mxu0 0
    %3426 = vmatpush1.bf16.msra.mxu0 0
    %3427 = vmatprep.subr.bf16.mxu0 0
    %3428 = vmatpush1.bf16.msra.mxu0 0
    %3429 = vmatprep.subr.bf16.mxu0 0
    %3430 = vmatpush1.bf16.msra.mxu0 0
    %3431 = vmatprep.subr.bf16.mxu0 0
    %3432 = vmatpush1.bf16.msra.mxu0 0
    %3433 = vmatprep.subr.bf16.mxu0 0
    %3434 = vmatpush1.bf16.msra.mxu0 0
    %3435 = vmatprep.subr.bf16.mxu0 0
    %3436 = vmatpush1.bf16.msra.mxu0 0
    %3437 = vmatprep.subr.bf16.mxu0 0
    %3438 = vmatpush1.bf16.msra.mxu0 0
    %3439 = vmatprep.subr.bf16.mxu0 0
    %3440 = vmatpush1.bf16.msra.mxu0 0
    %3441 = vmatprep.subr.bf16.mxu0 0
    %3442 = vmatpush1.bf16.msra.mxu0 0
    %3443 = vmatprep.subr.bf16.mxu0 0
    %3444 = vmatpush1.bf16.msra.mxu0 0
    %3445 = vmatprep.mubr.bf16.mxu0 0
    %3446 = vmatmul.mubr.bf16.gmra.mrb[0].mxu0 %v3411
    %v3447 = vpop.f32.mrb[0].mxu0
    %v3448 = vadd.f32 0.0, %v3447
    %v3449 = vpop.f32.mrb[0].mxu0
    %v3450 = vpop.f32.mrb[0].mxu0
    %v3451 = vpop.f32.mrb[0].mxu0
    %3452 = vdwg.mxu0
    %v3461 = vunpack.c.l.b16 %v912
    %v3462 = vunpack.c.l.b16 %v913
    %v3463 = vunpack.c.l.b16 %v914
    %v3464 = vunpack.c.l.b16 %v915
    %v3465 = vunpack.c.l.b16 %v916
    %v3466 = vunpack.c.l.b16 %v917
    %v3467 = vunpack.c.l.b16 %v918
    %v3468 = vunpack.c.l.b16 %v919
    %v3469 = vpack.c.b16 %v3462, %v3461
    %v3470 = vpack.c.b16 %v3464, %v3463
    %v3471 = vpack.c.b16 %v3466, %v3465
    %v3472 = vpack.c.b16 %v3468, %v3467
    %v3478 = vsel %vm2161, %v2513, 0
    %3480 = vmatprep.subr.bf16.mxu0 0
    %3481 = vmatpush1.bf16.msra.mxu0 %v3469
    %3482 = vmatprep.subr.bf16.mxu0 0
    %3483 = vmatpush1.bf16.msra.mxu0 %v3470
    %3484 = vmatprep.subr.bf16.mxu0 0
    %3485 = vmatpush1.bf16.msra.mxu0 %v3471
    %3486 = vmatprep.subr.bf16.mxu0 0
    %3487 = vmatpush1.bf16.msra.mxu0 %v3472
    %3488 = vmatprep.subr.bf16.mxu0 0
    %3489 = vmatpush1.bf16.msra.mxu0 0
    %3490 = vmatprep.subr.bf16.mxu0 0
    %3491 = vmatpush1.bf16.msra.mxu0 0
    %3492 = vmatprep.subr.bf16.mxu0 0
    %3493 = vmatpush1.bf16.msra.mxu0 0
    %3494 = vmatprep.subr.bf16.mxu0 0
    %3495 = vmatpush1.bf16.msra.mxu0 0
    %3496 = vmatprep.subr.bf16.mxu0 0
    %3497 = vmatpush1.bf16.msra.mxu0 0
    %3498 = vmatprep.subr.bf16.mxu0 0
    %3499 = vmatpush1.bf16.msra.mxu0 0
    %3500 = vmatprep.subr.bf16.mxu0 0
    %3501 = vmatpush1.bf16.msra.mxu0 0
    %3502 = vmatprep.subr.bf16.mxu0 0
    %3503 = vmatpush1.bf16.msra.mxu0 0
    %3504 = vmatprep.subr.bf16.mxu0 0
    %3505 = vmatpush1.bf16.msra.mxu0 0
    %3506 = vmatprep.subr.bf16.mxu0 0
    %3507 = vmatpush1.bf16.msra.mxu0 0
    %3508 = vmatprep.subr.bf16.mxu0 0
    %3509 = vmatpush1.bf16.msra.mxu0 0
    %3510 = vmatprep.subr.bf16.mxu0 0
    %3511 = vmatpush1.bf16.msra.mxu0 0
    %3512 = vmatprep.mubr.bf16.mxu0 0
    %3513 = vmatmul.mubr.bf16.gmra.mrb[0].mxu0 %v3478
    %v3514 = vpop.f32.mrb[0].mxu0
    %v3515 = vadd.f32 0.0, %v3514
    %v3516 = vpop.f32.mrb[0].mxu0
    %v3517 = vpop.f32.mrb[0].mxu0
    %v3518 = vpop.f32.mrb[0].mxu0
    %3519 = vdwg.mxu0
    %v3528 = vunpack.c.l.b16 %v920
    %v3529 = vunpack.c.l.b16 %v921
    %v3530 = vunpack.c.l.b16 %v922
    %v3531 = vunpack.c.l.b16 %v923
    %v3532 = vunpack.c.l.b16 %v924
    %v3533 = vunpack.c.l.b16 %v925
    %v3534 = vunpack.c.l.b16 %v926
    %v3535 = vunpack.c.l.b16 %v927
    %v3536 = vpack.c.b16 %v3529, %v3528
    %v3537 = vpack.c.b16 %v3531, %v3530
    %v3538 = vpack.c.b16 %v3533, %v3532
    %v3539 = vpack.c.b16 %v3535, %v3534
    %v3545 = vsel %vm2161, %v2514, 0
    %3547 = vmatprep.subr.bf16.mxu0 0
    %3548 = vmatpush1.bf16.msra.mxu0 %v3536
    %3549 = vmatprep.subr.bf16.mxu0 0
    %3550 = vmatpush1.bf16.msra.mxu0 %v3537
    %3551 = vmatprep.subr.bf16.mxu0 0
    %3552 = vmatpush1.bf16.msra.mxu0 %v3538
    %3553 = vmatprep.subr.bf16.mxu0 0
    %3554 = vmatpush1.bf16.msra.mxu0 %v3539
    %3555 = vmatprep.subr.bf16.mxu0 0
    %3556 = vmatpush1.bf16.msra.mxu0 0
    %3557 = vmatprep.subr.bf16.mxu0 0
    %3558 = vmatpush1.bf16.msra.mxu0 0
    %3559 = vmatprep.subr.bf16.mxu0 0
    %3560 = vmatpush1.bf16.msra.mxu0 0
    %3561 = vmatprep.subr.bf16.mxu0 0
    %3562 = vmatpush1.bf16.msra.mxu0 0
    %3563 = vmatprep.subr.bf16.mxu0 0
    %3564 = vmatpush1.bf16.msra.mxu0 0
    %3565 = vmatprep.subr.bf16.mxu0 0
    %3566 = vmatpush1.bf16.msra.mxu0 0
    %3567 = vmatprep.subr.bf16.mxu0 0
    %3568 = vmatpush1.bf16.msra.mxu0 0
    %3569 = vmatprep.subr.bf16.mxu0 0
    %3570 = vmatpush1.bf16.msra.mxu0 0
    %3571 = vmatprep.subr.bf16.mxu0 0
    %3572 = vmatpush1.bf16.msra.mxu0 0
    %3573 = vmatprep.subr.bf16.mxu0 0
    %3574 = vmatpush1.bf16.msra.mxu0 0
    %3575 = vmatprep.subr.bf16.mxu0 0
    %3576 = vmatpush1.bf16.msra.mxu0 0
    %3577 = vmatprep.subr.bf16.mxu0 0
    %3578 = vmatpush1.bf16.msra.mxu0 0
    %3579 = vmatprep.mubr.bf16.mxu0 0
    %3580 = vmatmul.mubr.bf16.gmra.mrb[0].mxu0 %v3545
    %v3581 = vpop.f32.mrb[0].mxu0
    %v3582 = vadd.f32 0.0, %v3581
    %v3583 = vpop.f32.mrb[0].mxu0
    %v3584 = vpop.f32.mrb[0].mxu0
    %v3585 = vpop.f32.mrb[0].mxu0
    %3586 = vdwg.mxu0
    %v3587 = vpack.c.bf16 %v2644, %v2577
    %v3588 = vpack.c.bf16 %v2778, %v2711
    %v3589 = vpack.c.bf16 %v2912, %v2845
    %v3590 = vpack.c.bf16 %v3046, %v2979
    %v3591 = vpack.c.bf16 %v3180, %v3113
    %v3592 = vpack.c.bf16 %v3314, %v3247
    %v3593 = vpack.c.bf16 %v3448, %v3381
    %v3594 = vpack.c.bf16 %v3582, %v3515
    %v3595 = vld [vmem:[#allocation6] sm:$0xf]
    %v3596 = vld [vmem:[#allocation6 + $0x4] sm:$0xf]
    %v3597 = vld [vmem:[#allocation6 + $0x8] sm:$0xf]
    %v3598 = vld [vmem:[#allocation6 + $0xc] sm:$0xf]
    %v3599 = vld [vmem:[%s6] sm:$0x1]
    %v3601 = vlaneseq
    %v3602 = vshrl.u32 %v3601, 7
    %v3603 = vsub.s32 0, %v3602
    %v3604 = vrot.slane %v3599, %v3603
    %v3610 = vunpack.c.l.b16 %v3595
    %v3611 = vunpack.c.l.b16 %v3596
    %v3612 = vunpack.c.l.b16 %v3597
    %v3613 = vunpack.c.l.b16 %v3598
    %v3614 = vpack.c.b16 %v3611, %v3610
    %v3615 = vpack.c.b16 %v3613, %v3612
    %v3619 = vsel %vm216, %v3587, 0
    %v3622 = vsel %vm216, %v3588, 0
    %v3625 = vsel %vm216, %v3589, 0
    %v3628 = vsel %vm216, %v3590, 0
    %v3631 = vsel %vm216, %v3591, 0
    %v3634 = vsel %vm216, %v3592, 0
    %v3637 = vsel %vm216, %v3593, 0
    %v3640 = vsel %vm216, %v3594, 0
    %3642 = vmatprep.subr.bf16.mxu0 0
    %3643 = vmatpush1.bf16.msra.mxu0 %v3614
    %3644 = vmatprep.subr.bf16.mxu0 0
    %3645 = vmatpush1.bf16.msra.mxu0 %v3615
    %3646 = vmatprep.subr.bf16.mxu0 0
    %3647 = vmatpush1.bf16.msra.mxu0 0
    %3648 = vmatprep.subr.bf16.mxu0 0
    %3649 = vmatpush1.bf16.msra.mxu0 0
    %3650 = vmatprep.subr.bf16.mxu0 0
    %3651 = vmatpush1.bf16.msra.mxu0 0
    %3652 = vmatprep.subr.bf16.mxu0 0
    %3653 = vmatpush1.bf16.msra.mxu0 0
    %3654 = vmatprep.subr.bf16.mxu0 0
    %3655 = vmatpush1.bf16.msra.mxu0 0
    %3656 = vmatprep.subr.bf16.mxu0 0
    %3657 = vmatpush1.bf16.msra.mxu0 0
    %3658 = vmatprep.subr.bf16.mxu0 0
    %3659 = vmatpush1.bf16.msra.mxu0 0
    %3660 = vmatprep.subr.bf16.mxu0 0
    %3661 = vmatpush1.bf16.msra.mxu0 0
    %3662 = vmatprep.subr.bf16.mxu0 0
    %3663 = vmatpush1.bf16.msra.mxu0 0
    %3664 = vmatprep.subr.bf16.mxu0 0
    %3665 = vmatpush1.bf16.msra.mxu0 0
    %3666 = vmatprep.subr.bf16.mxu0 0
    %3667 = vmatpush1.bf16.msra.mxu0 0
    %3668 = vmatprep.subr.bf16.mxu0 0
    %3669 = vmatpush1.bf16.msra.mxu0 0
    %3670 = vmatprep.subr.bf16.mxu0 0
    %3671 = vmatpush1.bf16.msra.mxu0 0
    %3672 = vmatprep.subr.bf16.mxu0 0
    %3673 = vmatpush1.bf16.msra.mxu0 0
    %3674 = vmatprep.mubr.bf16.mxu0 0
    %3675 = vmatmul.mubr.bf16.gmra.mrb[0].mxu0 %v3619
    %v3676 = vpop.f32.mrb[0].mxu0
    %v3677 = vadd.f32 %v3604, %v3676
    %v3678 = vpop.f32.mrb[0].mxu0
    %v3679 = vpop.f32.mrb[0].mxu0
    %v3680 = vadd.f32 %v3604, %v3679
    %v3681 = vpop.f32.mrb[0].mxu0
    %3682 = vmatprep.mubr.bf16.mxu0 0
    %3683 = vmatmul.mubr.bf16.gmra.mrb[0].mxu0 %v3622
    %v3684 = vpop.f32.mrb[0].mxu0
    %v3685 = vadd.f32 %v3604, %v3684
    %v3686 = vpop.f32.mrb[0].mxu0
    %v3687 = vpop.f32.mrb[0].mxu0
    %v3688 = vadd.f32 %v3604, %v3687
    %v3689 = vpop.f32.mrb[0].mxu0
    %3690 = vmatprep.mubr.bf16.mxu0 0
    %3691 = vmatmul.mubr.bf16.gmra.mrb[0].mxu0 %v3625
    %v3692 = vpop.f32.mrb[0].mxu0
    %v3693 = vadd.f32 %v3604, %v3692
    %v3694 = vpop.f32.mrb[0].mxu0
    %v3695 = vpop.f32.mrb[0].mxu0
    %v3696 = vadd.f32 %v3604, %v3695
    %v3697 = vpop.f32.mrb[0].mxu0
    %3698 = vmatprep.mubr.bf16.mxu0 0
    %3699 = vmatmul.mubr.bf16.gmra.mrb[0].mxu0 %v3628
    %v3700 = vpop.f32.mrb[0].mxu0
    %v3701 = vadd.f32 %v3604, %v3700
    %v3702 = vpop.f32.mrb[0].mxu0
    %v3703 = vpop.f32.mrb[0].mxu0
    %v3704 = vadd.f32 %v3604, %v3703
    %v3705 = vpop.f32.mrb[0].mxu0
    %3706 = vmatprep.mubr.bf16.mxu0 0
    %3707 = vmatmul.mubr.bf16.gmra.mrb[0].mxu0 %v3631
    %v3708 = vpop.f32.mrb[0].mxu0
    %v3709 = vadd.f32 %v3604, %v3708
    %v3710 = vpop.f32.mrb[0].mxu0
    %v3711 = vpop.f32.mrb[0].mxu0
    %v3712 = vadd.f32 %v3604, %v3711
    %v3713 = vpop.f32.mrb[0].mxu0
    %3714 = vmatprep.mubr.bf16.mxu0 0
    %3715 = vmatmul.mubr.bf16.gmra.mrb[0].mxu0 %v3634
    %v3716 = vpop.f32.mrb[0].mxu0
    %v3717 = vadd.f32 %v3604, %v3716
    %v3718 = vpop.f32.mrb[0].mxu0
    %v3719 = vpop.f32.mrb[0].mxu0
    %v3720 = vadd.f32 %v3604, %v3719
    %v3721 = vpop.f32.mrb[0].mxu0
    %3722 = vmatprep.mubr.bf16.mxu0 0
    %3723 = vmatmul.mubr.bf16.gmra.mrb[0].mxu0 %v3637
    %v3724 = vpop.f32.mrb[0].mxu0
    %v3725 = vadd.f32 %v3604, %v3724
    %v3726 = vpop.f32.mrb[0].mxu0
    %v3727 = vpop.f32.mrb[0].mxu0
    %v3728 = vadd.f32 %v3604, %v3727
    %v3729 = vpop.f32.mrb[0].mxu0
    %3730 = vmatprep.mubr.bf16.mxu0 0
    %3731 = vmatmul.mubr.bf16.gmra.mrb[0].mxu0 %v3640
    %v3732 = vpop.f32.mrb[0].mxu0
    %v3733 = vadd.f32 %v3604, %v3732
    %v3734 = vpop.f32.mrb[0].mxu0
    %v3735 = vpop.f32.mrb[0].mxu0
    %v3736 = vadd.f32 %v3604, %v3735
    %v3737 = vpop.f32.mrb[0].mxu0
    %3738 = vdwg.mxu0
    %v3739 = vadd.f32 %v143, %v3677
    %v3740 = vadd.f32 %v144, %v3680
    %v3741 = vadd.f32 %v145, %v3685
    %v3742 = vadd.f32 %v146, %v3688
    %v3743 = vadd.f32 %v147, %v3693
    %v3744 = vadd.f32 %v148, %v3696
    %v3745 = vadd.f32 %v149, %v3701
    %v3746 = vadd.f32 %v150, %v3704
    %v3747 = vadd.f32 %v151, %v3709
    %v3748 = vadd.f32 %v152, %v3712
    %v3749 = vadd.f32 %v153, %v3717
    %v3750 = vadd.f32 %v154, %v3720
    %v3751 = vadd.f32 %v155, %v3725
    %v3752 = vadd.f32 %v156, %v3728
    %v3753 = vadd.f32 %v157, %v3733
    %v3754 = vadd.f32 %v158, %v3736
    %s3755 = scalar_lea.vmem %s2, 48
    %v3756 = vld [vmem:[%s3755] sm:$0xf]
    %v3757 = vld [vmem:[%s3755 + $0x4] sm:$0xf]
    %v3758 = vld [vmem:[%s3755 + $0x8] sm:$0xf]
    %v3759 = vld [vmem:[%s3755 + $0xc] sm:$0xf]
    %v3760 = vld [vmem:[%s3755 + $0x10] sm:$0xf]
    %v3761 = vld [vmem:[%s3755 + $0x14] sm:$0xf]
    %v3762 = vld [vmem:[%s3755 + $0x18] sm:$0xf]
    %v3763 = vld [vmem:[%s3755 + $0x1c] sm:$0xf]
    %v3764 = vld [vmem:[%s3755 + $0x20] sm:$0xf]
    %v3765 = vld [vmem:[%s3755 + $0x24] sm:$0xf]
    %v3766 = vld [vmem:[%s3755 + $0x28] sm:$0xf]
    %v3767 = vld [vmem:[%s3755 + $0x2c] sm:$0xf]
    %s3768 = scalar_lea.vmem %s3, 3
    %v3769 = vld [vmem:[%s3768] sm:$0x1]
    %v3770 = vld [vmem:[%s3768 + $0x1] sm:$0x1]
    %v3771 = vld [vmem:[%s3768 + $0x2] sm:$0x1]
    %v3772 = vpack.c.bf16 %v3740, %v3739
    %v3773 = vpack.c.bf16 %v3742, %v3741
    %v3774 = vpack.c.bf16 %v3744, %v3743
    %v3775 = vpack.c.bf16 %v3746, %v3745
    %v3776 = vpack.c.bf16 %v3748, %v3747
    %v3777 = vpack.c.bf16 %v3750, %v3749
    %v3778 = vpack.c.bf16 %v3752, %v3751
    %v3779 = vpack.c.bf16 %v3754, %v3753
    %v3780 = vpack.c.bf16 %v3739, %v3739
    %v3781 = vpack.c.bf16 %v3740, %v3740
    %v3782 = vpack.c.bf16 %v3741, %v3741
    %v3783 = vpack.c.bf16 %v3742, %v3742
    %v3784 = vpack.c.bf16 %v3743, %v3743
    %v3785 = vpack.c.bf16 %v3744, %v3744
    %v3786 = vpack.c.bf16 %v3745, %v3745
    %v3787 = vpack.c.bf16 %v3746, %v3746
    %v3788 = vpack.c.bf16 %v3747, %v3747
    %v3789 = vpack.c.bf16 %v3748, %v3748
    %v3790 = vpack.c.bf16 %v3749, %v3749
    %v3791 = vpack.c.bf16 %v3750, %v3750
    %v3792 = vpack.c.bf16 %v3751, %v3751
    %v3793 = vpack.c.bf16 %v3752, %v3752
    %v3794 = vpack.c.bf16 %v3753, %v3753
    %v3795 = vpack.c.bf16 %v3754, %v3754
    %v3797 = vlaneseq
    %v3798 = vshrl.u32 %v3797, 7
    %v3799 = vsub.s32 0, %v3798
    %v3800 = vrot.slane %v3769, %v3799
    %v3818 = vunpack.c.l.b16 %v3780
    %v3819 = vunpack.c.l.b16 %v3781
    %v3820 = vunpack.c.l.b16 %v3782
    %v3821 = vunpack.c.l.b16 %v3783
    %v3822 = vunpack.c.l.b16 %v3784
    %v3823 = vunpack.c.l.b16 %v3785
    %v3824 = vunpack.c.l.b16 %v3786
    %v3825 = vunpack.c.l.b16 %v3787
    %v3826 = vunpack.c.l.b16 %v3788
    %v3827 = vunpack.c.l.b16 %v3789
    %v3828 = vunpack.c.l.b16 %v3790
    %v3829 = vunpack.c.l.b16 %v3791
    %v3830 = vunpack.c.l.b16 %v3792
    %v3831 = vunpack.c.l.b16 %v3793
    %v3832 = vunpack.c.l.b16 %v3794
    %v3833 = vunpack.c.l.b16 %v3795
    %v3834 = vrot.slane %v3819, 7
    %vm3835 = vcmask 1041409
    %v3836 = vsel %vm3835, %v3834, %v3818
    %v3837 = vrot.slane %v3820, 6
    %vm3838 = vcmask 1042434
    %v3839 = vsel %vm3838, %v3837, %v3836
    %v3840 = vrot.slane %v3821, 5
    %vm3841 = vcmask 1043459
    %v3842 = vsel %vm3841, %v3840, %v3839
    %v3843 = vrot.slane %v3822, 4
    %vm3844 = vcmask 1044484
    %v3845 = vsel %vm3844, %v3843, %v3842
    %v3846 = vrot.slane %v3823, 3
    %vm3847 = vcmask 1045509
    %v3848 = vsel %vm3847, %v3846, %v3845
    %v3849 = vrot.slane %v3824, 2
    %vm3850 = vcmask 1046534
    %v3851 = vsel %vm3850, %v3849, %v3848
    %v3852 = vrot.slane %v3825, 1
    %vm3853 = vcmask 1047559
    %v3854 = vsel %vm3853, %v3852, %v3851
    %v3855 = vrot.slane %v3827, 7
    %v3856 = vsel %vm3835, %v3855, %v3826
    %v3857 = vrot.slane %v3828, 6
    %v3858 = vsel %vm3838, %v3857, %v3856
    %v3859 = vrot.slane %v3829, 5
    %v3860 = vsel %vm3841, %v3859, %v3858
    %v3861 = vrot.slane %v3830, 4
    %v3862 = vsel %vm3844, %v3861, %v3860
    %v3863 = vrot.slane %v3831, 3
    %v3864 = vsel %vm3847, %v3863, %v3862
    %v3865 = vrot.slane %v3832, 2
    %v3866 = vsel %vm3850, %v3865, %v3864
    %v3867 = vrot.slane %v3833, 1
    %v3868 = vsel %vm3853, %v3867, %v3866
    %v3869 = vpack.c.b16 %v3868, %v3854
    %v3874 = vunpack.c.l.b16 %v3756
    %v3875 = vunpack.c.l.b16 %v3757
    %v3876 = vunpack.c.l.b16 %v3758
    %v3877 = vunpack.c.l.b16 %v3759
    %v3878 = vpack.c.b16 %v3875, %v3874
    %v3879 = vpack.c.b16 %v3877, %v3876
    %v3883 = vsel %vm216, %v3869, 0
    %3885 = vmatprep.subr.bf16.mxu0 0
    %3886 = vmatpush1.bf16.msra.mxu0 %v3878
    %3887 = vmatprep.subr.bf16.mxu0 0
    %3888 = vmatpush1.bf16.msra.mxu0 %v3879
    %3889 = vmatprep.subr.bf16.mxu0 0
    %3890 = vmatpush1.bf16.msra.mxu0 0
    %3891 = vmatprep.subr.bf16.mxu0 0
    %3892 = vmatpush1.bf16.msra.mxu0 0
    %3893 = vmatprep.subr.bf16.mxu0 0
    %3894 = vmatpush1.bf16.msra.mxu0 0
    %3895 = vmatprep.subr.bf16.mxu0 0
    %3896 = vmatpush1.bf16.msra.mxu0 0
    %3897 = vmatprep.subr.bf16.mxu0 0
    %3898 = vmatpush1.bf16.msra.mxu0 0
    %3899 = vmatprep.subr.bf16.mxu0 0
    %3900 = vmatpush1.bf16.msra.mxu0 0
    %3901 = vmatprep.subr.bf16.mxu0 0
    %3902 = vmatpush1.bf16.msra.mxu0 0
    %3903 = vmatprep.subr.bf16.mxu0 0
    %3904 = vmatpush1.bf16.msra.mxu0 0
    %3905 = vmatprep.subr.bf16.mxu0 0
    %3906 = vmatpush1.bf16.msra.mxu0 0
    %3907 = vmatprep.subr.bf16.mxu0 0
    %3908 = vmatpush1.bf16.msra.mxu0 0
    %3909 = vmatprep.subr.bf16.mxu0 0
    %3910 = vmatpush1.bf16.msra.mxu0 0
    %3911 = vmatprep.subr.bf16.mxu0 0
    %3912 = vmatpush1.bf16.msra.mxu0 0
    %3913 = vmatprep.subr.bf16.mxu0 0
    %3914 = vmatpush1.bf16.msra.mxu0 0
    %3915 = vmatprep.subr.bf16.mxu0 0
    %3916 = vmatpush1.bf16.msra.mxu0 0
    %3917 = vmatprep.mubr.bf16.mxu0 0
    %3918 = vmatmul.mubr.bf16.gmra.mrb[0].mxu0 %v3883
    %v3919 = vpop.f32.mrb[0].mxu0
    %v3920 = vadd.f32 %v3800, %v3919
    %v3921 = vpop.f32.mrb[0].mxu0
    %v3922 = vpop.f32.mrb[0].mxu0
    %v3923 = vadd.f32 %v3800, %v3922
    %v3924 = vpop.f32.mrb[0].mxu0
    %3925 = vdwg.mxu0
    %v3928 = vcombine.high %v3920, %v3920
    %v3930 = vunpack.c.l.s4 1966171168
    %v3931 = vunpack.c.0.s8 %v3930
    %v3932 = vlaneseq
    %v3933 = vshrl.u32 %v3932, 7
    %v3934 = vsub.s32 %v3931, %v3933
    %v3935 = vrot.slane %v3920, %v3934
    %v3937 = vunpack.c.l.s4 1966171168
    %v3938 = vunpack.c.0.s8 %v3937
    %v3939 = vlaneseq
    %v3940 = vshrl.u32 %v3939, 7
    %v3941 = vsub.s32 %v3938, %v3940
    %v3942 = vrot.slane %v3928, %v3941
    %v3943 = vcombine.high %v3935, %v3935
    %v3944 = vcombine.high %v3942, %v3942
    %v3946 = vunpack.c.l.s4 1966171168
    %v3947 = vunpack.c.0.s8 %v3946
    %v3948 = vlaneseq
    %v3949 = vshrl.u32 %v3948, 7
    %v3950 = vsub.s32 %v3947, %v3949
    %v3951 = vrot.slane %v3935, %v3950
    %v3953 = vunpack.c.l.s4 1966171168
    %v3954 = vunpack.c.0.s8 %v3953
    %v3955 = vlaneseq
    %v3956 = vshrl.u32 %v3955, 7
    %v3957 = vsub.s32 %v3954, %v3956
    %v3958 = vrot.slane %v3942, %v3957
    %v3960 = vunpack.c.l.s4 1966171168
    %v3961 = vunpack.c.0.s8 %v3960
    %v3962 = vlaneseq
    %v3963 = vshrl.u32 %v3962, 7
    %v3964 = vsub.s32 %v3961, %v3963
    %v3965 = vrot.slane %v3943, %v3964
    %v3967 = vunpack.c.l.s4 1966171168
    %v3968 = vunpack.c.0.s8 %v3967
    %v3969 = vlaneseq
    %v3970 = vshrl.u32 %v3969, 7
    %v3971 = vsub.s32 %v3968, %v3970
    %v3972 = vrot.slane %v3944, %v3971
    %v3973 = vcombine.high %v3951, %v3951
    %v3974 = vcombine.high %v3958, %v3958
    %v3975 = vcombine.high %v3965, %v3965
    %v3976 = vcombine.high %v3972, %v3972
    %v3977 = vcombine.high %v3923, %v3923
    %v3979 = vunpack.c.l.s4 1966171168
    %v3980 = vunpack.c.0.s8 %v3979
    %v3981 = vlaneseq
    %v3982 = vshrl.u32 %v3981, 7
    %v3983 = vsub.s32 %v3980, %v3982
    %v3984 = vrot.slane %v3923, %v3983
    %v3986 = vunpack.c.l.s4 1966171168
    %v3987 = vunpack.c.0.s8 %v3986
    %v3988 = vlaneseq
    %v3989 = vshrl.u32 %v3988, 7
    %v3990 = vsub.s32 %v3987, %v3989
    %v3991 = vrot.slane %v3977, %v3990
    %v3992 = vcombine.high %v3984, %v3984
    %v3993 = vcombine.high %v3991, %v3991
    %v3995 = vunpack.c.l.s4 1966171168
    %v3996 = vunpack.c.0.s8 %v3995
    %v3997 = vlaneseq
    %v3998 = vshrl.u32 %v3997, 7
    %v3999 = vsub.s32 %v3996, %v3998
    %v4000 = vrot.slane %v3984, %v3999
    %v4002 = vunpack.c.l.s4 1966171168
    %v4003 = vunpack.c.0.s8 %v4002
    %v4004 = vlaneseq
    %v4005 = vshrl.u32 %v4004, 7
    %v4006 = vsub.s32 %v4003, %v4005
    %v4007 = vrot.slane %v3991, %v4006
    %v4009 = vunpack.c.l.s4 1966171168
    %v4010 = vunpack.c.0.s8 %v4009
    %v4011 = vlaneseq
    %v4012 = vshrl.u32 %v4011, 7
    %v4013 = vsub.s32 %v4010, %v4012
    %v4014 = vrot.slane %v3992, %v4013
    %v4016 = vunpack.c.l.s4 1966171168
    %v4017 = vunpack.c.0.s8 %v4016
    %v4018 = vlaneseq
    %v4019 = vshrl.u32 %v4018, 7
    %v4020 = vsub.s32 %v4017, %v4019
    %v4021 = vrot.slane %v3993, %v4020
    %v4022 = vcombine.high %v4000, %v4000
    %v4023 = vcombine.high %v4007, %v4007
    %v4024 = vcombine.high %v4014, %v4014
    %v4025 = vcombine.high %v4021, %v4021
    %v4042 = vpack.c.bf16 %v3951, %v3951
    %v4043 = vpack.c.bf16 %v3965, %v3965
    %v4044 = vpack.c.bf16 %v3973, %v3973
    %v4045 = vpack.c.bf16 %v3975, %v3975
    %v4046 = vpack.c.bf16 %v3958, %v3958
    %v4047 = vpack.c.bf16 %v3972, %v3972
    %v4048 = vpack.c.bf16 %v3974, %v3974
    %v4049 = vpack.c.bf16 %v3976, %v3976
    %v4050 = vpack.c.bf16 %v4000, %v4000
    %v4051 = vpack.c.bf16 %v4014, %v4014
    %v4052 = vpack.c.bf16 %v4022, %v4022
    %v4053 = vpack.c.bf16 %v4024, %v4024
    %v4054 = vpack.c.bf16 %v4007, %v4007
    %v4055 = vpack.c.bf16 %v4021, %v4021
    %v4056 = vpack.c.bf16 %v4023, %v4023
    %v4057 = vpack.c.bf16 %v4025, %v4025
    %v4059 = vlaneseq
    %v4060 = vshrl.u32 %v4059, 7
    %v4061 = vsub.s32 0, %v4060
    %v4062 = vrot.slane %v3770, %v4061
    %v4068 = vunpack.c.l.b16 %v3760
    %v4069 = vunpack.c.l.b16 %v3761
    %v4070 = vunpack.c.l.b16 %v3762
    %v4071 = vunpack.c.l.b16 %v3763
    %v4072 = vpack.c.b16 %v4069, %v4068
    %v4073 = vpack.c.b16 %v4071, %v4070
    %v4077 = vsel %vm216, %v3772, 0
    %v4080 = vsel %vm216, %v3773, 0
    %v4083 = vsel %vm216, %v3774, 0
    %v4086 = vsel %vm216, %v3775, 0
    %v4089 = vsel %vm216, %v3776, 0
    %v4092 = vsel %vm216, %v3777, 0
    %v4095 = vsel %vm216, %v3778, 0
    %v4098 = vsel %vm216, %v3779, 0
    %4100 = vmatprep.subr.bf16.mxu0 0
    %4101 = vmatpush1.bf16.msra.mxu0 %v4072
    %4102 = vmatprep.subr.bf16.mxu0 0
    %4103 = vmatpush1.bf16.msra.mxu0 %v4073
    %4104 = vmatprep.subr.bf16.mxu0 0
    %4105 = vmatpush1.bf16.msra.mxu0 0
    %4106 = vmatprep.subr.bf16.mxu0 0
    %4107 = vmatpush1.bf16.msra.mxu0 0
    %4108 = vmatprep.subr.bf16.mxu0 0
    %4109 = vmatpush1.bf16.msra.mxu0 0
    %4110 = vmatprep.subr.bf16.mxu0 0
    %4111 = vmatpush1.bf16.msra.mxu0 0
    %4112 = vmatprep.subr.bf16.mxu0 0
    %4113 = vmatpush1.bf16.msra.mxu0 0
    %4114 = vmatprep.subr.bf16.mxu0 0
    %4115 = vmatpush1.bf16.msra.mxu0 0
    %4116 = vmatprep.subr.bf16.mxu0 0
    %4117 = vmatpush1.bf16.msra.mxu0 0
    %4118 = vmatprep.subr.bf16.mxu0 0
    %4119 = vmatpush1.bf16.msra.mxu0 0
    %4120 = vmatprep.subr.bf16.mxu0 0
    %4121 = vmatpush1.bf16.msra.mxu0 0
    %4122 = vmatprep.subr.bf16.mxu0 0
    %4123 = vmatpush1.bf16.msra.mxu0 0
    %4124 = vmatprep.subr.bf16.mxu0 0
    %4125 = vmatpush1.bf16.msra.mxu0 0
    %4126 = vmatprep.subr.bf16.mxu0 0
    %4127 = vmatpush1.bf16.msra.mxu0 0
    %4128 = vmatprep.subr.bf16.mxu0 0
    %4129 = vmatpush1.bf16.msra.mxu0 0
    %4130 = vmatprep.subr.bf16.mxu0 0
    %4131 = vmatpush1.bf16.msra.mxu0 0
    %4132 = vmatprep.mubr.bf16.mxu0 0
    %4133 = vmatmul.mubr.bf16.gmra.mrb[0].mxu0 %v4077
    %v4134 = vpop.f32.mrb[0].mxu0
    %v4135 = vadd.f32 %v4062, %v4134
    %v4136 = vpop.f32.mrb[0].mxu0
    %v4137 = vpop.f32.mrb[0].mxu0
    %v4138 = vadd.f32 %v4062, %v4137
    %v4139 = vpop.f32.mrb[0].mxu0
    %4140 = vmatprep.mubr.bf16.mxu0 0
    %4141 = vmatmul.mubr.bf16.gmra.mrb[0].mxu0 %v4080
    %v4142 = vpop.f32.mrb[0].mxu0
    %v4143 = vadd.f32 %v4062, %v4142
    %v4144 = vpop.f32.mrb[0].mxu0
    %v4145 = vpop.f32.mrb[0].mxu0
    %v4146 = vadd.f32 %v4062, %v4145
    %v4147 = vpop.f32.mrb[0].mxu0
    %4148 = vmatprep.mubr.bf16.mxu0 0
    %4149 = vmatmul.mubr.bf16.gmra.mrb[0].mxu0 %v4083
    %v4150 = vpop.f32.mrb[0].mxu0
    %v4151 = vadd.f32 %v4062, %v4150
    %v4152 = vpop.f32.mrb[0].mxu0
    %v4153 = vpop.f32.mrb[0].mxu0
    %v4154 = vadd.f32 %v4062, %v4153
    %v4155 = vpop.f32.mrb[0].mxu0
    %4156 = vmatprep.mubr.bf16.mxu0 0
    %4157 = vmatmul.mubr.bf16.gmra.mrb[0].mxu0 %v4086
    %v4158 = vpop.f32.mrb[0].mxu0
    %v4159 = vadd.f32 %v4062, %v4158
    %v4160 = vpop.f32.mrb[0].mxu0
    %v4161 = vpop.f32.mrb[0].mxu0
    %v4162 = vadd.f32 %v4062, %v4161
    %v4163 = vpop.f32.mrb[0].mxu0
    %4164 = vmatprep.mubr.bf16.mxu0 0
    %4165 = vmatmul.mubr.bf16.gmra.mrb[0].mxu0 %v4089
    %v4166 = vpop.f32.mrb[0].mxu0
    %v4167 = vadd.f32 %v4062, %v4166
    %v4168 = vpop.f32.mrb[0].mxu0
    %v4169 = vpop.f32.mrb[0].mxu0
    %v4170 = vadd.f32 %v4062, %v4169
    %v4171 = vpop.f32.mrb[0].mxu0
    %4172 = vmatprep.mubr.bf16.mxu0 0
    %4173 = vmatmul.mubr.bf16.gmra.mrb[0].mxu0 %v4092
    %v4174 = vpop.f32.mrb[0].mxu0
    %v4175 = vadd.f32 %v4062, %v4174
    %v4176 = vpop.f32.mrb[0].mxu0
    %v4177 = vpop.f32.mrb[0].mxu0
    %v4178 = vadd.f32 %v4062, %v4177
    %v4179 = vpop.f32.mrb[0].mxu0
    %4180 = vmatprep.mubr.bf16.mxu0 0
    %4181 = vmatmul.mubr.bf16.gmra.mrb[0].mxu0 %v4095
    %v4182 = vpop.f32.mrb[0].mxu0
    %v4183 = vadd.f32 %v4062, %v4182
    %v4184 = vpop.f32.mrb[0].mxu0
    %v4185 = vpop.f32.mrb[0].mxu0
    %v4186 = vadd.f32 %v4062, %v4185
    %v4187 = vpop.f32.mrb[0].mxu0
    %4188 = vmatprep.mubr.bf16.mxu0 0
    %4189 = vmatmul.mubr.bf16.gmra.mrb[0].mxu0 %v4098
    %v4190 = vpop.f32.mrb[0].mxu0
    %v4191 = vadd.f32 %v4062, %v4190
    %v4192 = vpop.f32.mrb[0].mxu0
    %v4193 = vpop.f32.mrb[0].mxu0
    %v4194 = vadd.f32 %v4062, %v4193
    %v4195 = vpop.f32.mrb[0].mxu0
    %4196 = vdwg.mxu0
    %v4198 = vlaneseq
    %v4199 = vshrl.u32 %v4198, 7
    %v4200 = vsub.s32 0, %v4199
    %v4201 = vrot.slane %v3771, %v4200
    %v4207 = vunpack.c.l.b16 %v3764
    %v4208 = vunpack.c.l.b16 %v3765
    %v4209 = vunpack.c.l.b16 %v3766
    %v4210 = vunpack.c.l.b16 %v3767
    %v4211 = vpack.c.b16 %v4208, %v4207
    %v4212 = vpack.c.b16 %v4210, %v4209
    %4215 = vmatprep.subr.bf16.mxu0 0
    %4216 = vmatpush1.bf16.msra.mxu0 %v4211
    %4217 = vmatprep.subr.bf16.mxu0 0
    %4218 = vmatpush1.bf16.msra.mxu0 %v4212
    %4219 = vmatprep.subr.bf16.mxu0 0
    %4220 = vmatpush1.bf16.msra.mxu0 0
    %4221 = vmatprep.subr.bf16.mxu0 0
    %4222 = vmatpush1.bf16.msra.mxu0 0
    %4223 = vmatprep.subr.bf16.mxu0 0
    %4224 = vmatpush1.bf16.msra.mxu0 0
    %4225 = vmatprep.subr.bf16.mxu0 0
    %4226 = vmatpush1.bf16.msra.mxu0 0
    %4227 = vmatprep.subr.bf16.mxu0 0
    %4228 = vmatpush1.bf16.msra.mxu0 0
    %4229 = vmatprep.subr.bf16.mxu0 0
    %4230 = vmatpush1.bf16.msra.mxu0 0
    %4231 = vmatprep.subr.bf16.mxu0 0
    %4232 = vmatpush1.bf16.msra.mxu0 0
    %4233 = vmatprep.subr.bf16.mxu0 0
    %4234 = vmatpush1.bf16.msra.mxu0 0
    %4235 = vmatprep.subr.bf16.mxu0 0
    %4236 = vmatpush1.bf16.msra.mxu0 0
    %4237 = vmatprep.subr.bf16.mxu0 0
    %4238 = vmatpush1.bf16.msra.mxu0 0
    %4239 = vmatprep.subr.bf16.mxu0 0
    %4240 = vmatpush1.bf16.msra.mxu0 0
    %4241 = vmatprep.subr.bf16.mxu0 0
    %4242 = vmatpush1.bf16.msra.mxu0 0
    %4243 = vmatprep.subr.bf16.mxu0 0
    %4244 = vmatpush1.bf16.msra.mxu0 0
    %4245 = vmatprep.subr.bf16.mxu0 0
    %4246 = vmatpush1.bf16.msra.mxu0 0
    %4247 = vmatprep.mubr.bf16.mxu0 0
    %4248 = vmatmul.mubr.bf16.gmra.mrb[0].mxu0 %v4077
    %v4249 = vpop.f32.mrb[0].mxu0
    %v4250 = vadd.f32 %v4201, %v4249
    %v4251 = vpop.f32.mrb[0].mxu0
    %v4252 = vpop.f32.mrb[0].mxu0
    %v4253 = vadd.f32 %v4201, %v4252
    %v4254 = vpop.f32.mrb[0].mxu0
    %4255 = vmatprep.mubr.bf16.mxu0 0
    %4256 = vmatmul.mubr.bf16.gmra.mrb[0].mxu0 %v4080
    %v4257 = vpop.f32.mrb[0].mxu0
    %v4258 = vadd.f32 %v4201, %v4257
    %v4259 = vpop.f32.mrb[0].mxu0
    %v4260 = vpop.f32.mrb[0].mxu0
    %v4261 = vadd.f32 %v4201, %v4260
    %v4262 = vpop.f32.mrb[0].mxu0
    %4263 = vmatprep.mubr.bf16.mxu0 0
    %4264 = vmatmul.mubr.bf16.gmra.mrb[0].mxu0 %v4083
    %v4265 = vpop.f32.mrb[0].mxu0
    %v4266 = vadd.f32 %v4201, %v4265
    %v4267 = vpop.f32.mrb[0].mxu0
    %v4268 = vpop.f32.mrb[0].mxu0
    %v4269 = vadd.f32 %v4201, %v4268
    %v4270 = vpop.f32.mrb[0].mxu0
    %4271 = vmatprep.mubr.bf16.mxu0 0
    %4272 = vmatmul.mubr.bf16.gmra.mrb[0].mxu0 %v4086
    %v4273 = vpop.f32.mrb[0].mxu0
    %v4274 = vadd.f32 %v4201, %v4273
    %v4275 = vpop.f32.mrb[0].mxu0
    %v4276 = vpop.f32.mrb[0].mxu0
    %v4277 = vadd.f32 %v4201, %v4276
    %v4278 = vpop.f32.mrb[0].mxu0
    %4279 = vmatprep.mubr.bf16.mxu0 0
    %4280 = vmatmul.mubr.bf16.gmra.mrb[0].mxu0 %v4089
    %v4281 = vpop.f32.mrb[0].mxu0
    %v4282 = vadd.f32 %v4201, %v4281
    %v4283 = vpop.f32.mrb[0].mxu0
    %v4284 = vpop.f32.mrb[0].mxu0
    %v4285 = vadd.f32 %v4201, %v4284
    %v4286 = vpop.f32.mrb[0].mxu0
    %4287 = vmatprep.mubr.bf16.mxu0 0
    %4288 = vmatmul.mubr.bf16.gmra.mrb[0].mxu0 %v4092
    %v4289 = vpop.f32.mrb[0].mxu0
    %v4290 = vadd.f32 %v4201, %v4289
    %v4291 = vpop.f32.mrb[0].mxu0
    %v4292 = vpop.f32.mrb[0].mxu0
    %v4293 = vadd.f32 %v4201, %v4292
    %v4294 = vpop.f32.mrb[0].mxu0
    %4295 = vmatprep.mubr.bf16.mxu0 0
    %4296 = vmatmul.mubr.bf16.gmra.mrb[0].mxu0 %v4095
    %v4297 = vpop.f32.mrb[0].mxu0
    %v4298 = vadd.f32 %v4201, %v4297
    %v4299 = vpop.f32.mrb[0].mxu0
    %v4300 = vpop.f32.mrb[0].mxu0
    %v4301 = vadd.f32 %v4201, %v4300
    %v4302 = vpop.f32.mrb[0].mxu0
    %4303 = vmatprep.mubr.bf16.mxu0 0
    %4304 = vmatmul.mubr.bf16.gmra.mrb[0].mxu0 %v4098
    %v4305 = vpop.f32.mrb[0].mxu0
    %v4306 = vadd.f32 %v4201, %v4305
    %v4307 = vpop.f32.mrb[0].mxu0
    %v4308 = vpop.f32.mrb[0].mxu0
    %v4309 = vadd.f32 %v4201, %v4308
    %v4310 = vpop.f32.mrb[0].mxu0
    %4311 = vdwg.mxu0
    %v4312 = vpack.c.bf16 %v4135, %v4135
    %v4313 = vpack.c.bf16 %v4138, %v4138
    %v4314 = vpack.c.bf16 %v4143, %v4143
    %v4315 = vpack.c.bf16 %v4146, %v4146
    %v4316 = vpack.c.bf16 %v4151, %v4151
    %v4317 = vpack.c.bf16 %v4154, %v4154
    %v4318 = vpack.c.bf16 %v4159, %v4159
    %v4319 = vpack.c.bf16 %v4162, %v4162
    %v4320 = vpack.c.bf16 %v4167, %v4167
    %v4321 = vpack.c.bf16 %v4170, %v4170
    %v4322 = vpack.c.bf16 %v4175, %v4175
    %v4323 = vpack.c.bf16 %v4178, %v4178
    %v4324 = vpack.c.bf16 %v4183, %v4183
    %v4325 = vpack.c.bf16 %v4186, %v4186
    %v4326 = vpack.c.bf16 %v4191, %v4191
    %v4327 = vpack.c.bf16 %v4194, %v4194
    %v4328 = vpack.c.bf16 %v4250, %v4250
    %v4329 = vpack.c.bf16 %v4253, %v4253
    %v4330 = vpack.c.bf16 %v4258, %v4258
    %v4331 = vpack.c.bf16 %v4261, %v4261
    %v4332 = vpack.c.bf16 %v4266, %v4266
    %v4333 = vpack.c.bf16 %v4269, %v4269
    %v4334 = vpack.c.bf16 %v4274, %v4274
    %v4335 = vpack.c.bf16 %v4277, %v4277
    %v4336 = vpack.c.bf16 %v4282, %v4282
    %v4337 = vpack.c.bf16 %v4285, %v4285
    %v4338 = vpack.c.bf16 %v4290, %v4290
    %v4339 = vpack.c.bf16 %v4293, %v4293
    %v4340 = vpack.c.bf16 %v4298, %v4298
    %v4341 = vpack.c.bf16 %v4301, %v4301
    %v4342 = vpack.c.bf16 %v4306, %v4306
    %v4343 = vpack.c.bf16 %v4309, %v4309
    %v4344 = vmul.bf16 %v4312, %v622
    %v4345 = vmul.bf16 %v4312, %v629
    %v4346 = vmul.bf16 %v4312, %v636
    %v4347 = vmul.bf16 %v4312, %v643
    %v4348 = vmul.bf16 %v4312, %v650
    %v4349 = vmul.bf16 %v4312, %v657
    %v4350 = vmul.bf16 %v4312, %v664
    %v4351 = vmul.bf16 %v4312, %v671
    %v4352 = vmul.bf16 %v4313, %v622
    %v4353 = vmul.bf16 %v4313, %v629
    %v4354 = vmul.bf16 %v4313, %v636
    %v4355 = vmul.bf16 %v4313, %v643
    %v4356 = vmul.bf16 %v4313, %v650
    %v4357 = vmul.bf16 %v4313, %v657
    %v4358 = vmul.bf16 %v4313, %v664
    %v4359 = vmul.bf16 %v4313, %v671
    %v4360 = vmul.bf16 %v4314, %v622
    %v4361 = vmul.bf16 %v4314, %v629
    %v4362 = vmul.bf16 %v4314, %v636
    %v4363 = vmul.bf16 %v4314, %v643
    %v4364 = vmul.bf16 %v4314, %v650
    %v4365 = vmul.bf16 %v4314, %v657
    %v4366 = vmul.bf16 %v4314, %v664
    %v4367 = vmul.bf16 %v4314, %v671
    %v4368 = vmul.bf16 %v4315, %v622
    %v4369 = vmul.bf16 %v4315, %v629
    %v4370 = vmul.bf16 %v4315, %v636
    %v4371 = vmul.bf16 %v4315, %v643
    %v4372 = vmul.bf16 %v4315, %v650
    %v4373 = vmul.bf16 %v4315, %v657
    %v4374 = vmul.bf16 %v4315, %v664
    %v4375 = vmul.bf16 %v4315, %v671
    %v4376 = vmul.bf16 %v4316, %v622
    %v4377 = vmul.bf16 %v4316, %v629
    %v4378 = vmul.bf16 %v4316, %v636
    %v4379 = vmul.bf16 %v4316, %v643
    %v4380 = vmul.bf16 %v4316, %v650
    %v4381 = vmul.bf16 %v4316, %v657
    %v4382 = vmul.bf16 %v4316, %v664
    %v4383 = vmul.bf16 %v4316, %v671
    %v4384 = vmul.bf16 %v4317, %v622
    %v4385 = vmul.bf16 %v4317, %v629
    %v4386 = vmul.bf16 %v4317, %v636
    %v4387 = vmul.bf16 %v4317, %v643
    %v4388 = vmul.bf16 %v4317, %v650
    %v4389 = vmul.bf16 %v4317, %v657
    %v4390 = vmul.bf16 %v4317, %v664
    %v4391 = vmul.bf16 %v4317, %v671
    %v4392 = vmul.bf16 %v4318, %v622
    %v4393 = vmul.bf16 %v4318, %v629
    %v4394 = vmul.bf16 %v4318, %v636
    %v4395 = vmul.bf16 %v4318, %v643
    %v4396 = vmul.bf16 %v4318, %v650
    %v4397 = vmul.bf16 %v4318, %v657
    %v4398 = vmul.bf16 %v4318, %v664
    %v4399 = vmul.bf16 %v4318, %v671
    %v4400 = vmul.bf16 %v4319, %v622
    %v4401 = vmul.bf16 %v4319, %v629
    %v4402 = vmul.bf16 %v4319, %v636
    %v4403 = vmul.bf16 %v4319, %v643
    %v4404 = vmul.bf16 %v4319, %v650
    %v4405 = vmul.bf16 %v4319, %v657
    %v4406 = vmul.bf16 %v4319, %v664
    %v4407 = vmul.bf16 %v4319, %v671
    %v4408 = vmul.bf16 %v4320, %v622
    %v4409 = vmul.bf16 %v4320, %v629
    %v4410 = vmul.bf16 %v4320, %v636
    %v4411 = vmul.bf16 %v4320, %v643
    %v4412 = vmul.bf16 %v4320, %v650
    %v4413 = vmul.bf16 %v4320, %v657
    %v4414 = vmul.bf16 %v4320, %v664
    %v4415 = vmul.bf16 %v4320, %v671
    %v4416 = vmul.bf16 %v4321, %v622
    %v4417 = vmul.bf16 %v4321, %v629
    %v4418 = vmul.bf16 %v4321, %v636
    %v4419 = vmul.bf16 %v4321, %v643
    %v4420 = vmul.bf16 %v4321, %v650
    %v4421 = vmul.bf16 %v4321, %v657
    %v4422 = vmul.bf16 %v4321, %v664
    %v4423 = vmul.bf16 %v4321, %v671
    %v4424 = vmul.bf16 %v4322, %v622
    %v4425 = vmul.bf16 %v4322, %v629
    %v4426 = vmul.bf16 %v4322, %v636
    %v4427 = vmul.bf16 %v4322, %v643
    %v4428 = vmul.bf16 %v4322, %v650
    %v4429 = vmul.bf16 %v4322, %v657
    %v4430 = vmul.bf16 %v4322, %v664
    %v4431 = vmul.bf16 %v4322, %v671
    %v4432 = vmul.bf16 %v4323, %v622
    %v4433 = vmul.bf16 %v4323, %v629
    %v4434 = vmul.bf16 %v4323, %v636
    %v4435 = vmul.bf16 %v4323, %v643
    %v4436 = vmul.bf16 %v4323, %v650
    %v4437 = vmul.bf16 %v4323, %v657
    %v4438 = vmul.bf16 %v4323, %v664
    %v4439 = vmul.bf16 %v4323, %v671
    %v4440 = vmul.bf16 %v4324, %v622
    %v4441 = vmul.bf16 %v4324, %v629
    %v4442 = vmul.bf16 %v4324, %v636
    %v4443 = vmul.bf16 %v4324, %v643
    %v4444 = vmul.bf16 %v4324, %v650
    %v4445 = vmul.bf16 %v4324, %v657
    %v4446 = vmul.bf16 %v4324, %v664
    %v4447 = vmul.bf16 %v4324, %v671
    %v4448 = vmul.bf16 %v4325, %v622
    %v4449 = vmul.bf16 %v4325, %v629
    %v4450 = vmul.bf16 %v4325, %v636
    %v4451 = vmul.bf16 %v4325, %v643
    %v4452 = vmul.bf16 %v4325, %v650
    %v4453 = vmul.bf16 %v4325, %v657
    %v4454 = vmul.bf16 %v4325, %v664
    %v4455 = vmul.bf16 %v4325, %v671
    %v4456 = vmul.bf16 %v4326, %v622
    %v4457 = vmul.bf16 %v4326, %v629
    %v4458 = vmul.bf16 %v4326, %v636
    %v4459 = vmul.bf16 %v4326, %v643
    %v4460 = vmul.bf16 %v4326, %v650
    %v4461 = vmul.bf16 %v4326, %v657
    %v4462 = vmul.bf16 %v4326, %v664
    %v4463 = vmul.bf16 %v4326, %v671
    %v4464 = vmul.bf16 %v4327, %v622
    %v4465 = vmul.bf16 %v4327, %v629
    %v4466 = vmul.bf16 %v4327, %v636
    %v4467 = vmul.bf16 %v4327, %v643
    %v4468 = vmul.bf16 %v4327, %v650
    %v4469 = vmul.bf16 %v4327, %v657
    %v4470 = vmul.bf16 %v4327, %v664
    %v4471 = vmul.bf16 %v4327, %v671
    %v4472 = vmul.bf16 %v4328, %v622
    %v4473 = vmul.bf16 %v4328, %v629
    %v4474 = vmul.bf16 %v4328, %v636
    %v4475 = vmul.bf16 %v4328, %v643
    %v4476 = vmul.bf16 %v4328, %v650
    %v4477 = vmul.bf16 %v4328, %v657
    %v4478 = vmul.bf16 %v4328, %v664
    %v4479 = vmul.bf16 %v4328, %v671
    %v4480 = vmul.bf16 %v4329, %v622
    %v4481 = vmul.bf16 %v4329, %v629
    %v4482 = vmul.bf16 %v4329, %v636
    %v4483 = vmul.bf16 %v4329, %v643
    %v4484 = vmul.bf16 %v4329, %v650
    %v4485 = vmul.bf16 %v4329, %v657
    %v4486 = vmul.bf16 %v4329, %v664
    %v4487 = vmul.bf16 %v4329, %v671
    %v4488 = vmul.bf16 %v4330, %v622
    %v4489 = vmul.bf16 %v4330, %v629
    %v4490 = vmul.bf16 %v4330, %v636
    %v4491 = vmul.bf16 %v4330, %v643
    %v4492 = vmul.bf16 %v4330, %v650
    %v4493 = vmul.bf16 %v4330, %v657
    %v4494 = vmul.bf16 %v4330, %v664
    %v4495 = vmul.bf16 %v4330, %v671
    %v4496 = vmul.bf16 %v4331, %v622
    %v4497 = vmul.bf16 %v4331, %v629
    %v4498 = vmul.bf16 %v4331, %v636
    %v4499 = vmul.bf16 %v4331, %v643
    %v4500 = vmul.bf16 %v4331, %v650
    %v4501 = vmul.bf16 %v4331, %v657
    %v4502 = vmul.bf16 %v4331, %v664
    %v4503 = vmul.bf16 %v4331, %v671
    %v4504 = vmul.bf16 %v4332, %v622
    %v4505 = vmul.bf16 %v4332, %v629
    %v4506 = vmul.bf16 %v4332, %v636
    %v4507 = vmul.bf16 %v4332, %v643
    %v4508 = vmul.bf16 %v4332, %v650
    %v4509 = vmul.bf16 %v4332, %v657
    %v4510 = vmul.bf16 %v4332, %v664
    %v4511 = vmul.bf16 %v4332, %v671
    %v4512 = vmul.bf16 %v4333, %v622
    %v4513 = vmul.bf16 %v4333, %v629
    %v4514 = vmul.bf16 %v4333, %v636
    %v4515 = vmul.bf16 %v4333, %v643
    %v4516 = vmul.bf16 %v4333, %v650
    %v4517 = vmul.bf16 %v4333, %v657
    %v4518 = vmul.bf16 %v4333, %v664
    %v4519 = vmul.bf16 %v4333, %v671
    %v4520 = vmul.bf16 %v4334, %v622
    %v4521 = vmul.bf16 %v4334, %v629
    %v4522 = vmul.bf16 %v4334, %v636
    %v4523 = vmul.bf16 %v4334, %v643
    %v4524 = vmul.bf16 %v4334, %v650
    %v4525 = vmul.bf16 %v4334, %v657
    %v4526 = vmul.bf16 %v4334, %v664
    %v4527 = vmul.bf16 %v4334, %v671
    %v4528 = vmul.bf16 %v4335, %v622
    %v4529 = vmul.bf16 %v4335, %v629
    %v4530 = vmul.bf16 %v4335, %v636
    %v4531 = vmul.bf16 %v4335, %v643
    %v4532 = vmul.bf16 %v4335, %v650
    %v4533 = vmul.bf16 %v4335, %v657
    %v4534 = vmul.bf16 %v4335, %v664
    %v4535 = vmul.bf16 %v4335, %v671
    %v4536 = vmul.bf16 %v4336, %v622
    %v4537 = vmul.bf16 %v4336, %v629
    %v4538 = vmul.bf16 %v4336, %v636
    %v4539 = vmul.bf16 %v4336, %v643
    %v4540 = vmul.bf16 %v4336, %v650
    %v4541 = vmul.bf16 %v4336, %v657
    %v4542 = vmul.bf16 %v4336, %v664
    %v4543 = vmul.bf16 %v4336, %v671
    %v4544 = vmul.bf16 %v4337, %v622
    %v4545 = vmul.bf16 %v4337, %v629
    %v4546 = vmul.bf16 %v4337, %v636
    %v4547 = vmul.bf16 %v4337, %v643
    %v4548 = vmul.bf16 %v4337, %v650
    %v4549 = vmul.bf16 %v4337, %v657
    %v4550 = vmul.bf16 %v4337, %v664
    %v4551 = vmul.bf16 %v4337, %v671
    %v4552 = vmul.bf16 %v4338, %v622
    %v4553 = vmul.bf16 %v4338, %v629
    %v4554 = vmul.bf16 %v4338, %v636
    %v4555 = vmul.bf16 %v4338, %v643
    %v4556 = vmul.bf16 %v4338, %v650
    %v4557 = vmul.bf16 %v4338, %v657
    %v4558 = vmul.bf16 %v4338, %v664
    %v4559 = vmul.bf16 %v4338, %v671
    %v4560 = vmul.bf16 %v4339, %v622
    %v4561 = vmul.bf16 %v4339, %v629
    %v4562 = vmul.bf16 %v4339, %v636
    %v4563 = vmul.bf16 %v4339, %v643
    %v4564 = vmul.bf16 %v4339, %v650
    %v4565 = vmul.bf16 %v4339, %v657
    %v4566 = vmul.bf16 %v4339, %v664
    %v4567 = vmul.bf16 %v4339, %v671
    %v4568 = vmul.bf16 %v4340, %v622
    %v4569 = vmul.bf16 %v4340, %v629
    %v4570 = vmul.bf16 %v4340, %v636
    %v4571 = vmul.bf16 %v4340, %v643
    %v4572 = vmul.bf16 %v4340, %v650
    %v4573 = vmul.bf16 %v4340, %v657
    %v4574 = vmul.bf16 %v4340, %v664
    %v4575 = vmul.bf16 %v4340, %v671
    %v4576 = vmul.bf16 %v4341, %v622
    %v4577 = vmul.bf16 %v4341, %v629
    %v4578 = vmul.bf16 %v4341, %v636
    %v4579 = vmul.bf16 %v4341, %v643
    %v4580 = vmul.bf16 %v4341, %v650
    %v4581 = vmul.bf16 %v4341, %v657
    %v4582 = vmul.bf16 %v4341, %v664
    %v4583 = vmul.bf16 %v4341, %v671
    %v4584 = vmul.bf16 %v4342, %v622
    %v4585 = vmul.bf16 %v4342, %v629
    %v4586 = vmul.bf16 %v4342, %v636
    %v4587 = vmul.bf16 %v4342, %v643
    %v4588 = vmul.bf16 %v4342, %v650
    %v4589 = vmul.bf16 %v4342, %v657
    %v4590 = vmul.bf16 %v4342, %v664
    %v4591 = vmul.bf16 %v4342, %v671
    %v4592 = vmul.bf16 %v4343, %v622
    %v4593 = vmul.bf16 %v4343, %v629
    %v4594 = vmul.bf16 %v4343, %v636
    %v4595 = vmul.bf16 %v4343, %v643
    %v4596 = vmul.bf16 %v4343, %v650
    %v4597 = vmul.bf16 %v4343, %v657
    %v4598 = vmul.bf16 %v4343, %v664
    %v4599 = vmul.bf16 %v4343, %v671
    %v4608 = vunpack.c.l.b16 %v4344
    %v4609 = vunpack.c.l.b16 %v4345
    %v4610 = vunpack.c.l.b16 %v4346
    %v4611 = vunpack.c.l.b16 %v4347
    %v4612 = vunpack.c.l.b16 %v4348
    %v4613 = vunpack.c.l.b16 %v4349
    %v4614 = vunpack.c.l.b16 %v4350
    %v4615 = vunpack.c.l.b16 %v4351
    %v4616 = vpack.c.b16 %v4609, %v4608
    %v4617 = vpack.c.b16 %v4611, %v4610
    %v4618 = vpack.c.b16 %v4613, %v4612
    %v4619 = vpack.c.b16 %v4615, %v4614
    %v4621 = vsel %vm216, %v4042, 0
    %v4624 = vsel %vm216, %v4616, 0
    %v4627 = vsel %vm216, %v4617, 0
    %v4630 = vsel %vm216, %v4618, 0
    %v4633 = vsel %vm216, %v4619, 0
    %4635 = vmatprep.subr.bf16.mxu0 0
    %4636 = vmatpush1.bf16.xpose.msra.mxu0 %v4624
    %4637 = vmatprep.subr.bf16.mxu0 0
    %4638 = vmatpush1.bf16.xpose.msra.mxu0 %v4627
    %4639 = vmatprep.subr.bf16.mxu0 0
    %4640 = vmatpush1.bf16.xpose.msra.mxu0 %v4630
    %4641 = vmatprep.subr.bf16.mxu0 0
    %4642 = vmatpush1.bf16.xpose.msra.mxu0 %v4633
    %4643 = vmatprep.subr.bf16.mxu0 0
    %4644 = vmatpush1.bf16.xpose.msra.mxu0 0
    %4645 = vmatprep.subr.bf16.mxu0 0
    %4646 = vmatpush1.bf16.xpose.msra.mxu0 0
    %4647 = vmatprep.subr.bf16.mxu0 0
    %4648 = vmatpush1.bf16.xpose.msra.mxu0 0
    %4649 = vmatprep.subr.bf16.mxu0 0
    %4650 = vmatpush1.bf16.xpose.msra.mxu0 0
    %4651 = vmatprep.subr.bf16.mxu0 0
    %4652 = vmatpush1.bf16.xpose.msra.mxu0 0
    %4653 = vmatprep.subr.bf16.mxu0 0
    %4654 = vmatpush1.bf16.xpose.msra.mxu0 0
    %4655 = vmatprep.subr.bf16.mxu0 0
    %4656 = vmatpush1.bf16.xpose.msra.mxu0 0
    %4657 = vmatprep.subr.bf16.mxu0 0
    %4658 = vmatpush1.bf16.xpose.msra.mxu0 0
    %4659 = vmatprep.subr.bf16.mxu0 0
    %4660 = vmatpush1.bf16.xpose.msra.mxu0 0
    %4661 = vmatprep.subr.bf16.mxu0 0
    %4662 = vmatpush1.bf16.xpose.msra.mxu0 0
    %4663 = vmatprep.subr.bf16.mxu0 0
    %4664 = vmatpush1.bf16.xpose.msra.mxu0 0
    %4665 = vmatprep.subr.bf16.mxu0 0
    %4666 = vmatpush1.bf16.xpose.msra.mxu0 0
    %4667 = vmatprep.mubr.bf16.mxu0 0
    %4668 = vmatmul.mubr.bf16.gmra.mrb[0].mxu0 %v4621
    %v4669 = vpop.f32.mrb[0].mxu0
    %v4670 = vadd.f32 0.0, %v4669
    %v4671 = vpop.f32.mrb[0].mxu0
    %v4672 = vpop.f32.mrb[0].mxu0
    %v4673 = vpop.f32.mrb[0].mxu0
    %4674 = vdwg.mxu0
    %v4683 = vunpack.c.l.b16 %v4352
    %v4684 = vunpack.c.l.b16 %v4353
    %v4685 = vunpack.c.l.b16 %v4354
    %v4686 = vunpack.c.l.b16 %v4355
    %v4687 = vunpack.c.l.b16 %v4356
    %v4688 = vunpack.c.l.b16 %v4357
    %v4689 = vunpack.c.l.b16 %v4358
    %v4690 = vunpack.c.l.b16 %v4359
    %v4691 = vpack.c.b16 %v4684, %v4683
    %v4692 = vpack.c.b16 %v4686, %v4685
    %v4693 = vpack.c.b16 %v4688, %v4687
    %v4694 = vpack.c.b16 %v4690, %v4689
    %v4696 = vsel %vm216, %v4043, 0
    %v4699 = vsel %vm216, %v4691, 0
    %v4702 = vsel %vm216, %v4692, 0
    %v4705 = vsel %vm216, %v4693, 0
    %v4708 = vsel %vm216, %v4694, 0
    %4710 = vmatprep.subr.bf16.mxu0 0
    %4711 = vmatpush1.bf16.xpose.msra.mxu0 %v4699
    %4712 = vmatprep.subr.bf16.mxu0 0
    %4713 = vmatpush1.bf16.xpose.msra.mxu0 %v4702
    %4714 = vmatprep.subr.bf16.mxu0 0
    %4715 = vmatpush1.bf16.xpose.msra.mxu0 %v4705
    %4716 = vmatprep.subr.bf16.mxu0 0
    %4717 = vmatpush1.bf16.xpose.msra.mxu0 %v4708
    %4718 = vmatprep.subr.bf16.mxu0 0
    %4719 = vmatpush1.bf16.xpose.msra.mxu0 0
    %4720 = vmatprep.subr.bf16.mxu0 0
    %4721 = vmatpush1.bf16.xpose.msra.mxu0 0
    %4722 = vmatprep.subr.bf16.mxu0 0
    %4723 = vmatpush1.bf16.xpose.msra.mxu0 0
    %4724 = vmatprep.subr.bf16.mxu0 0
    %4725 = vmatpush1.bf16.xpose.msra.mxu0 0
    %4726 = vmatprep.subr.bf16.mxu0 0
    %4727 = vmatpush1.bf16.xpose.msra.mxu0 0
    %4728 = vmatprep.subr.bf16.mxu0 0
    %4729 = vmatpush1.bf16.xpose.msra.mxu0 0
    %4730 = vmatprep.subr.bf16.mxu0 0
    %4731 = vmatpush1.bf16.xpose.msra.mxu0 0
    %4732 = vmatprep.subr.bf16.mxu0 0
    %4733 = vmatpush1.bf16.xpose.msra.mxu0 0
    %4734 = vmatprep.subr.bf16.mxu0 0
    %4735 = vmatpush1.bf16.xpose.msra.mxu0 0
    %4736 = vmatprep.subr.bf16.mxu0 0
    %4737 = vmatpush1.bf16.xpose.msra.mxu0 0
    %4738 = vmatprep.subr.bf16.mxu0 0
    %4739 = vmatpush1.bf16.xpose.msra.mxu0 0
    %4740 = vmatprep.subr.bf16.mxu0 0
    %4741 = vmatpush1.bf16.xpose.msra.mxu0 0
    %4742 = vmatprep.mubr.bf16.mxu0 0
    %4743 = vmatmul.mubr.bf16.gmra.mrb[0].mxu0 %v4696
    %v4744 = vpop.f32.mrb[0].mxu0
    %v4745 = vadd.f32 0.0, %v4744
    %v4746 = vpop.f32.mrb[0].mxu0
    %v4747 = vpop.f32.mrb[0].mxu0
    %v4748 = vpop.f32.mrb[0].mxu0
    %4749 = vdwg.mxu0
    %v4758 = vunpack.c.l.b16 %v4360
    %v4759 = vunpack.c.l.b16 %v4361
    %v4760 = vunpack.c.l.b16 %v4362
    %v4761 = vunpack.c.l.b16 %v4363
    %v4762 = vunpack.c.l.b16 %v4364
    %v4763 = vunpack.c.l.b16 %v4365
    %v4764 = vunpack.c.l.b16 %v4366
    %v4765 = vunpack.c.l.b16 %v4367
    %v4766 = vpack.c.b16 %v4759, %v4758
    %v4767 = vpack.c.b16 %v4761, %v4760
    %v4768 = vpack.c.b16 %v4763, %v4762
    %v4769 = vpack.c.b16 %v4765, %v4764
    %v4771 = vsel %vm216, %v4044, 0
    %v4774 = vsel %vm216, %v4766, 0
    %v4777 = vsel %vm216, %v4767, 0
    %v4780 = vsel %vm216, %v4768, 0
    %v4783 = vsel %vm216, %v4769, 0
    %4785 = vmatprep.subr.bf16.mxu0 0
    %4786 = vmatpush1.bf16.xpose.msra.mxu0 %v4774
    %4787 = vmatprep.subr.bf16.mxu0 0
    %4788 = vmatpush1.bf16.xpose.msra.mxu0 %v4777
    %4789 = vmatprep.subr.bf16.mxu0 0
    %4790 = vmatpush1.bf16.xpose.msra.mxu0 %v4780
    %4791 = vmatprep.subr.bf16.mxu0 0
    %4792 = vmatpush1.bf16.xpose.msra.mxu0 %v4783
    %4793 = vmatprep.subr.bf16.mxu0 0
    %4794 = vmatpush1.bf16.xpose.msra.mxu0 0
    %4795 = vmatprep.subr.bf16.mxu0 0
    %4796 = vmatpush1.bf16.xpose.msra.mxu0 0
    %4797 = vmatprep.subr.bf16.mxu0 0
    %4798 = vmatpush1.bf16.xpose.msra.mxu0 0
    %4799 = vmatprep.subr.bf16.mxu0 0
    %4800 = vmatpush1.bf16.xpose.msra.mxu0 0
    %4801 = vmatprep.subr.bf16.mxu0 0
    %4802 = vmatpush1.bf16.xpose.msra.mxu0 0
    %4803 = vmatprep.subr.bf16.mxu0 0
    %4804 = vmatpush1.bf16.xpose.msra.mxu0 0
    %4805 = vmatprep.subr.bf16.mxu0 0
    %4806 = vmatpush1.bf16.xpose.msra.mxu0 0
    %4807 = vmatprep.subr.bf16.mxu0 0
    %4808 = vmatpush1.bf16.xpose.msra.mxu0 0
    %4809 = vmatprep.subr.bf16.mxu0 0
    %4810 = vmatpush1.bf16.xpose.msra.mxu0 0
    %4811 = vmatprep.subr.bf16.mxu0 0
    %4812 = vmatpush1.bf16.xpose.msra.mxu0 0
    %4813 = vmatprep.subr.bf16.mxu0 0
    %4814 = vmatpush1.bf16.xpose.msra.mxu0 0
    %4815 = vmatprep.subr.bf16.mxu0 0
    %4816 = vmatpush1.bf16.xpose.msra.mxu0 0
    %4817 = vmatprep.mubr.bf16.mxu0 0
    %4818 = vmatmul.mubr.bf16.gmra.mrb[0].mxu0 %v4771
    %v4819 = vpop.f32.mrb[0].mxu0
    %v4820 = vadd.f32 0.0, %v4819
    %v4821 = vpop.f32.mrb[0].mxu0
    %v4822 = vpop.f32.mrb[0].mxu0
    %v4823 = vpop.f32.mrb[0].mxu0
    %4824 = vdwg.mxu0
    %v4833 = vunpack.c.l.b16 %v4368
    %v4834 = vunpack.c.l.b16 %v4369
    %v4835 = vunpack.c.l.b16 %v4370
    %v4836 = vunpack.c.l.b16 %v4371
    %v4837 = vunpack.c.l.b16 %v4372
    %v4838 = vunpack.c.l.b16 %v4373
    %v4839 = vunpack.c.l.b16 %v4374
    %v4840 = vunpack.c.l.b16 %v4375
    %v4841 = vpack.c.b16 %v4834, %v4833
    %v4842 = vpack.c.b16 %v4836, %v4835
    %v4843 = vpack.c.b16 %v4838, %v4837
    %v4844 = vpack.c.b16 %v4840, %v4839
    %v4846 = vsel %vm216, %v4045, 0
    %v4849 = vsel %vm216, %v4841, 0
    %v4852 = vsel %vm216, %v4842, 0
    %v4855 = vsel %vm216, %v4843, 0
    %v4858 = vsel %vm216, %v4844, 0
    %4860 = vmatprep.subr.bf16.mxu0 0
    %4861 = vmatpush1.bf16.xpose.msra.mxu0 %v4849
    %4862 = vmatprep.subr.bf16.mxu0 0
    %4863 = vmatpush1.bf16.xpose.msra.mxu0 %v4852
    %4864 = vmatprep.subr.bf16.mxu0 0
    %4865 = vmatpush1.bf16.xpose.msra.mxu0 %v4855
    %4866 = vmatprep.subr.bf16.mxu0 0
    %4867 = vmatpush1.bf16.xpose.msra.mxu0 %v4858
    %4868 = vmatprep.subr.bf16.mxu0 0
    %4869 = vmatpush1.bf16.xpose.msra.mxu0 0
    %4870 = vmatprep.subr.bf16.mxu0 0
    %4871 = vmatpush1.bf16.xpose.msra.mxu0 0
    %4872 = vmatprep.subr.bf16.mxu0 0
    %4873 = vmatpush1.bf16.xpose.msra.mxu0 0
    %4874 = vmatprep.subr.bf16.mxu0 0
    %4875 = vmatpush1.bf16.xpose.msra.mxu0 0
    %4876 = vmatprep.subr.bf16.mxu0 0
    %4877 = vmatpush1.bf16.xpose.msra.mxu0 0
    %4878 = vmatprep.subr.bf16.mxu0 0
    %4879 = vmatpush1.bf16.xpose.msra.mxu0 0
    %4880 = vmatprep.subr.bf16.mxu0 0
    %4881 = vmatpush1.bf16.xpose.msra.mxu0 0
    %4882 = vmatprep.subr.bf16.mxu0 0
    %4883 = vmatpush1.bf16.xpose.msra.mxu0 0
    %4884 = vmatprep.subr.bf16.mxu0 0
    %4885 = vmatpush1.bf16.xpose.msra.mxu0 0
    %4886 = vmatprep.subr.bf16.mxu0 0
    %4887 = vmatpush1.bf16.xpose.msra.mxu0 0
    %4888 = vmatprep.subr.bf16.mxu0 0
    %4889 = vmatpush1.bf16.xpose.msra.mxu0 0
    %4890 = vmatprep.subr.bf16.mxu0 0
    %4891 = vmatpush1.bf16.xpose.msra.mxu0 0
    %4892 = vmatprep.mubr.bf16.mxu0 0
    %4893 = vmatmul.mubr.bf16.gmra.mrb[0].mxu0 %v4846
    %v4894 = vpop.f32.mrb[0].mxu0
    %v4895 = vadd.f32 0.0, %v4894
    %v4896 = vpop.f32.mrb[0].mxu0
    %v4897 = vpop.f32.mrb[0].mxu0
    %v4898 = vpop.f32.mrb[0].mxu0
    %4899 = vdwg.mxu0
    %v4908 = vunpack.c.l.b16 %v4376
    %v4909 = vunpack.c.l.b16 %v4377
    %v4910 = vunpack.c.l.b16 %v4378
    %v4911 = vunpack.c.l.b16 %v4379
    %v4912 = vunpack.c.l.b16 %v4380
    %v4913 = vunpack.c.l.b16 %v4381
    %v4914 = vunpack.c.l.b16 %v4382
    %v4915 = vunpack.c.l.b16 %v4383
    %v4916 = vpack.c.b16 %v4909, %v4908
    %v4917 = vpack.c.b16 %v4911, %v4910
    %v4918 = vpack.c.b16 %v4913, %v4912
    %v4919 = vpack.c.b16 %v4915, %v4914
    %v4921 = vsel %vm216, %v4046, 0
    %v4924 = vsel %vm216, %v4916, 0
    %v4927 = vsel %vm216, %v4917, 0
    %v4930 = vsel %vm216, %v4918, 0
    %v4933 = vsel %vm216, %v4919, 0
    %4935 = vmatprep.subr.bf16.mxu0 0
    %4936 = vmatpush1.bf16.xpose.msra.mxu0 %v4924
    %4937 = vmatprep.subr.bf16.mxu0 0
    %4938 = vmatpush1.bf16.xpose.msra.mxu0 %v4927
    %4939 = vmatprep.subr.bf16.mxu0 0
    %4940 = vmatpush1.bf16.xpose.msra.mxu0 %v4930
    %4941 = vmatprep.subr.bf16.mxu0 0
    %4942 = vmatpush1.bf16.xpose.msra.mxu0 %v4933
    %4943 = vmatprep.subr.bf16.mxu0 0
    %4944 = vmatpush1.bf16.xpose.msra.mxu0 0
    %4945 = vmatprep.subr.bf16.mxu0 0
    %4946 = vmatpush1.bf16.xpose.msra.mxu0 0
    %4947 = vmatprep.subr.bf16.mxu0 0
    %4948 = vmatpush1.bf16.xpose.msra.mxu0 0
    %4949 = vmatprep.subr.bf16.mxu0 0
    %4950 = vmatpush1.bf16.xpose.msra.mxu0 0
    %4951 = vmatprep.subr.bf16.mxu0 0
    %4952 = vmatpush1.bf16.xpose.msra.mxu0 0
    %4953 = vmatprep.subr.bf16.mxu0 0
    %4954 = vmatpush1.bf16.xpose.msra.mxu0 0
    %4955 = vmatprep.subr.bf16.mxu0 0
    %4956 = vmatpush1.bf16.xpose.msra.mxu0 0
    %4957 = vmatprep.subr.bf16.mxu0 0
    %4958 = vmatpush1.bf16.xpose.msra.mxu0 0
    %4959 = vmatprep.subr.bf16.mxu0 0
    %4960 = vmatpush1.bf16.xpose.msra.mxu0 0
    %4961 = vmatprep.subr.bf16.mxu0 0
    %4962 = vmatpush1.bf16.xpose.msra.mxu0 0
    %4963 = vmatprep.subr.bf16.mxu0 0
    %4964 = vmatpush1.bf16.xpose.msra.mxu0 0
    %4965 = vmatprep.subr.bf16.mxu0 0
    %4966 = vmatpush1.bf16.xpose.msra.mxu0 0
    %4967 = vmatprep.mubr.bf16.mxu0 0
    %4968 = vmatmul.mubr.bf16.gmra.mrb[0].mxu0 %v4921
    %v4969 = vpop.f32.mrb[0].mxu0
    %v4970 = vadd.f32 0.0, %v4969
    %v4971 = vpop.f32.mrb[0].mxu0
    %v4972 = vpop.f32.mrb[0].mxu0
    %v4973 = vpop.f32.mrb[0].mxu0
    %4974 = vdwg.mxu0
    %v4983 = vunpack.c.l.b16 %v4384
    %v4984 = vunpack.c.l.b16 %v4385
    %v4985 = vunpack.c.l.b16 %v4386
    %v4986 = vunpack.c.l.b16 %v4387
    %v4987 = vunpack.c.l.b16 %v4388
    %v4988 = vunpack.c.l.b16 %v4389
    %v4989 = vunpack.c.l.b16 %v4390
    %v4990 = vunpack.c.l.b16 %v4391
    %v4991 = vpack.c.b16 %v4984, %v4983
    %v4992 = vpack.c.b16 %v4986, %v4985
    %v4993 = vpack.c.b16 %v4988, %v4987
    %v4994 = vpack.c.b16 %v4990, %v4989
    %v4996 = vsel %vm216, %v4047, 0
    %v4999 = vsel %vm216, %v4991, 0
    %v5002 = vsel %vm216, %v4992, 0
    %v5005 = vsel %vm216, %v4993, 0
    %v5008 = vsel %vm216, %v4994, 0
    %5010 = vmatprep.subr.bf16.mxu0 0
    %5011 = vmatpush1.bf16.xpose.msra.mxu0 %v4999
    %5012 = vmatprep.subr.bf16.mxu0 0
    %5013 = vmatpush1.bf16.xpose.msra.mxu0 %v5002
    %5014 = vmatprep.subr.bf16.mxu0 0
    %5015 = vmatpush1.bf16.xpose.msra.mxu0 %v5005
    %5016 = vmatprep.subr.bf16.mxu0 0
    %5017 = vmatpush1.bf16.xpose.msra.mxu0 %v5008
    %5018 = vmatprep.subr.bf16.mxu0 0
    %5019 = vmatpush1.bf16.xpose.msra.mxu0 0
    %5020 = vmatprep.subr.bf16.mxu0 0
    %5021 = vmatpush1.bf16.xpose.msra.mxu0 0
    %5022 = vmatprep.subr.bf16.mxu0 0
    %5023 = vmatpush1.bf16.xpose.msra.mxu0 0
    %5024 = vmatprep.subr.bf16.mxu0 0
    %5025 = vmatpush1.bf16.xpose.msra.mxu0 0
    %5026 = vmatprep.subr.bf16.mxu0 0
    %5027 = vmatpush1.bf16.xpose.msra.mxu0 0
    %5028 = vmatprep.subr.bf16.mxu0 0
    %5029 = vmatpush1.bf16.xpose.msra.mxu0 0
    %5030 = vmatprep.subr.bf16.mxu0 0
    %5031 = vmatpush1.bf16.xpose.msra.mxu0 0
    %5032 = vmatprep.subr.bf16.mxu0 0
    %5033 = vmatpush1.bf16.xpose.msra.mxu0 0
    %5034 = vmatprep.subr.bf16.mxu0 0
    %5035 = vmatpush1.bf16.xpose.msra.mxu0 0
    %5036 = vmatprep.subr.bf16.mxu0 0
    %5037 = vmatpush1.bf16.xpose.msra.mxu0 0
    %5038 = vmatprep.subr.bf16.mxu0 0
    %5039 = vmatpush1.bf16.xpose.msra.mxu0 0
    %5040 = vmatprep.subr.bf16.mxu0 0
    %5041 = vmatpush1.bf16.xpose.msra.mxu0 0
    %5042 = vmatprep.mubr.bf16.mxu0 0
    %5043 = vmatmul.mubr.bf16.gmra.mrb[0].mxu0 %v4996
    %v5044 = vpop.f32.mrb[0].mxu0
    %v5045 = vadd.f32 0.0, %v5044
    %v5046 = vpop.f32.mrb[0].mxu0
    %v5047 = vpop.f32.mrb[0].mxu0
    %v5048 = vpop.f32.mrb[0].mxu0
    %5049 = vdwg.mxu0
    %v5058 = vunpack.c.l.b16 %v4392
    %v5059 = vunpack.c.l.b16 %v4393
    %v5060 = vunpack.c.l.b16 %v4394
    %v5061 = vunpack.c.l.b16 %v4395
    %v5062 = vunpack.c.l.b16 %v4396
    %v5063 = vunpack.c.l.b16 %v4397
    %v5064 = vunpack.c.l.b16 %v4398
    %v5065 = vunpack.c.l.b16 %v4399
    %v5066 = vpack.c.b16 %v5059, %v5058
    %v5067 = vpack.c.b16 %v5061, %v5060
    %v5068 = vpack.c.b16 %v5063, %v5062
    %v5069 = vpack.c.b16 %v5065, %v5064
    %v5071 = vsel %vm216, %v4048, 0
    %v5074 = vsel %vm216, %v5066, 0
    %v5077 = vsel %vm216, %v5067, 0
    %v5080 = vsel %vm216, %v5068, 0
    %v5083 = vsel %vm216, %v5069, 0
    %5085 = vmatprep.subr.bf16.mxu0 0
    %5086 = vmatpush1.bf16.xpose.msra.mxu0 %v5074
    %5087 = vmatprep.subr.bf16.mxu0 0
    %5088 = vmatpush1.bf16.xpose.msra.mxu0 %v5077
    %5089 = vmatprep.subr.bf16.mxu0 0
    %5090 = vmatpush1.bf16.xpose.msra.mxu0 %v5080
    %5091 = vmatprep.subr.bf16.mxu0 0
    %5092 = vmatpush1.bf16.xpose.msra.mxu0 %v5083
    %5093 = vmatprep.subr.bf16.mxu0 0
    %5094 = vmatpush1.bf16.xpose.msra.mxu0 0
    %5095 = vmatprep.subr.bf16.mxu0 0
    %5096 = vmatpush1.bf16.xpose.msra.mxu0 0
    %5097 = vmatprep.subr.bf16.mxu0 0
    %5098 = vmatpush1.bf16.xpose.msra.mxu0 0
    %5099 = vmatprep.subr.bf16.mxu0 0
    %5100 = vmatpush1.bf16.xpose.msra.mxu0 0
    %5101 = vmatprep.subr.bf16.mxu0 0
    %5102 = vmatpush1.bf16.xpose.msra.mxu0 0
    %5103 = vmatprep.subr.bf16.mxu0 0
    %5104 = vmatpush1.bf16.xpose.msra.mxu0 0
    %5105 = vmatprep.subr.bf16.mxu0 0
    %5106 = vmatpush1.bf16.xpose.msra.mxu0 0
    %5107 = vmatprep.subr.bf16.mxu0 0
    %5108 = vmatpush1.bf16.xpose.msra.mxu0 0
    %5109 = vmatprep.subr.bf16.mxu0 0
    %5110 = vmatpush1.bf16.xpose.msra.mxu0 0
    %5111 = vmatprep.subr.bf16.mxu0 0
    %5112 = vmatpush1.bf16.xpose.msra.mxu0 0
    %5113 = vmatprep.subr.bf16.mxu0 0
    %5114 = vmatpush1.bf16.xpose.msra.mxu0 0
    %5115 = vmatprep.subr.bf16.mxu0 0
    %5116 = vmatpush1.bf16.xpose.msra.mxu0 0
    %5117 = vmatprep.mubr.bf16.mxu0 0
    %5118 = vmatmul.mubr.bf16.gmra.mrb[0].mxu0 %v5071
    %v5119 = vpop.f32.mrb[0].mxu0
    %v5120 = vadd.f32 0.0, %v5119
    %v5121 = vpop.f32.mrb[0].mxu0
    %v5122 = vpop.f32.mrb[0].mxu0
    %v5123 = vpop.f32.mrb[0].mxu0
    %5124 = vdwg.mxu0
    %v5133 = vunpack.c.l.b16 %v4400
    %v5134 = vunpack.c.l.b16 %v4401
    %v5135 = vunpack.c.l.b16 %v4402
    %v5136 = vunpack.c.l.b16 %v4403
    %v5137 = vunpack.c.l.b16 %v4404
    %v5138 = vunpack.c.l.b16 %v4405
    %v5139 = vunpack.c.l.b16 %v4406
    %v5140 = vunpack.c.l.b16 %v4407
    %v5141 = vpack.c.b16 %v5134, %v5133
    %v5142 = vpack.c.b16 %v5136, %v5135
    %v5143 = vpack.c.b16 %v5138, %v5137
    %v5144 = vpack.c.b16 %v5140, %v5139
    %v5146 = vsel %vm216, %v4049, 0
    %v5149 = vsel %vm216, %v5141, 0
    %v5152 = vsel %vm216, %v5142, 0
    %v5155 = vsel %vm216, %v5143, 0
    %v5158 = vsel %vm216, %v5144, 0
    %5160 = vmatprep.subr.bf16.mxu0 0
    %5161 = vmatpush1.bf16.xpose.msra.mxu0 %v5149
    %5162 = vmatprep.subr.bf16.mxu0 0
    %5163 = vmatpush1.bf16.xpose.msra.mxu0 %v5152
    %5164 = vmatprep.subr.bf16.mxu0 0
    %5165 = vmatpush1.bf16.xpose.msra.mxu0 %v5155
    %5166 = vmatprep.subr.bf16.mxu0 0
    %5167 = vmatpush1.bf16.xpose.msra.mxu0 %v5158
    %5168 = vmatprep.subr.bf16.mxu0 0
    %5169 = vmatpush1.bf16.xpose.msra.mxu0 0
    %5170 = vmatprep.subr.bf16.mxu0 0
    %5171 = vmatpush1.bf16.xpose.msra.mxu0 0
    %5172 = vmatprep.subr.bf16.mxu0 0
    %5173 = vmatpush1.bf16.xpose.msra.mxu0 0
    %5174 = vmatprep.subr.bf16.mxu0 0
    %5175 = vmatpush1.bf16.xpose.msra.mxu0 0
    %5176 = vmatprep.subr.bf16.mxu0 0
    %5177 = vmatpush1.bf16.xpose.msra.mxu0 0
    %5178 = vmatprep.subr.bf16.mxu0 0
    %5179 = vmatpush1.bf16.xpose.msra.mxu0 0
    %5180 = vmatprep.subr.bf16.mxu0 0
    %5181 = vmatpush1.bf16.xpose.msra.mxu0 0
    %5182 = vmatprep.subr.bf16.mxu0 0
    %5183 = vmatpush1.bf16.xpose.msra.mxu0 0
    %5184 = vmatprep.subr.bf16.mxu0 0
    %5185 = vmatpush1.bf16.xpose.msra.mxu0 0
    %5186 = vmatprep.subr.bf16.mxu0 0
    %5187 = vmatpush1.bf16.xpose.msra.mxu0 0
    %5188 = vmatprep.subr.bf16.mxu0 0
    %5189 = vmatpush1.bf16.xpose.msra.mxu0 0
    %5190 = vmatprep.subr.bf16.mxu0 0
    %5191 = vmatpush1.bf16.xpose.msra.mxu0 0
    %5192 = vmatprep.mubr.bf16.mxu0 0
    %5193 = vmatmul.mubr.bf16.gmra.mrb[0].mxu0 %v5146
    %v5194 = vpop.f32.mrb[0].mxu0
    %v5195 = vadd.f32 0.0, %v5194
    %v5196 = vpop.f32.mrb[0].mxu0
    %v5197 = vpop.f32.mrb[0].mxu0
    %v5198 = vpop.f32.mrb[0].mxu0
    %5199 = vdwg.mxu0
    %v5208 = vunpack.c.l.b16 %v4408
    %v5209 = vunpack.c.l.b16 %v4409
    %v5210 = vunpack.c.l.b16 %v4410
    %v5211 = vunpack.c.l.b16 %v4411
    %v5212 = vunpack.c.l.b16 %v4412
    %v5213 = vunpack.c.l.b16 %v4413
    %v5214 = vunpack.c.l.b16 %v4414
    %v5215 = vunpack.c.l.b16 %v4415
    %v5216 = vpack.c.b16 %v5209, %v5208
    %v5217 = vpack.c.b16 %v5211, %v5210
    %v5218 = vpack.c.b16 %v5213, %v5212
    %v5219 = vpack.c.b16 %v5215, %v5214
    %v5221 = vsel %vm216, %v4050, 0
    %v5224 = vsel %vm216, %v5216, 0
    %v5227 = vsel %vm216, %v5217, 0
    %v5230 = vsel %vm216, %v5218, 0
    %v5233 = vsel %vm216, %v5219, 0
    %5235 = vmatprep.subr.bf16.mxu0 0
    %5236 = vmatpush1.bf16.xpose.msra.mxu0 %v5224
    %5237 = vmatprep.subr.bf16.mxu0 0
    %5238 = vmatpush1.bf16.xpose.msra.mxu0 %v5227
    %5239 = vmatprep.subr.bf16.mxu0 0
    %5240 = vmatpush1.bf16.xpose.msra.mxu0 %v5230
    %5241 = vmatprep.subr.bf16.mxu0 0
    %5242 = vmatpush1.bf16.xpose.msra.mxu0 %v5233
    %5243 = vmatprep.subr.bf16.mxu0 0
    %5244 = vmatpush1.bf16.xpose.msra.mxu0 0
    %5245 = vmatprep.subr.bf16.mxu0 0
    %5246 = vmatpush1.bf16.xpose.msra.mxu0 0
    %5247 = vmatprep.subr.bf16.mxu0 0
    %5248 = vmatpush1.bf16.xpose.msra.mxu0 0
    %5249 = vmatprep.subr.bf16.mxu0 0
    %5250 = vmatpush1.bf16.xpose.msra.mxu0 0
    %5251 = vmatprep.subr.bf16.mxu0 0
    %5252 = vmatpush1.bf16.xpose.msra.mxu0 0
    %5253 = vmatprep.subr.bf16.mxu0 0
    %5254 = vmatpush1.bf16.xpose.msra.mxu0 0
    %5255 = vmatprep.subr.bf16.mxu0 0
    %5256 = vmatpush1.bf16.xpose.msra.mxu0 0
    %5257 = vmatprep.subr.bf16.mxu0 0
    %5258 = vmatpush1.bf16.xpose.msra.mxu0 0
    %5259 = vmatprep.subr.bf16.mxu0 0
    %5260 = vmatpush1.bf16.xpose.msra.mxu0 0
    %5261 = vmatprep.subr.bf16.mxu0 0
    %5262 = vmatpush1.bf16.xpose.msra.mxu0 0
    %5263 = vmatprep.subr.bf16.mxu0 0
    %5264 = vmatpush1.bf16.xpose.msra.mxu0 0
    %5265 = vmatprep.subr.bf16.mxu0 0
    %5266 = vmatpush1.bf16.xpose.msra.mxu0 0
    %5267 = vmatprep.mubr.bf16.mxu0 0
    %5268 = vmatmul.mubr.bf16.gmra.mrb[0].mxu0 %v5221
    %v5269 = vpop.f32.mrb[0].mxu0
    %v5270 = vadd.f32 0.0, %v5269
    %v5271 = vpop.f32.mrb[0].mxu0
    %v5272 = vpop.f32.mrb[0].mxu0
    %v5273 = vpop.f32.mrb[0].mxu0
    %5274 = vdwg.mxu0
    %v5283 = vunpack.c.l.b16 %v4416
    %v5284 = vunpack.c.l.b16 %v4417
    %v5285 = vunpack.c.l.b16 %v4418
    %v5286 = vunpack.c.l.b16 %v4419
    %v5287 = vunpack.c.l.b16 %v4420
    %v5288 = vunpack.c.l.b16 %v4421
    %v5289 = vunpack.c.l.b16 %v4422
    %v5290 = vunpack.c.l.b16 %v4423
    %v5291 = vpack.c.b16 %v5284, %v5283
    %v5292 = vpack.c.b16 %v5286, %v5285
    %v5293 = vpack.c.b16 %v5288, %v5287
    %v5294 = vpack.c.b16 %v5290, %v5289
    %v5296 = vsel %vm216, %v4051, 0
    %v5299 = vsel %vm216, %v5291, 0
    %v5302 = vsel %vm216, %v5292, 0
    %v5305 = vsel %vm216, %v5293, 0
    %v5308 = vsel %vm216, %v5294, 0
    %5310 = vmatprep.subr.bf16.mxu0 0
    %5311 = vmatpush1.bf16.xpose.msra.mxu0 %v5299
    %5312 = vmatprep.subr.bf16.mxu0 0
    %5313 = vmatpush1.bf16.xpose.msra.mxu0 %v5302
    %5314 = vmatprep.subr.bf16.mxu0 0
    %5315 = vmatpush1.bf16.xpose.msra.mxu0 %v5305
    %5316 = vmatprep.subr.bf16.mxu0 0
    %5317 = vmatpush1.bf16.xpose.msra.mxu0 %v5308
    %5318 = vmatprep.subr.bf16.mxu0 0
    %5319 = vmatpush1.bf16.xpose.msra.mxu0 0
    %5320 = vmatprep.subr.bf16.mxu0 0
    %5321 = vmatpush1.bf16.xpose.msra.mxu0 0
    %5322 = vmatprep.subr.bf16.mxu0 0
    %5323 = vmatpush1.bf16.xpose.msra.mxu0 0
    %5324 = vmatprep.subr.bf16.mxu0 0
    %5325 = vmatpush1.bf16.xpose.msra.mxu0 0
    %5326 = vmatprep.subr.bf16.mxu0 0
    %5327 = vmatpush1.bf16.xpose.msra.mxu0 0
    %5328 = vmatprep.subr.bf16.mxu0 0
    %5329 = vmatpush1.bf16.xpose.msra.mxu0 0
    %5330 = vmatprep.subr.bf16.mxu0 0
    %5331 = vmatpush1.bf16.xpose.msra.mxu0 0
    %5332 = vmatprep.subr.bf16.mxu0 0
    %5333 = vmatpush1.bf16.xpose.msra.mxu0 0
    %5334 = vmatprep.subr.bf16.mxu0 0
    %5335 = vmatpush1.bf16.xpose.msra.mxu0 0
    %5336 = vmatprep.subr.bf16.mxu0 0
    %5337 = vmatpush1.bf16.xpose.msra.mxu0 0
    %5338 = vmatprep.subr.bf16.mxu0 0
    %5339 = vmatpush1.bf16.xpose.msra.mxu0 0
    %5340 = vmatprep.subr.bf16.mxu0 0
    %5341 = vmatpush1.bf16.xpose.msra.mxu0 0
    %5342 = vmatprep.mubr.bf16.mxu0 0
    %5343 = vmatmul.mubr.bf16.gmra.mrb[0].mxu0 %v5296
    %v5344 = vpop.f32.mrb[0].mxu0
    %v5345 = vadd.f32 0.0, %v5344
    %v5346 = vpop.f32.mrb[0].mxu0
    %v5347 = vpop.f32.mrb[0].mxu0
    %v5348 = vpop.f32.mrb[0].mxu0
    %5349 = vdwg.mxu0
    %v5358 = vunpack.c.l.b16 %v4424
    %v5359 = vunpack.c.l.b16 %v4425
    %v5360 = vunpack.c.l.b16 %v4426
    %v5361 = vunpack.c.l.b16 %v4427
    %v5362 = vunpack.c.l.b16 %v4428
    %v5363 = vunpack.c.l.b16 %v4429
    %v5364 = vunpack.c.l.b16 %v4430
    %v5365 = vunpack.c.l.b16 %v4431
    %v5366 = vpack.c.b16 %v5359, %v5358
    %v5367 = vpack.c.b16 %v5361, %v5360
    %v5368 = vpack.c.b16 %v5363, %v5362
    %v5369 = vpack.c.b16 %v5365, %v5364
    %v5371 = vsel %vm216, %v4052, 0
    %v5374 = vsel %vm216, %v5366, 0
    %v5377 = vsel %vm216, %v5367, 0
    %v5380 = vsel %vm216, %v5368, 0
    %v5383 = vsel %vm216, %v5369, 0
    %5385 = vmatprep.subr.bf16.mxu0 0
    %5386 = vmatpush1.bf16.xpose.msra.mxu0 %v5374
    %5387 = vmatprep.subr.bf16.mxu0 0
    %5388 = vmatpush1.bf16.xpose.msra.mxu0 %v5377
    %5389 = vmatprep.subr.bf16.mxu0 0
    %5390 = vmatpush1.bf16.xpose.msra.mxu0 %v5380
    %5391 = vmatprep.subr.bf16.mxu0 0
    %5392 = vmatpush1.bf16.xpose.msra.mxu0 %v5383
    %5393 = vmatprep.subr.bf16.mxu0 0
    %5394 = vmatpush1.bf16.xpose.msra.mxu0 0
    %5395 = vmatprep.subr.bf16.mxu0 0
    %5396 = vmatpush1.bf16.xpose.msra.mxu0 0
    %5397 = vmatprep.subr.bf16.mxu0 0
    %5398 = vmatpush1.bf16.xpose.msra.mxu0 0
    %5399 = vmatprep.subr.bf16.mxu0 0
    %5400 = vmatpush1.bf16.xpose.msra.mxu0 0
    %5401 = vmatprep.subr.bf16.mxu0 0
    %5402 = vmatpush1.bf16.xpose.msra.mxu0 0
    %5403 = vmatprep.subr.bf16.mxu0 0
    %5404 = vmatpush1.bf16.xpose.msra.mxu0 0
    %5405 = vmatprep.subr.bf16.mxu0 0
    %5406 = vmatpush1.bf16.xpose.msra.mxu0 0
    %5407 = vmatprep.subr.bf16.mxu0 0
    %5408 = vmatpush1.bf16.xpose.msra.mxu0 0
    %5409 = vmatprep.subr.bf16.mxu0 0
    %5410 = vmatpush1.bf16.xpose.msra.mxu0 0
    %5411 = vmatprep.subr.bf16.mxu0 0
    %5412 = vmatpush1.bf16.xpose.msra.mxu0 0
    %5413 = vmatprep.subr.bf16.mxu0 0
    %5414 = vmatpush1.bf16.xpose.msra.mxu0 0
    %5415 = vmatprep.subr.bf16.mxu0 0
    %5416 = vmatpush1.bf16.xpose.msra.mxu0 0
    %5417 = vmatprep.mubr.bf16.mxu0 0
    %5418 = vmatmul.mubr.bf16.gmra.mrb[0].mxu0 %v5371
    %v5419 = vpop.f32.mrb[0].mxu0
    %v5420 = vadd.f32 0.0, %v5419
    %v5421 = vpop.f32.mrb[0].mxu0
    %v5422 = vpop.f32.mrb[0].mxu0
    %v5423 = vpop.f32.mrb[0].mxu0
    %5424 = vdwg.mxu0
    %v5433 = vunpack.c.l.b16 %v4432
    %v5434 = vunpack.c.l.b16 %v4433
    %v5435 = vunpack.c.l.b16 %v4434
    %v5436 = vunpack.c.l.b16 %v4435
    %v5437 = vunpack.c.l.b16 %v4436
    %v5438 = vunpack.c.l.b16 %v4437
    %v5439 = vunpack.c.l.b16 %v4438
    %v5440 = vunpack.c.l.b16 %v4439
    %v5441 = vpack.c.b16 %v5434, %v5433
    %v5442 = vpack.c.b16 %v5436, %v5435
    %v5443 = vpack.c.b16 %v5438, %v5437
    %v5444 = vpack.c.b16 %v5440, %v5439
    %v5446 = vsel %vm216, %v4053, 0
    %v5449 = vsel %vm216, %v5441, 0
    %v5452 = vsel %vm216, %v5442, 0
    %v5455 = vsel %vm216, %v5443, 0
    %v5458 = vsel %vm216, %v5444, 0
    %5460 = vmatprep.subr.bf16.mxu0 0
    %5461 = vmatpush1.bf16.xpose.msra.mxu0 %v5449
    %5462 = vmatprep.subr.bf16.mxu0 0
    %5463 = vmatpush1.bf16.xpose.msra.mxu0 %v5452
    %5464 = vmatprep.subr.bf16.mxu0 0
    %5465 = vmatpush1.bf16.xpose.msra.mxu0 %v5455
    %5466 = vmatprep.subr.bf16.mxu0 0
    %5467 = vmatpush1.bf16.xpose.msra.mxu0 %v5458
    %5468 = vmatprep.subr.bf16.mxu0 0
    %5469 = vmatpush1.bf16.xpose.msra.mxu0 0
    %5470 = vmatprep.subr.bf16.mxu0 0
    %5471 = vmatpush1.bf16.xpose.msra.mxu0 0
    %5472 = vmatprep.subr.bf16.mxu0 0
    %5473 = vmatpush1.bf16.xpose.msra.mxu0 0
    %5474 = vmatprep.subr.bf16.mxu0 0
    %5475 = vmatpush1.bf16.xpose.msra.mxu0 0
    %5476 = vmatprep.subr.bf16.mxu0 0
    %5477 = vmatpush1.bf16.xpose.msra.mxu0 0
    %5478 = vmatprep.subr.bf16.mxu0 0
    %5479 = vmatpush1.bf16.xpose.msra.mxu0 0
    %5480 = vmatprep.subr.bf16.mxu0 0
    %5481 = vmatpush1.bf16.xpose.msra.mxu0 0
    %5482 = vmatprep.subr.bf16.mxu0 0
    %5483 = vmatpush1.bf16.xpose.msra.mxu0 0
    %5484 = vmatprep.subr.bf16.mxu0 0
    %5485 = vmatpush1.bf16.xpose.msra.mxu0 0
    %5486 = vmatprep.subr.bf16.mxu0 0
    %5487 = vmatpush1.bf16.xpose.msra.mxu0 0
    %5488 = vmatprep.subr.bf16.mxu0 0
    %5489 = vmatpush1.bf16.xpose.msra.mxu0 0
    %5490 = vmatprep.subr.bf16.mxu0 0
    %5491 = vmatpush1.bf16.xpose.msra.mxu0 0
    %5492 = vmatprep.mubr.bf16.mxu0 0
    %5493 = vmatmul.mubr.bf16.gmra.mrb[0].mxu0 %v5446
    %v5494 = vpop.f32.mrb[0].mxu0
    %v5495 = vadd.f32 0.0, %v5494
    %v5496 = vpop.f32.mrb[0].mxu0
    %v5497 = vpop.f32.mrb[0].mxu0
    %v5498 = vpop.f32.mrb[0].mxu0
    %5499 = vdwg.mxu0
    %v5508 = vunpack.c.l.b16 %v4440
    %v5509 = vunpack.c.l.b16 %v4441
    %v5510 = vunpack.c.l.b16 %v4442
    %v5511 = vunpack.c.l.b16 %v4443
    %v5512 = vunpack.c.l.b16 %v4444
    %v5513 = vunpack.c.l.b16 %v4445
    %v5514 = vunpack.c.l.b16 %v4446
    %v5515 = vunpack.c.l.b16 %v4447
    %v5516 = vpack.c.b16 %v5509, %v5508
    %v5517 = vpack.c.b16 %v5511, %v5510
    %v5518 = vpack.c.b16 %v5513, %v5512
    %v5519 = vpack.c.b16 %v5515, %v5514
    %v5521 = vsel %vm216, %v4054, 0
    %v5524 = vsel %vm216, %v5516, 0
    %v5527 = vsel %vm216, %v5517, 0
    %v5530 = vsel %vm216, %v5518, 0
    %v5533 = vsel %vm216, %v5519, 0
    %5535 = vmatprep.subr.bf16.mxu0 0
    %5536 = vmatpush1.bf16.xpose.msra.mxu0 %v5524
    %5537 = vmatprep.subr.bf16.mxu0 0
    %5538 = vmatpush1.bf16.xpose.msra.mxu0 %v5527
    %5539 = vmatprep.subr.bf16.mxu0 0
    %5540 = vmatpush1.bf16.xpose.msra.mxu0 %v5530
    %5541 = vmatprep.subr.bf16.mxu0 0
    %5542 = vmatpush1.bf16.xpose.msra.mxu0 %v5533
    %5543 = vmatprep.subr.bf16.mxu0 0
    %5544 = vmatpush1.bf16.xpose.msra.mxu0 0
    %5545 = vmatprep.subr.bf16.mxu0 0
    %5546 = vmatpush1.bf16.xpose.msra.mxu0 0
    %5547 = vmatprep.subr.bf16.mxu0 0
    %5548 = vmatpush1.bf16.xpose.msra.mxu0 0
    %5549 = vmatprep.subr.bf16.mxu0 0
    %5550 = vmatpush1.bf16.xpose.msra.mxu0 0
    %5551 = vmatprep.subr.bf16.mxu0 0
    %5552 = vmatpush1.bf16.xpose.msra.mxu0 0
    %5553 = vmatprep.subr.bf16.mxu0 0
    %5554 = vmatpush1.bf16.xpose.msra.mxu0 0
    %5555 = vmatprep.subr.bf16.mxu0 0
    %5556 = vmatpush1.bf16.xpose.msra.mxu0 0
    %5557 = vmatprep.subr.bf16.mxu0 0
    %5558 = vmatpush1.bf16.xpose.msra.mxu0 0
    %5559 = vmatprep.subr.bf16.mxu0 0
    %5560 = vmatpush1.bf16.xpose.msra.mxu0 0
    %5561 = vmatprep.subr.bf16.mxu0 0
    %5562 = vmatpush1.bf16.xpose.msra.mxu0 0
    %5563 = vmatprep.subr.bf16.mxu0 0
    %5564 = vmatpush1.bf16.xpose.msra.mxu0 0
    %5565 = vmatprep.subr.bf16.mxu0 0
    %5566 = vmatpush1.bf16.xpose.msra.mxu0 0
    %5567 = vmatprep.mubr.bf16.mxu0 0
    %5568 = vmatmul.mubr.bf16.gmra.mrb[0].mxu0 %v5521
    %v5569 = vpop.f32.mrb[0].mxu0
    %v5570 = vadd.f32 0.0, %v5569
    %v5571 = vpop.f32.mrb[0].mxu0
    %v5572 = vpop.f32.mrb[0].mxu0
    %v5573 = vpop.f32.mrb[0].mxu0
    %5574 = vdwg.mxu0
    %v5583 = vunpack.c.l.b16 %v4448
    %v5584 = vunpack.c.l.b16 %v4449
    %v5585 = vunpack.c.l.b16 %v4450
    %v5586 = vunpack.c.l.b16 %v4451
    %v5587 = vunpack.c.l.b16 %v4452
    %v5588 = vunpack.c.l.b16 %v4453
    %v5589 = vunpack.c.l.b16 %v4454
    %v5590 = vunpack.c.l.b16 %v4455
    %v5591 = vpack.c.b16 %v5584, %v5583
    %v5592 = vpack.c.b16 %v5586, %v5585
    %v5593 = vpack.c.b16 %v5588, %v5587
    %v5594 = vpack.c.b16 %v5590, %v5589
    %v5596 = vsel %vm216, %v4055, 0
    %v5599 = vsel %vm216, %v5591, 0
    %v5602 = vsel %vm216, %v5592, 0
    %v5605 = vsel %vm216, %v5593, 0
    %v5608 = vsel %vm216, %v5594, 0
    %5610 = vmatprep.subr.bf16.mxu0 0
    %5611 = vmatpush1.bf16.xpose.msra.mxu0 %v5599
    %5612 = vmatprep.subr.bf16.mxu0 0
    %5613 = vmatpush1.bf16.xpose.msra.mxu0 %v5602
    %5614 = vmatprep.subr.bf16.mxu0 0
    %5615 = vmatpush1.bf16.xpose.msra.mxu0 %v5605
    %5616 = vmatprep.subr.bf16.mxu0 0
    %5617 = vmatpush1.bf16.xpose.msra.mxu0 %v5608
    %5618 = vmatprep.subr.bf16.mxu0 0
    %5619 = vmatpush1.bf16.xpose.msra.mxu0 0
    %5620 = vmatprep.subr.bf16.mxu0 0
    %5621 = vmatpush1.bf16.xpose.msra.mxu0 0
    %5622 = vmatprep.subr.bf16.mxu0 0
    %5623 = vmatpush1.bf16.xpose.msra.mxu0 0
    %5624 = vmatprep.subr.bf16.mxu0 0
    %5625 = vmatpush1.bf16.xpose.msra.mxu0 0
    %5626 = vmatprep.subr.bf16.mxu0 0
    %5627 = vmatpush1.bf16.xpose.msra.mxu0 0
    %5628 = vmatprep.subr.bf16.mxu0 0
    %5629 = vmatpush1.bf16.xpose.msra.mxu0 0
    %5630 = vmatprep.subr.bf16.mxu0 0
    %5631 = vmatpush1.bf16.xpose.msra.mxu0 0
    %5632 = vmatprep.subr.bf16.mxu0 0
    %5633 = vmatpush1.bf16.xpose.msra.mxu0 0
    %5634 = vmatprep.subr.bf16.mxu0 0
    %5635 = vmatpush1.bf16.xpose.msra.mxu0 0
    %5636 = vmatprep.subr.bf16.mxu0 0
    %5637 = vmatpush1.bf16.xpose.msra.mxu0 0
    %5638 = vmatprep.subr.bf16.mxu0 0
    %5639 = vmatpush1.bf16.xpose.msra.mxu0 0
    %5640 = vmatprep.subr.bf16.mxu0 0
    %5641 = vmatpush1.bf16.xpose.msra.mxu0 0
    %5642 = vmatprep.mubr.bf16.mxu0 0
    %5643 = vmatmul.mubr.bf16.gmra.mrb[0].mxu0 %v5596
    %v5644 = vpop.f32.mrb[0].mxu0
    %v5645 = vadd.f32 0.0, %v5644
    %v5646 = vpop.f32.mrb[0].mxu0
    %v5647 = vpop.f32.mrb[0].mxu0
    %v5648 = vpop.f32.mrb[0].mxu0
    %5649 = vdwg.mxu0
    %v5658 = vunpack.c.l.b16 %v4456
    %v5659 = vunpack.c.l.b16 %v4457
    %v5660 = vunpack.c.l.b16 %v4458
    %v5661 = vunpack.c.l.b16 %v4459
    %v5662 = vunpack.c.l.b16 %v4460
    %v5663 = vunpack.c.l.b16 %v4461
    %v5664 = vunpack.c.l.b16 %v4462
    %v5665 = vunpack.c.l.b16 %v4463
    %v5666 = vpack.c.b16 %v5659, %v5658
    %v5667 = vpack.c.b16 %v5661, %v5660
    %v5668 = vpack.c.b16 %v5663, %v5662
    %v5669 = vpack.c.b16 %v5665, %v5664
    %v5671 = vsel %vm216, %v4056, 0
    %v5674 = vsel %vm216, %v5666, 0
    %v5677 = vsel %vm216, %v5667, 0
    %v5680 = vsel %vm216, %v5668, 0
    %v5683 = vsel %vm216, %v5669, 0
    %5685 = vmatprep.subr.bf16.mxu0 0
    %5686 = vmatpush1.bf16.xpose.msra.mxu0 %v5674
    %5687 = vmatprep.subr.bf16.mxu0 0
    %5688 = vmatpush1.bf16.xpose.msra.mxu0 %v5677
    %5689 = vmatprep.subr.bf16.mxu0 0
    %5690 = vmatpush1.bf16.xpose.msra.mxu0 %v5680
    %5691 = vmatprep.subr.bf16.mxu0 0
    %5692 = vmatpush1.bf16.xpose.msra.mxu0 %v5683
    %5693 = vmatprep.subr.bf16.mxu0 0
    %5694 = vmatpush1.bf16.xpose.msra.mxu0 0
    %5695 = vmatprep.subr.bf16.mxu0 0
    %5696 = vmatpush1.bf16.xpose.msra.mxu0 0
    %5697 = vmatprep.subr.bf16.mxu0 0
    %5698 = vmatpush1.bf16.xpose.msra.mxu0 0
    %5699 = vmatprep.subr.bf16.mxu0 0
    %5700 = vmatpush1.bf16.xpose.msra.mxu0 0
    %5701 = vmatprep.subr.bf16.mxu0 0
    %5702 = vmatpush1.bf16.xpose.msra.mxu0 0
    %5703 = vmatprep.subr.bf16.mxu0 0
    %5704 = vmatpush1.bf16.xpose.msra.mxu0 0
    %5705 = vmatprep.subr.bf16.mxu0 0
    %5706 = vmatpush1.bf16.xpose.msra.mxu0 0
    %5707 = vmatprep.subr.bf16.mxu0 0
    %5708 = vmatpush1.bf16.xpose.msra.mxu0 0
    %5709 = vmatprep.subr.bf16.mxu0 0
    %5710 = vmatpush1.bf16.xpose.msra.mxu0 0
    %5711 = vmatprep.subr.bf16.mxu0 0
    %5712 = vmatpush1.bf16.xpose.msra.mxu0 0
    %5713 = vmatprep.subr.bf16.mxu0 0
    %5714 = vmatpush1.bf16.xpose.msra.mxu0 0
    %5715 = vmatprep.subr.bf16.mxu0 0
    %5716 = vmatpush1.bf16.xpose.msra.mxu0 0
    %5717 = vmatprep.mubr.bf16.mxu0 0
    %5718 = vmatmul.mubr.bf16.gmra.mrb[0].mxu0 %v5671
    %v5719 = vpop.f32.mrb[0].mxu0
    %v5720 = vadd.f32 0.0, %v5719
    %v5721 = vpop.f32.mrb[0].mxu0
    %v5722 = vpop.f32.mrb[0].mxu0
    %v5723 = vpop.f32.mrb[0].mxu0
    %5724 = vdwg.mxu0
    %v5733 = vunpack.c.l.b16 %v4464
    %v5734 = vunpack.c.l.b16 %v4465
    %v5735 = vunpack.c.l.b16 %v4466
    %v5736 = vunpack.c.l.b16 %v4467
    %v5737 = vunpack.c.l.b16 %v4468
    %v5738 = vunpack.c.l.b16 %v4469
    %v5739 = vunpack.c.l.b16 %v4470
    %v5740 = vunpack.c.l.b16 %v4471
    %v5741 = vpack.c.b16 %v5734, %v5733
    %v5742 = vpack.c.b16 %v5736, %v5735
    %v5743 = vpack.c.b16 %v5738, %v5737
    %v5744 = vpack.c.b16 %v5740, %v5739
    %v5746 = vsel %vm216, %v4057, 0
    %v5749 = vsel %vm216, %v5741, 0
    %v5752 = vsel %vm216, %v5742, 0
    %v5755 = vsel %vm216, %v5743, 0
    %v5758 = vsel %vm216, %v5744, 0
    %5760 = vmatprep.subr.bf16.mxu0 0
    %5761 = vmatpush1.bf16.xpose.msra.mxu0 %v5749
    %5762 = vmatprep.subr.bf16.mxu0 0
    %5763 = vmatpush1.bf16.xpose.msra.mxu0 %v5752
    %5764 = vmatprep.subr.bf16.mxu0 0
    %5765 = vmatpush1.bf16.xpose.msra.mxu0 %v5755
    %5766 = vmatprep.subr.bf16.mxu0 0
    %5767 = vmatpush1.bf16.xpose.msra.mxu0 %v5758
    %5768 = vmatprep.subr.bf16.mxu0 0
    %5769 = vmatpush1.bf16.xpose.msra.mxu0 0
    %5770 = vmatprep.subr.bf16.mxu0 0
    %5771 = vmatpush1.bf16.xpose.msra.mxu0 0
    %5772 = vmatprep.subr.bf16.mxu0 0
    %5773 = vmatpush1.bf16.xpose.msra.mxu0 0
    %5774 = vmatprep.subr.bf16.mxu0 0
    %5775 = vmatpush1.bf16.xpose.msra.mxu0 0
    %5776 = vmatprep.subr.bf16.mxu0 0
    %5777 = vmatpush1.bf16.xpose.msra.mxu0 0
    %5778 = vmatprep.subr.bf16.mxu0 0
    %5779 = vmatpush1.bf16.xpose.msra.mxu0 0
    %5780 = vmatprep.subr.bf16.mxu0 0
    %5781 = vmatpush1.bf16.xpose.msra.mxu0 0
    %5782 = vmatprep.subr.bf16.mxu0 0
    %5783 = vmatpush1.bf16.xpose.msra.mxu0 0
    %5784 = vmatprep.subr.bf16.mxu0 0
    %5785 = vmatpush1.bf16.xpose.msra.mxu0 0
    %5786 = vmatprep.subr.bf16.mxu0 0
    %5787 = vmatpush1.bf16.xpose.msra.mxu0 0
    %5788 = vmatprep.subr.bf16.mxu0 0
    %5789 = vmatpush1.bf16.xpose.msra.mxu0 0
    %5790 = vmatprep.subr.bf16.mxu0 0
    %5791 = vmatpush1.bf16.xpose.msra.mxu0 0
    %5792 = vmatprep.mubr.bf16.mxu0 0
    %5793 = vmatmul.mubr.bf16.gmra.mrb[0].mxu0 %v5746
    %v5794 = vpop.f32.mrb[0].mxu0
    %v5795 = vadd.f32 0.0, %v5794
    %v5796 = vpop.f32.mrb[0].mxu0
    %v5797 = vpop.f32.mrb[0].mxu0
    %v5798 = vpop.f32.mrb[0].mxu0
    %5799 = vdwg.mxu0
    %v5800 = vmul.f32 %v4670, 0.5
    %v5801 = vmul.f32 %v4745, 0.5
    %v5802 = vmul.f32 %v4820, 0.5
    %v5803 = vmul.f32 %v4895, 0.5
    %v5804 = vmul.f32 %v4970, 0.5
    %v5805 = vmul.f32 %v5045, 0.5
    %v5806 = vmul.f32 %v5120, 0.5
    %v5807 = vmul.f32 %v5195, 0.5
    %v5808 = vmul.f32 %v5270, 0.5
    %v5809 = vmul.f32 %v5345, 0.5
    %v5810 = vmul.f32 %v5420, 0.5
    %v5811 = vmul.f32 %v5495, 0.5
    %v5812 = vmul.f32 %v5570, 0.5
    %v5813 = vmul.f32 %v5645, 0.5
    %v5814 = vmul.f32 %v5720, 0.5
    %v5815 = vmul.f32 %v5795, 0.5
    %s5816 = scalar_lea.vmem [#allocation3], 8
    %v5817 = vld [vmem:[%s5816] sm:$0xff]
    %v5818 = vlaneseq
    %v5819 = vshrl.u32 %v5818, 7
    %v5820 = vsub.s32 0, %v5819
    %v5821 = vrot.slane %v5817, %v5820
    %v5822 = vadd.f32 %v5800, %v5821
    %v5823 = vadd.f32 %v5801, %v5821
    %v5824 = vadd.f32 %v5802, %v5821
    %v5825 = vadd.f32 %v5803, %v5821
    %v5826 = vadd.f32 %v5804, %v5821
    %v5827 = vadd.f32 %v5805, %v5821
    %v5828 = vadd.f32 %v5806, %v5821
    %v5829 = vadd.f32 %v5807, %v5821
    %v5830 = vadd.f32 %v5808, %v5821
    %v5831 = vadd.f32 %v5809, %v5821
    %v5832 = vadd.f32 %v5810, %v5821
    %v5833 = vadd.f32 %v5811, %v5821
    %v5834 = vadd.f32 %v5812, %v5821
    %v5835 = vadd.f32 %v5813, %v5821
    %v5836 = vadd.f32 %v5814, %v5821
    %v5837 = vadd.f32 %v5815, %v5821
    %v5854 = vrot.slane %v5823, 7
    %v5855 = vsel %vm3835, %v5854, %v5822
    %v5856 = vrot.slane %v5824, 6
    %v5857 = vsel %vm3838, %v5856, %v5855
    %v5858 = vrot.slane %v5825, 5
    %v5859 = vsel %vm3841, %v5858, %v5857
    %v5860 = vrot.slane %v5826, 4
    %v5861 = vsel %vm3844, %v5860, %v5859
    %v5862 = vrot.slane %v5827, 3
    %v5863 = vsel %vm3847, %v5862, %v5861
    %v5864 = vrot.slane %v5828, 2
    %v5865 = vsel %vm3850, %v5864, %v5863
    %v5866 = vrot.slane %v5829, 1
    %v5867 = vsel %vm3853, %v5866, %v5865
    %v5868 = vrot.slane %v5831, 7
    %v5869 = vsel %vm3835, %v5868, %v5830
    %v5870 = vrot.slane %v5832, 6
    %v5871 = vsel %vm3838, %v5870, %v5869
    %v5872 = vrot.slane %v5833, 5
    %v5873 = vsel %vm3841, %v5872, %v5871
    %v5874 = vrot.slane %v5834, 4
    %v5875 = vsel %vm3844, %v5874, %v5873
    %v5876 = vrot.slane %v5835, 3
    %v5877 = vsel %vm3847, %v5876, %v5875
    %v5878 = vrot.slane %v5836, 2
    %v5879 = vsel %vm3850, %v5878, %v5877
    %v5880 = vrot.slane %v5837, 1
    %v5881 = vsel %vm3853, %v5880, %v5879
    %v5884 = vsel %vm2161, %v5867, -inf
    %5885 = vmax.xlane.f32.xlu0 %v5884
    %v5886 = vpop.xlane.xlu0 %5885
    %v5887 = vsel %vm2161, %v5881, -inf
    %5888 = vmax.xlane.f32.xlu0 %v5887
    %v5889 = vpop.xlane.xlu0 %5888
    %v5892 = vrot.slane %v5886, 1
    %v5893 = vrot.slane %v5886, 2
    %v5894 = vrot.slane %v5886, 3
    %v5895 = vrot.slane %v5886, 4
    %v5896 = vrot.slane %v5886, 5
    %v5897 = vrot.slane %v5886, 6
    %v5898 = vrot.slane %v5886, 7
    %v5899 = vrot.slane %v5889, 1
    %v5900 = vrot.slane %v5889, 2
    %v5901 = vrot.slane %v5889, 3
    %v5902 = vrot.slane %v5889, 4
    %v5903 = vrot.slane %v5889, 5
    %v5904 = vrot.slane %v5889, 6
    %v5905 = vrot.slane %v5889, 7
    %v5922 = vsub.f32 %v5822, %v5886
    %v5923 = vsub.f32 %v5823, %v5892
    %v5924 = vsub.f32 %v5824, %v5893
    %v5925 = vsub.f32 %v5825, %v5894
    %v5926 = vsub.f32 %v5826, %v5895
    %v5927 = vsub.f32 %v5827, %v5896
    %v5928 = vsub.f32 %v5828, %v5897
    %v5929 = vsub.f32 %v5829, %v5898
    %v5930 = vsub.f32 %v5830, %v5889
    %v5931 = vsub.f32 %v5831, %v5899
    %v5932 = vsub.f32 %v5832, %v5900
    %v5933 = vsub.f32 %v5833, %v5901
    %v5934 = vsub.f32 %v5834, %v5902
    %v5935 = vsub.f32 %v5835, %v5903
    %v5936 = vsub.f32 %v5836, %v5904
    %v5937 = vsub.f32 %v5837, %v5905
    %v5938 = vmul.f32 %v5922, 1.442695
    %v5939 = vpow.pop %v5938
    %v5940 = vmul.f32 %v5923, 1.442695
    %v5941 = vpow.pop %v5940
    %v5942 = vmul.f32 %v5924, 1.442695
    %v5943 = vpow.pop %v5942
    %v5944 = vmul.f32 %v5925, 1.442695
    %v5945 = vpow.pop %v5944
    %v5946 = vmul.f32 %v5926, 1.442695
    %v5947 = vpow.pop %v5946
    %v5948 = vmul.f32 %v5927, 1.442695
    %v5949 = vpow.pop %v5948
    %v5950 = vmul.f32 %v5928, 1.442695
    %v5951 = vpow.pop %v5950
    %v5952 = vmul.f32 %v5929, 1.442695
    %v5953 = vpow.pop %v5952
    %v5954 = vmul.f32 %v5930, 1.442695
    %v5955 = vpow.pop %v5954
    %v5956 = vmul.f32 %v5931, 1.442695
    %v5957 = vpow.pop %v5956
    %v5958 = vmul.f32 %v5932, 1.442695
    %v5959 = vpow.pop %v5958
    %v5960 = vmul.f32 %v5933, 1.442695
    %v5961 = vpow.pop %v5960
    %v5962 = vmul.f32 %v5934, 1.442695
    %v5963 = vpow.pop %v5962
    %v5964 = vmul.f32 %v5935, 1.442695
    %v5965 = vpow.pop %v5964
    %v5966 = vmul.f32 %v5936, 1.442695
    %v5967 = vpow.pop %v5966
    %v5968 = vmul.f32 %v5937, 1.442695
    %v5969 = vpow.pop %v5968
    %v5986 = vrot.slane %v5941, 7
    %v5987 = vsel %vm3835, %v5986, %v5939
    %v5988 = vrot.slane %v5943, 6
    %v5989 = vsel %vm3838, %v5988, %v5987
    %v5990 = vrot.slane %v5945, 5
    %v5991 = vsel %vm3841, %v5990, %v5989
    %v5992 = vrot.slane %v5947, 4
    %v5993 = vsel %vm3844, %v5992, %v5991
    %v5994 = vrot.slane %v5949, 3
    %v5995 = vsel %vm3847, %v5994, %v5993
    %v5996 = vrot.slane %v5951, 2
    %v5997 = vsel %vm3850, %v5996, %v5995
    %v5998 = vrot.slane %v5953, 1
    %v5999 = vsel %vm3853, %v5998, %v5997
    %v6000 = vrot.slane %v5957, 7
    %v6001 = vsel %vm3835, %v6000, %v5955
    %v6002 = vrot.slane %v5959, 6
    %v6003 = vsel %vm3838, %v6002, %v6001
    %v6004 = vrot.slane %v5961, 5
    %v6005 = vsel %vm3841, %v6004, %v6003
    %v6006 = vrot.slane %v5963, 4
    %v6007 = vsel %vm3844, %v6006, %v6005
    %v6008 = vrot.slane %v5965, 3
    %v6009 = vsel %vm3847, %v6008, %v6007
    %v6010 = vrot.slane %v5967, 2
    %v6011 = vsel %vm3850, %v6010, %v6009
    %v6012 = vrot.slane %v5969, 1
    %v6013 = vsel %vm3853, %v6012, %v6011
    %v6014 = vsel %vm2161, %v5999, 0
    %v6016 = vsel %vm2161, %v6013, 0
    %6018 = vmatprep.subr.mxu0 0.0
    %6019 = vmatpush1.msra.mxu0 %v167
    %6020 = vmatprep.subr.mxu0 0.0
    %6021 = vmatpush1.msra.mxu0 %v168
    %6022 = vmatprep.subr.mxu0 0.0
    %6023 = vmatpush1.msra.mxu0 %v169
    %6024 = vmatprep.subr.mxu0 0.0
    %6025 = vmatpush1.msra.mxu0 %v170
    %6026 = vmatprep.subr.mxu0 0.0
    %6027 = vmatpush1.msra.mxu0 %v171
    %6028 = vmatprep.subr.mxu0 0.0
    %6029 = vmatpush1.msra.mxu0 %v172
    %6030 = vmatprep.subr.mxu0 0.0
    %6031 = vmatpush1.msra.mxu0 %v173
    %6032 = vmatprep.subr.mxu0 0.0
    %6033 = vmatpush1.msra.mxu0 %v174
    %6034 = vmatprep.subr.mxu0 0.0
    %6035 = vmatpush1.msra.mxu0 0.0
    %6036 = vmatprep.subr.mxu0 0.0
    %6037 = vmatpush1.msra.mxu0 0.0
    %6038 = vmatprep.subr.mxu0 0.0
    %6039 = vmatpush1.msra.mxu0 0.0
    %6040 = vmatprep.subr.mxu0 0.0
    %6041 = vmatpush1.msra.mxu0 0.0
    %6042 = vmatprep.subr.mxu0 0.0
    %6043 = vmatpush1.msra.mxu0 0.0
    %6044 = vmatprep.subr.mxu0 0.0
    %6045 = vmatpush1.msra.mxu0 0.0
    %6046 = vmatprep.subr.mxu0 0.0
    %6047 = vmatpush1.msra.mxu0 0.0
    %6048 = vmatprep.subr.mxu0 0.0
    %6049 = vmatpush1.msra.mxu0 0.0
    %6050 = vmatprep.subr.mxu0 0.0
    %6051 = vmatpush1.msra.mxu0 0.0
    %6052 = vmatprep.subr.mxu0 0.0
    %6053 = vmatpush1.msra.mxu0 0.0
    %6054 = vmatprep.subr.mxu0 0.0
    %6055 = vmatpush1.msra.mxu0 0.0
    %6056 = vmatprep.subr.mxu0 0.0
    %6057 = vmatpush1.msra.mxu0 0.0
    %6058 = vmatprep.subr.mxu0 0.0
    %6059 = vmatpush1.msra.mxu0 0.0
    %6060 = vmatprep.subr.mxu0 0.0
    %6061 = vmatpush1.msra.mxu0 0.0
    %6062 = vmatprep.subr.mxu0 0.0
    %6063 = vmatpush1.msra.mxu0 0.0
    %6064 = vmatprep.subr.mxu0 0.0
    %6065 = vmatpush1.msra.mxu0 0.0
    %6066 = vmatprep.subr.mxu0 0.0
    %6067 = vmatpush1.msra.mxu0 0.0
    %6068 = vmatprep.subr.mxu0 0.0
    %6069 = vmatpush1.msra.mxu0 0.0
    %6070 = vmatprep.subr.mxu0 0.0
    %6071 = vmatpush1.msra.mxu0 0.0
    %6072 = vmatprep.subr.mxu0 0.0
    %6073 = vmatpush1.msra.mxu0 0.0
    %6074 = vmatprep.subr.mxu0 0.0
    %6075 = vmatpush1.msra.mxu0 0.0
    %6076 = vmatprep.subr.mxu0 0.0
    %6077 = vmatpush1.msra.mxu0 0.0
    %6078 = vmatprep.subr.mxu0 0.0
    %6079 = vmatpush1.msra.mxu0 0.0
    %6080 = vmatprep.subr.mxu0 0.0
    %6081 = vmatpush1.msra.mxu0 0.0
    %6082 = vmatprep.mubr.f32.mxu0 0.0
    %6083 = vmatmul.mubr.f32.gmra.mrb[0].mxu0 %v6014
    %v6084 = vpop.f32.mrb[0].mxu0
    %v6085 = vadd.f32 0.0, %v6084
    %v6086 = vpop.f32.mrb[0].mxu0
    %6087 = vmatprep.mubr.f32.mxu0 0.0
    %6088 = vmatmul.mubr.f32.gmra.mrb[0].mxu0 %v6016
    %v6089 = vpop.f32.mrb[0].mxu0
    %v6090 = vadd.f32 0.0, %v6089
    %v6091 = vpop.f32.mrb[0].mxu0
    %6092 = vdwg.mxu0
    %v6093 = vmax.f32 %v6085, 1e-30
    %v6094 = vmax.f32 %v6090, 1e-30
    %v6095 = vrcp.pop %v6093
    %v6096 = vrcp.pop %v6094
    %v6099 = vrot.slane %v6095, 1
    %v6100 = vrot.slane %v6095, 2
    %v6101 = vrot.slane %v6095, 3
    %v6102 = vrot.slane %v6095, 4
    %v6103 = vrot.slane %v6095, 5
    %v6104 = vrot.slane %v6095, 6
    %v6105 = vrot.slane %v6095, 7
    %v6106 = vrot.slane %v6096, 1
    %v6107 = vrot.slane %v6096, 2
    %v6108 = vrot.slane %v6096, 3
    %v6109 = vrot.slane %v6096, 4
    %v6110 = vrot.slane %v6096, 5
    %v6111 = vrot.slane %v6096, 6
    %v6112 = vrot.slane %v6096, 7
    %v6129 = vmul.f32 %v5939, %v6095
    %v6130 = vmul.f32 %v5941, %v6099
    %v6131 = vmul.f32 %v5943, %v6100
    %v6132 = vmul.f32 %v5945, %v6101
    %v6133 = vmul.f32 %v5947, %v6102
    %v6134 = vmul.f32 %v5949, %v6103
    %v6135 = vmul.f32 %v5951, %v6104
    %v6136 = vmul.f32 %v5953, %v6105
    %v6137 = vmul.f32 %v5955, %v6096
    %v6138 = vmul.f32 %v5957, %v6106
    %v6139 = vmul.f32 %v5959, %v6107
    %v6140 = vmul.f32 %v5961, %v6108
    %v6141 = vmul.f32 %v5963, %v6109
    %v6142 = vmul.f32 %v5965, %v6110
    %v6143 = vmul.f32 %v5967, %v6111
    %v6144 = vmul.f32 %v5969, %v6112
    %v6145 = vpack.c.bf16 %v6129, %v6129
    %v6146 = vpack.c.bf16 %v6130, %v6130
    %v6147 = vpack.c.bf16 %v6131, %v6131
    %v6148 = vpack.c.bf16 %v6132, %v6132
    %v6149 = vpack.c.bf16 %v6133, %v6133
    %v6150 = vpack.c.bf16 %v6134, %v6134
    %v6151 = vpack.c.bf16 %v6135, %v6135
    %v6152 = vpack.c.bf16 %v6136, %v6136
    %v6153 = vpack.c.bf16 %v6137, %v6137
    %v6154 = vpack.c.bf16 %v6138, %v6138
    %v6155 = vpack.c.bf16 %v6139, %v6139
    %v6156 = vpack.c.bf16 %v6140, %v6140
    %v6157 = vpack.c.bf16 %v6141, %v6141
    %v6158 = vpack.c.bf16 %v6142, %v6142
    %v6159 = vpack.c.bf16 %v6143, %v6143
    %v6160 = vpack.c.bf16 %v6144, %v6144
    %v6169 = vunpack.c.l.b16 %v4472
    %v6170 = vunpack.c.l.b16 %v4473
    %v6171 = vunpack.c.l.b16 %v4474
    %v6172 = vunpack.c.l.b16 %v4475
    %v6173 = vunpack.c.l.b16 %v4476
    %v6174 = vunpack.c.l.b16 %v4477
    %v6175 = vunpack.c.l.b16 %v4478
    %v6176 = vunpack.c.l.b16 %v4479
    %v6177 = vpack.c.b16 %v6170, %v6169
    %v6178 = vpack.c.b16 %v6172, %v6171
    %v6179 = vpack.c.b16 %v6174, %v6173
    %v6180 = vpack.c.b16 %v6176, %v6175
    %v6186 = vsel %vm2161, %v6145, 0
    %6188 = vmatprep.subr.bf16.mxu0 0
    %6189 = vmatpush1.bf16.msra.mxu0 %v6177
    %6190 = vmatprep.subr.bf16.mxu0 0
    %6191 = vmatpush1.bf16.msra.mxu0 %v6178
    %6192 = vmatprep.subr.bf16.mxu0 0
    %6193 = vmatpush1.bf16.msra.mxu0 %v6179
    %6194 = vmatprep.subr.bf16.mxu0 0
    %6195 = vmatpush1.bf16.msra.mxu0 %v6180
    %6196 = vmatprep.subr.bf16.mxu0 0
    %6197 = vmatpush1.bf16.msra.mxu0 0
    %6198 = vmatprep.subr.bf16.mxu0 0
    %6199 = vmatpush1.bf16.msra.mxu0 0
    %6200 = vmatprep.subr.bf16.mxu0 0
    %6201 = vmatpush1.bf16.msra.mxu0 0
    %6202 = vmatprep.subr.bf16.mxu0 0
    %6203 = vmatpush1.bf16.msra.mxu0 0
    %6204 = vmatprep.subr.bf16.mxu0 0
    %6205 = vmatpush1.bf16.msra.mxu0 0
    %6206 = vmatprep.subr.bf16.mxu0 0
    %6207 = vmatpush1.bf16.msra.mxu0 0
    %6208 = vmatprep.subr.bf16.mxu0 0
    %6209 = vmatpush1.bf16.msra.mxu0 0
    %6210 = vmatprep.subr.bf16.mxu0 0
    %6211 = vmatpush1.bf16.msra.mxu0 0
    %6212 = vmatprep.subr.bf16.mxu0 0
    %6213 = vmatpush1.bf16.msra.mxu0 0
    %6214 = vmatprep.subr.bf16.mxu0 0
    %6215 = vmatpush1.bf16.msra.mxu0 0
    %6216 = vmatprep.subr.bf16.mxu0 0
    %6217 = vmatpush1.bf16.msra.mxu0 0
    %6218 = vmatprep.subr.bf16.mxu0 0
    %6219 = vmatpush1.bf16.msra.mxu0 0
    %6220 = vmatprep.mubr.bf16.mxu0 0
    %6221 = vmatmul.mubr.bf16.gmra.mrb[0].mxu0 %v6186
    %v6222 = vpop.f32.mrb[0].mxu0
    %v6223 = vadd.f32 0.0, %v6222
    %v6224 = vpop.f32.mrb[0].mxu0
    %v6225 = vpop.f32.mrb[0].mxu0
    %v6226 = vpop.f32.mrb[0].mxu0
    %6227 = vdwg.mxu0
    %v6236 = vunpack.c.l.b16 %v4480
    %v6237 = vunpack.c.l.b16 %v4481
    %v6238 = vunpack.c.l.b16 %v4482
    %v6239 = vunpack.c.l.b16 %v4483
    %v6240 = vunpack.c.l.b16 %v4484
    %v6241 = vunpack.c.l.b16 %v4485
    %v6242 = vunpack.c.l.b16 %v4486
    %v6243 = vunpack.c.l.b16 %v4487
    %v6244 = vpack.c.b16 %v6237, %v6236
    %v6245 = vpack.c.b16 %v6239, %v6238
    %v6246 = vpack.c.b16 %v6241, %v6240
    %v6247 = vpack.c.b16 %v6243, %v6242
    %v6253 = vsel %vm2161, %v6146, 0
    %6255 = vmatprep.subr.bf16.mxu0 0
    %6256 = vmatpush1.bf16.msra.mxu0 %v6244
    %6257 = vmatprep.subr.bf16.mxu0 0
    %6258 = vmatpush1.bf16.msra.mxu0 %v6245
    %6259 = vmatprep.subr.bf16.mxu0 0
    %6260 = vmatpush1.bf16.msra.mxu0 %v6246
    %6261 = vmatprep.subr.bf16.mxu0 0
    %6262 = vmatpush1.bf16.msra.mxu0 %v6247
    %6263 = vmatprep.subr.bf16.mxu0 0
    %6264 = vmatpush1.bf16.msra.mxu0 0
    %6265 = vmatprep.subr.bf16.mxu0 0
    %6266 = vmatpush1.bf16.msra.mxu0 0
    %6267 = vmatprep.subr.bf16.mxu0 0
    %6268 = vmatpush1.bf16.msra.mxu0 0
    %6269 = vmatprep.subr.bf16.mxu0 0
    %6270 = vmatpush1.bf16.msra.mxu0 0
    %6271 = vmatprep.subr.bf16.mxu0 0
    %6272 = vmatpush1.bf16.msra.mxu0 0
    %6273 = vmatprep.subr.bf16.mxu0 0
    %6274 = vmatpush1.bf16.msra.mxu0 0
    %6275 = vmatprep.subr.bf16.mxu0 0
    %6276 = vmatpush1.bf16.msra.mxu0 0
    %6277 = vmatprep.subr.bf16.mxu0 0
    %6278 = vmatpush1.bf16.msra.mxu0 0
    %6279 = vmatprep.subr.bf16.mxu0 0
    %6280 = vmatpush1.bf16.msra.mxu0 0
    %6281 = vmatprep.subr.bf16.mxu0 0
    %6282 = vmatpush1.bf16.msra.mxu0 0
    %6283 = vmatprep.subr.bf16.mxu0 0
    %6284 = vmatpush1.bf16.msra.mxu0 0
    %6285 = vmatprep.subr.bf16.mxu0 0
    %6286 = vmatpush1.bf16.msra.mxu0 0
    %6287 = vmatprep.mubr.bf16.mxu0 0
    %6288 = vmatmul.mubr.bf16.gmra.mrb[0].mxu0 %v6253
    %v6289 = vpop.f32.mrb[0].mxu0
    %v6290 = vadd.f32 0.0, %v6289
    %v6291 = vpop.f32.mrb[0].mxu0
    %v6292 = vpop.f32.mrb[0].mxu0
    %v6293 = vpop.f32.mrb[0].mxu0
    %6294 = vdwg.mxu0
    %v6303 = vunpack.c.l.b16 %v4488
    %v6304 = vunpack.c.l.b16 %v4489
    %v6305 = vunpack.c.l.b16 %v4490
    %v6306 = vunpack.c.l.b16 %v4491
    %v6307 = vunpack.c.l.b16 %v4492
    %v6308 = vunpack.c.l.b16 %v4493
    %v6309 = vunpack.c.l.b16 %v4494
    %v6310 = vunpack.c.l.b16 %v4495
    %v6311 = vpack.c.b16 %v6304, %v6303
    %v6312 = vpack.c.b16 %v6306, %v6305
    %v6313 = vpack.c.b16 %v6308, %v6307
    %v6314 = vpack.c.b16 %v6310, %v6309
    %v6320 = vsel %vm2161, %v6147, 0
    %6322 = vmatprep.subr.bf16.mxu0 0
    %6323 = vmatpush1.bf16.msra.mxu0 %v6311
    %6324 = vmatprep.subr.bf16.mxu0 0
    %6325 = vmatpush1.bf16.msra.mxu0 %v6312
    %6326 = vmatprep.subr.bf16.mxu0 0
    %6327 = vmatpush1.bf16.msra.mxu0 %v6313
    %6328 = vmatprep.subr.bf16.mxu0 0
    %6329 = vmatpush1.bf16.msra.mxu0 %v6314
    %6330 = vmatprep.subr.bf16.mxu0 0
    %6331 = vmatpush1.bf16.msra.mxu0 0
    %6332 = vmatprep.subr.bf16.mxu0 0
    %6333 = vmatpush1.bf16.msra.mxu0 0
    %6334 = vmatprep.subr.bf16.mxu0 0
    %6335 = vmatpush1.bf16.msra.mxu0 0
    %6336 = vmatprep.subr.bf16.mxu0 0
    %6337 = vmatpush1.bf16.msra.mxu0 0
    %6338 = vmatprep.subr.bf16.mxu0 0
    %6339 = vmatpush1.bf16.msra.mxu0 0
    %6340 = vmatprep.subr.bf16.mxu0 0
    %6341 = vmatpush1.bf16.msra.mxu0 0
    %6342 = vmatprep.subr.bf16.mxu0 0
    %6343 = vmatpush1.bf16.msra.mxu0 0
    %6344 = vmatprep.subr.bf16.mxu0 0
    %6345 = vmatpush1.bf16.msra.mxu0 0
    %6346 = vmatprep.subr.bf16.mxu0 0
    %6347 = vmatpush1.bf16.msra.mxu0 0
    %6348 = vmatprep.subr.bf16.mxu0 0
    %6349 = vmatpush1.bf16.msra.mxu0 0
    %6350 = vmatprep.subr.bf16.mxu0 0
    %6351 = vmatpush1.bf16.msra.mxu0 0
    %6352 = vmatprep.subr.bf16.mxu0 0
    %6353 = vmatpush1.bf16.msra.mxu0 0
    %6354 = vmatprep.mubr.bf16.mxu0 0
    %6355 = vmatmul.mubr.bf16.gmra.mrb[0].mxu0 %v6320
    %v6356 = vpop.f32.mrb[0].mxu0
    %v6357 = vadd.f32 0.0, %v6356
    %v6358 = vpop.f32.mrb[0].mxu0
    %v6359 = vpop.f32.mrb[0].mxu0
    %v6360 = vpop.f32.mrb[0].mxu0
    %6361 = vdwg.mxu0
    %v6370 = vunpack.c.l.b16 %v4496
    %v6371 = vunpack.c.l.b16 %v4497
    %v6372 = vunpack.c.l.b16 %v4498
    %v6373 = vunpack.c.l.b16 %v4499
    %v6374 = vunpack.c.l.b16 %v4500
    %v6375 = vunpack.c.l.b16 %v4501
    %v6376 = vunpack.c.l.b16 %v4502
    %v6377 = vunpack.c.l.b16 %v4503
    %v6378 = vpack.c.b16 %v6371, %v6370
    %v6379 = vpack.c.b16 %v6373, %v6372
    %v6380 = vpack.c.b16 %v6375, %v6374
    %v6381 = vpack.c.b16 %v6377, %v6376
    %v6387 = vsel %vm2161, %v6148, 0
    %6389 = vmatprep.subr.bf16.mxu0 0
    %6390 = vmatpush1.bf16.msra.mxu0 %v6378
    %6391 = vmatprep.subr.bf16.mxu0 0
    %6392 = vmatpush1.bf16.msra.mxu0 %v6379
    %6393 = vmatprep.subr.bf16.mxu0 0
    %6394 = vmatpush1.bf16.msra.mxu0 %v6380
    %6395 = vmatprep.subr.bf16.mxu0 0
    %6396 = vmatpush1.bf16.msra.mxu0 %v6381
    %6397 = vmatprep.subr.bf16.mxu0 0
    %6398 = vmatpush1.bf16.msra.mxu0 0
    %6399 = vmatprep.subr.bf16.mxu0 0
    %6400 = vmatpush1.bf16.msra.mxu0 0
    %6401 = vmatprep.subr.bf16.mxu0 0
    %6402 = vmatpush1.bf16.msra.mxu0 0
    %6403 = vmatprep.subr.bf16.mxu0 0
    %6404 = vmatpush1.bf16.msra.mxu0 0
    %6405 = vmatprep.subr.bf16.mxu0 0
    %6406 = vmatpush1.bf16.msra.mxu0 0
    %6407 = vmatprep.subr.bf16.mxu0 0
    %6408 = vmatpush1.bf16.msra.mxu0 0
    %6409 = vmatprep.subr.bf16.mxu0 0
    %6410 = vmatpush1.bf16.msra.mxu0 0
    %6411 = vmatprep.subr.bf16.mxu0 0
    %6412 = vmatpush1.bf16.msra.mxu0 0
    %6413 = vmatprep.subr.bf16.mxu0 0
    %6414 = vmatpush1.bf16.msra.mxu0 0
    %6415 = vmatprep.subr.bf16.mxu0 0
    %6416 = vmatpush1.bf16.msra.mxu0 0
    %6417 = vmatprep.subr.bf16.mxu0 0
    %6418 = vmatpush1.bf16.msra.mxu0 0
    %6419 = vmatprep.subr.bf16.mxu0 0
    %6420 = vmatpush1.bf16.msra.mxu0 0
    %6421 = vmatprep.mubr.bf16.mxu0 0
    %6422 = vmatmul.mubr.bf16.gmra.mrb[0].mxu0 %v6387
    %v6423 = vpop.f32.mrb[0].mxu0
    %v6424 = vadd.f32 0.0, %v6423
    %v6425 = vpop.f32.mrb[0].mxu0
    %v6426 = vpop.f32.mrb[0].mxu0
    %v6427 = vpop.f32.mrb[0].mxu0
    %6428 = vdwg.mxu0
    %v6437 = vunpack.c.l.b16 %v4504
    %v6438 = vunpack.c.l.b16 %v4505
    %v6439 = vunpack.c.l.b16 %v4506
    %v6440 = vunpack.c.l.b16 %v4507
    %v6441 = vunpack.c.l.b16 %v4508
    %v6442 = vunpack.c.l.b16 %v4509
    %v6443 = vunpack.c.l.b16 %v4510
    %v6444 = vunpack.c.l.b16 %v4511
    %v6445 = vpack.c.b16 %v6438, %v6437
    %v6446 = vpack.c.b16 %v6440, %v6439
    %v6447 = vpack.c.b16 %v6442, %v6441
    %v6448 = vpack.c.b16 %v6444, %v6443
    %v6454 = vsel %vm2161, %v6149, 0
    %6456 = vmatprep.subr.bf16.mxu0 0
    %6457 = vmatpush1.bf16.msra.mxu0 %v6445
    %6458 = vmatprep.subr.bf16.mxu0 0
    %6459 = vmatpush1.bf16.msra.mxu0 %v6446
    %6460 = vmatprep.subr.bf16.mxu0 0
    %6461 = vmatpush1.bf16.msra.mxu0 %v6447
    %6462 = vmatprep.subr.bf16.mxu0 0
    %6463 = vmatpush1.bf16.msra.mxu0 %v6448
    %6464 = vmatprep.subr.bf16.mxu0 0
    %6465 = vmatpush1.bf16.msra.mxu0 0
    %6466 = vmatprep.subr.bf16.mxu0 0
    %6467 = vmatpush1.bf16.msra.mxu0 0
    %6468 = vmatprep.subr.bf16.mxu0 0
    %6469 = vmatpush1.bf16.msra.mxu0 0
    %6470 = vmatprep.subr.bf16.mxu0 0
    %6471 = vmatpush1.bf16.msra.mxu0 0
    %6472 = vmatprep.subr.bf16.mxu0 0
    %6473 = vmatpush1.bf16.msra.mxu0 0
    %6474 = vmatprep.subr.bf16.mxu0 0
    %6475 = vmatpush1.bf16.msra.mxu0 0
    %6476 = vmatprep.subr.bf16.mxu0 0
    %6477 = vmatpush1.bf16.msra.mxu0 0
    %6478 = vmatprep.subr.bf16.mxu0 0
    %6479 = vmatpush1.bf16.msra.mxu0 0
    %6480 = vmatprep.subr.bf16.mxu0 0
    %6481 = vmatpush1.bf16.msra.mxu0 0
    %6482 = vmatprep.subr.bf16.mxu0 0
    %6483 = vmatpush1.bf16.msra.mxu0 0
    %6484 = vmatprep.subr.bf16.mxu0 0
    %6485 = vmatpush1.bf16.msra.mxu0 0
    %6486 = vmatprep.subr.bf16.mxu0 0
    %6487 = vmatpush1.bf16.msra.mxu0 0
    %6488 = vmatprep.mubr.bf16.mxu0 0
    %6489 = vmatmul.mubr.bf16.gmra.mrb[0].mxu0 %v6454
    %v6490 = vpop.f32.mrb[0].mxu0
    %v6491 = vadd.f32 0.0, %v6490
    %v6492 = vpop.f32.mrb[0].mxu0
    %v6493 = vpop.f32.mrb[0].mxu0
    %v6494 = vpop.f32.mrb[0].mxu0
    %6495 = vdwg.mxu0
    %v6504 = vunpack.c.l.b16 %v4512
    %v6505 = vunpack.c.l.b16 %v4513
    %v6506 = vunpack.c.l.b16 %v4514
    %v6507 = vunpack.c.l.b16 %v4515
    %v6508 = vunpack.c.l.b16 %v4516
    %v6509 = vunpack.c.l.b16 %v4517
    %v6510 = vunpack.c.l.b16 %v4518
    %v6511 = vunpack.c.l.b16 %v4519
    %v6512 = vpack.c.b16 %v6505, %v6504
    %v6513 = vpack.c.b16 %v6507, %v6506
    %v6514 = vpack.c.b16 %v6509, %v6508
    %v6515 = vpack.c.b16 %v6511, %v6510
    %v6521 = vsel %vm2161, %v6150, 0
    %6523 = vmatprep.subr.bf16.mxu0 0
    %6524 = vmatpush1.bf16.msra.mxu0 %v6512
    %6525 = vmatprep.subr.bf16.mxu0 0
    %6526 = vmatpush1.bf16.msra.mxu0 %v6513
    %6527 = vmatprep.subr.bf16.mxu0 0
    %6528 = vmatpush1.bf16.msra.mxu0 %v6514
    %6529 = vmatprep.subr.bf16.mxu0 0
    %6530 = vmatpush1.bf16.msra.mxu0 %v6515
    %6531 = vmatprep.subr.bf16.mxu0 0
    %6532 = vmatpush1.bf16.msra.mxu0 0
    %6533 = vmatprep.subr.bf16.mxu0 0
    %6534 = vmatpush1.bf16.msra.mxu0 0
    %6535 = vmatprep.subr.bf16.mxu0 0
    %6536 = vmatpush1.bf16.msra.mxu0 0
    %6537 = vmatprep.subr.bf16.mxu0 0
    %6538 = vmatpush1.bf16.msra.mxu0 0
    %6539 = vmatprep.subr.bf16.mxu0 0
    %6540 = vmatpush1.bf16.msra.mxu0 0
    %6541 = vmatprep.subr.bf16.mxu0 0
    %6542 = vmatpush1.bf16.msra.mxu0 0
    %6543 = vmatprep.subr.bf16.mxu0 0
    %6544 = vmatpush1.bf16.msra.mxu0 0
    %6545 = vmatprep.subr.bf16.mxu0 0
    %6546 = vmatpush1.bf16.msra.mxu0 0
    %6547 = vmatprep.subr.bf16.mxu0 0
    %6548 = vmatpush1.bf16.msra.mxu0 0
    %6549 = vmatprep.subr.bf16.mxu0 0
    %6550 = vmatpush1.bf16.msra.mxu0 0
    %6551 = vmatprep.subr.bf16.mxu0 0
    %6552 = vmatpush1.bf16.msra.mxu0 0
    %6553 = vmatprep.subr.bf16.mxu0 0
    %6554 = vmatpush1.bf16.msra.mxu0 0
    %6555 = vmatprep.mubr.bf16.mxu0 0
    %6556 = vmatmul.mubr.bf16.gmra.mrb[0].mxu0 %v6521
    %v6557 = vpop.f32.mrb[0].mxu0
    %v6558 = vadd.f32 0.0, %v6557
    %v6559 = vpop.f32.mrb[0].mxu0
    %v6560 = vpop.f32.mrb[0].mxu0
    %v6561 = vpop.f32.mrb[0].mxu0
    %6562 = vdwg.mxu0
    %v6571 = vunpack.c.l.b16 %v4520
    %v6572 = vunpack.c.l.b16 %v4521
    %v6573 = vunpack.c.l.b16 %v4522
    %v6574 = vunpack.c.l.b16 %v4523
    %v6575 = vunpack.c.l.b16 %v4524
    %v6576 = vunpack.c.l.b16 %v4525
    %v6577 = vunpack.c.l.b16 %v4526
    %v6578 = vunpack.c.l.b16 %v4527
    %v6579 = vpack.c.b16 %v6572, %v6571
    %v6580 = vpack.c.b16 %v6574, %v6573
    %v6581 = vpack.c.b16 %v6576, %v6575
    %v6582 = vpack.c.b16 %v6578, %v6577
    %v6588 = vsel %vm2161, %v6151, 0
    %6590 = vmatprep.subr.bf16.mxu0 0
    %6591 = vmatpush1.bf16.msra.mxu0 %v6579
    %6592 = vmatprep.subr.bf16.mxu0 0
    %6593 = vmatpush1.bf16.msra.mxu0 %v6580
    %6594 = vmatprep.subr.bf16.mxu0 0
    %6595 = vmatpush1.bf16.msra.mxu0 %v6581
    %6596 = vmatprep.subr.bf16.mxu0 0
    %6597 = vmatpush1.bf16.msra.mxu0 %v6582
    %6598 = vmatprep.subr.bf16.mxu0 0
    %6599 = vmatpush1.bf16.msra.mxu0 0
    %6600 = vmatprep.subr.bf16.mxu0 0
    %6601 = vmatpush1.bf16.msra.mxu0 0
    %6602 = vmatprep.subr.bf16.mxu0 0
    %6603 = vmatpush1.bf16.msra.mxu0 0
    %6604 = vmatprep.subr.bf16.mxu0 0
    %6605 = vmatpush1.bf16.msra.mxu0 0
    %6606 = vmatprep.subr.bf16.mxu0 0
    %6607 = vmatpush1.bf16.msra.mxu0 0
    %6608 = vmatprep.subr.bf16.mxu0 0
    %6609 = vmatpush1.bf16.msra.mxu0 0
    %6610 = vmatprep.subr.bf16.mxu0 0
    %6611 = vmatpush1.bf16.msra.mxu0 0
    %6612 = vmatprep.subr.bf16.mxu0 0
    %6613 = vmatpush1.bf16.msra.mxu0 0
    %6614 = vmatprep.subr.bf16.mxu0 0
    %6615 = vmatpush1.bf16.msra.mxu0 0
    %6616 = vmatprep.subr.bf16.mxu0 0
    %6617 = vmatpush1.bf16.msra.mxu0 0
    %6618 = vmatprep.subr.bf16.mxu0 0
    %6619 = vmatpush1.bf16.msra.mxu0 0
    %6620 = vmatprep.subr.bf16.mxu0 0
    %6621 = vmatpush1.bf16.msra.mxu0 0
    %6622 = vmatprep.mubr.bf16.mxu0 0
    %6623 = vmatmul.mubr.bf16.gmra.mrb[0].mxu0 %v6588
    %v6624 = vpop.f32.mrb[0].mxu0
    %v6625 = vadd.f32 0.0, %v6624
    %v6626 = vpop.f32.mrb[0].mxu0
    %v6627 = vpop.f32.mrb[0].mxu0
    %v6628 = vpop.f32.mrb[0].mxu0
    %6629 = vdwg.mxu0
    %v6638 = vunpack.c.l.b16 %v4528
    %v6639 = vunpack.c.l.b16 %v4529
    %v6640 = vunpack.c.l.b16 %v4530
    %v6641 = vunpack.c.l.b16 %v4531
    %v6642 = vunpack.c.l.b16 %v4532
    %v6643 = vunpack.c.l.b16 %v4533
    %v6644 = vunpack.c.l.b16 %v4534
    %v6645 = vunpack.c.l.b16 %v4535
    %v6646 = vpack.c.b16 %v6639, %v6638
    %v6647 = vpack.c.b16 %v6641, %v6640
    %v6648 = vpack.c.b16 %v6643, %v6642
    %v6649 = vpack.c.b16 %v6645, %v6644
    %v6655 = vsel %vm2161, %v6152, 0
    %6657 = vmatprep.subr.bf16.mxu0 0
    %6658 = vmatpush1.bf16.msra.mxu0 %v6646
    %6659 = vmatprep.subr.bf16.mxu0 0
    %6660 = vmatpush1.bf16.msra.mxu0 %v6647
    %6661 = vmatprep.subr.bf16.mxu0 0
    %6662 = vmatpush1.bf16.msra.mxu0 %v6648
    %6663 = vmatprep.subr.bf16.mxu0 0
    %6664 = vmatpush1.bf16.msra.mxu0 %v6649
    %6665 = vmatprep.subr.bf16.mxu0 0
    %6666 = vmatpush1.bf16.msra.mxu0 0
    %6667 = vmatprep.subr.bf16.mxu0 0
    %6668 = vmatpush1.bf16.msra.mxu0 0
    %6669 = vmatprep.subr.bf16.mxu0 0
    %6670 = vmatpush1.bf16.msra.mxu0 0
    %6671 = vmatprep.subr.bf16.mxu0 0
    %6672 = vmatpush1.bf16.msra.mxu0 0
    %6673 = vmatprep.subr.bf16.mxu0 0
    %6674 = vmatpush1.bf16.msra.mxu0 0
    %6675 = vmatprep.subr.bf16.mxu0 0
    %6676 = vmatpush1.bf16.msra.mxu0 0
    %6677 = vmatprep.subr.bf16.mxu0 0
    %6678 = vmatpush1.bf16.msra.mxu0 0
    %6679 = vmatprep.subr.bf16.mxu0 0
    %6680 = vmatpush1.bf16.msra.mxu0 0
    %6681 = vmatprep.subr.bf16.mxu0 0
    %6682 = vmatpush1.bf16.msra.mxu0 0
    %6683 = vmatprep.subr.bf16.mxu0 0
    %6684 = vmatpush1.bf16.msra.mxu0 0
    %6685 = vmatprep.subr.bf16.mxu0 0
    %6686 = vmatpush1.bf16.msra.mxu0 0
    %6687 = vmatprep.subr.bf16.mxu0 0
    %6688 = vmatpush1.bf16.msra.mxu0 0
    %6689 = vmatprep.mubr.bf16.mxu0 0
    %6690 = vmatmul.mubr.bf16.gmra.mrb[0].mxu0 %v6655
    %v6691 = vpop.f32.mrb[0].mxu0
    %v6692 = vadd.f32 0.0, %v6691
    %v6693 = vpop.f32.mrb[0].mxu0
    %v6694 = vpop.f32.mrb[0].mxu0
    %v6695 = vpop.f32.mrb[0].mxu0
    %6696 = vdwg.mxu0
    %v6705 = vunpack.c.l.b16 %v4536
    %v6706 = vunpack.c.l.b16 %v4537
    %v6707 = vunpack.c.l.b16 %v4538
    %v6708 = vunpack.c.l.b16 %v4539
    %v6709 = vunpack.c.l.b16 %v4540
    %v6710 = vunpack.c.l.b16 %v4541
    %v6711 = vunpack.c.l.b16 %v4542
    %v6712 = vunpack.c.l.b16 %v4543
    %v6713 = vpack.c.b16 %v6706, %v6705
    %v6714 = vpack.c.b16 %v6708, %v6707
    %v6715 = vpack.c.b16 %v6710, %v6709
    %v6716 = vpack.c.b16 %v6712, %v6711
    %v6722 = vsel %vm2161, %v6153, 0
    %6724 = vmatprep.subr.bf16.mxu0 0
    %6725 = vmatpush1.bf16.msra.mxu0 %v6713
    %6726 = vmatprep.subr.bf16.mxu0 0
    %6727 = vmatpush1.bf16.msra.mxu0 %v6714
    %6728 = vmatprep.subr.bf16.mxu0 0
    %6729 = vmatpush1.bf16.msra.mxu0 %v6715
    %6730 = vmatprep.subr.bf16.mxu0 0
    %6731 = vmatpush1.bf16.msra.mxu0 %v6716
    %6732 = vmatprep.subr.bf16.mxu0 0
    %6733 = vmatpush1.bf16.msra.mxu0 0
    %6734 = vmatprep.subr.bf16.mxu0 0
    %6735 = vmatpush1.bf16.msra.mxu0 0
    %6736 = vmatprep.subr.bf16.mxu0 0
    %6737 = vmatpush1.bf16.msra.mxu0 0
    %6738 = vmatprep.subr.bf16.mxu0 0
    %6739 = vmatpush1.bf16.msra.mxu0 0
    %6740 = vmatprep.subr.bf16.mxu0 0
    %6741 = vmatpush1.bf16.msra.mxu0 0
    %6742 = vmatprep.subr.bf16.mxu0 0
    %6743 = vmatpush1.bf16.msra.mxu0 0
    %6744 = vmatprep.subr.bf16.mxu0 0
    %6745 = vmatpush1.bf16.msra.mxu0 0
    %6746 = vmatprep.subr.bf16.mxu0 0
    %6747 = vmatpush1.bf16.msra.mxu0 0
    %6748 = vmatprep.subr.bf16.mxu0 0
    %6749 = vmatpush1.bf16.msra.mxu0 0
    %6750 = vmatprep.subr.bf16.mxu0 0
    %6751 = vmatpush1.bf16.msra.mxu0 0
    %6752 = vmatprep.subr.bf16.mxu0 0
    %6753 = vmatpush1.bf16.msra.mxu0 0
    %6754 = vmatprep.subr.bf16.mxu0 0
    %6755 = vmatpush1.bf16.msra.mxu0 0
    %6756 = vmatprep.mubr.bf16.mxu0 0
    %6757 = vmatmul.mubr.bf16.gmra.mrb[0].mxu0 %v6722
    %v6758 = vpop.f32.mrb[0].mxu0
    %v6759 = vadd.f32 0.0, %v6758
    %v6760 = vpop.f32.mrb[0].mxu0
    %v6761 = vpop.f32.mrb[0].mxu0
    %v6762 = vpop.f32.mrb[0].mxu0
    %6763 = vdwg.mxu0
    %v6772 = vunpack.c.l.b16 %v4544
    %v6773 = vunpack.c.l.b16 %v4545
    %v6774 = vunpack.c.l.b16 %v4546
    %v6775 = vunpack.c.l.b16 %v4547
    %v6776 = vunpack.c.l.b16 %v4548
    %v6777 = vunpack.c.l.b16 %v4549
    %v6778 = vunpack.c.l.b16 %v4550
    %v6779 = vunpack.c.l.b16 %v4551
    %v6780 = vpack.c.b16 %v6773, %v6772
    %v6781 = vpack.c.b16 %v6775, %v6774
    %v6782 = vpack.c.b16 %v6777, %v6776
    %v6783 = vpack.c.b16 %v6779, %v6778
    %v6789 = vsel %vm2161, %v6154, 0
    %6791 = vmatprep.subr.bf16.mxu0 0
    %6792 = vmatpush1.bf16.msra.mxu0 %v6780
    %6793 = vmatprep.subr.bf16.mxu0 0
    %6794 = vmatpush1.bf16.msra.mxu0 %v6781
    %6795 = vmatprep.subr.bf16.mxu0 0
    %6796 = vmatpush1.bf16.msra.mxu0 %v6782
    %6797 = vmatprep.subr.bf16.mxu0 0
    %6798 = vmatpush1.bf16.msra.mxu0 %v6783
    %6799 = vmatprep.subr.bf16.mxu0 0
    %6800 = vmatpush1.bf16.msra.mxu0 0
    %6801 = vmatprep.subr.bf16.mxu0 0
    %6802 = vmatpush1.bf16.msra.mxu0 0
    %6803 = vmatprep.subr.bf16.mxu0 0
    %6804 = vmatpush1.bf16.msra.mxu0 0
    %6805 = vmatprep.subr.bf16.mxu0 0
    %6806 = vmatpush1.bf16.msra.mxu0 0
    %6807 = vmatprep.subr.bf16.mxu0 0
    %6808 = vmatpush1.bf16.msra.mxu0 0
    %6809 = vmatprep.subr.bf16.mxu0 0
    %6810 = vmatpush1.bf16.msra.mxu0 0
    %6811 = vmatprep.subr.bf16.mxu0 0
    %6812 = vmatpush1.bf16.msra.mxu0 0
    %6813 = vmatprep.subr.bf16.mxu0 0
    %6814 = vmatpush1.bf16.msra.mxu0 0
    %6815 = vmatprep.subr.bf16.mxu0 0
    %6816 = vmatpush1.bf16.msra.mxu0 0
    %6817 = vmatprep.subr.bf16.mxu0 0
    %6818 = vmatpush1.bf16.msra.mxu0 0
    %6819 = vmatprep.subr.bf16.mxu0 0
    %6820 = vmatpush1.bf16.msra.mxu0 0
    %6821 = vmatprep.subr.bf16.mxu0 0
    %6822 = vmatpush1.bf16.msra.mxu0 0
    %6823 = vmatprep.mubr.bf16.mxu0 0
    %6824 = vmatmul.mubr.bf16.gmra.mrb[0].mxu0 %v6789
    %v6825 = vpop.f32.mrb[0].mxu0
    %v6826 = vadd.f32 0.0, %v6825
    %v6827 = vpop.f32.mrb[0].mxu0
    %v6828 = vpop.f32.mrb[0].mxu0
    %v6829 = vpop.f32.mrb[0].mxu0
    %6830 = vdwg.mxu0
    %v6839 = vunpack.c.l.b16 %v4552
    %v6840 = vunpack.c.l.b16 %v4553
    %v6841 = vunpack.c.l.b16 %v4554
    %v6842 = vunpack.c.l.b16 %v4555
    %v6843 = vunpack.c.l.b16 %v4556
    %v6844 = vunpack.c.l.b16 %v4557
    %v6845 = vunpack.c.l.b16 %v4558
    %v6846 = vunpack.c.l.b16 %v4559
    %v6847 = vpack.c.b16 %v6840, %v6839
    %v6848 = vpack.c.b16 %v6842, %v6841
    %v6849 = vpack.c.b16 %v6844, %v6843
    %v6850 = vpack.c.b16 %v6846, %v6845
    %v6856 = vsel %vm2161, %v6155, 0
    %6858 = vmatprep.subr.bf16.mxu0 0
    %6859 = vmatpush1.bf16.msra.mxu0 %v6847
    %6860 = vmatprep.subr.bf16.mxu0 0
    %6861 = vmatpush1.bf16.msra.mxu0 %v6848
    %6862 = vmatprep.subr.bf16.mxu0 0
    %6863 = vmatpush1.bf16.msra.mxu0 %v6849
    %6864 = vmatprep.subr.bf16.mxu0 0
    %6865 = vmatpush1.bf16.msra.mxu0 %v6850
    %6866 = vmatprep.subr.bf16.mxu0 0
    %6867 = vmatpush1.bf16.msra.mxu0 0
    %6868 = vmatprep.subr.bf16.mxu0 0
    %6869 = vmatpush1.bf16.msra.mxu0 0
    %6870 = vmatprep.subr.bf16.mxu0 0
    %6871 = vmatpush1.bf16.msra.mxu0 0
    %6872 = vmatprep.subr.bf16.mxu0 0
    %6873 = vmatpush1.bf16.msra.mxu0 0
    %6874 = vmatprep.subr.bf16.mxu0 0
    %6875 = vmatpush1.bf16.msra.mxu0 0
    %6876 = vmatprep.subr.bf16.mxu0 0
    %6877 = vmatpush1.bf16.msra.mxu0 0
    %6878 = vmatprep.subr.bf16.mxu0 0
    %6879 = vmatpush1.bf16.msra.mxu0 0
    %6880 = vmatprep.subr.bf16.mxu0 0
    %6881 = vmatpush1.bf16.msra.mxu0 0
    %6882 = vmatprep.subr.bf16.mxu0 0
    %6883 = vmatpush1.bf16.msra.mxu0 0
    %6884 = vmatprep.subr.bf16.mxu0 0
    %6885 = vmatpush1.bf16.msra.mxu0 0
    %6886 = vmatprep.subr.bf16.mxu0 0
    %6887 = vmatpush1.bf16.msra.mxu0 0
    %6888 = vmatprep.subr.bf16.mxu0 0
    %6889 = vmatpush1.bf16.msra.mxu0 0
    %6890 = vmatprep.mubr.bf16.mxu0 0
    %6891 = vmatmul.mubr.bf16.gmra.mrb[0].mxu0 %v6856
    %v6892 = vpop.f32.mrb[0].mxu0
    %v6893 = vadd.f32 0.0, %v6892
    %v6894 = vpop.f32.mrb[0].mxu0
    %v6895 = vpop.f32.mrb[0].mxu0
    %v6896 = vpop.f32.mrb[0].mxu0
    %6897 = vdwg.mxu0
    %v6906 = vunpack.c.l.b16 %v4560
    %v6907 = vunpack.c.l.b16 %v4561
    %v6908 = vunpack.c.l.b16 %v4562
    %v6909 = vunpack.c.l.b16 %v4563
    %v6910 = vunpack.c.l.b16 %v4564
    %v6911 = vunpack.c.l.b16 %v4565
    %v6912 = vunpack.c.l.b16 %v4566
    %v6913 = vunpack.c.l.b16 %v4567
    %v6914 = vpack.c.b16 %v6907, %v6906
    %v6915 = vpack.c.b16 %v6909, %v6908
    %v6916 = vpack.c.b16 %v6911, %v6910
    %v6917 = vpack.c.b16 %v6913, %v6912
    %v6923 = vsel %vm2161, %v6156, 0
    %6925 = vmatprep.subr.bf16.mxu0 0
    %6926 = vmatpush1.bf16.msra.mxu0 %v6914
    %6927 = vmatprep.subr.bf16.mxu0 0
    %6928 = vmatpush1.bf16.msra.mxu0 %v6915
    %6929 = vmatprep.subr.bf16.mxu0 0
    %6930 = vmatpush1.bf16.msra.mxu0 %v6916
    %6931 = vmatprep.subr.bf16.mxu0 0
    %6932 = vmatpush1.bf16.msra.mxu0 %v6917
    %6933 = vmatprep.subr.bf16.mxu0 0
    %6934 = vmatpush1.bf16.msra.mxu0 0
    %6935 = vmatprep.subr.bf16.mxu0 0
    %6936 = vmatpush1.bf16.msra.mxu0 0
    %6937 = vmatprep.subr.bf16.mxu0 0
    %6938 = vmatpush1.bf16.msra.mxu0 0
    %6939 = vmatprep.subr.bf16.mxu0 0
    %6940 = vmatpush1.bf16.msra.mxu0 0
    %6941 = vmatprep.subr.bf16.mxu0 0
    %6942 = vmatpush1.bf16.msra.mxu0 0
    %6943 = vmatprep.subr.bf16.mxu0 0
    %6944 = vmatpush1.bf16.msra.mxu0 0
    %6945 = vmatprep.subr.bf16.mxu0 0
    %6946 = vmatpush1.bf16.msra.mxu0 0
    %6947 = vmatprep.subr.bf16.mxu0 0
    %6948 = vmatpush1.bf16.msra.mxu0 0
    %6949 = vmatprep.subr.bf16.mxu0 0
    %6950 = vmatpush1.bf16.msra.mxu0 0
    %6951 = vmatprep.subr.bf16.mxu0 0
    %6952 = vmatpush1.bf16.msra.mxu0 0
    %6953 = vmatprep.subr.bf16.mxu0 0
    %6954 = vmatpush1.bf16.msra.mxu0 0
    %6955 = vmatprep.subr.bf16.mxu0 0
    %6956 = vmatpush1.bf16.msra.mxu0 0
    %6957 = vmatprep.mubr.bf16.mxu0 0
    %6958 = vmatmul.mubr.bf16.gmra.mrb[0].mxu0 %v6923
    %v6959 = vpop.f32.mrb[0].mxu0
    %v6960 = vadd.f32 0.0, %v6959
    %v6961 = vpop.f32.mrb[0].mxu0
    %v6962 = vpop.f32.mrb[0].mxu0
    %v6963 = vpop.f32.mrb[0].mxu0
    %6964 = vdwg.mxu0
    %v6973 = vunpack.c.l.b16 %v4568
    %v6974 = vunpack.c.l.b16 %v4569
    %v6975 = vunpack.c.l.b16 %v4570
    %v6976 = vunpack.c.l.b16 %v4571
    %v6977 = vunpack.c.l.b16 %v4572
    %v6978 = vunpack.c.l.b16 %v4573
    %v6979 = vunpack.c.l.b16 %v4574
    %v6980 = vunpack.c.l.b16 %v4575
    %v6981 = vpack.c.b16 %v6974, %v6973
    %v6982 = vpack.c.b16 %v6976, %v6975
    %v6983 = vpack.c.b16 %v6978, %v6977
    %v6984 = vpack.c.b16 %v6980, %v6979
    %v6990 = vsel %vm2161, %v6157, 0
    %6992 = vmatprep.subr.bf16.mxu0 0
    %6993 = vmatpush1.bf16.msra.mxu0 %v6981
    %6994 = vmatprep.subr.bf16.mxu0 0
    %6995 = vmatpush1.bf16.msra.mxu0 %v6982
    %6996 = vmatprep.subr.bf16.mxu0 0
    %6997 = vmatpush1.bf16.msra.mxu0 %v6983
    %6998 = vmatprep.subr.bf16.mxu0 0
    %6999 = vmatpush1.bf16.msra.mxu0 %v6984
    %7000 = vmatprep.subr.bf16.mxu0 0
    %7001 = vmatpush1.bf16.msra.mxu0 0
    %7002 = vmatprep.subr.bf16.mxu0 0
    %7003 = vmatpush1.bf16.msra.mxu0 0
    %7004 = vmatprep.subr.bf16.mxu0 0
    %7005 = vmatpush1.bf16.msra.mxu0 0
    %7006 = vmatprep.subr.bf16.mxu0 0
    %7007 = vmatpush1.bf16.msra.mxu0 0
    %7008 = vmatprep.subr.bf16.mxu0 0
    %7009 = vmatpush1.bf16.msra.mxu0 0
    %7010 = vmatprep.subr.bf16.mxu0 0
    %7011 = vmatpush1.bf16.msra.mxu0 0
    %7012 = vmatprep.subr.bf16.mxu0 0
    %7013 = vmatpush1.bf16.msra.mxu0 0
    %7014 = vmatprep.subr.bf16.mxu0 0
    %7015 = vmatpush1.bf16.msra.mxu0 0
    %7016 = vmatprep.subr.bf16.mxu0 0
    %7017 = vmatpush1.bf16.msra.mxu0 0
    %7018 = vmatprep.subr.bf16.mxu0 0
    %7019 = vmatpush1.bf16.msra.mxu0 0
    %7020 = vmatprep.subr.bf16.mxu0 0
    %7021 = vmatpush1.bf16.msra.mxu0 0
    %7022 = vmatprep.subr.bf16.mxu0 0
    %7023 = vmatpush1.bf16.msra.mxu0 0
    %7024 = vmatprep.mubr.bf16.mxu0 0
    %7025 = vmatmul.mubr.bf16.gmra.mrb[0].mxu0 %v6990
    %v7026 = vpop.f32.mrb[0].mxu0
    %v7027 = vadd.f32 0.0, %v7026
    %v7028 = vpop.f32.mrb[0].mxu0
    %v7029 = vpop.f32.mrb[0].mxu0
    %v7030 = vpop.f32.mrb[0].mxu0
    %7031 = vdwg.mxu0
    %v7040 = vunpack.c.l.b16 %v4576
    %v7041 = vunpack.c.l.b16 %v4577
    %v7042 = vunpack.c.l.b16 %v4578
    %v7043 = vunpack.c.l.b16 %v4579
    %v7044 = vunpack.c.l.b16 %v4580
    %v7045 = vunpack.c.l.b16 %v4581
    %v7046 = vunpack.c.l.b16 %v4582
    %v7047 = vunpack.c.l.b16 %v4583
    %v7048 = vpack.c.b16 %v7041, %v7040
    %v7049 = vpack.c.b16 %v7043, %v7042
    %v7050 = vpack.c.b16 %v7045, %v7044
    %v7051 = vpack.c.b16 %v7047, %v7046
    %v7057 = vsel %vm2161, %v6158, 0
    %7059 = vmatprep.subr.bf16.mxu0 0
    %7060 = vmatpush1.bf16.msra.mxu0 %v7048
    %7061 = vmatprep.subr.bf16.mxu0 0
    %7062 = vmatpush1.bf16.msra.mxu0 %v7049
    %7063 = vmatprep.subr.bf16.mxu0 0
    %7064 = vmatpush1.bf16.msra.mxu0 %v7050
    %7065 = vmatprep.subr.bf16.mxu0 0
    %7066 = vmatpush1.bf16.msra.mxu0 %v7051
    %7067 = vmatprep.subr.bf16.mxu0 0
    %7068 = vmatpush1.bf16.msra.mxu0 0
    %7069 = vmatprep.subr.bf16.mxu0 0
    %7070 = vmatpush1.bf16.msra.mxu0 0
    %7071 = vmatprep.subr.bf16.mxu0 0
    %7072 = vmatpush1.bf16.msra.mxu0 0
    %7073 = vmatprep.subr.bf16.mxu0 0
    %7074 = vmatpush1.bf16.msra.mxu0 0
    %7075 = vmatprep.subr.bf16.mxu0 0
    %7076 = vmatpush1.bf16.msra.mxu0 0
    %7077 = vmatprep.subr.bf16.mxu0 0
    %7078 = vmatpush1.bf16.msra.mxu0 0
    %7079 = vmatprep.subr.bf16.mxu0 0
    %7080 = vmatpush1.bf16.msra.mxu0 0
    %7081 = vmatprep.subr.bf16.mxu0 0
    %7082 = vmatpush1.bf16.msra.mxu0 0
    %7083 = vmatprep.subr.bf16.mxu0 0
    %7084 = vmatpush1.bf16.msra.mxu0 0
    %7085 = vmatprep.subr.bf16.mxu0 0
    %7086 = vmatpush1.bf16.msra.mxu0 0
    %7087 = vmatprep.subr.bf16.mxu0 0
    %7088 = vmatpush1.bf16.msra.mxu0 0
    %7089 = vmatprep.subr.bf16.mxu0 0
    %7090 = vmatpush1.bf16.msra.mxu0 0
    %7091 = vmatprep.mubr.bf16.mxu0 0
    %7092 = vmatmul.mubr.bf16.gmra.mrb[0].mxu0 %v7057
    %v7093 = vpop.f32.mrb[0].mxu0
    %v7094 = vadd.f32 0.0, %v7093
    %v7095 = vpop.f32.mrb[0].mxu0
    %v7096 = vpop.f32.mrb[0].mxu0
    %v7097 = vpop.f32.mrb[0].mxu0
    %7098 = vdwg.mxu0
    %v7107 = vunpack.c.l.b16 %v4584
    %v7108 = vunpack.c.l.b16 %v4585
    %v7109 = vunpack.c.l.b16 %v4586
    %v7110 = vunpack.c.l.b16 %v4587
    %v7111 = vunpack.c.l.b16 %v4588
    %v7112 = vunpack.c.l.b16 %v4589
    %v7113 = vunpack.c.l.b16 %v4590
    %v7114 = vunpack.c.l.b16 %v4591
    %v7115 = vpack.c.b16 %v7108, %v7107
    %v7116 = vpack.c.b16 %v7110, %v7109
    %v7117 = vpack.c.b16 %v7112, %v7111
    %v7118 = vpack.c.b16 %v7114, %v7113
    %v7124 = vsel %vm2161, %v6159, 0
    %7126 = vmatprep.subr.bf16.mxu0 0
    %7127 = vmatpush1.bf16.msra.mxu0 %v7115
    %7128 = vmatprep.subr.bf16.mxu0 0
    %7129 = vmatpush1.bf16.msra.mxu0 %v7116
    %7130 = vmatprep.subr.bf16.mxu0 0
    %7131 = vmatpush1.bf16.msra.mxu0 %v7117
    %7132 = vmatprep.subr.bf16.mxu0 0
    %7133 = vmatpush1.bf16.msra.mxu0 %v7118
    %7134 = vmatprep.subr.bf16.mxu0 0
    %7135 = vmatpush1.bf16.msra.mxu0 0
    %7136 = vmatprep.subr.bf16.mxu0 0
    %7137 = vmatpush1.bf16.msra.mxu0 0
    %7138 = vmatprep.subr.bf16.mxu0 0
    %7139 = vmatpush1.bf16.msra.mxu0 0
    %7140 = vmatprep.subr.bf16.mxu0 0
    %7141 = vmatpush1.bf16.msra.mxu0 0
    %7142 = vmatprep.subr.bf16.mxu0 0
    %7143 = vmatpush1.bf16.msra.mxu0 0
    %7144 = vmatprep.subr.bf16.mxu0 0
    %7145 = vmatpush1.bf16.msra.mxu0 0
    %7146 = vmatprep.subr.bf16.mxu0 0
    %7147 = vmatpush1.bf16.msra.mxu0 0
    %7148 = vmatprep.subr.bf16.mxu0 0
    %7149 = vmatpush1.bf16.msra.mxu0 0
    %7150 = vmatprep.subr.bf16.mxu0 0
    %7151 = vmatpush1.bf16.msra.mxu0 0
    %7152 = vmatprep.subr.bf16.mxu0 0
    %7153 = vmatpush1.bf16.msra.mxu0 0
    %7154 = vmatprep.subr.bf16.mxu0 0
    %7155 = vmatpush1.bf16.msra.mxu0 0
    %7156 = vmatprep.subr.bf16.mxu0 0
    %7157 = vmatpush1.bf16.msra.mxu0 0
    %7158 = vmatprep.mubr.bf16.mxu0 0
    %7159 = vmatmul.mubr.bf16.gmra.mrb[0].mxu0 %v7124
    %v7160 = vpop.f32.mrb[0].mxu0
    %v7161 = vadd.f32 0.0, %v7160
    %v7162 = vpop.f32.mrb[0].mxu0
    %v7163 = vpop.f32.mrb[0].mxu0
    %v7164 = vpop.f32.mrb[0].mxu0
    %7165 = vdwg.mxu0
    %v7174 = vunpack.c.l.b16 %v4592
    %v7175 = vunpack.c.l.b16 %v4593
    %v7176 = vunpack.c.l.b16 %v4594
    %v7177 = vunpack.c.l.b16 %v4595
    %v7178 = vunpack.c.l.b16 %v4596
    %v7179 = vunpack.c.l.b16 %v4597
    %v7180 = vunpack.c.l.b16 %v4598
    %v7181 = vunpack.c.l.b16 %v4599
    %v7182 = vpack.c.b16 %v7175, %v7174
    %v7183 = vpack.c.b16 %v7177, %v7176
    %v7184 = vpack.c.b16 %v7179, %v7178
    %v7185 = vpack.c.b16 %v7181, %v7180
    %v7191 = vsel %vm2161, %v6160, 0
    %7193 = vmatprep.subr.bf16.mxu0 0
    %7194 = vmatpush1.bf16.msra.mxu0 %v7182
    %7195 = vmatprep.subr.bf16.mxu0 0
    %7196 = vmatpush1.bf16.msra.mxu0 %v7183
    %7197 = vmatprep.subr.bf16.mxu0 0
    %7198 = vmatpush1.bf16.msra.mxu0 %v7184
    %7199 = vmatprep.subr.bf16.mxu0 0
    %7200 = vmatpush1.bf16.msra.mxu0 %v7185
    %7201 = vmatprep.subr.bf16.mxu0 0
    %7202 = vmatpush1.bf16.msra.mxu0 0
    %7203 = vmatprep.subr.bf16.mxu0 0
    %7204 = vmatpush1.bf16.msra.mxu0 0
    %7205 = vmatprep.subr.bf16.mxu0 0
    %7206 = vmatpush1.bf16.msra.mxu0 0
    %7207 = vmatprep.subr.bf16.mxu0 0
    %7208 = vmatpush1.bf16.msra.mxu0 0
    %7209 = vmatprep.subr.bf16.mxu0 0
    %7210 = vmatpush1.bf16.msra.mxu0 0
    %7211 = vmatprep.subr.bf16.mxu0 0
    %7212 = vmatpush1.bf16.msra.mxu0 0
    %7213 = vmatprep.subr.bf16.mxu0 0
    %7214 = vmatpush1.bf16.msra.mxu0 0
    %7215 = vmatprep.subr.bf16.mxu0 0
    %7216 = vmatpush1.bf16.msra.mxu0 0
    %7217 = vmatprep.subr.bf16.mxu0 0
    %7218 = vmatpush1.bf16.msra.mxu0 0
    %7219 = vmatprep.subr.bf16.mxu0 0
    %7220 = vmatpush1.bf16.msra.mxu0 0
    %7221 = vmatprep.subr.bf16.mxu0 0
    %7222 = vmatpush1.bf16.msra.mxu0 0
    %7223 = vmatprep.subr.bf16.mxu0 0
    %7224 = vmatpush1.bf16.msra.mxu0 0
    %7225 = vmatprep.mubr.bf16.mxu0 0
    %7226 = vmatmul.mubr.bf16.gmra.mrb[0].mxu0 %v7191
    %v7227 = vpop.f32.mrb[0].mxu0
    %v7228 = vadd.f32 0.0, %v7227
    %v7229 = vpop.f32.mrb[0].mxu0
    %v7230 = vpop.f32.mrb[0].mxu0
    %v7231 = vpop.f32.mrb[0].mxu0
    %7232 = vdwg.mxu0
    %v7233 = vpack.c.bf16 %v6223, %v6223
    %v7234 = vpack.c.bf16 %v6290, %v6290
    %v7235 = vpack.c.bf16 %v6357, %v6357
    %v7236 = vpack.c.bf16 %v6424, %v6424
    %v7237 = vpack.c.bf16 %v6491, %v6491
    %v7238 = vpack.c.bf16 %v6558, %v6558
    %v7239 = vpack.c.bf16 %v6625, %v6625
    %v7240 = vpack.c.bf16 %v6692, %v6692
    %v7241 = vpack.c.bf16 %v6759, %v6759
    %v7242 = vpack.c.bf16 %v6826, %v6826
    %v7243 = vpack.c.bf16 %v6893, %v6893
    %v7244 = vpack.c.bf16 %v6960, %v6960
    %v7245 = vpack.c.bf16 %v7027, %v7027
    %v7246 = vpack.c.bf16 %v7094, %v7094
    %v7247 = vpack.c.bf16 %v7161, %v7161
    %v7248 = vpack.c.bf16 %v7228, %v7228
    %s7249 = scalar_lea.vmem [#allocation6], 16
    %v7250 = vld [vmem:[%s7249] sm:$0xf]
    %v7251 = vld [vmem:[%s7249 + $0x4] sm:$0xf]
    %v7252 = vld [vmem:[%s7249 + $0x8] sm:$0xf]
    %v7253 = vld [vmem:[%s7249 + $0xc] sm:$0xf]
    %s7254 = scalar_lea.vmem %s6, 1
    %v7255 = vld [vmem:[%s7254] sm:$0x1]
    %v7257 = vlaneseq
    %v7258 = vshrl.u32 %v7257, 7
    %v7259 = vsub.s32 0, %v7258
    %v7260 = vrot.slane %v7255, %v7259
    %v7278 = vunpack.c.l.b16 %v7233
    %v7279 = vunpack.c.l.b16 %v7234
    %v7280 = vunpack.c.l.b16 %v7235
    %v7281 = vunpack.c.l.b16 %v7236
    %v7282 = vunpack.c.l.b16 %v7237
    %v7283 = vunpack.c.l.b16 %v7238
    %v7284 = vunpack.c.l.b16 %v7239
    %v7285 = vunpack.c.l.b16 %v7240
    %v7286 = vunpack.c.l.b16 %v7241
    %v7287 = vunpack.c.l.b16 %v7242
    %v7288 = vunpack.c.l.b16 %v7243
    %v7289 = vunpack.c.l.b16 %v7244
    %v7290 = vunpack.c.l.b16 %v7245
    %v7291 = vunpack.c.l.b16 %v7246
    %v7292 = vunpack.c.l.b16 %v7247
    %v7293 = vunpack.c.l.b16 %v7248
    %v7294 = vrot.slane %v7279, 7
    %v7295 = vsel %vm3835, %v7294, %v7278
    %v7296 = vrot.slane %v7280, 6
    %v7297 = vsel %vm3838, %v7296, %v7295
    %v7298 = vrot.slane %v7281, 5
    %v7299 = vsel %vm3841, %v7298, %v7297
    %v7300 = vrot.slane %v7282, 4
    %v7301 = vsel %vm3844, %v7300, %v7299
    %v7302 = vrot.slane %v7283, 3
    %v7303 = vsel %vm3847, %v7302, %v7301
    %v7304 = vrot.slane %v7284, 2
    %v7305 = vsel %vm3850, %v7304, %v7303
    %v7306 = vrot.slane %v7285, 1
    %v7307 = vsel %vm3853, %v7306, %v7305
    %v7308 = vrot.slane %v7287, 7
    %v7309 = vsel %vm3835, %v7308, %v7286
    %v7310 = vrot.slane %v7288, 6
    %v7311 = vsel %vm3838, %v7310, %v7309
    %v7312 = vrot.slane %v7289, 5
    %v7313 = vsel %vm3841, %v7312, %v7311
    %v7314 = vrot.slane %v7290, 4
    %v7315 = vsel %vm3844, %v7314, %v7313
    %v7316 = vrot.slane %v7291, 3
    %v7317 = vsel %vm3847, %v7316, %v7315
    %v7318 = vrot.slane %v7292, 2
    %v7319 = vsel %vm3850, %v7318, %v7317
    %v7320 = vrot.slane %v7293, 1
    %v7321 = vsel %vm3853, %v7320, %v7319
    %v7322 = vpack.c.b16 %v7321, %v7307
    %v7327 = vunpack.c.l.b16 %v7250
    %v7328 = vunpack.c.l.b16 %v7251
    %v7329 = vunpack.c.l.b16 %v7252
    %v7330 = vunpack.c.l.b16 %v7253
    %v7331 = vpack.c.b16 %v7328, %v7327
    %v7332 = vpack.c.b16 %v7330, %v7329
    %v7336 = vsel %vm216, %v7322, 0
    %7338 = vmatprep.subr.bf16.mxu0 0
    %7339 = vmatpush1.bf16.msra.mxu0 %v7331
    %7340 = vmatprep.subr.bf16.mxu0 0
    %7341 = vmatpush1.bf16.msra.mxu0 %v7332
    %7342 = vmatprep.subr.bf16.mxu0 0
    %7343 = vmatpush1.bf16.msra.mxu0 0
    %7344 = vmatprep.subr.bf16.mxu0 0
    %7345 = vmatpush1.bf16.msra.mxu0 0
    %7346 = vmatprep.subr.bf16.mxu0 0
    %7347 = vmatpush1.bf16.msra.mxu0 0
    %7348 = vmatprep.subr.bf16.mxu0 0
    %7349 = vmatpush1.bf16.msra.mxu0 0
    %7350 = vmatprep.subr.bf16.mxu0 0
    %7351 = vmatpush1.bf16.msra.mxu0 0
    %7352 = vmatprep.subr.bf16.mxu0 0
    %7353 = vmatpush1.bf16.msra.mxu0 0
    %7354 = vmatprep.subr.bf16.mxu0 0
    %7355 = vmatpush1.bf16.msra.mxu0 0
    %7356 = vmatprep.subr.bf16.mxu0 0
    %7357 = vmatpush1.bf16.msra.mxu0 0
    %7358 = vmatprep.subr.bf16.mxu0 0
    %7359 = vmatpush1.bf16.msra.mxu0 0
    %7360 = vmatprep.subr.bf16.mxu0 0
    %7361 = vmatpush1.bf16.msra.mxu0 0
    %7362 = vmatprep.subr.bf16.mxu0 0
    %7363 = vmatpush1.bf16.msra.mxu0 0
    %7364 = vmatprep.subr.bf16.mxu0 0
    %7365 = vmatpush1.bf16.msra.mxu0 0
    %7366 = vmatprep.subr.bf16.mxu0 0
    %7367 = vmatpush1.bf16.msra.mxu0 0
    %7368 = vmatprep.subr.bf16.mxu0 0
    %7369 = vmatpush1.bf16.msra.mxu0 0
    %7370 = vmatprep.mubr.bf16.mxu0 0
    %7371 = vmatmul.mubr.bf16.gmra.mrb[0].mxu0 %v7336
    %v7372 = vpop.f32.mrb[0].mxu0
    %v7373 = vadd.f32 %v7260, %v7372
    %v7374 = vpop.f32.mrb[0].mxu0
    %v7375 = vpop.f32.mrb[0].mxu0
    %v7376 = vadd.f32 %v7260, %v7375
    %v7377 = vpop.f32.mrb[0].mxu0
    %7378 = vdwg.mxu0
    %v7381 = vrot.slane %v7373, 1
    %v7382 = vrot.slane %v7373, 2
    %v7383 = vrot.slane %v7373, 3
    %v7384 = vrot.slane %v7373, 4
    %v7385 = vrot.slane %v7373, 5
    %v7386 = vrot.slane %v7373, 6
    %v7387 = vrot.slane %v7373, 7
    %v7388 = vrot.slane %v7376, 1
    %v7389 = vrot.slane %v7376, 2
    %v7390 = vrot.slane %v7376, 3
    %v7391 = vrot.slane %v7376, 4
    %v7392 = vrot.slane %v7376, 5
    %v7393 = vrot.slane %v7376, 6
    %v7394 = vrot.slane %v7376, 7
    %v7411 = vadd.f32 %v3739, %v7373
    %v7412 = vadd.f32 %v3740, %v7381
    %v7413 = vadd.f32 %v3741, %v7382
    %v7414 = vadd.f32 %v3742, %v7383
    %v7415 = vadd.f32 %v3743, %v7384
    %v7416 = vadd.f32 %v3744, %v7385
    %v7417 = vadd.f32 %v3745, %v7386
    %v7418 = vadd.f32 %v3746, %v7387
    %v7419 = vadd.f32 %v3747, %v7376
    %v7420 = vadd.f32 %v3748, %v7388
    %v7421 = vadd.f32 %v3749, %v7389
    %v7422 = vadd.f32 %v3750, %v7390
    %v7423 = vadd.f32 %v3751, %v7391
    %v7424 = vadd.f32 %v3752, %v7392
    %v7425 = vadd.f32 %v3753, %v7393
    %v7426 = vadd.f32 %v3754, %v7394
    %v7443 = vrot.slane %v7412, 7
    %v7444 = vsel %vm3835, %v7443, %v7411
    %v7445 = vrot.slane %v7413, 6
    %v7446 = vsel %vm3838, %v7445, %v7444
    %v7447 = vrot.slane %v7414, 5
    %v7448 = vsel %vm3841, %v7447, %v7446
    %v7449 = vrot.slane %v7415, 4
    %v7450 = vsel %vm3844, %v7449, %v7448
    %v7451 = vrot.slane %v7416, 3
    %v7452 = vsel %vm3847, %v7451, %v7450
    %v7453 = vrot.slane %v7417, 2
    %v7454 = vsel %vm3850, %v7453, %v7452
    %v7455 = vrot.slane %v7418, 1
    %v7456 = vsel %vm3853, %v7455, %v7454
    %v7457 = vrot.slane %v7420, 7
    %v7458 = vsel %vm3835, %v7457, %v7419
    %v7459 = vrot.slane %v7421, 6
    %v7460 = vsel %vm3838, %v7459, %v7458
    %v7461 = vrot.slane %v7422, 5
    %v7462 = vsel %vm3841, %v7461, %v7460
    %v7463 = vrot.slane %v7423, 4
    %v7464 = vsel %vm3844, %v7463, %v7462
    %v7465 = vrot.slane %v7424, 3
    %v7466 = vsel %vm3847, %v7465, %v7464
    %v7467 = vrot.slane %v7425, 2
    %v7468 = vsel %vm3850, %v7467, %v7466
    %v7469 = vrot.slane %v7426, 1
    %v7470 = vsel %vm3853, %v7469, %v7468
    %7473 = vst.msk [vmem:[#allocation9] sm:$0xff] %vm216, %v7456
    %7474 = vst.msk [vmem:[#allocation9 + $0x8] sm:$0xff] %vm216, %v7470
    // Predicated region
    $region50: #{nnvit_forward.1} parent=1 // pred_check
      _
    $region51: #{nnvit_forward.1} parent=1 // pred_check_branch
      %7476 = sbr.rel (0) target = $region53
    $region52: #{nnvit_forward.1} parent=1 // pred_region
      %s7478 = ssub.s32 256, 256
      %7479 = vsyncadd [#allocation5], %s7478
      %s7480 = sshll.u32 [#allocation9], 4
      %s7481 = int_to_ptr.vmem [resolvable:$true] %s7480
      %7486 = dma.vmem_to_hbm [thread:$0]  %s7481, 256, %s9, [#allocation5], 128, 128, 8
    $region53: #{nnvit_forward.1} parent=1 // pred_fallthru
      _
    // Predicated region
    $region54: #{nnvit_forward.1} parent=1 // pred_check
      _
    $region55: #{nnvit_forward.1} parent=1 // pred_check_branch
      %7488 = sbr.rel (0) target = $region57
    $region56: #{nnvit_forward.1} parent=1 // pred_region
      %7489 = dma.done [#allocation5], 256
    $region57: #{nnvit_forward.1} parent=1 // pred_fallthru
      _
    %7490 = vsyncpa [#allocation4], 1
    %7491 = vsyncpa [#allocation7], 1
    %7492 = vsyncpa [#allocation5], 1

</llo_original>
